<compile_context>
chip_gen: v7x
topology: tpu7x:2x2x1
jax: 0.10.0
libtpu: 0.0.40
codegen_flags: <defaults>
</compile_context>

<pallas_src>
import jax
import jax.numpy as jnp
import numpy as np
from jax.experimental import pallas as pl
from jax.experimental.pallas import tpu as pltpu


def _round_up(x, m):
    return (x + m - 1) // m * m


# ----------------------------------------------------------------------------
# Parameter setup (deterministic, matches the module's __init__ shapes/init scheme;
# weights stored as (fan_in, fan_out), biases as 1-D (fan_out,)).
# ----------------------------------------------------------------------------
def init_params(key, class_num, total):
    keys = iter(jax.random.split(key, 32))
    p = {}

    def linear(name, fan_in, fan_out):
        # xavier_normal_: std = sqrt(2 / (fan_in + fan_out)); bias = 0.
        std = (2.0 / (fan_in + fan_out)) ** 0.5
        p[name + "_w"] = std * jax.random.normal(next(keys), (fan_in, fan_out), jnp.float32)
        p[name + "_b"] = jnp.zeros((fan_out,), jnp.float32)

    linear("o1", class_num, 128); linear("o2", 128, 64)                  # Output_Component
    linear("l1", 1, 128);         linear("l2", 128, 64)                  # Loss_Component
    linear("g1", total, 256);     linear("g2", 256, 128); linear("g3", 128, 64)
    linear("y1", class_num, 128); linear("y2", 128, 64)                  # Label_Component
    linear("e1", 256, 256); linear("e2", 256, 128)                       # Encoder_Component
    linear("e3", 128, 64);  linear("e4", 64, 1)

    p["conv_w"] = jax.random.normal(next(keys), (5, 5), jnp.float32)     # nn.init.normal_
    p["conv_b"] = jnp.zeros((), jnp.float32)                             # bias filled with 0
    return p


# ----------------------------------------------------------------------------
# Fused forward pass
# ----------------------------------------------------------------------------
def whitebox_attack_forward(params, output, loss, gradient, label,
                            *, block_b=128, weight_dtype=jnp.bfloat16):
    f32 = jnp.float32
    B, c_in, H, W = gradient.shape
    assert c_in == 1 and H % 2 == 0 and W % 2 == 0
    C = output.shape[1]
    assert label.shape == (B, C) and loss.shape == (B, 1)
    total = (H // 2) * (W // 2)
    assert params["g1_w"].shape[0] == total
    assert block_b % 8 == 0

    # ---- static geometry of the lane-flattened conv/pool pipeline ------------
    WP = W + 4                       # padded frame width
    PF = (H + 4) * WP                # padded frame length (lanes)
    L1 = (H - 1) * WP + W            # conv anchors needed
    L2 = L1 - WP                     # after vertical pair-max
    L3 = L2 - 1                      # after horizontal pair-max

    # ---- fold eval-mode BatchNorm2d(1) (mean=0, var=1, gamma=1, beta=0) ------
    bn_scale = 1.0 / jnp.sqrt(1.0 + 1e-5)
    conv_pack = jnp.concatenate(
        [(params["conv_w"] * bn_scale).reshape(25),
         (params["conv_b"] * bn_scale).reshape(1)]).astype(f32)           # SMEM (26,)

    # ---- merged / expanded weights (pure layout plumbing, done once in XLA) --
    # Output+Label first layers -> block-diagonal (2C, 256).
    w_ol1 = jnp.zeros((2 * C, 256), f32)
    w_ol1 = w_ol1.at[0:C, 0:128].set(params["o1_w"])
    w_ol1 = w_ol1.at[C:2 * C, 128:256].set(params["y1_w"])
    # Output/Label/Loss second layers -> block-diagonal (384, 192) -> [o_r|y_r|l_r].
    w_oly2 = jnp.zeros((384, 192), f32)
    w_oly2 = w_oly2.at[0:128, 0:64].set(params["o2_w"])
    w_oly2 = w_oly2.at[128:256, 64:128].set(params["y2_w"])
    w_oly2 = w_oly2.at[256:384, 128:192].set(params["l2_w"])
    # Gradient first linear with max-pool even-row/even-col selection + Flatten folded
    # in: row 2*i*WP + 2*j of the expanded weight is row i*(W//2)+j of g1_w, rest zero.
    rows = np.asarray([2 * i * WP + 2 * j for i in range(H // 2) for j in range(W // 2)],
                      dtype=np.int32)
    w_g1e = jnp.zeros((L3, 256), f32).at[rows].set(params["g1_w"])
    # Encoder first layer with rows permuted to the in-kernel concat order
    # [out_r, label_r, loss_r, grad_r]   (torch cat order is (out, loss, grad, label)).
    e1 = params["e1_w"]
    w_e1p = jnp.concatenate([e1[0:64], e1[192:256], e1[64:128], e1[128:192]], axis=0)

    weights = [w_ol1, w_g1e, params["g2_w"], params["g3_w"], w_oly2,
               w_e1p, params["e2_w"], params["e3_w"], params["e4_w"]]
    weights = [w.astype(weight_dtype) for w in weights]        # bf16 on the MXU path

    # ---- pack all bias vectors + the K=1 Loss row weight into ONE small array ----
    segs = [
        ("wl1",    params["l1_w"].reshape(128)),               # stays f32 (VPU path)
        ("b_ol1",  jnp.concatenate([params["o1_b"], params["y1_b"]])),
        ("b_l1",   params["l1_b"]),
        ("b_g1",   params["g1_b"]),
        ("b_g2",   params["g2_b"]),
        ("b_g3",   params["g3_b"]),
        ("b_oly2", jnp.concatenate([params["o2_b"], params["y2_b"], params["l2_b"]])),
        ("b_e1",   params["e1_b"]),
        ("b_e2",   params["e2_b"]),
        ("b_e3",   params["e3_b"]),
        ("b_e4",   params["e4_b"]),
    ]
    off, offs, sizes = 0, {}, {}
    for name, v in segs:
        offs[name] = off
        sizes[name] = int(v.shape[0])
        off += int(v.shape[0])
    sp = jnp.concatenate([v for _, v in segs]).reshape(1, off).astype(f32)

    # ---- batch blocking -------------------------------------------------------
    bb = min(block_b, _round_up(B, 8))
    BP = _round_up(B, bb)

    def pad_b(x):
        return x if BP == B else jnp.pad(x, ((0, BP - B),) + ((0, 0),) * (x.ndim - 1))

    x_ol = pad_b(jnp.concatenate([output, label], axis=1).astype(f32))    # (BP, 2C)
    loss_p = pad_b(loss.astype(f32))                                      # (BP, 1)
    grad_p = pad_b(gradient.reshape(B, H * W).astype(f32))                # (BP, H*W)

    # ---- the fused kernel -----------------------------------------------------
    def kernel(xol_ref, loss_ref, grad_ref, cw_ref, sp_ref,
               w_ol1_ref, w_g1e_ref, w_g2_ref, w_g3_ref, w_oly2_ref,
               w_e1_ref, w_e2_ref, w_e3_ref, w_e4_ref,
               out_ref, pad_s, cat1_s, cat2_s):

        def bias(name):
            o = offs[name]
            return sp_ref[:, o:o + sizes[name]]                           # (1, n) f32

        def dense(x, w_ref, bname, relu):
            y = jnp.dot(x.astype(w_ref.dtype), w_ref[...],
                        preferred_element_type=jnp.float32) + bias(bname)
            return jnp.maximum(y, 0.0) if relu else y

        # -- Gradient component: conv5x5 (+BN fold) + ReLU, 2x2 max-pool --------
        # zero-padded frame built in VMEM (no jnp.pad / HBM round trip).
        pad_s[...] = jnp.zeros_like(pad_s)
        for y in range(H):
            d = (y + 2) * WP + 2
            pad_s[:, d:d + W] = grad_ref[:, y * W:(y + 1) * W]

        acc = jnp.zeros((bb, L1), jnp.float32)
        for ky in range(5):                                    # 25 taps = lane shifts
            for kx in range(5):
                o = ky * WP + kx
                acc = acc + cw_ref[5 * ky + kx] * pad_s[:, o:o + L1]
        conv = jnp.maximum(acc + cw_ref[25], 0.0)              # conv + BN + ReLU
        rmax = jnp.maximum(conv[:, 0:L2], conv[:, WP:WP + L2])  # vertical 2-max
        cmax = jnp.maximum(rmax[:, 0:L3], rmax[:, 1:L3 + 1])    # horizontal 2-max
        # even-row/even-col selection + Flatten are folded into w_g1e's zero rows.
        hg = dense(cmax, w_g1e_ref, "b_g1", True)              # (bb, 256)
        hg = dense(hg, w_g2_ref, "b_g2", True)                 # (bb, 128)
        grad_r = dense(hg, w_g3_ref, "b_g3", False)            # (bb, 64)

        # -- Output+Label (block-diag merged) and Loss (VPU, K=1) first layers --
        h_ol = dense(xol_ref[...], w_ol1_ref, "b_ol1", True)   # (bb, 256) = [o_h | y_h]
        wl1 = sp_ref[:, offs["wl1"]:offs["wl1"] + 128]         # (1, 128) f32
        h_l = jnp.maximum(loss_ref[...] * wl1 + bias("b_l1"), 0.0)       # (bb, 128)
        cat1_s[:, 0:256] = h_ol
        cat1_s[:, 256:384] = h_l
        oly_r = dense(cat1_s[...], w_oly2_ref, "b_oly2", False)  # (bb,192)=[o_r|y_r|l_r]

        # -- Encoder head: cat(o,l,g,y) + Linear(256,256) as a single K=256 dot --
        cat2_s[:, 0:192] = oly_r
        cat2_s[:, 192:256] = grad_r
        h = dense(cat2_s[...], w_e1_ref, "b_e1", True)         # (bb, 256)
        h = dense(h, w_e2_ref, "b_e2", True)                   # (bb, 128)
        h = dense(h, w_e3_ref, "b_e3", True)                   # (bb, 64)
        logit = dense(h, w_e4_ref, "b_e4", False)              # (bb, 1)
        out_ref[...] = jax.nn.sigmoid(logit)

    def batch_spec(d):
        return pl.BlockSpec((bb, d), lambda i: (i, 0))

    def resident_spec(shape):                                  # stays in VMEM across steps
        return pl.BlockSpec(shape, lambda i: (0, 0))

    in_specs = [
        batch_spec(2 * C),                                     # output|label (concat)
        batch_spec(1),                                         # loss
        batch_spec(H * W),                                     # gradient (flattened)
        pl.BlockSpec(memory_space=pltpu.MemorySpace.SMEM),     # conv taps + bias
        resident_spec(sp.shape),                               # packed biases / loss row
    ] + [resident_spec(w.shape) for w in weights]

    grid_spec = pltpu.PrefetchScalarGridSpec(
        num_scalar_prefetch=0,
        grid=(BP // bb,),
        in_specs=in_specs,
        out_specs=pl.BlockSpec((bb, 1), lambda i: (i, 0)),
        scratch_shapes=[
            pltpu.VMEM((bb, PF), jnp.float32),                 # zero-padded conv frame
            pltpu.VMEM((bb, 384), jnp.float32),                # [h_ol | h_loss]
            pltpu.VMEM((bb, 256), jnp.float32),                # [o_r|y_r|l_r|g_r]
        ],
    )

    result = pl.pallas_call(
        kernel,
        out_shape=jax.ShapeDtypeStruct((BP, 1), jnp.float32),
        grid_spec=grid_spec,
        compiler_params=pltpu.CompilerParams(
            dimension_semantics=("parallel",)),                # v7x: batch across both TCs
    )(x_ol, loss_p, grad_p, conv_pack, sp, *weights)

    return result[:B]


# ----------------------------------------------------------------------------
# Pure-JAX reference (same eval-mode semantics, weights rounded like the kernel)
# ----------------------------------------------------------------------------
def reference_forward(params, output, loss, gradient, label, weight_dtype=jnp.float32):
    f32 = jnp.float32
    q = lambda w: w.astype(weight_dtype).astype(f32)

    def dense(x, w, b, relu=False, quant=True):
        y = x @ (q(w) if quant else w) + b
        return jnp.maximum(y, 0.0) if relu else y

    out_r = dense(dense(output, params["o1_w"], params["o1_b"], True),
                  params["o2_w"], params["o2_b"])
    loss_r = dense(dense(loss, params["l1_w"], params["l1_b"], True, quant=False),
                   params["l2_w"], params["l2_b"])
    label_r = dense(dense(label, params["y1_w"], params["y1_b"], True),
                    params["y2_w"], params["y2_b"])

    scale = 1.0 / jnp.sqrt(1.0 + 1e-5)
    conv = jax.lax.conv_general_dilated(
        gradient, params["conv_w"].reshape(1, 1, 5, 5), (1, 1), ((2, 2), (2, 2)),
        dimension_numbers=("NCHW", "OIHW", "NCHW"))
    conv = jnp.maximum((conv + params["conv_b"]) * scale, 0.0)
    B, _, H, W = gradient.shape
    pooled = conv.reshape(B, 1, H // 2, 2, W // 2, 2).max(axis=(3, 5))
    flat = pooled.reshape(B, -1)
    g = dense(flat, params["g1_w"], params["g1_b"], True)
    g = dense(g, params["g2_w"], params["g2_b"], True)
    grad_r = dense(g, params["g3_w"], params["g3_b"])

    x = jnp.concatenate([out_r, loss_r, grad_r, label_r], axis=1)
    x = dense(x, params["e1_w"], params["e1_b"], True)
    x = dense(x, params["e2_w"], params["e2_b"], True)
    x = dense(x, params["e3_w"], params["e3_b"], True)
    x = dense(x, params["e4_w"], params["e4_b"])
    return jax.nn.sigmoid(x)


if __name__ == "__main__":
    class_num, H, W = 10, 16, 16
    total = (H // 2) * (W // 2)          # 64 == nn.Linear(total, 256) input dim
    B = 128                              # batched per perf guidance; grid over batch

    key = jax.random.PRNGKey(0)
    kp, ko, kl, kg, ky = jax.random.split(key, 5)
    params = init_params(kp, class_num, total)

    output = jax.nn.softmax(jax.random.normal(ko, (B, class_num), jnp.float32), axis=-1)
    loss = jnp.abs(jax.random.normal(kl, (B, 1), jnp.float32))
    gradient = jax.random.normal(kg, (B, 1, H, W), jnp.float32)   # NCHW, C=1
    label = jax.nn.one_hot(jax.random.randint(ky, (B,), 0, class_num),
                           class_num, dtype=jnp.float32)

    fwd = jax.jit(whitebox_attack_forward, static_argnames=("block_b", "weight_dtype"))
    result = jax.block_until_ready(fwd(params, output, loss, gradient, label, block_b=64))

    ref = reference_forward(params, output, loss, gradient, label,
                            weight_dtype=jnp.bfloat16)
    assert result.shape == (B, 1)
    assert bool(jnp.all(jnp.isfinite(result)))
    assert bool(jnp.all((result >= 0.0) & (result <= 1.0)))
    assert float(jnp.max(jnp.abs(result - ref))) < 5e-2
    print("KERNEL_OK")
</pallas_src>

<mosaic_0001>
module attributes {stable_mosaic.version = 11 : i64} {
  func.func @kernel(%arg0: i32, %arg1: memref<64x20xf32, #tpu.memory_space<vmem>>, %arg2: memref<64x1xf32, #tpu.memory_space<vmem>>, %arg3: memref<64x256xf32, #tpu.memory_space<vmem>>, %arg4: memref<26xf32, #tpu.memory_space<smem>>, %arg5: memref<1x1601xf32, #tpu.memory_space<vmem>>, %arg6: memref<20x256xbf16, #tpu.memory_space<vmem>>, %arg7: memref<295x256xbf16, #tpu.memory_space<vmem>>, %arg8: memref<256x128xbf16, #tpu.memory_space<vmem>>, %arg9: memref<128x64xbf16, #tpu.memory_space<vmem>>, %arg10: memref<384x192xbf16, #tpu.memory_space<vmem>>, %arg11: memref<256x256xbf16, #tpu.memory_space<vmem>>, %arg12: memref<256x128xbf16, #tpu.memory_space<vmem>>, %arg13: memref<128x64xbf16, #tpu.memory_space<vmem>>, %arg14: memref<64x1xbf16, #tpu.memory_space<vmem>>, %arg15: memref<64x1xf32, #tpu.memory_space<vmem>>, %arg16: memref<64x400xf32, #tpu.memory_space<vmem>>, %arg17: memref<64x384xf32, #tpu.memory_space<vmem>>, %arg18: memref<64x256xf32, #tpu.memory_space<vmem>>) attributes {dimension_semantics = [#tpu.dimension_semantics<parallel>], iteration_bounds = array<i64: 2>, scalar_prefetch = 0 : i64, scratch_operands = 3 : i64, tpu.core_type = #tpu.core_type<tc>, window_params = [{transform_indices = @transform_0, window_bounds = array<i64: 64, 20>}, {transform_indices = @transform_1, window_bounds = array<i64: 64, 1>}, {transform_indices = @transform_2, window_bounds = array<i64: 64, 256>}, {transform_indices = @transform_3, window_bounds = array<i64: 26>}, {pipeline_mode = #tpu.pipeline_mode<synchronous>, transform_indices = @transform_4, window_bounds = array<i64: 1, 1601>}, {pipeline_mode = #tpu.pipeline_mode<synchronous>, transform_indices = @transform_5, window_bounds = array<i64: 20, 256>}, {pipeline_mode = #tpu.pipeline_mode<synchronous>, transform_indices = @transform_6, window_bounds = array<i64: 295, 256>}, {pipeline_mode = #tpu.pipeline_mode<synchronous>, transform_indices = @transform_7, window_bounds = array<i64: 256, 128>}, {pipeline_mode = #tpu.pipeline_mode<synchronous>, transform_indices = @transform_8, window_bounds = array<i64: 128, 64>}, {pipeline_mode = #tpu.pipeline_mode<synchronous>, transform_indices = @transform_9, window_bounds = array<i64: 384, 192>}, {pipeline_mode = #tpu.pipeline_mode<synchronous>, transform_indices = @transform_10, window_bounds = array<i64: 256, 256>}, {pipeline_mode = #tpu.pipeline_mode<synchronous>, transform_indices = @transform_11, window_bounds = array<i64: 256, 128>}, {pipeline_mode = #tpu.pipeline_mode<synchronous>, transform_indices = @transform_12, window_bounds = array<i64: 128, 64>}, {pipeline_mode = #tpu.pipeline_mode<synchronous>, transform_indices = @transform_13, window_bounds = array<i64: 64, 1>}, {transform_indices = @transform_14, window_bounds = array<i64: 64, 1>}]} {
    %cst = arith.constant 0.000000e+00 : f32
    %0 = vector.broadcast %cst : f32 to vector<64x400xf32>
    %c0 = arith.constant 0 : index
    %c0_0 = arith.constant 0 : index
    %1 = vector.load %arg16[%c0, %c0_0] : memref<64x400xf32, #tpu.memory_space<vmem>>, vector<64x400xf32>
    tpu.vector_store %arg16[%c0, %c0_0], %0 {strides = array<i32>} : memref<64x400xf32, #tpu.memory_space<vmem>>, vector<64x400xf32>,
    %c0_1 = arith.constant 0 : index
    %c0_2 = arith.constant 0 : index
    %2 = vector.load %arg3[%c0_1, %c0_2] : memref<64x256xf32, #tpu.memory_space<vmem>>, vector<64x16xf32>
    %c0_3 = arith.constant 0 : index
    %c42 = arith.constant 42 : index
    %3 = vector.load %arg16[%c0_3, %c42] : memref<64x400xf32, #tpu.memory_space<vmem>>, vector<64x16xf32>
    tpu.vector_store %arg16[%c0_3, %c42], %2 {strides = array<i32>} : memref<64x400xf32, #tpu.memory_space<vmem>>, vector<64x16xf32>,
    %c0_4 = arith.constant 0 : index
    %c16 = arith.constant 16 : index
    %4 = vector.load %arg3[%c0_4, %c16] : memref<64x256xf32, #tpu.memory_space<vmem>>, vector<64x16xf32>
    %c0_5 = arith.constant 0 : index
    %c62 = arith.constant 62 : index
    %5 = vector.load %arg16[%c0_5, %c62] : memref<64x400xf32, #tpu.memory_space<vmem>>, vector<64x16xf32>
    tpu.vector_store %arg16[%c0_5, %c62], %4 {strides = array<i32>} : memref<64x400xf32, #tpu.memory_space<vmem>>, vector<64x16xf32>,
    %c0_6 = arith.constant 0 : index
    %c32 = arith.constant 32 : index
    %6 = vector.load %arg3[%c0_6, %c32] : memref<64x256xf32, #tpu.memory_space<vmem>>, vector<64x16xf32>
    %c0_7 = arith.constant 0 : index
    %c82 = arith.constant 82 : index
    %7 = vector.load %arg16[%c0_7, %c82] : memref<64x400xf32, #tpu.memory_space<vmem>>, vector<64x16xf32>
    tpu.vector_store %arg16[%c0_7, %c82], %6 {strides = array<i32>} : memref<64x400xf32, #tpu.memory_space<vmem>>, vector<64x16xf32>,
    %c0_8 = arith.constant 0 : index
    %c48 = arith.constant 48 : index
    %8 = vector.load %arg3[%c0_8, %c48] : memref<64x256xf32, #tpu.memory_space<vmem>>, vector<64x16xf32>
    %c0_9 = arith.constant 0 : index
    %c102 = arith.constant 102 : index
    %9 = vector.load %arg16[%c0_9, %c102] : memref<64x400xf32, #tpu.memory_space<vmem>>, vector<64x16xf32>
    tpu.vector_store %arg16[%c0_9, %c102], %8 {strides = array<i32>} : memref<64x400xf32, #tpu.memory_space<vmem>>, vector<64x16xf32>,
    %c0_10 = arith.constant 0 : index
    %c64 = arith.constant 64 : index
    %10 = vector.load %arg3[%c0_10, %c64] : memref<64x256xf32, #tpu.memory_space<vmem>>, vector<64x16xf32>
    %c0_11 = arith.constant 0 : index
    %c122 = arith.constant 122 : index
    %11 = vector.load %arg16[%c0_11, %c122] : memref<64x400xf32, #tpu.memory_space<vmem>>, vector<64x16xf32>
    tpu.vector_store %arg16[%c0_11, %c122], %10 {strides = array<i32>} : memref<64x400xf32, #tpu.memory_space<vmem>>, vector<64x16xf32>,
    %c0_12 = arith.constant 0 : index
    %c80 = arith.constant 80 : index
    %12 = vector.load %arg3[%c0_12, %c80] : memref<64x256xf32, #tpu.memory_space<vmem>>, vector<64x16xf32>
    %c0_13 = arith.constant 0 : index
    %c142 = arith.constant 142 : index
    %13 = vector.load %arg16[%c0_13, %c142] : memref<64x400xf32, #tpu.memory_space<vmem>>, vector<64x16xf32>
    tpu.vector_store %arg16[%c0_13, %c142], %12 {strides = array<i32>} : memref<64x400xf32, #tpu.memory_space<vmem>>, vector<64x16xf32>,
    %c0_14 = arith.constant 0 : index
    %c96 = arith.constant 96 : index
    %14 = vector.load %arg3[%c0_14, %c96] : memref<64x256xf32, #tpu.memory_space<vmem>>, vector<64x16xf32>
    %c0_15 = arith.constant 0 : index
    %c162 = arith.constant 162 : index
    %15 = vector.load %arg16[%c0_15, %c162] : memref<64x400xf32, #tpu.memory_space<vmem>>, vector<64x16xf32>
    tpu.vector_store %arg16[%c0_15, %c162], %14 {strides = array<i32>} : memref<64x400xf32, #tpu.memory_space<vmem>>, vector<64x16xf32>,
    %c0_16 = arith.constant 0 : index
    %c112 = arith.constant 112 : index
    %16 = vector.load %arg3[%c0_16, %c112] : memref<64x256xf32, #tpu.memory_space<vmem>>, vector<64x16xf32>
    %c0_17 = arith.constant 0 : index
    %c182 = arith.constant 182 : index
    %17 = vector.load %arg16[%c0_17, %c182] : memref<64x400xf32, #tpu.memory_space<vmem>>, vector<64x16xf32>
    tpu.vector_store %arg16[%c0_17, %c182], %16 {strides = array<i32>} : memref<64x400xf32, #tpu.memory_space<vmem>>, vector<64x16xf32>,
    %c0_18 = arith.constant 0 : index
    %c128 = arith.constant 128 : index
    %18 = vector.load %arg3[%c0_18, %c128] : memref<64x256xf32, #tpu.memory_space<vmem>>, vector<64x16xf32>
    %c0_19 = arith.constant 0 : index
    %c202 = arith.constant 202 : index
    %19 = vector.load %arg16[%c0_19, %c202] : memref<64x400xf32, #tpu.memory_space<vmem>>, vector<64x16xf32>
    tpu.vector_store %arg16[%c0_19, %c202], %18 {strides = array<i32>} : memref<64x400xf32, #tpu.memory_space<vmem>>, vector<64x16xf32>,
    %c0_20 = arith.constant 0 : index
    %c144 = arith.constant 144 : index
    %20 = vector.load %arg3[%c0_20, %c144] : memref<64x256xf32, #tpu.memory_space<vmem>>, vector<64x16xf32>
    %c0_21 = arith.constant 0 : index
    %c222 = arith.constant 222 : index
    %21 = vector.load %arg16[%c0_21, %c222] : memref<64x400xf32, #tpu.memory_space<vmem>>, vector<64x16xf32>
    tpu.vector_store %arg16[%c0_21, %c222], %20 {strides = array<i32>} : memref<64x400xf32, #tpu.memory_space<vmem>>, vector<64x16xf32>,
    %c0_22 = arith.constant 0 : index
    %c160 = arith.constant 160 : index
    %22 = vector.load %arg3[%c0_22, %c160] : memref<64x256xf32, #tpu.memory_space<vmem>>, vector<64x16xf32>
    %c0_23 = arith.constant 0 : index
    %c242 = arith.constant 242 : index
    %23 = vector.load %arg16[%c0_23, %c242] : memref<64x400xf32, #tpu.memory_space<vmem>>, vector<64x16xf32>
    tpu.vector_store %arg16[%c0_23, %c242], %22 {strides = array<i32>} : memref<64x400xf32, #tpu.memory_space<vmem>>, vector<64x16xf32>,
    %c0_24 = arith.constant 0 : index
    %c176 = arith.constant 176 : index
    %24 = vector.load %arg3[%c0_24, %c176] : memref<64x256xf32, #tpu.memory_space<vmem>>, vector<64x16xf32>
    %c0_25 = arith.constant 0 : index
    %c262 = arith.constant 262 : index
    %25 = vector.load %arg16[%c0_25, %c262] : memref<64x400xf32, #tpu.memory_space<vmem>>, vector<64x16xf32>
    tpu.vector_store %arg16[%c0_25, %c262], %24 {strides = array<i32>} : memref<64x400xf32, #tpu.memory_space<vmem>>, vector<64x16xf32>,
    %c0_26 = arith.constant 0 : index
    %c192 = arith.constant 192 : index
    %26 = vector.load %arg3[%c0_26, %c192] : memref<64x256xf32, #tpu.memory_space<vmem>>, vector<64x16xf32>
    %c0_27 = arith.constant 0 : index
    %c282 = arith.constant 282 : index
    %27 = vector.load %arg16[%c0_27, %c282] : memref<64x400xf32, #tpu.memory_space<vmem>>, vector<64x16xf32>
    tpu.vector_store %arg16[%c0_27, %c282], %26 {strides = array<i32>} : memref<64x400xf32, #tpu.memory_space<vmem>>, vector<64x16xf32>,
    %c0_28 = arith.constant 0 : index
    %c208 = arith.constant 208 : index
    %28 = vector.load %arg3[%c0_28, %c208] : memref<64x256xf32, #tpu.memory_space<vmem>>, vector<64x16xf32>
    %c0_29 = arith.constant 0 : index
    %c302 = arith.constant 302 : index
    %29 = vector.load %arg16[%c0_29, %c302] : memref<64x400xf32, #tpu.memory_space<vmem>>, vector<64x16xf32>
    tpu.vector_store %arg16[%c0_29, %c302], %28 {strides = array<i32>} : memref<64x400xf32, #tpu.memory_space<vmem>>, vector<64x16xf32>,
    %c0_30 = arith.constant 0 : index
    %c224 = arith.constant 224 : index
    %30 = vector.load %arg3[%c0_30, %c224] : memref<64x256xf32, #tpu.memory_space<vmem>>, vector<64x16xf32>
    %c0_31 = arith.constant 0 : index
    %c322 = arith.constant 322 : index
    %31 = vector.load %arg16[%c0_31, %c322] : memref<64x400xf32, #tpu.memory_space<vmem>>, vector<64x16xf32>
    tpu.vector_store %arg16[%c0_31, %c322], %30 {strides = array<i32>} : memref<64x400xf32, #tpu.memory_space<vmem>>, vector<64x16xf32>,
    %c0_32 = arith.constant 0 : index
    %c240 = arith.constant 240 : index
    %32 = vector.load %arg3[%c0_32, %c240] : memref<64x256xf32, #tpu.memory_space<vmem>>, vector<64x16xf32>
    %c0_33 = arith.constant 0 : index
    %c342 = arith.constant 342 : index
    %33 = vector.load %arg16[%c0_33, %c342] : memref<64x400xf32, #tpu.memory_space<vmem>>, vector<64x16xf32>
    tpu.vector_store %arg16[%c0_33, %c342], %32 {strides = array<i32>} : memref<64x400xf32, #tpu.memory_space<vmem>>, vector<64x16xf32>,
    %cst_34 = arith.constant 0.000000e+00 : f32
    %34 = vector.broadcast %cst_34 : f32 to vector<64x316xf32>
    %c0_35 = arith.constant 0 : index
    %35 = memref.load %arg4[%c0_35] : memref<26xf32, #tpu.memory_space<smem>>
    %c0_36 = arith.constant 0 : index
    %c0_37 = arith.constant 0 : index
    %36 = vector.load %arg16[%c0_36, %c0_37] : memref<64x400xf32, #tpu.memory_space<vmem>>, vector<64x316xf32>
    %37 = vector.broadcast %35 : f32 to vector<64x316xf32>
    %38 = arith.mulf %37, %36 : vector<64x316xf32>
    %39 = arith.addf %34, %38 : vector<64x316xf32>
    %c1 = arith.constant 1 : index
    %40 = memref.load %arg4[%c1] : memref<26xf32, #tpu.memory_space<smem>>
    %c0_38 = arith.constant 0 : index
    %c1_39 = arith.constant 1 : index
    %41 = vector.load %arg16[%c0_38, %c1_39] : memref<64x400xf32, #tpu.memory_space<vmem>>, vector<64x316xf32>
    %42 = vector.broadcast %40 : f32 to vector<64x316xf32>
    %43 = arith.mulf %42, %41 : vector<64x316xf32>
    %44 = arith.addf %39, %43 : vector<64x316xf32>
    %c2 = arith.constant 2 : index
    %45 = memref.load %arg4[%c2] : memref<26xf32, #tpu.memory_space<smem>>
    %c0_40 = arith.constant 0 : index
    %c2_41 = arith.constant 2 : index
    %46 = vector.load %arg16[%c0_40, %c2_41] : memref<64x400xf32, #tpu.memory_space<vmem>>, vector<64x316xf32>
    %47 = vector.broadcast %45 : f32 to vector<64x316xf32>
    %48 = arith.mulf %47, %46 : vector<64x316xf32>
    %49 = arith.addf %44, %48 : vector<64x316xf32>
    %c3 = arith.constant 3 : index
    %50 = memref.load %arg4[%c3] : memref<26xf32, #tpu.memory_space<smem>>
    %c0_42 = arith.constant 0 : index
    %c3_43 = arith.constant 3 : index
    %51 = vector.load %arg16[%c0_42, %c3_43] : memref<64x400xf32, #tpu.memory_space<vmem>>, vector<64x316xf32>
    %52 = vector.broadcast %50 : f32 to vector<64x316xf32>
    %53 = arith.mulf %52, %51 : vector<64x316xf32>
    %54 = arith.addf %49, %53 : vector<64x316xf32>
    %c4 = arith.constant 4 : index
    %55 = memref.load %arg4[%c4] : memref<26xf32, #tpu.memory_space<smem>>
    %c0_44 = arith.constant 0 : index
    %c4_45 = arith.constant 4 : index
    %56 = vector.load %arg16[%c0_44, %c4_45] : memref<64x400xf32, #tpu.memory_space<vmem>>, vector<64x316xf32>
    %57 = vector.broadcast %55 : f32 to vector<64x316xf32>
    %58 = arith.mulf %57, %56 : vector<64x316xf32>
    %59 = arith.addf %54, %58 : vector<64x316xf32>
    %c5 = arith.constant 5 : index
    %60 = memref.load %arg4[%c5] : memref<26xf32, #tpu.memory_space<smem>>
    %c0_46 = arith.constant 0 : index
    %c20 = arith.constant 20 : index
    %61 = vector.load %arg16[%c0_46, %c20] : memref<64x400xf32, #tpu.memory_space<vmem>>, vector<64x316xf32>
    %62 = vector.broadcast %60 : f32 to vector<64x316xf32>
    %63 = arith.mulf %62, %61 : vector<64x316xf32>
    %64 = arith.addf %59, %63 : vector<64x316xf32>
    %c6 = arith.constant 6 : index
    %65 = memref.load %arg4[%c6] : memref<26xf32, #tpu.memory_space<smem>>
    %c0_47 = arith.constant 0 : index
    %c21 = arith.constant 21 : index
    %66 = vector.load %arg16[%c0_47, %c21] : memref<64x400xf32, #tpu.memory_space<vmem>>, vector<64x316xf32>
    %67 = vector.broadcast %65 : f32 to vector<64x316xf32>
    %68 = arith.mulf %67, %66 : vector<64x316xf32>
    %69 = arith.addf %64, %68 : vector<64x316xf32>
    %c7 = arith.constant 7 : index
    %70 = memref.load %arg4[%c7] : memref<26xf32, #tpu.memory_space<smem>>
    %c0_48 = arith.constant 0 : index
    %c22 = arith.constant 22 : index
    %71 = vector.load %arg16[%c0_48, %c22] : memref<64x400xf32, #tpu.memory_space<vmem>>, vector<64x316xf32>
    %72 = vector.broadcast %70 : f32 to vector<64x316xf32>
    %73 = arith.mulf %72, %71 : vector<64x316xf32>
    %74 = arith.addf %69, %73 : vector<64x316xf32>
    %c8 = arith.constant 8 : index
    %75 = memref.load %arg4[%c8] : memref<26xf32, #tpu.memory_space<smem>>
    %c0_49 = arith.constant 0 : index
    %c23 = arith.constant 23 : index
    %76 = vector.load %arg16[%c0_49, %c23] : memref<64x400xf32, #tpu.memory_space<vmem>>, vector<64x316xf32>
    %77 = vector.broadcast %75 : f32 to vector<64x316xf32>
    %78 = arith.mulf %77, %76 : vector<64x316xf32>
    %79 = arith.addf %74, %78 : vector<64x316xf32>
    %c9 = arith.constant 9 : index
    %80 = memref.load %arg4[%c9] : memref<26xf32, #tpu.memory_space<smem>>
    %c0_50 = arith.constant 0 : index
    %c24 = arith.constant 24 : index
    %81 = vector.load %arg16[%c0_50, %c24] : memref<64x400xf32, #tpu.memory_space<vmem>>, vector<64x316xf32>
    %82 = vector.broadcast %80 : f32 to vector<64x316xf32>
    %83 = arith.mulf %82, %81 : vector<64x316xf32>
    %84 = arith.addf %79, %83 : vector<64x316xf32>
    %c10 = arith.constant 10 : index
    %85 = memref.load %arg4[%c10] : memref<26xf32, #tpu.memory_space<smem>>
    %c0_51 = arith.constant 0 : index
    %c40 = arith.constant 40 : index
    %86 = vector.load %arg16[%c0_51, %c40] : memref<64x400xf32, #tpu.memory_space<vmem>>, vector<64x316xf32>
    %87 = vector.broadcast %85 : f32 to vector<64x316xf32>
    %88 = arith.mulf %87, %86 : vector<64x316xf32>
    %89 = arith.addf %84, %88 : vector<64x316xf32>
    %c11 = arith.constant 11 : index
    %90 = memref.load %arg4[%c11] : memref<26xf32, #tpu.memory_space<smem>>
    %c0_52 = arith.constant 0 : index
    %c41 = arith.constant 41 : index
    %91 = vector.load %arg16[%c0_52, %c41] : memref<64x400xf32, #tpu.memory_space<vmem>>, vector<64x316xf32>
    %92 = vector.broadcast %90 : f32 to vector<64x316xf32>
    %93 = arith.mulf %92, %91 : vector<64x316xf32>
    %94 = arith.addf %89, %93 : vector<64x316xf32>
    %c12 = arith.constant 12 : index
    %95 = memref.load %arg4[%c12] : memref<26xf32, #tpu.memory_space<smem>>
    %c0_53 = arith.constant 0 : index
    %c42_54 = arith.constant 42 : index
    %96 = vector.load %arg16[%c0_53, %c42_54] : memref<64x400xf32, #tpu.memory_space<vmem>>, vector<64x316xf32>
    %97 = vector.broadcast %95 : f32 to vector<64x316xf32>
    %98 = arith.mulf %97, %96 : vector<64x316xf32>
    %99 = arith.addf %94, %98 : vector<64x316xf32>
    %c13 = arith.constant 13 : index
    %100 = memref.load %arg4[%c13] : memref<26xf32, #tpu.memory_space<smem>>
    %c0_55 = arith.constant 0 : index
    %c43 = arith.constant 43 : index
    %101 = vector.load %arg16[%c0_55, %c43] : memref<64x400xf32, #tpu.memory_space<vmem>>, vector<64x316xf32>
    %102 = vector.broadcast %100 : f32 to vector<64x316xf32>
    %103 = arith.mulf %102, %101 : vector<64x316xf32>
    %104 = arith.addf %99, %103 : vector<64x316xf32>
    %c14 = arith.constant 14 : index
    %105 = memref.load %arg4[%c14] : memref<26xf32, #tpu.memory_space<smem>>
    %c0_56 = arith.constant 0 : index
    %c44 = arith.constant 44 : index
    %106 = vector.load %arg16[%c0_56, %c44] : memref<64x400xf32, #tpu.memory_space<vmem>>, vector<64x316xf32>
    %107 = vector.broadcast %105 : f32 to vector<64x316xf32>
    %108 = arith.mulf %107, %106 : vector<64x316xf32>
    %109 = arith.addf %104, %108 : vector<64x316xf32>
    %c15 = arith.constant 15 : index
    %110 = memref.load %arg4[%c15] : memref<26xf32, #tpu.memory_space<smem>>
    %c0_57 = arith.constant 0 : index
    %c60 = arith.constant 60 : index
    %111 = vector.load %arg16[%c0_57, %c60] : memref<64x400xf32, #tpu.memory_space<vmem>>, vector<64x316xf32>
    %112 = vector.broadcast %110 : f32 to vector<64x316xf32>
    %113 = arith.mulf %112, %111 : vector<64x316xf32>
    %114 = arith.addf %109, %113 : vector<64x316xf32>
    %c16_58 = arith.constant 16 : index
    %115 = memref.load %arg4[%c16_58] : memref<26xf32, #tpu.memory_space<smem>>
    %c0_59 = arith.constant 0 : index
    %c61 = arith.constant 61 : index
    %116 = vector.load %arg16[%c0_59, %c61] : memref<64x400xf32, #tpu.memory_space<vmem>>, vector<64x316xf32>
    %117 = vector.broadcast %115 : f32 to vector<64x316xf32>
    %118 = arith.mulf %117, %116 : vector<64x316xf32>
    %119 = arith.addf %114, %118 : vector<64x316xf32>
    %c17 = arith.constant 17 : index
    %120 = memref.load %arg4[%c17] : memref<26xf32, #tpu.memory_space<smem>>
    %c0_60 = arith.constant 0 : index
    %c62_61 = arith.constant 62 : index
    %121 = vector.load %arg16[%c0_60, %c62_61] : memref<64x400xf32, #tpu.memory_space<vmem>>, vector<64x316xf32>
    %122 = vector.broadcast %120 : f32 to vector<64x316xf32>
    %123 = arith.mulf %122, %121 : vector<64x316xf32>
    %124 = arith.addf %119, %123 : vector<64x316xf32>
    %c18 = arith.constant 18 : index
    %125 = memref.load %arg4[%c18] : memref<26xf32, #tpu.memory_space<smem>>
    %c0_62 = arith.constant 0 : index
    %c63 = arith.constant 63 : index
    %126 = vector.load %arg16[%c0_62, %c63] : memref<64x400xf32, #tpu.memory_space<vmem>>, vector<64x316xf32>
    %127 = vector.broadcast %125 : f32 to vector<64x316xf32>
    %128 = arith.mulf %127, %126 : vector<64x316xf32>
    %129 = arith.addf %124, %128 : vector<64x316xf32>
    %c19 = arith.constant 19 : index
    %130 = memref.load %arg4[%c19] : memref<26xf32, #tpu.memory_space<smem>>
    %c0_63 = arith.constant 0 : index
    %c64_64 = arith.constant 64 : index
    %131 = vector.load %arg16[%c0_63, %c64_64] : memref<64x400xf32, #tpu.memory_space<vmem>>, vector<64x316xf32>
    %132 = vector.broadcast %130 : f32 to vector<64x316xf32>
    %133 = arith.mulf %132, %131 : vector<64x316xf32>
    %134 = arith.addf %129, %133 : vector<64x316xf32>
    %c20_65 = arith.constant 20 : index
    %135 = memref.load %arg4[%c20_65] : memref<26xf32, #tpu.memory_space<smem>>
    %c0_66 = arith.constant 0 : index
    %c80_67 = arith.constant 80 : index
    %136 = vector.load %arg16[%c0_66, %c80_67] : memref<64x400xf32, #tpu.memory_space<vmem>>, vector<64x316xf32>
    %137 = vector.broadcast %135 : f32 to vector<64x316xf32>
    %138 = arith.mulf %137, %136 : vector<64x316xf32>
    %139 = arith.addf %134, %138 : vector<64x316xf32>
    %c21_68 = arith.constant 21 : index
    %140 = memref.load %arg4[%c21_68] : memref<26xf32, #tpu.memory_space<smem>>
    %c0_69 = arith.constant 0 : index
    %c81 = arith.constant 81 : index
    %141 = vector.load %arg16[%c0_69, %c81] : memref<64x400xf32, #tpu.memory_space<vmem>>, vector<64x316xf32>
    %142 = vector.broadcast %140 : f32 to vector<64x316xf32>
    %143 = arith.mulf %142, %141 : vector<64x316xf32>
    %144 = arith.addf %139, %143 : vector<64x316xf32>
    %c22_70 = arith.constant 22 : index
    %145 = memref.load %arg4[%c22_70] : memref<26xf32, #tpu.memory_space<smem>>
    %c0_71 = arith.constant 0 : index
    %c82_72 = arith.constant 82 : index
    %146 = vector.load %arg16[%c0_71, %c82_72] : memref<64x400xf32, #tpu.memory_space<vmem>>, vector<64x316xf32>
    %147 = vector.broadcast %145 : f32 to vector<64x316xf32>
    %148 = arith.mulf %147, %146 : vector<64x316xf32>
    %149 = arith.addf %144, %148 : vector<64x316xf32>
    %c23_73 = arith.constant 23 : index
    %150 = memref.load %arg4[%c23_73] : memref<26xf32, #tpu.memory_space<smem>>
    %c0_74 = arith.constant 0 : index
    %c83 = arith.constant 83 : index
    %151 = vector.load %arg16[%c0_74, %c83] : memref<64x400xf32, #tpu.memory_space<vmem>>, vector<64x316xf32>
    %152 = vector.broadcast %150 : f32 to vector<64x316xf32>
    %153 = arith.mulf %152, %151 : vector<64x316xf32>
    %154 = arith.addf %149, %153 : vector<64x316xf32>
    %c24_75 = arith.constant 24 : index
    %155 = memref.load %arg4[%c24_75] : memref<26xf32, #tpu.memory_space<smem>>
    %c0_76 = arith.constant 0 : index
    %c84 = arith.constant 84 : index
    %156 = vector.load %arg16[%c0_76, %c84] : memref<64x400xf32, #tpu.memory_space<vmem>>, vector<64x316xf32>
    %157 = vector.broadcast %155 : f32 to vector<64x316xf32>
    %158 = arith.mulf %157, %156 : vector<64x316xf32>
    %159 = arith.addf %154, %158 : vector<64x316xf32>
    %c25 = arith.constant 25 : index
    %160 = memref.load %arg4[%c25] : memref<26xf32, #tpu.memory_space<smem>>
    %161 = vector.broadcast %160 : f32 to vector<64x316xf32>
    %162 = arith.addf %159, %161 : vector<64x316xf32>
    %cst_77 = arith.constant 0.000000e+00 : f32
    %163 = vector.broadcast %cst_77 : f32 to vector<64x316xf32>
    %164 = arith.maximumf %162, %163 : vector<64x316xf32>
    %165 = vector.extract_strided_slice %164 {offsets = [0, 0], sizes = [64, 296], strides = [1, 1]} : vector<64x316xf32> to vector<64x296xf32>
    %166 = vector.extract_strided_slice %164 {offsets = [0, 20], sizes = [64, 296], strides = [1, 1]} : vector<64x316xf32> to vector<64x296xf32>
    %167 = arith.maximumf %165, %166 : vector<64x296xf32>
    %168 = vector.extract_strided_slice %167 {offsets = [0, 0], sizes = [64, 295], strides = [1, 1]} : vector<64x296xf32> to vector<64x295xf32>
    %169 = vector.extract_strided_slice %167 {offsets = [0, 1], sizes = [64, 295], strides = [1, 1]} : vector<64x296xf32> to vector<64x295xf32>
    %170 = arith.maximumf %168, %169 : vector<64x295xf32>
    %171 = arith.truncf %170 : vector<64x295xf32> to vector<64x295xbf16>
    %c0_78 = arith.constant 0 : index
    %c0_79 = arith.constant 0 : index
    %172 = vector.load %arg7[%c0_78, %c0_79] : memref<295x256xbf16, #tpu.memory_space<vmem>>, vector<295x256xbf16>
    %cst_80 = arith.constant dense<0.000000e+00> : vector<64x256xf32>
    %173 = tpu.matmul %171, %172, %cst_80 {dimension_numbers = #tpu.dot_dimension_numbers<[1], [0], [0], [1], [0, 0, 1, 1], [], []>} : vector<64x295xbf16>, vector<295x256xbf16>, vector<64x256xf32> -> vector<64x256xf32>
    %c0_81 = arith.constant 0 : index
    %c512 = arith.constant 512 : index
    %174 = vector.load %arg5[%c0_81, %c512] : memref<1x1601xf32, #tpu.memory_space<vmem>>, vector<1x256xf32>
    %175 = vector.broadcast %174 : vector<1x256xf32> to vector<64x256xf32>
    %176 = arith.addf %173, %175 : vector<64x256xf32>
    %cst_82 = arith.constant 0.000000e+00 : f32
    %177 = vector.broadcast %cst_82 : f32 to vector<64x256xf32>
    %178 = arith.maximumf %176, %177 : vector<64x256xf32>
    %179 = arith.truncf %178 : vector<64x256xf32> to vector<64x256xbf16>
    %c0_83 = arith.constant 0 : index
    %c0_84 = arith.constant 0 : index
    %180 = vector.load %arg8[%c0_83, %c0_84] : memref<256x128xbf16, #tpu.memory_space<vmem>>, vector<256x128xbf16>
    %cst_85 = arith.constant dense<0.000000e+00> : vector<64x128xf32>
    %181 = tpu.matmul %179, %180, %cst_85 {dimension_numbers = #tpu.dot_dimension_numbers<[1], [0], [0], [1], [0, 0, 1, 1], [], []>} : vector<64x256xbf16>, vector<256x128xbf16>, vector<64x128xf32> -> vector<64x128xf32>
    %c0_86 = arith.constant 0 : index
    %c768 = arith.constant 768 : index
    %182 = vector.load %arg5[%c0_86, %c768] : memref<1x1601xf32, #tpu.memory_space<vmem>>, vector<1x128xf32>
    %183 = vector.broadcast %182 : vector<1x128xf32> to vector<64x128xf32>
    %184 = arith.addf %181, %183 : vector<64x128xf32>
    %cst_87 = arith.constant 0.000000e+00 : f32
    %185 = vector.broadcast %cst_87 : f32 to vector<64x128xf32>
    %186 = arith.maximumf %184, %185 : vector<64x128xf32>
    %187 = arith.truncf %186 : vector<64x128xf32> to vector<64x128xbf16>
    %c0_88 = arith.constant 0 : index
    %c0_89 = arith.constant 0 : index
    %188 = vector.load %arg9[%c0_88, %c0_89] : memref<128x64xbf16, #tpu.memory_space<vmem>>, vector<128x64xbf16>
    %cst_90 = arith.constant dense<0.000000e+00> : vector<64x64xf32>
    %189 = tpu.matmul %187, %188, %cst_90 {dimension_numbers = #tpu.dot_dimension_numbers<[1], [0], [0], [1], [0, 0, 1, 1], [], []>} : vector<64x128xbf16>, vector<128x64xbf16>, vector<64x64xf32> -> vector<64x64xf32>
    %c0_91 = arith.constant 0 : index
    %c896 = arith.constant 896 : index
    %190 = vector.load %arg5[%c0_91, %c896] : memref<1x1601xf32, #tpu.memory_space<vmem>>, vector<1x64xf32>
    %191 = vector.broadcast %190 : vector<1x64xf32> to vector<64x64xf32>
    %192 = arith.addf %189, %191 : vector<64x64xf32>
    %c0_92 = arith.constant 0 : index
    %c0_93 = arith.constant 0 : index
    %193 = vector.load %arg1[%c0_92, %c0_93] : memref<64x20xf32, #tpu.memory_space<vmem>>, vector<64x20xf32>
    %194 = arith.truncf %193 : vector<64x20xf32> to vector<64x20xbf16>
    %c0_94 = arith.constant 0 : index
    %c0_95 = arith.constant 0 : index
    %195 = vector.load %arg6[%c0_94, %c0_95] : memref<20x256xbf16, #tpu.memory_space<vmem>>, vector<20x256xbf16>
    %cst_96 = arith.constant dense<0.000000e+00> : vector<64x256xf32>
    %196 = tpu.matmul %194, %195, %cst_96 {dimension_numbers = #tpu.dot_dimension_numbers<[1], [0], [0], [1], [0, 0, 1, 1], [], []>} : vector<64x20xbf16>, vector<20x256xbf16>, vector<64x256xf32> -> vector<64x256xf32>
    %c0_97 = arith.constant 0 : index
    %c128_98 = arith.constant 128 : index
    %197 = vector.load %arg5[%c0_97, %c128_98] : memref<1x1601xf32, #tpu.memory_space<vmem>>, vector<1x256xf32>
    %198 = vector.broadcast %197 : vector<1x256xf32> to vector<64x256xf32>
    %199 = arith.addf %196, %198 : vector<64x256xf32>
    %cst_99 = arith.constant 0.000000e+00 : f32
    %200 = vector.broadcast %cst_99 : f32 to vector<64x256xf32>
    %201 = arith.maximumf %199, %200 : vector<64x256xf32>
    %c0_100 = arith.constant 0 : index
    %c0_101 = arith.constant 0 : index
    %202 = vector.load %arg5[%c0_100, %c0_101] : memref<1x1601xf32, #tpu.memory_space<vmem>>, vector<1x128xf32>
    %c0_102 = arith.constant 0 : index
    %c0_103 = arith.constant 0 : index
    %203 = vector.load %arg2[%c0_102, %c0_103] : memref<64x1xf32, #tpu.memory_space<vmem>>, vector<64x1xf32>
    %204 = vector.broadcast %203 : vector<64x1xf32> to vector<64x128xf32>
    %205 = vector.broadcast %202 : vector<1x128xf32> to vector<64x128xf32>
    %206 = arith.mulf %204, %205 : vector<64x128xf32>
    %c0_104 = arith.constant 0 : index
    %c384 = arith.constant 384 : index
    %207 = vector.load %arg5[%c0_104, %c384] : memref<1x1601xf32, #tpu.memory_space<vmem>>, vector<1x128xf32>
    %208 = vector.broadcast %207 : vector<1x128xf32> to vector<64x128xf32>
    %209 = arith.addf %206, %208 : vector<64x128xf32>
    %cst_105 = arith.constant 0.000000e+00 : f32
    %210 = vector.broadcast %cst_105 : f32 to vector<64x128xf32>
    %211 = arith.maximumf %209, %210 : vector<64x128xf32>
    %c0_106 = arith.constant 0 : index
    %c0_107 = arith.constant 0 : index
    %212 = vector.load %arg17[%c0_106, %c0_107] : memref<64x384xf32, #tpu.memory_space<vmem>>, vector<64x256xf32>
    tpu.vector_store %arg17[%c0_106, %c0_107], %201 {strides = array<i32>} : memref<64x384xf32, #tpu.memory_space<vmem>>, vector<64x256xf32>,
    %c0_108 = arith.constant 0 : index
    %c256 = arith.constant 256 : index
    %213 = vector.load %arg17[%c0_108, %c256] : memref<64x384xf32, #tpu.memory_space<vmem>>, vector<64x128xf32>
    tpu.vector_store %arg17[%c0_108, %c256], %211 {strides = array<i32>} : memref<64x384xf32, #tpu.memory_space<vmem>>, vector<64x128xf32>,
    %c0_109 = arith.constant 0 : index
    %c0_110 = arith.constant 0 : index
    %214 = vector.load %arg17[%c0_109, %c0_110] : memref<64x384xf32, #tpu.memory_space<vmem>>, vector<64x384xf32>
    %215 = arith.truncf %214 : vector<64x384xf32> to vector<64x384xbf16>
    %c0_111 = arith.constant 0 : index
    %c0_112 = arith.constant 0 : index
    %216 = vector.load %arg10[%c0_111, %c0_112] : memref<384x192xbf16, #tpu.memory_space<vmem>>, vector<384x192xbf16>
    %cst_113 = arith.constant dense<0.000000e+00> : vector<64x192xf32>
    %217 = tpu.matmul %215, %216, %cst_113 {dimension_numbers = #tpu.dot_dimension_numbers<[1], [0], [0], [1], [0, 0, 1, 1], [], []>} : vector<64x384xbf16>, vector<384x192xbf16>, vector<64x192xf32> -> vector<64x192xf32>
    %c0_114 = arith.constant 0 : index
    %c960 = arith.constant 960 : index
    %218 = vector.load %arg5[%c0_114, %c960] : memref<1x1601xf32, #tpu.memory_space<vmem>>, vector<1x192xf32>
    %219 = vector.broadcast %218 : vector<1x192xf32> to vector<64x192xf32>
    %220 = arith.addf %217, %219 : vector<64x192xf32>
    %c0_115 = arith.constant 0 : index
    %c0_116 = arith.constant 0 : index
    %221 = vector.load %arg18[%c0_115, %c0_116] : memref<64x256xf32, #tpu.memory_space<vmem>>, vector<64x192xf32>
    tpu.vector_store %arg18[%c0_115, %c0_116], %220 {strides = array<i32>} : memref<64x256xf32, #tpu.memory_space<vmem>>, vector<64x192xf32>,
    %c0_117 = arith.constant 0 : index
    %c192_118 = arith.constant 192 : index
    %222 = vector.load %arg18[%c0_117, %c192_118] : memref<64x256xf32, #tpu.memory_space<vmem>>, vector<64x64xf32>
    tpu.vector_store %arg18[%c0_117, %c192_118], %192 {strides = array<i32>} : memref<64x256xf32, #tpu.memory_space<vmem>>, vector<64x64xf32>,
    %c0_119 = arith.constant 0 : index
    %c0_120 = arith.constant 0 : index
    %223 = vector.load %arg18[%c0_119, %c0_120] : memref<64x256xf32, #tpu.memory_space<vmem>>, vector<64x256xf32>
    %224 = arith.truncf %223 : vector<64x256xf32> to vector<64x256xbf16>
    %c0_121 = arith.constant 0 : index
    %c0_122 = arith.constant 0 : index
    %225 = vector.load %arg11[%c0_121, %c0_122] : memref<256x256xbf16, #tpu.memory_space<vmem>>, vector<256x256xbf16>
    %cst_123 = arith.constant dense<0.000000e+00> : vector<64x256xf32>
    %226 = tpu.matmul %224, %225, %cst_123 {dimension_numbers = #tpu.dot_dimension_numbers<[1], [0], [0], [1], [0, 0, 1, 1], [], []>} : vector<64x256xbf16>, vector<256x256xbf16>, vector<64x256xf32> -> vector<64x256xf32>
    %c0_124 = arith.constant 0 : index
    %c1152 = arith.constant 1152 : index
    %227 = vector.load %arg5[%c0_124, %c1152] : memref<1x1601xf32, #tpu.memory_space<vmem>>, vector<1x256xf32>
    %228 = vector.broadcast %227 : vector<1x256xf32> to vector<64x256xf32>
    %229 = arith.addf %226, %228 : vector<64x256xf32>
    %cst_125 = arith.constant 0.000000e+00 : f32
    %230 = vector.broadcast %cst_125 : f32 to vector<64x256xf32>
    %231 = arith.maximumf %229, %230 : vector<64x256xf32>
    %232 = arith.truncf %231 : vector<64x256xf32> to vector<64x256xbf16>
    %c0_126 = arith.constant 0 : index
    %c0_127 = arith.constant 0 : index
    %233 = vector.load %arg12[%c0_126, %c0_127] : memref<256x128xbf16, #tpu.memory_space<vmem>>, vector<256x128xbf16>
    %cst_128 = arith.constant dense<0.000000e+00> : vector<64x128xf32>
    %234 = tpu.matmul %232, %233, %cst_128 {dimension_numbers = #tpu.dot_dimension_numbers<[1], [0], [0], [1], [0, 0, 1, 1], [], []>} : vector<64x256xbf16>, vector<256x128xbf16>, vector<64x128xf32> -> vector<64x128xf32>
    %c0_129 = arith.constant 0 : index
    %c1408 = arith.constant 1408 : index
    %235 = vector.load %arg5[%c0_129, %c1408] : memref<1x1601xf32, #tpu.memory_space<vmem>>, vector<1x128xf32>
    %236 = vector.broadcast %235 : vector<1x128xf32> to vector<64x128xf32>
    %237 = arith.addf %234, %236 : vector<64x128xf32>
    %cst_130 = arith.constant 0.000000e+00 : f32
    %238 = vector.broadcast %cst_130 : f32 to vector<64x128xf32>
    %239 = arith.maximumf %237, %238 : vector<64x128xf32>
    %240 = arith.truncf %239 : vector<64x128xf32> to vector<64x128xbf16>
    %c0_131 = arith.constant 0 : index
    %c0_132 = arith.constant 0 : index
    %241 = vector.load %arg13[%c0_131, %c0_132] : memref<128x64xbf16, #tpu.memory_space<vmem>>, vector<128x64xbf16>
    %cst_133 = arith.constant dense<0.000000e+00> : vector<64x64xf32>
    %242 = tpu.matmul %240, %241, %cst_133 {dimension_numbers = #tpu.dot_dimension_numbers<[1], [0], [0], [1], [0, 0, 1, 1], [], []>} : vector<64x128xbf16>, vector<128x64xbf16>, vector<64x64xf32> -> vector<64x64xf32>
    %c0_134 = arith.constant 0 : index
    %c1536 = arith.constant 1536 : index
    %243 = vector.load %arg5[%c0_134, %c1536] : memref<1x1601xf32, #tpu.memory_space<vmem>>, vector<1x64xf32>
    %244 = vector.broadcast %243 : vector<1x64xf32> to vector<64x64xf32>
    %245 = arith.addf %242, %244 : vector<64x64xf32>
    %cst_135 = arith.constant 0.000000e+00 : f32
    %246 = vector.broadcast %cst_135 : f32 to vector<64x64xf32>
    %247 = arith.maximumf %245, %246 : vector<64x64xf32>
    %248 = arith.truncf %247 : vector<64x64xf32> to vector<64x64xbf16>
    %c0_136 = arith.constant 0 : index
    %c0_137 = arith.constant 0 : index
    %249 = vector.load %arg14[%c0_136, %c0_137] : memref<64x1xbf16, #tpu.memory_space<vmem>>, vector<64x1xbf16>
    %cst_138 = arith.constant dense<0.000000e+00> : vector<64x1xf32>
    %250 = tpu.matmul %248, %249, %cst_138 {dimension_numbers = #tpu.dot_dimension_numbers<[1], [0], [0], [1], [0, 0, 1, 1], [], []>} : vector<64x64xbf16>, vector<64x1xbf16>, vector<64x1xf32> -> vector<64x1xf32>
    %c0_139 = arith.constant 0 : index
    %c1600 = arith.constant 1600 : index
    %251 = vector.load %arg5[%c0_139, %c1600] : memref<1x1601xf32, #tpu.memory_space<vmem>>, vector<1x1xf32>
    %252 = vector.broadcast %251 : vector<1x1xf32> to vector<64x1xf32>
    %253 = arith.addf %250, %252 : vector<64x1xf32>
    %254 = arith.negf %253 : vector<64x1xf32>
    %255 = math.exp %254 : vector<64x1xf32>
    %cst_140 = arith.constant 1.000000e+00 : f32
    %256 = vector.broadcast %cst_140 : f32 to vector<64x1xf32>
    %257 = arith.addf %256, %255 : vector<64x1xf32>
    %258 = arith.divf %256, %257 : vector<64x1xf32>
    %c0_141 = arith.constant 0 : index
    %c0_142 = arith.constant 0 : index
    %259 = vector.load %arg15[%c0_141, %c0_142] : memref<64x1xf32, #tpu.memory_space<vmem>>, vector<64x1xf32>
    tpu.vector_store %arg15[%c0_141, %c0_142], %258 {strides = array<i32>} : memref<64x1xf32, #tpu.memory_space<vmem>>, vector<64x1xf32>,
    return
  }
  func.func @transform_0(%arg0: i32) -> (i32, i32) {
    %c0_i32 = arith.constant 0 : i32
    %c0_i32_0 = arith.constant 0 : i32
    return %arg0, %c0_i32 : i32, i32
  }
  func.func @transform_1(%arg0: i32) -> (i32, i32) {
    %c0_i32 = arith.constant 0 : i32
    %c0_i32_0 = arith.constant 0 : i32
    return %arg0, %c0_i32 : i32, i32
  }
  func.func @transform_2(%arg0: i32) -> (i32, i32) {
    %c0_i32 = arith.constant 0 : i32
    %c0_i32_0 = arith.constant 0 : i32
    return %arg0, %c0_i32 : i32, i32
  }
  func.func @transform_3(%arg0: i32) -> i32 {
    %c0_i32 = arith.constant 0 : i32
    %c0_i32_0 = arith.constant 0 : i32
    return %c0_i32 : i32
  }
  func.func @transform_4(%arg0: i32) -> (i32, i32) {
    %c0_i32 = arith.constant 0 : i32
    %c0_i32_0 = arith.constant 0 : i32
    %c0_i32_1 = arith.constant 0 : i32
    return %c0_i32, %c0_i32_0 : i32, i32
  }
  func.func @transform_5(%arg0: i32) -> (i32, i32) {
    %c0_i32 = arith.constant 0 : i32
    %c0_i32_0 = arith.constant 0 : i32
    %c0_i32_1 = arith.constant 0 : i32
    return %c0_i32, %c0_i32_0 : i32, i32
  }
  func.func @transform_6(%arg0: i32) -> (i32, i32) {
    %c0_i32 = arith.constant 0 : i32
    %c0_i32_0 = arith.constant 0 : i32
    %c0_i32_1 = arith.constant 0 : i32
    return %c0_i32, %c0_i32_0 : i32, i32
  }
  func.func @transform_7(%arg0: i32) -> (i32, i32) {
    %c0_i32 = arith.constant 0 : i32
    %c0_i32_0 = arith.constant 0 : i32
    %c0_i32_1 = arith.constant 0 : i32
    return %c0_i32, %c0_i32_0 : i32, i32
  }
  func.func @transform_8(%arg0: i32) -> (i32, i32) {
    %c0_i32 = arith.constant 0 : i32
    %c0_i32_0 = arith.constant 0 : i32
    %c0_i32_1 = arith.constant 0 : i32
    return %c0_i32, %c0_i32_0 : i32, i32
  }
  func.func @transform_9(%arg0: i32) -> (i32, i32) {
    %c0_i32 = arith.constant 0 : i32
    %c0_i32_0 = arith.constant 0 : i32
    %c0_i32_1 = arith.constant 0 : i32
    return %c0_i32, %c0_i32_0 : i32, i32
  }
  func.func @transform_10(%arg0: i32) -> (i32, i32) {
    %c0_i32 = arith.constant 0 : i32
    %c0_i32_0 = arith.constant 0 : i32
    %c0_i32_1 = arith.constant 0 : i32
    return %c0_i32, %c0_i32_0 : i32, i32
  }
  func.func @transform_11(%arg0: i32) -> (i32, i32) {
    %c0_i32 = arith.constant 0 : i32
    %c0_i32_0 = arith.constant 0 : i32
    %c0_i32_1 = arith.constant 0 : i32
    return %c0_i32, %c0_i32_0 : i32, i32
  }
  func.func @transform_12(%arg0: i32) -> (i32, i32) {
    %c0_i32 = arith.constant 0 : i32
    %c0_i32_0 = arith.constant 0 : i32
    %c0_i32_1 = arith.constant 0 : i32
    return %c0_i32, %c0_i32_0 : i32, i32
  }
  func.func @transform_13(%arg0: i32) -> (i32, i32) {
    %c0_i32 = arith.constant 0 : i32
    %c0_i32_0 = arith.constant 0 : i32
    %c0_i32_1 = arith.constant 0 : i32
    return %c0_i32, %c0_i32_0 : i32, i32
  }
  func.func @transform_14(%arg0: i32) -> (i32, i32) {
    %c0_i32 = arith.constant 0 : i32
    %c0_i32_0 = arith.constant 0 : i32
    return %arg0, %c0_i32 : i32, i32
  }
}

</mosaic_0001>

<llo_original>
// kernel: whitebox_attack_forward.1
$region0: #{whitebox_attack_forward.1}
  #allocation0 [shape = 'u32[]', space=smem, size = 0x4, offset = 0x4, fixed_abs, tag = 'smem constant byte address 0x4 - core index']
  #allocation1 [shape = 'u32[144,128]{1,0:T(1,128)}', space=vmem, size = 0x12000, scoped, tag = 'internal scratch']
  #allocation2 [shape = 'f32[64,400]{1,0:T(8,128)}', space=vmem, size = 0x20000, scoped, tag = 'scratch operand']
  #allocation3 [shape = 'f32[64,384]{1,0:T(8,128)}', space=vmem, size = 0x18000, scoped, tag = 'scratch operand']
  #allocation4 [shape = 'f32[64,256]{1,0:T(8,128)}', space=vmem, size = 0x10000, scoped, tag = 'scratch operand']
  %s0 = inlined_call_operand.vmem [shape: f32[128,20], index: 0, kind: input, shape index: {}]
  %s1 = inlined_call_operand.vmem [shape: f32[128,1], index: 1, kind: input, shape index: {}]
  %s2 = inlined_call_operand.vmem [shape: f32[128,256], index: 2, kind: input, shape index: {}]
  %s3 = inlined_call_operand.vmem [shape: f32[26], index: 3, kind: input, shape index: {}]
  %s4 = inlined_call_operand.vmem [shape: f32[1,1601], index: 4, kind: input, shape index: {}]
  %s5 = inlined_call_operand.vmem [shape: bf16[20,256], index: 5, kind: input, shape index: {}]
  %s6 = inlined_call_operand.vmem [shape: bf16[295,256], index: 6, kind: input, shape index: {}]
  %s7 = inlined_call_operand.vmem [shape: bf16[256,128], index: 7, kind: input, shape index: {}]
  %s8 = inlined_call_operand.vmem [shape: bf16[128,64], index: 8, kind: input, shape index: {}]
  %s9 = inlined_call_operand.vmem [shape: bf16[384,192], index: 9, kind: input, shape index: {}]
  %s10 = inlined_call_operand.vmem [shape: bf16[256,256], index: 10, kind: input, shape index: {}]
  %s11 = inlined_call_operand.vmem [shape: bf16[256,128], index: 11, kind: input, shape index: {}]
  %s12 = inlined_call_operand.vmem [shape: bf16[128,64], index: 12, kind: input, shape index: {}]
  %s13 = inlined_call_operand.vmem [shape: bf16[64,1], index: 13, kind: input, shape index: {}]
  %s14 = inlined_call_operand.vmem [shape: f32[128,1], index: 14, kind: output, shape index: {}]
  %s15 = sld [smem:[#allocation0]]
  $region93: #{whitebox_attack_forward.1} parent=0
    _
  %s17 = ssub.s32 1, %s15
  %s18 = scalar_select 0, %s17, %s15
  $region1: #{whitebox_attack_forward.1} parent=0
    #allocation5 [shape = 'u8[512]{0}', space=smem, size = 0x200, scoped, tag = 'input window, operand 3, single buffered']
    #allocation6 [shape = 's32[2]{0}', space=sflag, size = 0x8, scoped, tag = 'scoped memory for whitebox_attack_forward.1']
    %19 = vsyncpa [#allocation6], 0
    loop: start=0, step=1, limit=4
    $region2: #{whitebox_attack_forward.1} parent=1 // loop_pre_header
      _
    $region3: #{whitebox_attack_forward.1} parent=1 // loop_header
      %s21 = sphi 0, %s25
      %p22 = scmp.ge.s32.totalorder %s21, 4
      %s31 = sphi 0, %s33
      %s34 = sphi 0, %s31
      %s35 = sphi 0, %s34
      %s51 = sphi 0, %s35
      %s57 = sphi 0, %s59
      %s60 = sphi 0, %s57
      %s61 = sphi 0, %s60
      %s77 = sphi 0, %s61
      %s83 = sphi 0, %s85
      %s86 = sphi 0, %s83
      %s87 = sphi 0, %s86
      %s103 = sphi 0, %s87
      %s107 = sphi 0, %s107
      %s109 = sphi 0, %s107
      %s110 = sphi 0, %s109
      %s124 = sphi 0, %s110
      %s128 = sphi 0, %s128
      %s130 = sphi 0, %s128
      %s131 = sphi 0, %s130
      %s145 = sphi 0, %s131
      %s149 = sphi 0, %s149
      %s151 = sphi 0, %s149
      %s152 = sphi 0, %s151
      %s166 = sphi 0, %s152
      %s170 = sphi 0, %s170
      %s172 = sphi 0, %s170
      %s173 = sphi 0, %s172
      %s187 = sphi 0, %s173
      %s191 = sphi 0, %s191
      %s193 = sphi 0, %s191
      %s194 = sphi 0, %s193
      %s208 = sphi 0, %s194
      %s212 = sphi 0, %s212
      %s214 = sphi 0, %s212
      %s215 = sphi 0, %s214
      %s229 = sphi 0, %s215
      %s233 = sphi 0, %s233
      %s235 = sphi 0, %s233
      %s236 = sphi 0, %s235
      %s250 = sphi 0, %s236
      %s254 = sphi 0, %s254
      %s256 = sphi 0, %s254
      %s257 = sphi 0, %s256
      %s271 = sphi 0, %s257
      %s275 = sphi 0, %s275
      %s277 = sphi 0, %s275
      %s278 = sphi 0, %s277
      %s292 = sphi 0, %s278
      %s296 = sphi 0, %s296
      %s298 = sphi 0, %s296
      %s299 = sphi 0, %s298
      %s313 = sphi 0, %s299
      %s317 = sphi 0, %s317
      %s319 = sphi 0, %s317
      %s320 = sphi 0, %s319
      %s334 = sphi 0, %s320
      %s340 = sphi 0, %s342
      %s343 = sphi 0, %s340
      %s344 = sphi 0, %s343
      %s360 = sphi 0, %s344
    $region4: #{whitebox_attack_forward.1} parent=1 // loop_header_branch
      %24 = sbr.rel (%p22) target = $region8
    $region5: #{whitebox_attack_forward.1} parent=1 // loop_body
      %s26 = ssub.s32 %s21, 1
      %s27 = ssub.s32 %s21, 2
      %s28 = sadd.s32 %s21, 1
      %s29 = ssub.s32 %s21, %s28
      %p30 = scmp.eq.s32.totalorder %s29, 0
      %s32 = sadd.s32 %s31, 1
      %s33 = scalar_select %p30, %s31, %s32
      %p36 = pneg %p30
      %p37 = scmp.eq.s32.totalorder %s21, 1
      %p38 = por %p36, %p37
      %p39 = scmp.ne.s32.totalorder %s31, %s34
      %p40 = scmp.eq.s32.totalorder %s21, 0
      %p41 = por %p39, %p40
      %p42 = scmp.ne.s32.totalorder %s31, %s34
      %p43 = scmp.eq.s32.totalorder %s26, 1
      %p44 = por %p42, %p43
      %p45 = scmp.ne.s32.totalorder %s34, %s35
      %p46 = scmp.eq.s32.totalorder %s26, 0
      %p47 = por %p45, %p46
      %p48 = scmp.ne.s32.totalorder %s34, %s35
      %p49 = scmp.eq.s32.totalorder %s27, 1
      %p50 = por %p48, %p49
      %p52 = scmp.ne.s32.totalorder %s35, %s51
      %p53 = scmp.eq.s32.totalorder %s27, 0
      %p54 = por %p52, %p53
      %s55 = ssub.s32 %s21, %s28
      %p56 = scmp.eq.s32.totalorder %s55, 0
      %s58 = sadd.s32 %s57, 1
      %s59 = scalar_select %p56, %s57, %s58
      %p62 = pneg %p56
      %p63 = scmp.eq.s32.totalorder %s21, 1
      %p64 = por %p62, %p63
      %p65 = scmp.ne.s32.totalorder %s57, %s60
      %p66 = scmp.eq.s32.totalorder %s21, 0
      %p67 = por %p65, %p66
      %p68 = scmp.ne.s32.totalorder %s57, %s60
      %p69 = scmp.eq.s32.totalorder %s26, 1
      %p70 = por %p68, %p69
      %p71 = scmp.ne.s32.totalorder %s60, %s61
      %p72 = scmp.eq.s32.totalorder %s26, 0
      %p73 = por %p71, %p72
      %p74 = scmp.ne.s32.totalorder %s60, %s61
      %p75 = scmp.eq.s32.totalorder %s27, 1
      %p76 = por %p74, %p75
      %p78 = scmp.ne.s32.totalorder %s61, %s77
      %p79 = scmp.eq.s32.totalorder %s27, 0
      %p80 = por %p78, %p79
      %s81 = ssub.s32 %s21, %s28
      %p82 = scmp.eq.s32.totalorder %s81, 0
      %s84 = sadd.s32 %s83, 1
      %s85 = scalar_select %p82, %s83, %s84
      %p88 = pneg %p82
      %p89 = scmp.eq.s32.totalorder %s21, 1
      %p90 = por %p88, %p89
      %p91 = scmp.ne.s32.totalorder %s83, %s86
      %p92 = scmp.eq.s32.totalorder %s21, 0
      %p93 = por %p91, %p92
      %p94 = scmp.ne.s32.totalorder %s83, %s86
      %p95 = scmp.eq.s32.totalorder %s26, 1
      %p96 = por %p94, %p95
      %p97 = scmp.ne.s32.totalorder %s86, %s87
      %p98 = scmp.eq.s32.totalorder %s26, 0
      %p99 = por %p97, %p98
      %p100 = scmp.ne.s32.totalorder %s86, %s87
      %p101 = scmp.eq.s32.totalorder %s27, 1
      %p102 = por %p100, %p101
      %p104 = scmp.ne.s32.totalorder %s87, %s103
      %p105 = scmp.eq.s32.totalorder %s27, 0
      %p106 = por %p104, %p105
      %s108 = sadd.s32 %s107, 1
      %p111 = scmp.eq.s32.totalorder %s21, 1
      %p112 = scmp.ne.s32.totalorder %s107, %s109
      %p113 = scmp.eq.s32.totalorder %s21, 0
      %p114 = por %p112, %p113
      %p115 = scmp.ne.s32.totalorder %s107, %s109
      %p116 = scmp.eq.s32.totalorder %s26, 1
      %p117 = por %p115, %p116
      %p118 = scmp.ne.s32.totalorder %s109, %s110
      %p119 = scmp.eq.s32.totalorder %s26, 0
      %p120 = por %p118, %p119
      %p121 = scmp.ne.s32.totalorder %s109, %s110
      %p122 = scmp.eq.s32.totalorder %s27, 1
      %p123 = por %p121, %p122
      %p125 = scmp.ne.s32.totalorder %s110, %s124
      %p126 = scmp.eq.s32.totalorder %s27, 0
      %p127 = por %p125, %p126
      %s129 = sadd.s32 %s128, 1
      %p132 = scmp.eq.s32.totalorder %s21, 1
      %p133 = scmp.ne.s32.totalorder %s128, %s130
      %p134 = scmp.eq.s32.totalorder %s21, 0
      %p135 = por %p133, %p134
      %p136 = scmp.ne.s32.totalorder %s128, %s130
      %p137 = scmp.eq.s32.totalorder %s26, 1
      %p138 = por %p136, %p137
      %p139 = scmp.ne.s32.totalorder %s130, %s131
      %p140 = scmp.eq.s32.totalorder %s26, 0
      %p141 = por %p139, %p140
      %p142 = scmp.ne.s32.totalorder %s130, %s131
      %p143 = scmp.eq.s32.totalorder %s27, 1
      %p144 = por %p142, %p143
      %p146 = scmp.ne.s32.totalorder %s131, %s145
      %p147 = scmp.eq.s32.totalorder %s27, 0
      %p148 = por %p146, %p147
      %s150 = sadd.s32 %s149, 1
      %p153 = scmp.eq.s32.totalorder %s21, 1
      %p154 = scmp.ne.s32.totalorder %s149, %s151
      %p155 = scmp.eq.s32.totalorder %s21, 0
      %p156 = por %p154, %p155
      %p157 = scmp.ne.s32.totalorder %s149, %s151
      %p158 = scmp.eq.s32.totalorder %s26, 1
      %p159 = por %p157, %p158
      %p160 = scmp.ne.s32.totalorder %s151, %s152
      %p161 = scmp.eq.s32.totalorder %s26, 0
      %p162 = por %p160, %p161
      %p163 = scmp.ne.s32.totalorder %s151, %s152
      %p164 = scmp.eq.s32.totalorder %s27, 1
      %p165 = por %p163, %p164
      %p167 = scmp.ne.s32.totalorder %s152, %s166
      %p168 = scmp.eq.s32.totalorder %s27, 0
      %p169 = por %p167, %p168
      %s171 = sadd.s32 %s170, 1
      %p174 = scmp.eq.s32.totalorder %s21, 1
      %p175 = scmp.ne.s32.totalorder %s170, %s172
      %p176 = scmp.eq.s32.totalorder %s21, 0
      %p177 = por %p175, %p176
      %p178 = scmp.ne.s32.totalorder %s170, %s172
      %p179 = scmp.eq.s32.totalorder %s26, 1
      %p180 = por %p178, %p179
      %p181 = scmp.ne.s32.totalorder %s172, %s173
      %p182 = scmp.eq.s32.totalorder %s26, 0
      %p183 = por %p181, %p182
      %p184 = scmp.ne.s32.totalorder %s172, %s173
      %p185 = scmp.eq.s32.totalorder %s27, 1
      %p186 = por %p184, %p185
      %p188 = scmp.ne.s32.totalorder %s173, %s187
      %p189 = scmp.eq.s32.totalorder %s27, 0
      %p190 = por %p188, %p189
      %s192 = sadd.s32 %s191, 1
      %p195 = scmp.eq.s32.totalorder %s21, 1
      %p196 = scmp.ne.s32.totalorder %s191, %s193
      %p197 = scmp.eq.s32.totalorder %s21, 0
      %p198 = por %p196, %p197
      %p199 = scmp.ne.s32.totalorder %s191, %s193
      %p200 = scmp.eq.s32.totalorder %s26, 1
      %p201 = por %p199, %p200
      %p202 = scmp.ne.s32.totalorder %s193, %s194
      %p203 = scmp.eq.s32.totalorder %s26, 0
      %p204 = por %p202, %p203
      %p205 = scmp.ne.s32.totalorder %s193, %s194
      %p206 = scmp.eq.s32.totalorder %s27, 1
      %p207 = por %p205, %p206
      %p209 = scmp.ne.s32.totalorder %s194, %s208
      %p210 = scmp.eq.s32.totalorder %s27, 0
      %p211 = por %p209, %p210
      %s213 = sadd.s32 %s212, 1
      %p216 = scmp.eq.s32.totalorder %s21, 1
      %p217 = scmp.ne.s32.totalorder %s212, %s214
      %p218 = scmp.eq.s32.totalorder %s21, 0
      %p219 = por %p217, %p218
      %p220 = scmp.ne.s32.totalorder %s212, %s214
      %p221 = scmp.eq.s32.totalorder %s26, 1
      %p222 = por %p220, %p221
      %p223 = scmp.ne.s32.totalorder %s214, %s215
      %p224 = scmp.eq.s32.totalorder %s26, 0
      %p225 = por %p223, %p224
      %p226 = scmp.ne.s32.totalorder %s214, %s215
      %p227 = scmp.eq.s32.totalorder %s27, 1
      %p228 = por %p226, %p227
      %p230 = scmp.ne.s32.totalorder %s215, %s229
      %p231 = scmp.eq.s32.totalorder %s27, 0
      %p232 = por %p230, %p231
      %s234 = sadd.s32 %s233, 1
      %p237 = scmp.eq.s32.totalorder %s21, 1
      %p238 = scmp.ne.s32.totalorder %s233, %s235
      %p239 = scmp.eq.s32.totalorder %s21, 0
      %p240 = por %p238, %p239
      %p241 = scmp.ne.s32.totalorder %s233, %s235
      %p242 = scmp.eq.s32.totalorder %s26, 1
      %p243 = por %p241, %p242
      %p244 = scmp.ne.s32.totalorder %s235, %s236
      %p245 = scmp.eq.s32.totalorder %s26, 0
      %p246 = por %p244, %p245
      %p247 = scmp.ne.s32.totalorder %s235, %s236
      %p248 = scmp.eq.s32.totalorder %s27, 1
      %p249 = por %p247, %p248
      %p251 = scmp.ne.s32.totalorder %s236, %s250
      %p252 = scmp.eq.s32.totalorder %s27, 0
      %p253 = por %p251, %p252
      %s255 = sadd.s32 %s254, 1
      %p258 = scmp.eq.s32.totalorder %s21, 1
      %p259 = scmp.ne.s32.totalorder %s254, %s256
      %p260 = scmp.eq.s32.totalorder %s21, 0
      %p261 = por %p259, %p260
      %p262 = scmp.ne.s32.totalorder %s254, %s256
      %p263 = scmp.eq.s32.totalorder %s26, 1
      %p264 = por %p262, %p263
      %p265 = scmp.ne.s32.totalorder %s256, %s257
      %p266 = scmp.eq.s32.totalorder %s26, 0
      %p267 = por %p265, %p266
      %p268 = scmp.ne.s32.totalorder %s256, %s257
      %p269 = scmp.eq.s32.totalorder %s27, 1
      %p270 = por %p268, %p269
      %p272 = scmp.ne.s32.totalorder %s257, %s271
      %p273 = scmp.eq.s32.totalorder %s27, 0
      %p274 = por %p272, %p273
      %s276 = sadd.s32 %s275, 1
      %p279 = scmp.eq.s32.totalorder %s21, 1
      %p280 = scmp.ne.s32.totalorder %s275, %s277
      %p281 = scmp.eq.s32.totalorder %s21, 0
      %p282 = por %p280, %p281
      %p283 = scmp.ne.s32.totalorder %s275, %s277
      %p284 = scmp.eq.s32.totalorder %s26, 1
      %p285 = por %p283, %p284
      %p286 = scmp.ne.s32.totalorder %s277, %s278
      %p287 = scmp.eq.s32.totalorder %s26, 0
      %p288 = por %p286, %p287
      %p289 = scmp.ne.s32.totalorder %s277, %s278
      %p290 = scmp.eq.s32.totalorder %s27, 1
      %p291 = por %p289, %p290
      %p293 = scmp.ne.s32.totalorder %s278, %s292
      %p294 = scmp.eq.s32.totalorder %s27, 0
      %p295 = por %p293, %p294
      %s297 = sadd.s32 %s296, 1
      %p300 = scmp.eq.s32.totalorder %s21, 1
      %p301 = scmp.ne.s32.totalorder %s296, %s298
      %p302 = scmp.eq.s32.totalorder %s21, 0
      %p303 = por %p301, %p302
      %p304 = scmp.ne.s32.totalorder %s296, %s298
      %p305 = scmp.eq.s32.totalorder %s26, 1
      %p306 = por %p304, %p305
      %p307 = scmp.ne.s32.totalorder %s298, %s299
      %p308 = scmp.eq.s32.totalorder %s26, 0
      %p309 = por %p307, %p308
      %p310 = scmp.ne.s32.totalorder %s298, %s299
      %p311 = scmp.eq.s32.totalorder %s27, 1
      %p312 = por %p310, %p311
      %p314 = scmp.ne.s32.totalorder %s299, %s313
      %p315 = scmp.eq.s32.totalorder %s27, 0
      %p316 = por %p314, %p315
      %s318 = sadd.s32 %s317, 1
      %p321 = scmp.eq.s32.totalorder %s21, 1
      %p322 = scmp.ne.s32.totalorder %s317, %s319
      %p323 = scmp.eq.s32.totalorder %s21, 0
      %p324 = por %p322, %p323
      %p325 = scmp.ne.s32.totalorder %s317, %s319
      %p326 = scmp.eq.s32.totalorder %s26, 1
      %p327 = por %p325, %p326
      %p328 = scmp.ne.s32.totalorder %s319, %s320
      %p329 = scmp.eq.s32.totalorder %s26, 0
      %p330 = por %p328, %p329
      %p331 = scmp.ne.s32.totalorder %s319, %s320
      %p332 = scmp.eq.s32.totalorder %s27, 1
      %p333 = por %p331, %p332
      %p335 = scmp.ne.s32.totalorder %s320, %s334
      %p336 = scmp.eq.s32.totalorder %s27, 0
      %p337 = por %p335, %p336
      %s338 = ssub.s32 %s21, %s28
      %p339 = scmp.eq.s32.totalorder %s338, 0
      %s341 = sadd.s32 %s340, 1
      %s342 = scalar_select %p339, %s340, %s341
      %p345 = pneg %p339
      %p346 = scmp.eq.s32.totalorder %s21, 1
      %p347 = por %p345, %p346
      %p348 = scmp.ne.s32.totalorder %s340, %s343
      %p349 = scmp.eq.s32.totalorder %s21, 0
      %p350 = por %p348, %p349
      %p351 = scmp.ne.s32.totalorder %s340, %s343
      %p352 = scmp.eq.s32.totalorder %s26, 1
      %p353 = por %p351, %p352
      %p354 = scmp.ne.s32.totalorder %s343, %s344
      %p355 = scmp.eq.s32.totalorder %s26, 0
      %p356 = por %p354, %p355
      %p357 = scmp.ne.s32.totalorder %s343, %s344
      %p358 = scmp.eq.s32.totalorder %s27, 1
      %p359 = por %p357, %p358
      %p361 = scmp.ne.s32.totalorder %s344, %s360
      %p362 = scmp.eq.s32.totalorder %s27, 0
      %p363 = por %p361, %p362
      %p364 = scmp.le.s32.totalorder 1, %s21
      %p365 = scmp.lt.s32.totalorder %s21, 3
      %p366 = pnand %p364, %p365
      %p367 = pneg %p366
      // Predicated region
      $region9: #{whitebox_attack_forward.1} parent=5 // pred_check
        _
      $region10: #{whitebox_attack_forward.1} parent=5 // pred_check_branch
        %369 = sbr.rel (%p366) target = $region12
      $region11: #{whitebox_attack_forward.1} parent=5 // pred_region
        %s370 = ssub.s32 %s21, 1
        // Predicated region
        $region13: #{whitebox_attack_forward.1} parent=11 // pred_check
          %p371 = pneg %p120
        $region14: #{whitebox_attack_forward.1} parent=11 // pred_check_branch
          %373 = sbr.rel (%p371) target = $region16
        $region15: #{whitebox_attack_forward.1} parent=11 // pred_region
          %s375 = ssub.s32 16, 16
          %376 = vsyncadd [#allocation6], %s375
          %s378 = sshll.u32 %s3, 4
          %s379 = int_to_ptr.vmem [resolvable:$true] %s378
          %381 = dma.vmem_to_smem %s379, 16, [#allocation5], [#allocation6]
        $region16: #{whitebox_attack_forward.1} parent=11 // pred_fallthru
          _
        // Predicated region
        $region17: #{whitebox_attack_forward.1} parent=11 // pred_check
          %p382 = pneg %p141
        $region18: #{whitebox_attack_forward.1} parent=11 // pred_check_branch
          %384 = sbr.rel (%p382) target = $region20
        $region19: #{whitebox_attack_forward.1} parent=11 // pred_region
          _
        $region20: #{whitebox_attack_forward.1} parent=11 // pred_fallthru
          _
        // Predicated region
        $region21: #{whitebox_attack_forward.1} parent=11 // pred_check
          %p385 = pneg %p162
        $region22: #{whitebox_attack_forward.1} parent=11 // pred_check_branch
          %387 = sbr.rel (%p385) target = $region24
        $region23: #{whitebox_attack_forward.1} parent=11 // pred_region
          _
        $region24: #{whitebox_attack_forward.1} parent=11 // pred_fallthru
          _
        // Predicated region
        $region25: #{whitebox_attack_forward.1} parent=11 // pred_check
          %p388 = pneg %p183
        $region26: #{whitebox_attack_forward.1} parent=11 // pred_check_branch
          %390 = sbr.rel (%p388) target = $region28
        $region27: #{whitebox_attack_forward.1} parent=11 // pred_region
          _
        $region28: #{whitebox_attack_forward.1} parent=11 // pred_fallthru
          _
        // Predicated region
        $region29: #{whitebox_attack_forward.1} parent=11 // pred_check
          %p391 = pneg %p204
        $region30: #{whitebox_attack_forward.1} parent=11 // pred_check_branch
          %393 = sbr.rel (%p391) target = $region32
        $region31: #{whitebox_attack_forward.1} parent=11 // pred_region
          _
        $region32: #{whitebox_attack_forward.1} parent=11 // pred_fallthru
          _
        // Predicated region
        $region33: #{whitebox_attack_forward.1} parent=11 // pred_check
          %p394 = pneg %p225
        $region34: #{whitebox_attack_forward.1} parent=11 // pred_check_branch
          %396 = sbr.rel (%p394) target = $region36
        $region35: #{whitebox_attack_forward.1} parent=11 // pred_region
          _
        $region36: #{whitebox_attack_forward.1} parent=11 // pred_fallthru
          _
        // Predicated region
        $region37: #{whitebox_attack_forward.1} parent=11 // pred_check
          %p397 = pneg %p246
        $region38: #{whitebox_attack_forward.1} parent=11 // pred_check_branch
          %399 = sbr.rel (%p397) target = $region40
        $region39: #{whitebox_attack_forward.1} parent=11 // pred_region
          _
        $region40: #{whitebox_attack_forward.1} parent=11 // pred_fallthru
          _
        // Predicated region
        $region41: #{whitebox_attack_forward.1} parent=11 // pred_check
          %p400 = pneg %p267
        $region42: #{whitebox_attack_forward.1} parent=11 // pred_check_branch
          %402 = sbr.rel (%p400) target = $region44
        $region43: #{whitebox_attack_forward.1} parent=11 // pred_region
          _
        $region44: #{whitebox_attack_forward.1} parent=11 // pred_fallthru
          _
        // Predicated region
        $region45: #{whitebox_attack_forward.1} parent=11 // pred_check
          %p403 = pneg %p288
        $region46: #{whitebox_attack_forward.1} parent=11 // pred_check_branch
          %405 = sbr.rel (%p403) target = $region48
        $region47: #{whitebox_attack_forward.1} parent=11 // pred_region
          _
        $region48: #{whitebox_attack_forward.1} parent=11 // pred_fallthru
          _
        // Predicated region
        $region49: #{whitebox_attack_forward.1} parent=11 // pred_check
          %p406 = pneg %p309
        $region50: #{whitebox_attack_forward.1} parent=11 // pred_check_branch
          %408 = sbr.rel (%p406) target = $region52
        $region51: #{whitebox_attack_forward.1} parent=11 // pred_region
          _
        $region52: #{whitebox_attack_forward.1} parent=11 // pred_fallthru
          _
        // Predicated region
        $region53: #{whitebox_attack_forward.1} parent=11 // pred_check
          %p409 = pneg %p330
        $region54: #{whitebox_attack_forward.1} parent=11 // pred_check_branch
          %411 = sbr.rel (%p409) target = $region56
        $region55: #{whitebox_attack_forward.1} parent=11 // pred_region
          _
        $region56: #{whitebox_attack_forward.1} parent=11 // pred_fallthru
          _
      $region12: #{whitebox_attack_forward.1} parent=5 // pred_fallthru
        _
      %p412 = scmp.lt.s32.totalorder %s21, 2
      // Predicated region
      $region57: #{whitebox_attack_forward.1} parent=5 // pred_check
        %p413 = pneg %p412
      $region58: #{whitebox_attack_forward.1} parent=5 // pred_check_branch
        %415 = sbr.rel (%p413) target = $region60
      $region59: #{whitebox_attack_forward.1} parent=5 // pred_region
        // Predicated region
        $region61: #{whitebox_attack_forward.1} parent=59 // pred_check
          %p416 = pneg %p41
        $region62: #{whitebox_attack_forward.1} parent=59 // pred_check_branch
          %418 = sbr.rel (%p416) target = $region64
        $region63: #{whitebox_attack_forward.1} parent=59 // pred_region
          %s419 = smul.u32 8, %s21
          %p420 = scmp.lt.s32.totalorder %s419, 15
          %s421 = scalar_select %p420, %s419, 15
          %s422 = smul.addr %s421, 8
          %s423 = scalar_lea.vmem %s0, %s422
          %s424 = smul.u32 8, %s21
        $region64: #{whitebox_attack_forward.1} parent=59 // pred_fallthru
          _
        // Predicated region
        $region65: #{whitebox_attack_forward.1} parent=59 // pred_check
          %p425 = pneg %p67
        $region66: #{whitebox_attack_forward.1} parent=59 // pred_check_branch
          %427 = sbr.rel (%p425) target = $region68
        $region67: #{whitebox_attack_forward.1} parent=59 // pred_region
          %s428 = smul.u32 8, %s21
          %p429 = scmp.lt.s32.totalorder %s428, 15
          %s430 = scalar_select %p429, %s428, 15
          %s431 = smul.addr %s430, 8
          %s432 = scalar_lea.vmem %s1, %s431
          %s433 = smul.u32 8, %s21
        $region68: #{whitebox_attack_forward.1} parent=59 // pred_fallthru
          _
        // Predicated region
        $region69: #{whitebox_attack_forward.1} parent=59 // pred_check
          %p434 = pneg %p93
        $region70: #{whitebox_attack_forward.1} parent=59 // pred_check_branch
          %436 = sbr.rel (%p434) target = $region72
        $region71: #{whitebox_attack_forward.1} parent=59 // pred_region
          %s437 = smul.u32 8, %s21
          %p438 = scmp.lt.s32.totalorder %s437, 15
          %s439 = scalar_select %p438, %s437, 15
          %s440 = smul.addr %s439, 2
          %s441 = smul.addr %s440, 8
          %s442 = scalar_lea.vmem %s2, %s441
          %s443 = smul.u32 8, %s21
        $region72: #{whitebox_attack_forward.1} parent=59 // pred_fallthru
          _
      $region60: #{whitebox_attack_forward.1} parent=5 // pred_fallthru
        _
      %p444 = scmp.le.s32.totalorder 1, %s21
      %p445 = scmp.lt.s32.totalorder %s21, 3
      %p446 = pnand %p444, %p445
      %p447 = pneg %p446
      // Predicated region
      $region73: #{whitebox_attack_forward.1} parent=5 // pred_check
        _
      $region74: #{whitebox_attack_forward.1} parent=5 // pred_check_branch
        %449 = sbr.rel (%p446) target = $region76
      $region75: #{whitebox_attack_forward.1} parent=5 // pred_region
        %s450 = ssub.s32 %s21, 1
        // Predicated region
        $region77: #{whitebox_attack_forward.1} parent=75 // pred_check
          %p451 = pneg %p120
        $region78: #{whitebox_attack_forward.1} parent=75 // pred_check_branch
          %453 = sbr.rel (%p451) target = $region80
        $region79: #{whitebox_attack_forward.1} parent=75 // pred_region
          %454 = dma.done [#allocation6], 16
        $region80: #{whitebox_attack_forward.1} parent=75 // pred_fallthru
          _
        %455 = sfence
        %s456 = smul.u32 8, %s26
        %p457 = scmp.lt.s32.totalorder %s456, 15
        %s458 = scalar_select %p457, %s456, 15
        %s459 = smul.addr %s458, 8
        %s460 = scalar_lea.vmem %s0, %s459
        %p461 = pneg %p47
        %p462 = pneg %p44
        %s463 = smul.u32 8, %s26
        %p464 = scmp.lt.s32.totalorder %s463, 15
        %s465 = scalar_select %p464, %s463, 15
        %s466 = smul.addr %s465, 8
        %s467 = scalar_lea.vmem %s1, %s466
        %p468 = pneg %p73
        %p469 = pneg %p70
        %s470 = smul.u32 8, %s26
        %p471 = scmp.lt.s32.totalorder %s470, 15
        %s472 = scalar_select %p471, %s470, 15
        %s473 = smul.addr %s472, 2
        %s474 = smul.addr %s473, 8
        %s475 = scalar_lea.vmem %s2, %s474
        %p476 = pneg %p99
        %p477 = pneg %p96
        %p478 = pneg %p120
        %p479 = pneg %p117
        %p480 = pneg %p141
        %p481 = pneg %p138
        %p482 = pneg %p162
        %p483 = pneg %p159
        %p484 = pneg %p183
        %p485 = pneg %p180
        %p486 = pneg %p204
        %p487 = pneg %p201
        %p488 = pneg %p225
        %p489 = pneg %p222
        %p490 = pneg %p246
        %p491 = pneg %p243
        %p492 = pneg %p267
        %p493 = pneg %p264
        %p494 = pneg %p288
        %p495 = pneg %p285
        %p496 = pneg %p309
        %p497 = pneg %p306
        %p498 = pneg %p330
        %p499 = pneg %p327
        %p500 = pneg %p356
        %p501 = pneg %p353
        %s502 = smul.u32 8, %s26
        %p503 = scmp.lt.s32.totalorder %s502, 15
        %s504 = scalar_select %p503, %s502, 15
        %s505 = smul.addr %s504, 8
        %s506 = scalar_lea.vmem %s14, %s505
        %s507 = smul.u32 8, %s26
        %p508 = scmp.lt.s32.totalorder %s507, 15
        %s509 = scalar_select %p508, %s507, 15
        %s510 = smul.addr %s509, 8
        %s511 = scalar_lea.vmem %s0, %s510
        %s512 = smul.u32 8, %s26
        %s513 = smul.u32 8, %s26
        %p514 = scmp.lt.s32.totalorder %s513, 15
        %s515 = scalar_select %p514, %s513, 15
        %s516 = smul.addr %s515, 8
        %s517 = scalar_lea.vmem %s1, %s516
        %s518 = smul.u32 8, %s26
        %s519 = smul.u32 8, %s26
        %p520 = scmp.lt.s32.totalorder %s519, 15
        %s521 = scalar_select %p520, %s519, 15
        %s522 = smul.addr %s521, 2
        %s523 = smul.addr %s522, 8
        %s524 = scalar_lea.vmem %s2, %s523
        %s525 = smul.u32 8, %s26
        %s526 = smul.u32 8, %s26
        %p527 = scmp.lt.s32.totalorder %s526, 15
        %s528 = scalar_select %p527, %s526, 15
        %s529 = smul.addr %s528, 8
        %s530 = scalar_lea.vmem %s14, %s529
        %s531 = smul.u32 8, %s26
        %533 = vst [vmem:[#allocation2] sm:$0xff] 0.0
        %534 = vst [vmem:[#allocation2 + $0x8] sm:$0xff] 0.0
        %535 = vst [vmem:[#allocation2 + $0x10] sm:$0xff] 0.0
        %vm536 = vcmask 130048
        %537 = vst.msk [vmem:[#allocation2 + $0x18] sm:$0xff] %vm536, 0.0
        %538 = vst [vmem:[#allocation2 + $0x20] sm:$0xff] 0.0
        %539 = vst [vmem:[#allocation2 + $0x28] sm:$0xff] 0.0
        %540 = vst [vmem:[#allocation2 + $0x30] sm:$0xff] 0.0
        %541 = vst.msk [vmem:[#allocation2 + $0x38] sm:$0xff] %vm536, 0.0
        %542 = vst [vmem:[#allocation2 + $0x40] sm:$0xff] 0.0
        %543 = vst [vmem:[#allocation2 + $0x48] sm:$0xff] 0.0
        %544 = vst [vmem:[#allocation2 + $0x50] sm:$0xff] 0.0
        %545 = vst.msk [vmem:[#allocation2 + $0x58] sm:$0xff] %vm536, 0.0
        %546 = vst [vmem:[#allocation2 + $0x60] sm:$0xff] 0.0
        %547 = vst [vmem:[#allocation2 + $0x68] sm:$0xff] 0.0
        %548 = vst [vmem:[#allocation2 + $0x70] sm:$0xff] 0.0
        %549 = vst.msk [vmem:[#allocation2 + $0x78] sm:$0xff] %vm536, 0.0
        %550 = vst [vmem:[#allocation2 + $0x80] sm:$0xff] 0.0
        %551 = vst [vmem:[#allocation2 + $0x88] sm:$0xff] 0.0
        %552 = vst [vmem:[#allocation2 + $0x90] sm:$0xff] 0.0
        %553 = vst.msk [vmem:[#allocation2 + $0x98] sm:$0xff] %vm536, 0.0
        %554 = vst [vmem:[#allocation2 + $0xa0] sm:$0xff] 0.0
        %555 = vst [vmem:[#allocation2 + $0xa8] sm:$0xff] 0.0
        %556 = vst [vmem:[#allocation2 + $0xb0] sm:$0xff] 0.0
        %557 = vst.msk [vmem:[#allocation2 + $0xb8] sm:$0xff] %vm536, 0.0
        %558 = vst [vmem:[#allocation2 + $0xc0] sm:$0xff] 0.0
        %559 = vst [vmem:[#allocation2 + $0xc8] sm:$0xff] 0.0
        %560 = vst [vmem:[#allocation2 + $0xd0] sm:$0xff] 0.0
        %561 = vst.msk [vmem:[#allocation2 + $0xd8] sm:$0xff] %vm536, 0.0
        %562 = vst [vmem:[#allocation2 + $0xe0] sm:$0xff] 0.0
        %563 = vst [vmem:[#allocation2 + $0xe8] sm:$0xff] 0.0
        %564 = vst [vmem:[#allocation2 + $0xf0] sm:$0xff] 0.0
        %565 = vst.msk [vmem:[#allocation2 + $0xf8] sm:$0xff] %vm536, 0.0
        %v566 = vld [vmem:[%s524] sm:$0xff]
        %v567 = vld [vmem:[%s524 + $0x10] sm:$0xff]
        %v568 = vld [vmem:[%s524 + $0x20] sm:$0xff]
        %v569 = vld [vmem:[%s524 + $0x30] sm:$0xff]
        %v570 = vld [vmem:[%s524 + $0x40] sm:$0xff]
        %v571 = vld [vmem:[%s524 + $0x50] sm:$0xff]
        %v572 = vld [vmem:[%s524 + $0x60] sm:$0xff]
        %v573 = vld [vmem:[%s524 + $0x70] sm:$0xff]
        %582 = vrot.lane.b32.xlu0 %v566, 42
        %v583 = vpop.permute.xlu0 %582
        %584 = vrot.lane.b32.xlu0 %v567, 42
        %v585 = vpop.permute.xlu0 %584
        %586 = vrot.lane.b32.xlu0 %v568, 42
        %v587 = vpop.permute.xlu0 %586
        %588 = vrot.lane.b32.xlu0 %v569, 42
        %v589 = vpop.permute.xlu0 %588
        %590 = vrot.lane.b32.xlu0 %v570, 42
        %v591 = vpop.permute.xlu0 %590
        %592 = vrot.lane.b32.xlu0 %v571, 42
        %v593 = vpop.permute.xlu0 %592
        %594 = vrot.lane.b32.xlu0 %v572, 42
        %v595 = vpop.permute.xlu0 %594
        %596 = vrot.lane.b32.xlu0 %v573, 42
        %v597 = vpop.permute.xlu0 %596
        %vm606 = vcmask 474448
        %607 = vst.msk [vmem:[#allocation2] sm:$0xff] %vm606, %v583
        %608 = vst.msk [vmem:[#allocation2 + $0x20] sm:$0xff] %vm606, %v585
        %609 = vst.msk [vmem:[#allocation2 + $0x40] sm:$0xff] %vm606, %v587
        %610 = vst.msk [vmem:[#allocation2 + $0x60] sm:$0xff] %vm606, %v589
        %611 = vst.msk [vmem:[#allocation2 + $0x80] sm:$0xff] %vm606, %v591
        %612 = vst.msk [vmem:[#allocation2 + $0xa0] sm:$0xff] %vm606, %v593
        %613 = vst.msk [vmem:[#allocation2 + $0xc0] sm:$0xff] %vm606, %v595
        %614 = vst.msk [vmem:[#allocation2 + $0xe0] sm:$0xff] %vm606, %v597
        %v615 = vld [vmem:[%s524] sm:$0xff]
        %v616 = vld [vmem:[%s524 + $0x10] sm:$0xff]
        %v617 = vld [vmem:[%s524 + $0x20] sm:$0xff]
        %v618 = vld [vmem:[%s524 + $0x30] sm:$0xff]
        %v619 = vld [vmem:[%s524 + $0x40] sm:$0xff]
        %v620 = vld [vmem:[%s524 + $0x50] sm:$0xff]
        %v621 = vld [vmem:[%s524 + $0x60] sm:$0xff]
        %v622 = vld [vmem:[%s524 + $0x70] sm:$0xff]
        %631 = vrot.lane.b32.xlu0 %v615, 46
        %v632 = vpop.permute.xlu0 %631
        %633 = vrot.lane.b32.xlu0 %v616, 46
        %v634 = vpop.permute.xlu0 %633
        %635 = vrot.lane.b32.xlu0 %v617, 46
        %v636 = vpop.permute.xlu0 %635
        %637 = vrot.lane.b32.xlu0 %v618, 46
        %v638 = vpop.permute.xlu0 %637
        %639 = vrot.lane.b32.xlu0 %v619, 46
        %v640 = vpop.permute.xlu0 %639
        %641 = vrot.lane.b32.xlu0 %v620, 46
        %v642 = vpop.permute.xlu0 %641
        %643 = vrot.lane.b32.xlu0 %v621, 46
        %v644 = vpop.permute.xlu0 %643
        %645 = vrot.lane.b32.xlu0 %v622, 46
        %v646 = vpop.permute.xlu0 %645
        %vm655 = vcmask 638448
        %656 = vst.msk [vmem:[#allocation2] sm:$0xff] %vm655, %v632
        %657 = vst.msk [vmem:[#allocation2 + $0x20] sm:$0xff] %vm655, %v634
        %658 = vst.msk [vmem:[#allocation2 + $0x40] sm:$0xff] %vm655, %v636
        %659 = vst.msk [vmem:[#allocation2 + $0x60] sm:$0xff] %vm655, %v638
        %660 = vst.msk [vmem:[#allocation2 + $0x80] sm:$0xff] %vm655, %v640
        %661 = vst.msk [vmem:[#allocation2 + $0xa0] sm:$0xff] %vm655, %v642
        %662 = vst.msk [vmem:[#allocation2 + $0xc0] sm:$0xff] %vm655, %v644
        %663 = vst.msk [vmem:[#allocation2 + $0xe0] sm:$0xff] %vm655, %v646
        %v664 = vld [vmem:[%s524] sm:$0xff]
        %v665 = vld [vmem:[%s524 + $0x10] sm:$0xff]
        %v666 = vld [vmem:[%s524 + $0x20] sm:$0xff]
        %v667 = vld [vmem:[%s524 + $0x30] sm:$0xff]
        %v668 = vld [vmem:[%s524 + $0x40] sm:$0xff]
        %v669 = vld [vmem:[%s524 + $0x50] sm:$0xff]
        %v670 = vld [vmem:[%s524 + $0x60] sm:$0xff]
        %v671 = vld [vmem:[%s524 + $0x70] sm:$0xff]
        %680 = vrot.lane.b32.xlu0 %v664, 50
        %v681 = vpop.permute.xlu0 %680
        %682 = vrot.lane.b32.xlu0 %v665, 50
        %v683 = vpop.permute.xlu0 %682
        %684 = vrot.lane.b32.xlu0 %v666, 50
        %v685 = vpop.permute.xlu0 %684
        %686 = vrot.lane.b32.xlu0 %v667, 50
        %v687 = vpop.permute.xlu0 %686
        %688 = vrot.lane.b32.xlu0 %v668, 50
        %v689 = vpop.permute.xlu0 %688
        %690 = vrot.lane.b32.xlu0 %v669, 50
        %v691 = vpop.permute.xlu0 %690
        %692 = vrot.lane.b32.xlu0 %v670, 50
        %v693 = vpop.permute.xlu0 %692
        %694 = vrot.lane.b32.xlu0 %v671, 50
        %v695 = vpop.permute.xlu0 %694
        %vm704 = vcmask 802448
        %705 = vst.msk [vmem:[#allocation2] sm:$0xff] %vm704, %v681
        %706 = vst.msk [vmem:[#allocation2 + $0x20] sm:$0xff] %vm704, %v683
        %707 = vst.msk [vmem:[#allocation2 + $0x40] sm:$0xff] %vm704, %v685
        %708 = vst.msk [vmem:[#allocation2 + $0x60] sm:$0xff] %vm704, %v687
        %709 = vst.msk [vmem:[#allocation2 + $0x80] sm:$0xff] %vm704, %v689
        %710 = vst.msk [vmem:[#allocation2 + $0xa0] sm:$0xff] %vm704, %v691
        %711 = vst.msk [vmem:[#allocation2 + $0xc0] sm:$0xff] %vm704, %v693
        %712 = vst.msk [vmem:[#allocation2 + $0xe0] sm:$0xff] %vm704, %v695
        %v713 = vld [vmem:[%s524] sm:$0xff]
        %v714 = vld [vmem:[%s524 + $0x10] sm:$0xff]
        %v715 = vld [vmem:[%s524 + $0x20] sm:$0xff]
        %v716 = vld [vmem:[%s524 + $0x30] sm:$0xff]
        %v717 = vld [vmem:[%s524 + $0x40] sm:$0xff]
        %v718 = vld [vmem:[%s524 + $0x50] sm:$0xff]
        %v719 = vld [vmem:[%s524 + $0x60] sm:$0xff]
        %v720 = vld [vmem:[%s524 + $0x70] sm:$0xff]
        %729 = vrot.lane.b32.xlu0 %v713, 54
        %v730 = vpop.permute.xlu0 %729
        %731 = vrot.lane.b32.xlu0 %v714, 54
        %v732 = vpop.permute.xlu0 %731
        %733 = vrot.lane.b32.xlu0 %v715, 54
        %v734 = vpop.permute.xlu0 %733
        %735 = vrot.lane.b32.xlu0 %v716, 54
        %v736 = vpop.permute.xlu0 %735
        %737 = vrot.lane.b32.xlu0 %v717, 54
        %v738 = vpop.permute.xlu0 %737
        %739 = vrot.lane.b32.xlu0 %v718, 54
        %v740 = vpop.permute.xlu0 %739
        %741 = vrot.lane.b32.xlu0 %v719, 54
        %v742 = vpop.permute.xlu0 %741
        %743 = vrot.lane.b32.xlu0 %v720, 54
        %v744 = vpop.permute.xlu0 %743
        %vm753 = vcmask 966448
        %754 = vst.msk [vmem:[#allocation2] sm:$0xff] %vm753, %v730
        %755 = vst.msk [vmem:[#allocation2 + $0x20] sm:$0xff] %vm753, %v732
        %756 = vst.msk [vmem:[#allocation2 + $0x40] sm:$0xff] %vm753, %v734
        %757 = vst.msk [vmem:[#allocation2 + $0x60] sm:$0xff] %vm753, %v736
        %758 = vst.msk [vmem:[#allocation2 + $0x80] sm:$0xff] %vm753, %v738
        %759 = vst.msk [vmem:[#allocation2 + $0xa0] sm:$0xff] %vm753, %v740
        %760 = vst.msk [vmem:[#allocation2 + $0xc0] sm:$0xff] %vm753, %v742
        %761 = vst.msk [vmem:[#allocation2 + $0xe0] sm:$0xff] %vm753, %v744
        %v762 = vld [vmem:[%s524] sm:$0xff]
        %v763 = vld [vmem:[%s524 + $0x10] sm:$0xff]
        %v764 = vld [vmem:[%s524 + $0x20] sm:$0xff]
        %v765 = vld [vmem:[%s524 + $0x30] sm:$0xff]
        %v766 = vld [vmem:[%s524 + $0x40] sm:$0xff]
        %v767 = vld [vmem:[%s524 + $0x50] sm:$0xff]
        %v768 = vld [vmem:[%s524 + $0x60] sm:$0xff]
        %v769 = vld [vmem:[%s524 + $0x70] sm:$0xff]
        %778 = vrot.lane.b32.xlu0 %v762, 58
        %v779 = vpop.permute.xlu0 %778
        %780 = vrot.lane.b32.xlu0 %v763, 58
        %v781 = vpop.permute.xlu0 %780
        %782 = vrot.lane.b32.xlu0 %v764, 58
        %v783 = vpop.permute.xlu0 %782
        %784 = vrot.lane.b32.xlu0 %v765, 58
        %v785 = vpop.permute.xlu0 %784
        %786 = vrot.lane.b32.xlu0 %v766, 58
        %v787 = vpop.permute.xlu0 %786
        %788 = vrot.lane.b32.xlu0 %v767, 58
        %v789 = vpop.permute.xlu0 %788
        %790 = vrot.lane.b32.xlu0 %v768, 58
        %v791 = vpop.permute.xlu0 %790
        %792 = vrot.lane.b32.xlu0 %v769, 58
        %v793 = vpop.permute.xlu0 %792
        %vm802 = vcmask 1048528
        %803 = vst.msk [vmem:[#allocation2] sm:$0xff] %vm802, %v779
        %vm804 = vcmask 80896
        %805 = vst.msk [vmem:[#allocation2 + $0x8] sm:$0xff] %vm804, %v779
        %806 = vst.msk [vmem:[#allocation2 + $0x20] sm:$0xff] %vm802, %v781
        %807 = vst.msk [vmem:[#allocation2 + $0x28] sm:$0xff] %vm804, %v781
        %808 = vst.msk [vmem:[#allocation2 + $0x40] sm:$0xff] %vm802, %v783
        %809 = vst.msk [vmem:[#allocation2 + $0x48] sm:$0xff] %vm804, %v783
        %810 = vst.msk [vmem:[#allocation2 + $0x60] sm:$0xff] %vm802, %v785
        %811 = vst.msk [vmem:[#allocation2 + $0x68] sm:$0xff] %vm804, %v785
        %812 = vst.msk [vmem:[#allocation2 + $0x80] sm:$0xff] %vm802, %v787
        %813 = vst.msk [vmem:[#allocation2 + $0x88] sm:$0xff] %vm804, %v787
        %814 = vst.msk [vmem:[#allocation2 + $0xa0] sm:$0xff] %vm802, %v789
        %815 = vst.msk [vmem:[#allocation2 + $0xa8] sm:$0xff] %vm804, %v789
        %816 = vst.msk [vmem:[#allocation2 + $0xc0] sm:$0xff] %vm802, %v791
        %817 = vst.msk [vmem:[#allocation2 + $0xc8] sm:$0xff] %vm804, %v791
        %818 = vst.msk [vmem:[#allocation2 + $0xe0] sm:$0xff] %vm802, %v793
        %819 = vst.msk [vmem:[#allocation2 + $0xe8] sm:$0xff] %vm804, %v793
        %v820 = vld [vmem:[%s524] sm:$0xff]
        %v821 = vld [vmem:[%s524 + $0x10] sm:$0xff]
        %v822 = vld [vmem:[%s524 + $0x20] sm:$0xff]
        %v823 = vld [vmem:[%s524 + $0x30] sm:$0xff]
        %v824 = vld [vmem:[%s524 + $0x40] sm:$0xff]
        %v825 = vld [vmem:[%s524 + $0x50] sm:$0xff]
        %v826 = vld [vmem:[%s524 + $0x60] sm:$0xff]
        %v827 = vld [vmem:[%s524 + $0x70] sm:$0xff]
        %836 = vrot.lane.b32.xlu0 %v820, 62
        %v837 = vpop.permute.xlu0 %836
        %838 = vrot.lane.b32.xlu0 %v821, 62
        %v839 = vpop.permute.xlu0 %838
        %840 = vrot.lane.b32.xlu0 %v822, 62
        %v841 = vpop.permute.xlu0 %840
        %842 = vrot.lane.b32.xlu0 %v823, 62
        %v843 = vpop.permute.xlu0 %842
        %844 = vrot.lane.b32.xlu0 %v824, 62
        %v845 = vpop.permute.xlu0 %844
        %846 = vrot.lane.b32.xlu0 %v825, 62
        %v847 = vpop.permute.xlu0 %846
        %848 = vrot.lane.b32.xlu0 %v826, 62
        %v849 = vpop.permute.xlu0 %848
        %850 = vrot.lane.b32.xlu0 %v827, 62
        %v851 = vpop.permute.xlu0 %850
        %vm860 = vcmask 244848
        %861 = vst.msk [vmem:[#allocation2 + $0x8] sm:$0xff] %vm860, %v837
        %862 = vst.msk [vmem:[#allocation2 + $0x28] sm:$0xff] %vm860, %v839
        %863 = vst.msk [vmem:[#allocation2 + $0x48] sm:$0xff] %vm860, %v841
        %864 = vst.msk [vmem:[#allocation2 + $0x68] sm:$0xff] %vm860, %v843
        %865 = vst.msk [vmem:[#allocation2 + $0x88] sm:$0xff] %vm860, %v845
        %866 = vst.msk [vmem:[#allocation2 + $0xa8] sm:$0xff] %vm860, %v847
        %867 = vst.msk [vmem:[#allocation2 + $0xc8] sm:$0xff] %vm860, %v849
        %868 = vst.msk [vmem:[#allocation2 + $0xe8] sm:$0xff] %vm860, %v851
        %v869 = vld [vmem:[%s524] sm:$0xff]
        %v870 = vld [vmem:[%s524 + $0x10] sm:$0xff]
        %v871 = vld [vmem:[%s524 + $0x20] sm:$0xff]
        %v872 = vld [vmem:[%s524 + $0x30] sm:$0xff]
        %v873 = vld [vmem:[%s524 + $0x40] sm:$0xff]
        %v874 = vld [vmem:[%s524 + $0x50] sm:$0xff]
        %v875 = vld [vmem:[%s524 + $0x60] sm:$0xff]
        %v876 = vld [vmem:[%s524 + $0x70] sm:$0xff]
        %885 = vrot.lane.b32.xlu0 %v869, 66
        %v886 = vpop.permute.xlu0 %885
        %887 = vrot.lane.b32.xlu0 %v870, 66
        %v888 = vpop.permute.xlu0 %887
        %889 = vrot.lane.b32.xlu0 %v871, 66
        %v890 = vpop.permute.xlu0 %889
        %891 = vrot.lane.b32.xlu0 %v872, 66
        %v892 = vpop.permute.xlu0 %891
        %893 = vrot.lane.b32.xlu0 %v873, 66
        %v894 = vpop.permute.xlu0 %893
        %895 = vrot.lane.b32.xlu0 %v874, 66
        %v896 = vpop.permute.xlu0 %895
        %897 = vrot.lane.b32.xlu0 %v875, 66
        %v898 = vpop.permute.xlu0 %897
        %899 = vrot.lane.b32.xlu0 %v876, 66
        %v900 = vpop.permute.xlu0 %899
        %vm909 = vcmask 408848
        %910 = vst.msk [vmem:[#allocation2 + $0x8] sm:$0xff] %vm909, %v886
        %911 = vst.msk [vmem:[#allocation2 + $0x28] sm:$0xff] %vm909, %v888
        %912 = vst.msk [vmem:[#allocation2 + $0x48] sm:$0xff] %vm909, %v890
        %913 = vst.msk [vmem:[#allocation2 + $0x68] sm:$0xff] %vm909, %v892
        %914 = vst.msk [vmem:[#allocation2 + $0x88] sm:$0xff] %vm909, %v894
        %915 = vst.msk [vmem:[#allocation2 + $0xa8] sm:$0xff] %vm909, %v896
        %916 = vst.msk [vmem:[#allocation2 + $0xc8] sm:$0xff] %vm909, %v898
        %917 = vst.msk [vmem:[#allocation2 + $0xe8] sm:$0xff] %vm909, %v900
        %v918 = vld [vmem:[%s524] sm:$0xff]
        %v919 = vld [vmem:[%s524 + $0x10] sm:$0xff]
        %v920 = vld [vmem:[%s524 + $0x20] sm:$0xff]
        %v921 = vld [vmem:[%s524 + $0x30] sm:$0xff]
        %v922 = vld [vmem:[%s524 + $0x40] sm:$0xff]
        %v923 = vld [vmem:[%s524 + $0x50] sm:$0xff]
        %v924 = vld [vmem:[%s524 + $0x60] sm:$0xff]
        %v925 = vld [vmem:[%s524 + $0x70] sm:$0xff]
        %934 = vrot.lane.b32.xlu0 %v918, 70
        %v935 = vpop.permute.xlu0 %934
        %936 = vrot.lane.b32.xlu0 %v919, 70
        %v937 = vpop.permute.xlu0 %936
        %938 = vrot.lane.b32.xlu0 %v920, 70
        %v939 = vpop.permute.xlu0 %938
        %940 = vrot.lane.b32.xlu0 %v921, 70
        %v941 = vpop.permute.xlu0 %940
        %942 = vrot.lane.b32.xlu0 %v922, 70
        %v943 = vpop.permute.xlu0 %942
        %944 = vrot.lane.b32.xlu0 %v923, 70
        %v945 = vpop.permute.xlu0 %944
        %946 = vrot.lane.b32.xlu0 %v924, 70
        %v947 = vpop.permute.xlu0 %946
        %948 = vrot.lane.b32.xlu0 %v925, 70
        %v949 = vpop.permute.xlu0 %948
        %vm958 = vcmask 572848
        %959 = vst.msk [vmem:[#allocation2 + $0x8] sm:$0xff] %vm958, %v935
        %960 = vst.msk [vmem:[#allocation2 + $0x28] sm:$0xff] %vm958, %v937
        %961 = vst.msk [vmem:[#allocation2 + $0x48] sm:$0xff] %vm958, %v939
        %962 = vst.msk [vmem:[#allocation2 + $0x68] sm:$0xff] %vm958, %v941
        %963 = vst.msk [vmem:[#allocation2 + $0x88] sm:$0xff] %vm958, %v943
        %964 = vst.msk [vmem:[#allocation2 + $0xa8] sm:$0xff] %vm958, %v945
        %965 = vst.msk [vmem:[#allocation2 + $0xc8] sm:$0xff] %vm958, %v947
        %966 = vst.msk [vmem:[#allocation2 + $0xe8] sm:$0xff] %vm958, %v949
        %v967 = vld [vmem:[%s524 + $0x8] sm:$0xff]
        %v968 = vld [vmem:[%s524 + $0x18] sm:$0xff]
        %v969 = vld [vmem:[%s524 + $0x28] sm:$0xff]
        %v970 = vld [vmem:[%s524 + $0x38] sm:$0xff]
        %v971 = vld [vmem:[%s524 + $0x48] sm:$0xff]
        %v972 = vld [vmem:[%s524 + $0x58] sm:$0xff]
        %v973 = vld [vmem:[%s524 + $0x68] sm:$0xff]
        %v974 = vld [vmem:[%s524 + $0x78] sm:$0xff]
        %983 = vrot.lane.b32.xlu0 %v967, 74
        %v984 = vpop.permute.xlu0 %983
        %985 = vrot.lane.b32.xlu0 %v968, 74
        %v986 = vpop.permute.xlu0 %985
        %987 = vrot.lane.b32.xlu0 %v969, 74
        %v988 = vpop.permute.xlu0 %987
        %989 = vrot.lane.b32.xlu0 %v970, 74
        %v990 = vpop.permute.xlu0 %989
        %991 = vrot.lane.b32.xlu0 %v971, 74
        %v992 = vpop.permute.xlu0 %991
        %993 = vrot.lane.b32.xlu0 %v972, 74
        %v994 = vpop.permute.xlu0 %993
        %995 = vrot.lane.b32.xlu0 %v973, 74
        %v996 = vpop.permute.xlu0 %995
        %997 = vrot.lane.b32.xlu0 %v974, 74
        %v998 = vpop.permute.xlu0 %997
        %vm1007 = vcmask 736848
        %1008 = vst.msk [vmem:[#allocation2 + $0x8] sm:$0xff] %vm1007, %v984
        %1009 = vst.msk [vmem:[#allocation2 + $0x28] sm:$0xff] %vm1007, %v986
        %1010 = vst.msk [vmem:[#allocation2 + $0x48] sm:$0xff] %vm1007, %v988
        %1011 = vst.msk [vmem:[#allocation2 + $0x68] sm:$0xff] %vm1007, %v990
        %1012 = vst.msk [vmem:[#allocation2 + $0x88] sm:$0xff] %vm1007, %v992
        %1013 = vst.msk [vmem:[#allocation2 + $0xa8] sm:$0xff] %vm1007, %v994
        %1014 = vst.msk [vmem:[#allocation2 + $0xc8] sm:$0xff] %vm1007, %v996
        %1015 = vst.msk [vmem:[#allocation2 + $0xe8] sm:$0xff] %vm1007, %v998
        %v1016 = vld [vmem:[%s524 + $0x8] sm:$0xff]
        %v1017 = vld [vmem:[%s524 + $0x18] sm:$0xff]
        %v1018 = vld [vmem:[%s524 + $0x28] sm:$0xff]
        %v1019 = vld [vmem:[%s524 + $0x38] sm:$0xff]
        %v1020 = vld [vmem:[%s524 + $0x48] sm:$0xff]
        %v1021 = vld [vmem:[%s524 + $0x58] sm:$0xff]
        %v1022 = vld [vmem:[%s524 + $0x68] sm:$0xff]
        %v1023 = vld [vmem:[%s524 + $0x78] sm:$0xff]
        %1032 = vrot.lane.b32.xlu0 %v1016, 78
        %v1033 = vpop.permute.xlu0 %1032
        %1034 = vrot.lane.b32.xlu0 %v1017, 78
        %v1035 = vpop.permute.xlu0 %1034
        %1036 = vrot.lane.b32.xlu0 %v1018, 78
        %v1037 = vpop.permute.xlu0 %1036
        %1038 = vrot.lane.b32.xlu0 %v1019, 78
        %v1039 = vpop.permute.xlu0 %1038
        %1040 = vrot.lane.b32.xlu0 %v1020, 78
        %v1041 = vpop.permute.xlu0 %1040
        %1042 = vrot.lane.b32.xlu0 %v1021, 78
        %v1043 = vpop.permute.xlu0 %1042
        %1044 = vrot.lane.b32.xlu0 %v1022, 78
        %v1045 = vpop.permute.xlu0 %1044
        %1046 = vrot.lane.b32.xlu0 %v1023, 78
        %v1047 = vpop.permute.xlu0 %1046
        %vm1056 = vcmask 900848
        %1057 = vst.msk [vmem:[#allocation2 + $0x8] sm:$0xff] %vm1056, %v1033
        %1058 = vst.msk [vmem:[#allocation2 + $0x28] sm:$0xff] %vm1056, %v1035
        %1059 = vst.msk [vmem:[#allocation2 + $0x48] sm:$0xff] %vm1056, %v1037
        %1060 = vst.msk [vmem:[#allocation2 + $0x68] sm:$0xff] %vm1056, %v1039
        %1061 = vst.msk [vmem:[#allocation2 + $0x88] sm:$0xff] %vm1056, %v1041
        %1062 = vst.msk [vmem:[#allocation2 + $0xa8] sm:$0xff] %vm1056, %v1043
        %1063 = vst.msk [vmem:[#allocation2 + $0xc8] sm:$0xff] %vm1056, %v1045
        %1064 = vst.msk [vmem:[#allocation2 + $0xe8] sm:$0xff] %vm1056, %v1047
        %v1065 = vld [vmem:[%s524 + $0x8] sm:$0xff]
        %v1066 = vld [vmem:[%s524 + $0x18] sm:$0xff]
        %v1067 = vld [vmem:[%s524 + $0x28] sm:$0xff]
        %v1068 = vld [vmem:[%s524 + $0x38] sm:$0xff]
        %v1069 = vld [vmem:[%s524 + $0x48] sm:$0xff]
        %v1070 = vld [vmem:[%s524 + $0x58] sm:$0xff]
        %v1071 = vld [vmem:[%s524 + $0x68] sm:$0xff]
        %v1072 = vld [vmem:[%s524 + $0x78] sm:$0xff]
        %1081 = vrot.lane.b32.xlu0 %v1065, 82
        %v1082 = vpop.permute.xlu0 %1081
        %1083 = vrot.lane.b32.xlu0 %v1066, 82
        %v1084 = vpop.permute.xlu0 %1083
        %1085 = vrot.lane.b32.xlu0 %v1067, 82
        %v1086 = vpop.permute.xlu0 %1085
        %1087 = vrot.lane.b32.xlu0 %v1068, 82
        %v1088 = vpop.permute.xlu0 %1087
        %1089 = vrot.lane.b32.xlu0 %v1069, 82
        %v1090 = vpop.permute.xlu0 %1089
        %1091 = vrot.lane.b32.xlu0 %v1070, 82
        %v1092 = vpop.permute.xlu0 %1091
        %1093 = vrot.lane.b32.xlu0 %v1071, 82
        %v1094 = vpop.permute.xlu0 %1093
        %1095 = vrot.lane.b32.xlu0 %v1072, 82
        %v1096 = vpop.permute.xlu0 %1095
        %vm1105 = vcmask 1048464
        %1106 = vst.msk [vmem:[#allocation2 + $0x8] sm:$0xff] %vm1105, %v1082
        %vm1107 = vcmask 15360
        %1108 = vst.msk [vmem:[#allocation2 + $0x10] sm:$0xff] %vm1107, %v1082
        %1109 = vst.msk [vmem:[#allocation2 + $0x28] sm:$0xff] %vm1105, %v1084
        %1110 = vst.msk [vmem:[#allocation2 + $0x30] sm:$0xff] %vm1107, %v1084
        %1111 = vst.msk [vmem:[#allocation2 + $0x48] sm:$0xff] %vm1105, %v1086
        %1112 = vst.msk [vmem:[#allocation2 + $0x50] sm:$0xff] %vm1107, %v1086
        %1113 = vst.msk [vmem:[#allocation2 + $0x68] sm:$0xff] %vm1105, %v1088
        %1114 = vst.msk [vmem:[#allocation2 + $0x70] sm:$0xff] %vm1107, %v1088
        %1115 = vst.msk [vmem:[#allocation2 + $0x88] sm:$0xff] %vm1105, %v1090
        %1116 = vst.msk [vmem:[#allocation2 + $0x90] sm:$0xff] %vm1107, %v1090
        %1117 = vst.msk [vmem:[#allocation2 + $0xa8] sm:$0xff] %vm1105, %v1092
        %1118 = vst.msk [vmem:[#allocation2 + $0xb0] sm:$0xff] %vm1107, %v1092
        %1119 = vst.msk [vmem:[#allocation2 + $0xc8] sm:$0xff] %vm1105, %v1094
        %1120 = vst.msk [vmem:[#allocation2 + $0xd0] sm:$0xff] %vm1107, %v1094
        %1121 = vst.msk [vmem:[#allocation2 + $0xe8] sm:$0xff] %vm1105, %v1096
        %1122 = vst.msk [vmem:[#allocation2 + $0xf0] sm:$0xff] %vm1107, %v1096
        %v1123 = vld [vmem:[%s524 + $0x8] sm:$0xff]
        %v1124 = vld [vmem:[%s524 + $0x18] sm:$0xff]
        %v1125 = vld [vmem:[%s524 + $0x28] sm:$0xff]
        %v1126 = vld [vmem:[%s524 + $0x38] sm:$0xff]
        %v1127 = vld [vmem:[%s524 + $0x48] sm:$0xff]
        %v1128 = vld [vmem:[%s524 + $0x58] sm:$0xff]
        %v1129 = vld [vmem:[%s524 + $0x68] sm:$0xff]
        %v1130 = vld [vmem:[%s524 + $0x78] sm:$0xff]
        %1139 = vrot.lane.b32.xlu0 %v1123, 86
        %v1140 = vpop.permute.xlu0 %1139
        %1141 = vrot.lane.b32.xlu0 %v1124, 86
        %v1142 = vpop.permute.xlu0 %1141
        %1143 = vrot.lane.b32.xlu0 %v1125, 86
        %v1144 = vpop.permute.xlu0 %1143
        %1145 = vrot.lane.b32.xlu0 %v1126, 86
        %v1146 = vpop.permute.xlu0 %1145
        %1147 = vrot.lane.b32.xlu0 %v1127, 86
        %v1148 = vpop.permute.xlu0 %1147
        %1149 = vrot.lane.b32.xlu0 %v1128, 86
        %v1150 = vpop.permute.xlu0 %1149
        %1151 = vrot.lane.b32.xlu0 %v1129, 86
        %v1152 = vpop.permute.xlu0 %1151
        %1153 = vrot.lane.b32.xlu0 %v1130, 86
        %v1154 = vpop.permute.xlu0 %1153
        %vm1163 = vcmask 179248
        %1164 = vst.msk [vmem:[#allocation2 + $0x10] sm:$0xff] %vm1163, %v1140
        %1165 = vst.msk [vmem:[#allocation2 + $0x30] sm:$0xff] %vm1163, %v1142
        %1166 = vst.msk [vmem:[#allocation2 + $0x50] sm:$0xff] %vm1163, %v1144
        %1167 = vst.msk [vmem:[#allocation2 + $0x70] sm:$0xff] %vm1163, %v1146
        %1168 = vst.msk [vmem:[#allocation2 + $0x90] sm:$0xff] %vm1163, %v1148
        %1169 = vst.msk [vmem:[#allocation2 + $0xb0] sm:$0xff] %vm1163, %v1150
        %1170 = vst.msk [vmem:[#allocation2 + $0xd0] sm:$0xff] %vm1163, %v1152
        %1171 = vst.msk [vmem:[#allocation2 + $0xf0] sm:$0xff] %vm1163, %v1154
        %v1172 = vld [vmem:[%s524 + $0x8] sm:$0xff]
        %v1173 = vld [vmem:[%s524 + $0x18] sm:$0xff]
        %v1174 = vld [vmem:[%s524 + $0x28] sm:$0xff]
        %v1175 = vld [vmem:[%s524 + $0x38] sm:$0xff]
        %v1176 = vld [vmem:[%s524 + $0x48] sm:$0xff]
        %v1177 = vld [vmem:[%s524 + $0x58] sm:$0xff]
        %v1178 = vld [vmem:[%s524 + $0x68] sm:$0xff]
        %v1179 = vld [vmem:[%s524 + $0x78] sm:$0xff]
        %1188 = vrot.lane.b32.xlu0 %v1172, 90
        %v1189 = vpop.permute.xlu0 %1188
        %1190 = vrot.lane.b32.xlu0 %v1173, 90
        %v1191 = vpop.permute.xlu0 %1190
        %1192 = vrot.lane.b32.xlu0 %v1174, 90
        %v1193 = vpop.permute.xlu0 %1192
        %1194 = vrot.lane.b32.xlu0 %v1175, 90
        %v1195 = vpop.permute.xlu0 %1194
        %1196 = vrot.lane.b32.xlu0 %v1176, 90
        %v1197 = vpop.permute.xlu0 %1196
        %1198 = vrot.lane.b32.xlu0 %v1177, 90
        %v1199 = vpop.permute.xlu0 %1198
        %1200 = vrot.lane.b32.xlu0 %v1178, 90
        %v1201 = vpop.permute.xlu0 %1200
        %1202 = vrot.lane.b32.xlu0 %v1179, 90
        %v1203 = vpop.permute.xlu0 %1202
        %vm1212 = vcmask 343248
        %1213 = vst.msk [vmem:[#allocation2 + $0x10] sm:$0xff] %vm1212, %v1189
        %1214 = vst.msk [vmem:[#allocation2 + $0x30] sm:$0xff] %vm1212, %v1191
        %1215 = vst.msk [vmem:[#allocation2 + $0x50] sm:$0xff] %vm1212, %v1193
        %1216 = vst.msk [vmem:[#allocation2 + $0x70] sm:$0xff] %vm1212, %v1195
        %1217 = vst.msk [vmem:[#allocation2 + $0x90] sm:$0xff] %vm1212, %v1197
        %1218 = vst.msk [vmem:[#allocation2 + $0xb0] sm:$0xff] %vm1212, %v1199
        %1219 = vst.msk [vmem:[#allocation2 + $0xd0] sm:$0xff] %vm1212, %v1201
        %1220 = vst.msk [vmem:[#allocation2 + $0xf0] sm:$0xff] %vm1212, %v1203
        %v1221 = vld [vmem:[%s524 + $0x8] sm:$0xff]
        %v1222 = vld [vmem:[%s524 + $0x18] sm:$0xff]
        %v1223 = vld [vmem:[%s524 + $0x28] sm:$0xff]
        %v1224 = vld [vmem:[%s524 + $0x38] sm:$0xff]
        %v1225 = vld [vmem:[%s524 + $0x48] sm:$0xff]
        %v1226 = vld [vmem:[%s524 + $0x58] sm:$0xff]
        %v1227 = vld [vmem:[%s524 + $0x68] sm:$0xff]
        %v1228 = vld [vmem:[%s524 + $0x78] sm:$0xff]
        %1237 = vrot.lane.b32.xlu0 %v1221, 94
        %v1238 = vpop.permute.xlu0 %1237
        %1239 = vrot.lane.b32.xlu0 %v1222, 94
        %v1240 = vpop.permute.xlu0 %1239
        %1241 = vrot.lane.b32.xlu0 %v1223, 94
        %v1242 = vpop.permute.xlu0 %1241
        %1243 = vrot.lane.b32.xlu0 %v1224, 94
        %v1244 = vpop.permute.xlu0 %1243
        %1245 = vrot.lane.b32.xlu0 %v1225, 94
        %v1246 = vpop.permute.xlu0 %1245
        %1247 = vrot.lane.b32.xlu0 %v1226, 94
        %v1248 = vpop.permute.xlu0 %1247
        %1249 = vrot.lane.b32.xlu0 %v1227, 94
        %v1250 = vpop.permute.xlu0 %1249
        %1251 = vrot.lane.b32.xlu0 %v1228, 94
        %v1252 = vpop.permute.xlu0 %1251
        %vm1261 = vcmask 507248
        %1262 = vst.msk [vmem:[#allocation2 + $0x10] sm:$0xff] %vm1261, %v1238
        %1263 = vst.msk [vmem:[#allocation2 + $0x30] sm:$0xff] %vm1261, %v1240
        %1264 = vst.msk [vmem:[#allocation2 + $0x50] sm:$0xff] %vm1261, %v1242
        %1265 = vst.msk [vmem:[#allocation2 + $0x70] sm:$0xff] %vm1261, %v1244
        %1266 = vst.msk [vmem:[#allocation2 + $0x90] sm:$0xff] %vm1261, %v1246
        %1267 = vst.msk [vmem:[#allocation2 + $0xb0] sm:$0xff] %vm1261, %v1248
        %1268 = vst.msk [vmem:[#allocation2 + $0xd0] sm:$0xff] %vm1261, %v1250
        %1269 = vst.msk [vmem:[#allocation2 + $0xf0] sm:$0xff] %vm1261, %v1252
        %v1270 = vld [vmem:[%s524 + $0x8] sm:$0xff]
        %v1271 = vld [vmem:[%s524 + $0x18] sm:$0xff]
        %v1272 = vld [vmem:[%s524 + $0x28] sm:$0xff]
        %v1273 = vld [vmem:[%s524 + $0x38] sm:$0xff]
        %v1274 = vld [vmem:[%s524 + $0x48] sm:$0xff]
        %v1275 = vld [vmem:[%s524 + $0x58] sm:$0xff]
        %v1276 = vld [vmem:[%s524 + $0x68] sm:$0xff]
        %v1277 = vld [vmem:[%s524 + $0x78] sm:$0xff]
        %1286 = vrot.lane.b32.xlu0 %v1270, 98
        %v1287 = vpop.permute.xlu0 %1286
        %1288 = vrot.lane.b32.xlu0 %v1271, 98
        %v1289 = vpop.permute.xlu0 %1288
        %1290 = vrot.lane.b32.xlu0 %v1272, 98
        %v1291 = vpop.permute.xlu0 %1290
        %1292 = vrot.lane.b32.xlu0 %v1273, 98
        %v1293 = vpop.permute.xlu0 %1292
        %1294 = vrot.lane.b32.xlu0 %v1274, 98
        %v1295 = vpop.permute.xlu0 %1294
        %1296 = vrot.lane.b32.xlu0 %v1275, 98
        %v1297 = vpop.permute.xlu0 %1296
        %1298 = vrot.lane.b32.xlu0 %v1276, 98
        %v1299 = vpop.permute.xlu0 %1298
        %1300 = vrot.lane.b32.xlu0 %v1277, 98
        %v1301 = vpop.permute.xlu0 %1300
        %vm1310 = vcmask 671248
        %1311 = vst.msk [vmem:[#allocation2 + $0x10] sm:$0xff] %vm1310, %v1287
        %1312 = vst.msk [vmem:[#allocation2 + $0x30] sm:$0xff] %vm1310, %v1289
        %1313 = vst.msk [vmem:[#allocation2 + $0x50] sm:$0xff] %vm1310, %v1291
        %1314 = vst.msk [vmem:[#allocation2 + $0x70] sm:$0xff] %vm1310, %v1293
        %1315 = vst.msk [vmem:[#allocation2 + $0x90] sm:$0xff] %vm1310, %v1295
        %1316 = vst.msk [vmem:[#allocation2 + $0xb0] sm:$0xff] %vm1310, %v1297
        %1317 = vst.msk [vmem:[#allocation2 + $0xd0] sm:$0xff] %vm1310, %v1299
        %1318 = vst.msk [vmem:[#allocation2 + $0xf0] sm:$0xff] %vm1310, %v1301
        %v1319 = vld [vmem:[%s524 + $0x8] sm:$0xff]
        %v1320 = vld [vmem:[%s524 + $0x18] sm:$0xff]
        %v1321 = vld [vmem:[%s524 + $0x28] sm:$0xff]
        %v1322 = vld [vmem:[%s524 + $0x38] sm:$0xff]
        %v1323 = vld [vmem:[%s524 + $0x48] sm:$0xff]
        %v1324 = vld [vmem:[%s524 + $0x58] sm:$0xff]
        %v1325 = vld [vmem:[%s524 + $0x68] sm:$0xff]
        %v1326 = vld [vmem:[%s524 + $0x78] sm:$0xff]
        %1335 = vrot.lane.b32.xlu0 %v1319, 102
        %v1336 = vpop.permute.xlu0 %1335
        %1337 = vrot.lane.b32.xlu0 %v1320, 102
        %v1338 = vpop.permute.xlu0 %1337
        %1339 = vrot.lane.b32.xlu0 %v1321, 102
        %v1340 = vpop.permute.xlu0 %1339
        %1341 = vrot.lane.b32.xlu0 %v1322, 102
        %v1342 = vpop.permute.xlu0 %1341
        %1343 = vrot.lane.b32.xlu0 %v1323, 102
        %v1344 = vpop.permute.xlu0 %1343
        %1345 = vrot.lane.b32.xlu0 %v1324, 102
        %v1346 = vpop.permute.xlu0 %1345
        %1347 = vrot.lane.b32.xlu0 %v1325, 102
        %v1348 = vpop.permute.xlu0 %1347
        %1349 = vrot.lane.b32.xlu0 %v1326, 102
        %v1350 = vpop.permute.xlu0 %1349
        %vm1359 = vcmask 835248
        %1360 = vst.msk [vmem:[#allocation2 + $0x10] sm:$0xff] %vm1359, %v1336
        %1361 = vst.msk [vmem:[#allocation2 + $0x30] sm:$0xff] %vm1359, %v1338
        %1362 = vst.msk [vmem:[#allocation2 + $0x50] sm:$0xff] %vm1359, %v1340
        %1363 = vst.msk [vmem:[#allocation2 + $0x70] sm:$0xff] %vm1359, %v1342
        %1364 = vst.msk [vmem:[#allocation2 + $0x90] sm:$0xff] %vm1359, %v1344
        %1365 = vst.msk [vmem:[#allocation2 + $0xb0] sm:$0xff] %vm1359, %v1346
        %1366 = vst.msk [vmem:[#allocation2 + $0xd0] sm:$0xff] %vm1359, %v1348
        %1367 = vst.msk [vmem:[#allocation2 + $0xf0] sm:$0xff] %vm1359, %v1350
        %s1368 = sld [smem:[#allocation5]]
        %v1369 = vld [vmem:[#allocation2] sm:$0xff]
        %v1370 = vld [vmem:[#allocation2 + $0x8] sm:$0xff]
        %v1371 = vld [vmem:[#allocation2 + $0x10] sm:$0xff]
        %v1372 = vld [vmem:[#allocation2 + $0x20] sm:$0xff]
        %v1373 = vld [vmem:[#allocation2 + $0x28] sm:$0xff]
        %v1374 = vld [vmem:[#allocation2 + $0x30] sm:$0xff]
        %v1375 = vld [vmem:[#allocation2 + $0x40] sm:$0xff]
        %v1376 = vld [vmem:[#allocation2 + $0x48] sm:$0xff]
        %v1377 = vld [vmem:[#allocation2 + $0x50] sm:$0xff]
        %v1378 = vld [vmem:[#allocation2 + $0x60] sm:$0xff]
        %v1379 = vld [vmem:[#allocation2 + $0x68] sm:$0xff]
        %v1380 = vld [vmem:[#allocation2 + $0x70] sm:$0xff]
        %v1381 = vld [vmem:[#allocation2 + $0x80] sm:$0xff]
        %v1382 = vld [vmem:[#allocation2 + $0x88] sm:$0xff]
        %v1383 = vld [vmem:[#allocation2 + $0x90] sm:$0xff]
        %v1384 = vld [vmem:[#allocation2 + $0xa0] sm:$0xff]
        %v1385 = vld [vmem:[#allocation2 + $0xa8] sm:$0xff]
        %v1386 = vld [vmem:[#allocation2 + $0xb0] sm:$0xff]
        %v1387 = vld [vmem:[#allocation2 + $0xc0] sm:$0xff]
        %v1388 = vld [vmem:[#allocation2 + $0xc8] sm:$0xff]
        %v1389 = vld [vmem:[#allocation2 + $0xd0] sm:$0xff]
        %v1390 = vld [vmem:[#allocation2 + $0xe0] sm:$0xff]
        %v1391 = vld [vmem:[#allocation2 + $0xe8] sm:$0xff]
        %v1392 = vld [vmem:[#allocation2 + $0xf0] sm:$0xff]
        %v1393 = vstv %s1368
        %v1394 = vmul.f32 %v1393, %v1369
        %v1395 = vmul.f32 %v1393, %v1370
        %v1396 = vmul.f32 %v1393, %v1371
        %v1397 = vmul.f32 %v1393, %v1372
        %v1398 = vmul.f32 %v1393, %v1373
        %v1399 = vmul.f32 %v1393, %v1374
        %v1400 = vmul.f32 %v1393, %v1375
        %v1401 = vmul.f32 %v1393, %v1376
        %v1402 = vmul.f32 %v1393, %v1377
        %v1403 = vmul.f32 %v1393, %v1378
        %v1404 = vmul.f32 %v1393, %v1379
        %v1405 = vmul.f32 %v1393, %v1380
        %v1406 = vmul.f32 %v1393, %v1381
        %v1407 = vmul.f32 %v1393, %v1382
        %v1408 = vmul.f32 %v1393, %v1383
        %v1409 = vmul.f32 %v1393, %v1384
        %v1410 = vmul.f32 %v1393, %v1385
        %v1411 = vmul.f32 %v1393, %v1386
        %v1412 = vmul.f32 %v1393, %v1387
        %v1413 = vmul.f32 %v1393, %v1388
        %v1414 = vmul.f32 %v1393, %v1389
        %v1415 = vmul.f32 %v1393, %v1390
        %v1416 = vmul.f32 %v1393, %v1391
        %v1417 = vmul.f32 %v1393, %v1392
        %v1418 = vadd.f32 %v1394, 0.0
        %v1419 = vadd.f32 %v1395, 0.0
        %v1420 = vadd.f32 %v1396, 0.0
        %v1421 = vadd.f32 %v1397, 0.0
        %v1422 = vadd.f32 %v1398, 0.0
        %v1423 = vadd.f32 %v1399, 0.0
        %v1424 = vadd.f32 %v1400, 0.0
        %v1425 = vadd.f32 %v1401, 0.0
        %v1426 = vadd.f32 %v1402, 0.0
        %v1427 = vadd.f32 %v1403, 0.0
        %v1428 = vadd.f32 %v1404, 0.0
        %v1429 = vadd.f32 %v1405, 0.0
        %v1430 = vadd.f32 %v1406, 0.0
        %v1431 = vadd.f32 %v1407, 0.0
        %v1432 = vadd.f32 %v1408, 0.0
        %v1433 = vadd.f32 %v1409, 0.0
        %v1434 = vadd.f32 %v1410, 0.0
        %v1435 = vadd.f32 %v1411, 0.0
        %v1436 = vadd.f32 %v1412, 0.0
        %v1437 = vadd.f32 %v1413, 0.0
        %v1438 = vadd.f32 %v1414, 0.0
        %v1439 = vadd.f32 %v1415, 0.0
        %v1440 = vadd.f32 %v1416, 0.0
        %v1441 = vadd.f32 %v1417, 0.0
        %s1442 = sld [smem:[#allocation5 + $0x1]]
        %v1443 = vstv %s1442
        %v1444 = vmul.f32 %v1443, %v1369
        %v1445 = vmul.f32 %v1443, %v1370
        %v1446 = vmul.f32 %v1443, %v1371
        %v1447 = vmul.f32 %v1443, %v1372
        %v1448 = vmul.f32 %v1443, %v1373
        %v1449 = vmul.f32 %v1443, %v1374
        %v1450 = vmul.f32 %v1443, %v1375
        %v1451 = vmul.f32 %v1443, %v1376
        %v1452 = vmul.f32 %v1443, %v1377
        %v1453 = vmul.f32 %v1443, %v1378
        %v1454 = vmul.f32 %v1443, %v1379
        %v1455 = vmul.f32 %v1443, %v1380
        %v1456 = vmul.f32 %v1443, %v1381
        %v1457 = vmul.f32 %v1443, %v1382
        %v1458 = vmul.f32 %v1443, %v1383
        %v1459 = vmul.f32 %v1443, %v1384
        %v1460 = vmul.f32 %v1443, %v1385
        %v1461 = vmul.f32 %v1443, %v1386
        %v1462 = vmul.f32 %v1443, %v1387
        %v1463 = vmul.f32 %v1443, %v1388
        %v1464 = vmul.f32 %v1443, %v1389
        %v1465 = vmul.f32 %v1443, %v1390
        %v1466 = vmul.f32 %v1443, %v1391
        %v1467 = vmul.f32 %v1443, %v1392
        %1492 = vrot.lane.b32.xlu0 %v1444, 127
        %v1493 = vpop.permute.xlu0 %1492
        %1494 = vrot.lane.b32.xlu0 %v1445, 127
        %v1495 = vpop.permute.xlu0 %1494
        %1496 = vrot.lane.b32.xlu0 %v1446, 127
        %v1497 = vpop.permute.xlu0 %1496
        %1498 = vrot.lane.b32.xlu0 %v1447, 127
        %v1499 = vpop.permute.xlu0 %1498
        %1500 = vrot.lane.b32.xlu0 %v1448, 127
        %v1501 = vpop.permute.xlu0 %1500
        %1502 = vrot.lane.b32.xlu0 %v1449, 127
        %v1503 = vpop.permute.xlu0 %1502
        %1504 = vrot.lane.b32.xlu0 %v1450, 127
        %v1505 = vpop.permute.xlu0 %1504
        %1506 = vrot.lane.b32.xlu0 %v1451, 127
        %v1507 = vpop.permute.xlu0 %1506
        %1508 = vrot.lane.b32.xlu0 %v1452, 127
        %v1509 = vpop.permute.xlu0 %1508
        %1510 = vrot.lane.b32.xlu0 %v1453, 127
        %v1511 = vpop.permute.xlu0 %1510
        %1512 = vrot.lane.b32.xlu0 %v1454, 127
        %v1513 = vpop.permute.xlu0 %1512
        %1514 = vrot.lane.b32.xlu0 %v1455, 127
        %v1515 = vpop.permute.xlu0 %1514
        %1516 = vrot.lane.b32.xlu0 %v1456, 127
        %v1517 = vpop.permute.xlu0 %1516
        %1518 = vrot.lane.b32.xlu0 %v1457, 127
        %v1519 = vpop.permute.xlu0 %1518
        %1520 = vrot.lane.b32.xlu0 %v1458, 127
        %v1521 = vpop.permute.xlu0 %1520
        %1522 = vrot.lane.b32.xlu0 %v1459, 127
        %v1523 = vpop.permute.xlu0 %1522
        %1524 = vrot.lane.b32.xlu0 %v1460, 127
        %v1525 = vpop.permute.xlu0 %1524
        %1526 = vrot.lane.b32.xlu0 %v1461, 127
        %v1527 = vpop.permute.xlu0 %1526
        %1528 = vrot.lane.b32.xlu0 %v1462, 127
        %v1529 = vpop.permute.xlu0 %1528
        %1530 = vrot.lane.b32.xlu0 %v1463, 127
        %v1531 = vpop.permute.xlu0 %1530
        %1532 = vrot.lane.b32.xlu0 %v1464, 127
        %v1533 = vpop.permute.xlu0 %1532
        %1534 = vrot.lane.b32.xlu0 %v1465, 127
        %v1535 = vpop.permute.xlu0 %1534
        %1536 = vrot.lane.b32.xlu0 %v1466, 127
        %v1537 = vpop.permute.xlu0 %1536
        %1538 = vrot.lane.b32.xlu0 %v1467, 127
        %v1539 = vpop.permute.xlu0 %1538
        %vm1540 = vcmask 1039360
        %v1541 = vsel %vm1540, %v1493, %v1495
        %v1542 = vsel %vm1540, %v1495, %v1497
        %v1543 = vsel %vm1540, %v1499, %v1501
        %v1544 = vsel %vm1540, %v1501, %v1503
        %v1545 = vsel %vm1540, %v1505, %v1507
        %v1546 = vsel %vm1540, %v1507, %v1509
        %v1547 = vsel %vm1540, %v1511, %v1513
        %v1548 = vsel %vm1540, %v1513, %v1515
        %v1549 = vsel %vm1540, %v1517, %v1519
        %v1550 = vsel %vm1540, %v1519, %v1521
        %v1551 = vsel %vm1540, %v1523, %v1525
        %v1552 = vsel %vm1540, %v1525, %v1527
        %v1553 = vsel %vm1540, %v1529, %v1531
        %v1554 = vsel %vm1540, %v1531, %v1533
        %v1555 = vsel %vm1540, %v1535, %v1537
        %v1556 = vsel %vm1540, %v1537, %v1539
        %v1581 = vadd.f32 %v1418, %v1541
        %v1582 = vadd.f32 %v1419, %v1542
        %v1583 = vadd.f32 %v1420, %v1497
        %v1584 = vadd.f32 %v1421, %v1543
        %v1585 = vadd.f32 %v1422, %v1544
        %v1586 = vadd.f32 %v1423, %v1503
        %v1587 = vadd.f32 %v1424, %v1545
        %v1588 = vadd.f32 %v1425, %v1546
        %v1589 = vadd.f32 %v1426, %v1509
        %v1590 = vadd.f32 %v1427, %v1547
        %v1591 = vadd.f32 %v1428, %v1548
        %v1592 = vadd.f32 %v1429, %v1515
        %v1593 = vadd.f32 %v1430, %v1549
        %v1594 = vadd.f32 %v1431, %v1550
        %v1595 = vadd.f32 %v1432, %v1521
        %v1596 = vadd.f32 %v1433, %v1551
        %v1597 = vadd.f32 %v1434, %v1552
        %v1598 = vadd.f32 %v1435, %v1527
        %v1599 = vadd.f32 %v1436, %v1553
        %v1600 = vadd.f32 %v1437, %v1554
        %v1601 = vadd.f32 %v1438, %v1533
        %v1602 = vadd.f32 %v1439, %v1555
        %v1603 = vadd.f32 %v1440, %v1556
        %v1604 = vadd.f32 %v1441, %v1539
        %s1605 = sld [smem:[#allocation5 + $0x2]]
        %v1606 = vstv %s1605
        %v1607 = vmul.f32 %v1606, %v1369
        %v1608 = vmul.f32 %v1606, %v1370
        %v1609 = vmul.f32 %v1606, %v1371
        %v1610 = vmul.f32 %v1606, %v1372
        %v1611 = vmul.f32 %v1606, %v1373
        %v1612 = vmul.f32 %v1606, %v1374
        %v1613 = vmul.f32 %v1606, %v1375
        %v1614 = vmul.f32 %v1606, %v1376
        %v1615 = vmul.f32 %v1606, %v1377
        %v1616 = vmul.f32 %v1606, %v1378
        %v1617 = vmul.f32 %v1606, %v1379
        %v1618 = vmul.f32 %v1606, %v1380
        %v1619 = vmul.f32 %v1606, %v1381
        %v1620 = vmul.f32 %v1606, %v1382
        %v1621 = vmul.f32 %v1606, %v1383
        %v1622 = vmul.f32 %v1606, %v1384
        %v1623 = vmul.f32 %v1606, %v1385
        %v1624 = vmul.f32 %v1606, %v1386
        %v1625 = vmul.f32 %v1606, %v1387
        %v1626 = vmul.f32 %v1606, %v1388
        %v1627 = vmul.f32 %v1606, %v1389
        %v1628 = vmul.f32 %v1606, %v1390
        %v1629 = vmul.f32 %v1606, %v1391
        %v1630 = vmul.f32 %v1606, %v1392
        %1655 = vrot.lane.b32.xlu0 %v1607, 126
        %v1656 = vpop.permute.xlu0 %1655
        %1657 = vrot.lane.b32.xlu0 %v1608, 126
        %v1658 = vpop.permute.xlu0 %1657
        %1659 = vrot.lane.b32.xlu0 %v1609, 126
        %v1660 = vpop.permute.xlu0 %1659
        %1661 = vrot.lane.b32.xlu0 %v1610, 126
        %v1662 = vpop.permute.xlu0 %1661
        %1663 = vrot.lane.b32.xlu0 %v1611, 126
        %v1664 = vpop.permute.xlu0 %1663
        %1665 = vrot.lane.b32.xlu0 %v1612, 126
        %v1666 = vpop.permute.xlu0 %1665
        %1667 = vrot.lane.b32.xlu0 %v1613, 126
        %v1668 = vpop.permute.xlu0 %1667
        %1669 = vrot.lane.b32.xlu0 %v1614, 126
        %v1670 = vpop.permute.xlu0 %1669
        %1671 = vrot.lane.b32.xlu0 %v1615, 126
        %v1672 = vpop.permute.xlu0 %1671
        %1673 = vrot.lane.b32.xlu0 %v1616, 126
        %v1674 = vpop.permute.xlu0 %1673
        %1675 = vrot.lane.b32.xlu0 %v1617, 126
        %v1676 = vpop.permute.xlu0 %1675
        %1677 = vrot.lane.b32.xlu0 %v1618, 126
        %v1678 = vpop.permute.xlu0 %1677
        %1679 = vrot.lane.b32.xlu0 %v1619, 126
        %v1680 = vpop.permute.xlu0 %1679
        %1681 = vrot.lane.b32.xlu0 %v1620, 126
        %v1682 = vpop.permute.xlu0 %1681
        %1683 = vrot.lane.b32.xlu0 %v1621, 126
        %v1684 = vpop.permute.xlu0 %1683
        %1685 = vrot.lane.b32.xlu0 %v1622, 126
        %v1686 = vpop.permute.xlu0 %1685
        %1687 = vrot.lane.b32.xlu0 %v1623, 126
        %v1688 = vpop.permute.xlu0 %1687
        %1689 = vrot.lane.b32.xlu0 %v1624, 126
        %v1690 = vpop.permute.xlu0 %1689
        %1691 = vrot.lane.b32.xlu0 %v1625, 126
        %v1692 = vpop.permute.xlu0 %1691
        %1693 = vrot.lane.b32.xlu0 %v1626, 126
        %v1694 = vpop.permute.xlu0 %1693
        %1695 = vrot.lane.b32.xlu0 %v1627, 126
        %v1696 = vpop.permute.xlu0 %1695
        %1697 = vrot.lane.b32.xlu0 %v1628, 126
        %v1698 = vpop.permute.xlu0 %1697
        %1699 = vrot.lane.b32.xlu0 %v1629, 126
        %v1700 = vpop.permute.xlu0 %1699
        %1701 = vrot.lane.b32.xlu0 %v1630, 126
        %v1702 = vpop.permute.xlu0 %1701
        %vm1703 = vcmask 1031168
        %v1704 = vsel %vm1703, %v1656, %v1658
        %v1705 = vsel %vm1703, %v1658, %v1660
        %v1706 = vsel %vm1703, %v1662, %v1664
        %v1707 = vsel %vm1703, %v1664, %v1666
        %v1708 = vsel %vm1703, %v1668, %v1670
        %v1709 = vsel %vm1703, %v1670, %v1672
        %v1710 = vsel %vm1703, %v1674, %v1676
        %v1711 = vsel %vm1703, %v1676, %v1678
        %v1712 = vsel %vm1703, %v1680, %v1682
        %v1713 = vsel %vm1703, %v1682, %v1684
        %v1714 = vsel %vm1703, %v1686, %v1688
        %v1715 = vsel %vm1703, %v1688, %v1690
        %v1716 = vsel %vm1703, %v1692, %v1694
        %v1717 = vsel %vm1703, %v1694, %v1696
        %v1718 = vsel %vm1703, %v1698, %v1700
        %v1719 = vsel %vm1703, %v1700, %v1702
        %v1744 = vadd.f32 %v1581, %v1704
        %v1745 = vadd.f32 %v1582, %v1705
        %v1746 = vadd.f32 %v1583, %v1660
        %v1747 = vadd.f32 %v1584, %v1706
        %v1748 = vadd.f32 %v1585, %v1707
        %v1749 = vadd.f32 %v1586, %v1666
        %v1750 = vadd.f32 %v1587, %v1708
        %v1751 = vadd.f32 %v1588, %v1709
        %v1752 = vadd.f32 %v1589, %v1672
        %v1753 = vadd.f32 %v1590, %v1710
        %v1754 = vadd.f32 %v1591, %v1711
        %v1755 = vadd.f32 %v1592, %v1678
        %v1756 = vadd.f32 %v1593, %v1712
        %v1757 = vadd.f32 %v1594, %v1713
        %v1758 = vadd.f32 %v1595, %v1684
        %v1759 = vadd.f32 %v1596, %v1714
        %v1760 = vadd.f32 %v1597, %v1715
        %v1761 = vadd.f32 %v1598, %v1690
        %v1762 = vadd.f32 %v1599, %v1716
        %v1763 = vadd.f32 %v1600, %v1717
        %v1764 = vadd.f32 %v1601, %v1696
        %v1765 = vadd.f32 %v1602, %v1718
        %v1766 = vadd.f32 %v1603, %v1719
        %v1767 = vadd.f32 %v1604, %v1702
        %s1768 = sld [smem:[#allocation5 + $0x3]]
        %v1769 = vstv %s1768
        %v1770 = vmul.f32 %v1769, %v1369
        %v1771 = vmul.f32 %v1769, %v1370
        %v1772 = vmul.f32 %v1769, %v1371
        %v1773 = vmul.f32 %v1769, %v1372
        %v1774 = vmul.f32 %v1769, %v1373
        %v1775 = vmul.f32 %v1769, %v1374
        %v1776 = vmul.f32 %v1769, %v1375
        %v1777 = vmul.f32 %v1769, %v1376
        %v1778 = vmul.f32 %v1769, %v1377
        %v1779 = vmul.f32 %v1769, %v1378
        %v1780 = vmul.f32 %v1769, %v1379
        %v1781 = vmul.f32 %v1769, %v1380
        %v1782 = vmul.f32 %v1769, %v1381
        %v1783 = vmul.f32 %v1769, %v1382
        %v1784 = vmul.f32 %v1769, %v1383
        %v1785 = vmul.f32 %v1769, %v1384
        %v1786 = vmul.f32 %v1769, %v1385
        %v1787 = vmul.f32 %v1769, %v1386
        %v1788 = vmul.f32 %v1769, %v1387
        %v1789 = vmul.f32 %v1769, %v1388
        %v1790 = vmul.f32 %v1769, %v1389
        %v1791 = vmul.f32 %v1769, %v1390
        %v1792 = vmul.f32 %v1769, %v1391
        %v1793 = vmul.f32 %v1769, %v1392
        %1818 = vrot.lane.b32.xlu0 %v1770, 125
        %v1819 = vpop.permute.xlu0 %1818
        %1820 = vrot.lane.b32.xlu0 %v1771, 125
        %v1821 = vpop.permute.xlu0 %1820
        %1822 = vrot.lane.b32.xlu0 %v1772, 125
        %v1823 = vpop.permute.xlu0 %1822
        %1824 = vrot.lane.b32.xlu0 %v1773, 125
        %v1825 = vpop.permute.xlu0 %1824
        %1826 = vrot.lane.b32.xlu0 %v1774, 125
        %v1827 = vpop.permute.xlu0 %1826
        %1828 = vrot.lane.b32.xlu0 %v1775, 125
        %v1829 = vpop.permute.xlu0 %1828
        %1830 = vrot.lane.b32.xlu0 %v1776, 125
        %v1831 = vpop.permute.xlu0 %1830
        %1832 = vrot.lane.b32.xlu0 %v1777, 125
        %v1833 = vpop.permute.xlu0 %1832
        %1834 = vrot.lane.b32.xlu0 %v1778, 125
        %v1835 = vpop.permute.xlu0 %1834
        %1836 = vrot.lane.b32.xlu0 %v1779, 125
        %v1837 = vpop.permute.xlu0 %1836
        %1838 = vrot.lane.b32.xlu0 %v1780, 125
        %v1839 = vpop.permute.xlu0 %1838
        %1840 = vrot.lane.b32.xlu0 %v1781, 125
        %v1841 = vpop.permute.xlu0 %1840
        %1842 = vrot.lane.b32.xlu0 %v1782, 125
        %v1843 = vpop.permute.xlu0 %1842
        %1844 = vrot.lane.b32.xlu0 %v1783, 125
        %v1845 = vpop.permute.xlu0 %1844
        %1846 = vrot.lane.b32.xlu0 %v1784, 125
        %v1847 = vpop.permute.xlu0 %1846
        %1848 = vrot.lane.b32.xlu0 %v1785, 125
        %v1849 = vpop.permute.xlu0 %1848
        %1850 = vrot.lane.b32.xlu0 %v1786, 125
        %v1851 = vpop.permute.xlu0 %1850
        %1852 = vrot.lane.b32.xlu0 %v1787, 125
        %v1853 = vpop.permute.xlu0 %1852
        %1854 = vrot.lane.b32.xlu0 %v1788, 125
        %v1855 = vpop.permute.xlu0 %1854
        %1856 = vrot.lane.b32.xlu0 %v1789, 125
        %v1857 = vpop.permute.xlu0 %1856
        %1858 = vrot.lane.b32.xlu0 %v1790, 125
        %v1859 = vpop.permute.xlu0 %1858
        %1860 = vrot.lane.b32.xlu0 %v1791, 125
        %v1861 = vpop.permute.xlu0 %1860
        %1862 = vrot.lane.b32.xlu0 %v1792, 125
        %v1863 = vpop.permute.xlu0 %1862
        %1864 = vrot.lane.b32.xlu0 %v1793, 125
        %v1865 = vpop.permute.xlu0 %1864
        %vm1866 = vcmask 1022976
        %v1867 = vsel %vm1866, %v1819, %v1821
        %v1868 = vsel %vm1866, %v1821, %v1823
        %v1869 = vsel %vm1866, %v1825, %v1827
        %v1870 = vsel %vm1866, %v1827, %v1829
        %v1871 = vsel %vm1866, %v1831, %v1833
        %v1872 = vsel %vm1866, %v1833, %v1835
        %v1873 = vsel %vm1866, %v1837, %v1839
        %v1874 = vsel %vm1866, %v1839, %v1841
        %v1875 = vsel %vm1866, %v1843, %v1845
        %v1876 = vsel %vm1866, %v1845, %v1847
        %v1877 = vsel %vm1866, %v1849, %v1851
        %v1878 = vsel %vm1866, %v1851, %v1853
        %v1879 = vsel %vm1866, %v1855, %v1857
        %v1880 = vsel %vm1866, %v1857, %v1859
        %v1881 = vsel %vm1866, %v1861, %v1863
        %v1882 = vsel %vm1866, %v1863, %v1865
        %v1907 = vadd.f32 %v1744, %v1867
        %v1908 = vadd.f32 %v1745, %v1868
        %v1909 = vadd.f32 %v1746, %v1823
        %v1910 = vadd.f32 %v1747, %v1869
        %v1911 = vadd.f32 %v1748, %v1870
        %v1912 = vadd.f32 %v1749, %v1829
        %v1913 = vadd.f32 %v1750, %v1871
        %v1914 = vadd.f32 %v1751, %v1872
        %v1915 = vadd.f32 %v1752, %v1835
        %v1916 = vadd.f32 %v1753, %v1873
        %v1917 = vadd.f32 %v1754, %v1874
        %v1918 = vadd.f32 %v1755, %v1841
        %v1919 = vadd.f32 %v1756, %v1875
        %v1920 = vadd.f32 %v1757, %v1876
        %v1921 = vadd.f32 %v1758, %v1847
        %v1922 = vadd.f32 %v1759, %v1877
        %v1923 = vadd.f32 %v1760, %v1878
        %v1924 = vadd.f32 %v1761, %v1853
        %v1925 = vadd.f32 %v1762, %v1879
        %v1926 = vadd.f32 %v1763, %v1880
        %v1927 = vadd.f32 %v1764, %v1859
        %v1928 = vadd.f32 %v1765, %v1881
        %v1929 = vadd.f32 %v1766, %v1882
        %v1930 = vadd.f32 %v1767, %v1865
        %s1931 = sld [smem:[#allocation5 + $0x4]]
        %v1932 = vstv %s1931
        %v1933 = vmul.f32 %v1932, %v1369
        %v1934 = vmul.f32 %v1932, %v1370
        %v1935 = vmul.f32 %v1932, %v1371
        %v1936 = vmul.f32 %v1932, %v1372
        %v1937 = vmul.f32 %v1932, %v1373
        %v1938 = vmul.f32 %v1932, %v1374
        %v1939 = vmul.f32 %v1932, %v1375
        %v1940 = vmul.f32 %v1932, %v1376
        %v1941 = vmul.f32 %v1932, %v1377
        %v1942 = vmul.f32 %v1932, %v1378
        %v1943 = vmul.f32 %v1932, %v1379
        %v1944 = vmul.f32 %v1932, %v1380
        %v1945 = vmul.f32 %v1932, %v1381
        %v1946 = vmul.f32 %v1932, %v1382
        %v1947 = vmul.f32 %v1932, %v1383
        %v1948 = vmul.f32 %v1932, %v1384
        %v1949 = vmul.f32 %v1932, %v1385
        %v1950 = vmul.f32 %v1932, %v1386
        %v1951 = vmul.f32 %v1932, %v1387
        %v1952 = vmul.f32 %v1932, %v1388
        %v1953 = vmul.f32 %v1932, %v1389
        %v1954 = vmul.f32 %v1932, %v1390
        %v1955 = vmul.f32 %v1932, %v1391
        %v1956 = vmul.f32 %v1932, %v1392
        %1981 = vrot.lane.b32.xlu0 %v1933, 124
        %v1982 = vpop.permute.xlu0 %1981
        %1983 = vrot.lane.b32.xlu0 %v1934, 124
        %v1984 = vpop.permute.xlu0 %1983
        %1985 = vrot.lane.b32.xlu0 %v1935, 124
        %v1986 = vpop.permute.xlu0 %1985
        %1987 = vrot.lane.b32.xlu0 %v1936, 124
        %v1988 = vpop.permute.xlu0 %1987
        %1989 = vrot.lane.b32.xlu0 %v1937, 124
        %v1990 = vpop.permute.xlu0 %1989
        %1991 = vrot.lane.b32.xlu0 %v1938, 124
        %v1992 = vpop.permute.xlu0 %1991
        %1993 = vrot.lane.b32.xlu0 %v1939, 124
        %v1994 = vpop.permute.xlu0 %1993
        %1995 = vrot.lane.b32.xlu0 %v1940, 124
        %v1996 = vpop.permute.xlu0 %1995
        %1997 = vrot.lane.b32.xlu0 %v1941, 124
        %v1998 = vpop.permute.xlu0 %1997
        %1999 = vrot.lane.b32.xlu0 %v1942, 124
        %v2000 = vpop.permute.xlu0 %1999
        %2001 = vrot.lane.b32.xlu0 %v1943, 124
        %v2002 = vpop.permute.xlu0 %2001
        %2003 = vrot.lane.b32.xlu0 %v1944, 124
        %v2004 = vpop.permute.xlu0 %2003
        %2005 = vrot.lane.b32.xlu0 %v1945, 124
        %v2006 = vpop.permute.xlu0 %2005
        %2007 = vrot.lane.b32.xlu0 %v1946, 124
        %v2008 = vpop.permute.xlu0 %2007
        %2009 = vrot.lane.b32.xlu0 %v1947, 124
        %v2010 = vpop.permute.xlu0 %2009
        %2011 = vrot.lane.b32.xlu0 %v1948, 124
        %v2012 = vpop.permute.xlu0 %2011
        %2013 = vrot.lane.b32.xlu0 %v1949, 124
        %v2014 = vpop.permute.xlu0 %2013
        %2015 = vrot.lane.b32.xlu0 %v1950, 124
        %v2016 = vpop.permute.xlu0 %2015
        %2017 = vrot.lane.b32.xlu0 %v1951, 124
        %v2018 = vpop.permute.xlu0 %2017
        %2019 = vrot.lane.b32.xlu0 %v1952, 124
        %v2020 = vpop.permute.xlu0 %2019
        %2021 = vrot.lane.b32.xlu0 %v1953, 124
        %v2022 = vpop.permute.xlu0 %2021
        %2023 = vrot.lane.b32.xlu0 %v1954, 124
        %v2024 = vpop.permute.xlu0 %2023
        %2025 = vrot.lane.b32.xlu0 %v1955, 124
        %v2026 = vpop.permute.xlu0 %2025
        %2027 = vrot.lane.b32.xlu0 %v1956, 124
        %v2028 = vpop.permute.xlu0 %2027
        %vm2029 = vcmask 1014784
        %v2030 = vsel %vm2029, %v1982, %v1984
        %v2031 = vsel %vm2029, %v1984, %v1986
        %v2032 = vsel %vm2029, %v1988, %v1990
        %v2033 = vsel %vm2029, %v1990, %v1992
        %v2034 = vsel %vm2029, %v1994, %v1996
        %v2035 = vsel %vm2029, %v1996, %v1998
        %v2036 = vsel %vm2029, %v2000, %v2002
        %v2037 = vsel %vm2029, %v2002, %v2004
        %v2038 = vsel %vm2029, %v2006, %v2008
        %v2039 = vsel %vm2029, %v2008, %v2010
        %v2040 = vsel %vm2029, %v2012, %v2014
        %v2041 = vsel %vm2029, %v2014, %v2016
        %v2042 = vsel %vm2029, %v2018, %v2020
        %v2043 = vsel %vm2029, %v2020, %v2022
        %v2044 = vsel %vm2029, %v2024, %v2026
        %v2045 = vsel %vm2029, %v2026, %v2028
        %v2070 = vadd.f32 %v1907, %v2030
        %v2071 = vadd.f32 %v1908, %v2031
        %v2072 = vadd.f32 %v1909, %v1986
        %v2073 = vadd.f32 %v1910, %v2032
        %v2074 = vadd.f32 %v1911, %v2033
        %v2075 = vadd.f32 %v1912, %v1992
        %v2076 = vadd.f32 %v1913, %v2034
        %v2077 = vadd.f32 %v1914, %v2035
        %v2078 = vadd.f32 %v1915, %v1998
        %v2079 = vadd.f32 %v1916, %v2036
        %v2080 = vadd.f32 %v1917, %v2037
        %v2081 = vadd.f32 %v1918, %v2004
        %v2082 = vadd.f32 %v1919, %v2038
        %v2083 = vadd.f32 %v1920, %v2039
        %v2084 = vadd.f32 %v1921, %v2010
        %v2085 = vadd.f32 %v1922, %v2040
        %v2086 = vadd.f32 %v1923, %v2041
        %v2087 = vadd.f32 %v1924, %v2016
        %v2088 = vadd.f32 %v1925, %v2042
        %v2089 = vadd.f32 %v1926, %v2043
        %v2090 = vadd.f32 %v1927, %v2022
        %v2091 = vadd.f32 %v1928, %v2044
        %v2092 = vadd.f32 %v1929, %v2045
        %v2093 = vadd.f32 %v1930, %v2028
        %s2094 = sld [smem:[#allocation5 + $0x5]]
        %v2095 = vstv %s2094
        %v2096 = vmul.f32 %v2095, %v1369
        %v2097 = vmul.f32 %v2095, %v1370
        %v2098 = vmul.f32 %v2095, %v1371
        %v2099 = vmul.f32 %v2095, %v1372
        %v2100 = vmul.f32 %v2095, %v1373
        %v2101 = vmul.f32 %v2095, %v1374
        %v2102 = vmul.f32 %v2095, %v1375
        %v2103 = vmul.f32 %v2095, %v1376
        %v2104 = vmul.f32 %v2095, %v1377
        %v2105 = vmul.f32 %v2095, %v1378
        %v2106 = vmul.f32 %v2095, %v1379
        %v2107 = vmul.f32 %v2095, %v1380
        %v2108 = vmul.f32 %v2095, %v1381
        %v2109 = vmul.f32 %v2095, %v1382
        %v2110 = vmul.f32 %v2095, %v1383
        %v2111 = vmul.f32 %v2095, %v1384
        %v2112 = vmul.f32 %v2095, %v1385
        %v2113 = vmul.f32 %v2095, %v1386
        %v2114 = vmul.f32 %v2095, %v1387
        %v2115 = vmul.f32 %v2095, %v1388
        %v2116 = vmul.f32 %v2095, %v1389
        %v2117 = vmul.f32 %v2095, %v1390
        %v2118 = vmul.f32 %v2095, %v1391
        %v2119 = vmul.f32 %v2095, %v1392
        %2144 = vrot.lane.b32.xlu0 %v2096, 108
        %v2145 = vpop.permute.xlu0 %2144
        %2146 = vrot.lane.b32.xlu0 %v2097, 108
        %v2147 = vpop.permute.xlu0 %2146
        %2148 = vrot.lane.b32.xlu0 %v2098, 108
        %v2149 = vpop.permute.xlu0 %2148
        %2150 = vrot.lane.b32.xlu0 %v2099, 108
        %v2151 = vpop.permute.xlu0 %2150
        %2152 = vrot.lane.b32.xlu0 %v2100, 108
        %v2153 = vpop.permute.xlu0 %2152
        %2154 = vrot.lane.b32.xlu0 %v2101, 108
        %v2155 = vpop.permute.xlu0 %2154
        %2156 = vrot.lane.b32.xlu0 %v2102, 108
        %v2157 = vpop.permute.xlu0 %2156
        %2158 = vrot.lane.b32.xlu0 %v2103, 108
        %v2159 = vpop.permute.xlu0 %2158
        %2160 = vrot.lane.b32.xlu0 %v2104, 108
        %v2161 = vpop.permute.xlu0 %2160
        %2162 = vrot.lane.b32.xlu0 %v2105, 108
        %v2163 = vpop.permute.xlu0 %2162
        %2164 = vrot.lane.b32.xlu0 %v2106, 108
        %v2165 = vpop.permute.xlu0 %2164
        %2166 = vrot.lane.b32.xlu0 %v2107, 108
        %v2167 = vpop.permute.xlu0 %2166
        %2168 = vrot.lane.b32.xlu0 %v2108, 108
        %v2169 = vpop.permute.xlu0 %2168
        %2170 = vrot.lane.b32.xlu0 %v2109, 108
        %v2171 = vpop.permute.xlu0 %2170
        %2172 = vrot.lane.b32.xlu0 %v2110, 108
        %v2173 = vpop.permute.xlu0 %2172
        %2174 = vrot.lane.b32.xlu0 %v2111, 108
        %v2175 = vpop.permute.xlu0 %2174
        %2176 = vrot.lane.b32.xlu0 %v2112, 108
        %v2177 = vpop.permute.xlu0 %2176
        %2178 = vrot.lane.b32.xlu0 %v2113, 108
        %v2179 = vpop.permute.xlu0 %2178
        %2180 = vrot.lane.b32.xlu0 %v2114, 108
        %v2181 = vpop.permute.xlu0 %2180
        %2182 = vrot.lane.b32.xlu0 %v2115, 108
        %v2183 = vpop.permute.xlu0 %2182
        %2184 = vrot.lane.b32.xlu0 %v2116, 108
        %v2185 = vpop.permute.xlu0 %2184
        %2186 = vrot.lane.b32.xlu0 %v2117, 108
        %v2187 = vpop.permute.xlu0 %2186
        %2188 = vrot.lane.b32.xlu0 %v2118, 108
        %v2189 = vpop.permute.xlu0 %2188
        %2190 = vrot.lane.b32.xlu0 %v2119, 108
        %v2191 = vpop.permute.xlu0 %2190
        %vm2192 = vcmask 883712
        %v2193 = vsel %vm2192, %v2145, %v2147
        %v2194 = vsel %vm2192, %v2147, %v2149
        %v2195 = vsel %vm2192, %v2151, %v2153
        %v2196 = vsel %vm2192, %v2153, %v2155
        %v2197 = vsel %vm2192, %v2157, %v2159
        %v2198 = vsel %vm2192, %v2159, %v2161
        %v2199 = vsel %vm2192, %v2163, %v2165
        %v2200 = vsel %vm2192, %v2165, %v2167
        %v2201 = vsel %vm2192, %v2169, %v2171
        %v2202 = vsel %vm2192, %v2171, %v2173
        %v2203 = vsel %vm2192, %v2175, %v2177
        %v2204 = vsel %vm2192, %v2177, %v2179
        %v2205 = vsel %vm2192, %v2181, %v2183
        %v2206 = vsel %vm2192, %v2183, %v2185
        %v2207 = vsel %vm2192, %v2187, %v2189
        %v2208 = vsel %vm2192, %v2189, %v2191
        %v2233 = vadd.f32 %v2070, %v2193
        %v2234 = vadd.f32 %v2071, %v2194
        %v2235 = vadd.f32 %v2072, %v2149
        %v2236 = vadd.f32 %v2073, %v2195
        %v2237 = vadd.f32 %v2074, %v2196
        %v2238 = vadd.f32 %v2075, %v2155
        %v2239 = vadd.f32 %v2076, %v2197
        %v2240 = vadd.f32 %v2077, %v2198
        %v2241 = vadd.f32 %v2078, %v2161
        %v2242 = vadd.f32 %v2079, %v2199
        %v2243 = vadd.f32 %v2080, %v2200
        %v2244 = vadd.f32 %v2081, %v2167
        %v2245 = vadd.f32 %v2082, %v2201
        %v2246 = vadd.f32 %v2083, %v2202
        %v2247 = vadd.f32 %v2084, %v2173
        %v2248 = vadd.f32 %v2085, %v2203
        %v2249 = vadd.f32 %v2086, %v2204
        %v2250 = vadd.f32 %v2087, %v2179
        %v2251 = vadd.f32 %v2088, %v2205
        %v2252 = vadd.f32 %v2089, %v2206
        %v2253 = vadd.f32 %v2090, %v2185
        %v2254 = vadd.f32 %v2091, %v2207
        %v2255 = vadd.f32 %v2092, %v2208
        %v2256 = vadd.f32 %v2093, %v2191
        %s2257 = sld [smem:[#allocation5 + $0x6]]
        %v2258 = vstv %s2257
        %v2259 = vmul.f32 %v2258, %v1369
        %v2260 = vmul.f32 %v2258, %v1370
        %v2261 = vmul.f32 %v2258, %v1371
        %v2262 = vmul.f32 %v2258, %v1372
        %v2263 = vmul.f32 %v2258, %v1373
        %v2264 = vmul.f32 %v2258, %v1374
        %v2265 = vmul.f32 %v2258, %v1375
        %v2266 = vmul.f32 %v2258, %v1376
        %v2267 = vmul.f32 %v2258, %v1377
        %v2268 = vmul.f32 %v2258, %v1378
        %v2269 = vmul.f32 %v2258, %v1379
        %v2270 = vmul.f32 %v2258, %v1380
        %v2271 = vmul.f32 %v2258, %v1381
        %v2272 = vmul.f32 %v2258, %v1382
        %v2273 = vmul.f32 %v2258, %v1383
        %v2274 = vmul.f32 %v2258, %v1384
        %v2275 = vmul.f32 %v2258, %v1385
        %v2276 = vmul.f32 %v2258, %v1386
        %v2277 = vmul.f32 %v2258, %v1387
        %v2278 = vmul.f32 %v2258, %v1388
        %v2279 = vmul.f32 %v2258, %v1389
        %v2280 = vmul.f32 %v2258, %v1390
        %v2281 = vmul.f32 %v2258, %v1391
        %v2282 = vmul.f32 %v2258, %v1392
        %2307 = vrot.lane.b32.xlu0 %v2259, 107
        %v2308 = vpop.permute.xlu0 %2307
        %2309 = vrot.lane.b32.xlu0 %v2260, 107
        %v2310 = vpop.permute.xlu0 %2309
        %2311 = vrot.lane.b32.xlu0 %v2261, 107
        %v2312 = vpop.permute.xlu0 %2311
        %2313 = vrot.lane.b32.xlu0 %v2262, 107
        %v2314 = vpop.permute.xlu0 %2313
        %2315 = vrot.lane.b32.xlu0 %v2263, 107
        %v2316 = vpop.permute.xlu0 %2315
        %2317 = vrot.lane.b32.xlu0 %v2264, 107
        %v2318 = vpop.permute.xlu0 %2317
        %2319 = vrot.lane.b32.xlu0 %v2265, 107
        %v2320 = vpop.permute.xlu0 %2319
        %2321 = vrot.lane.b32.xlu0 %v2266, 107
        %v2322 = vpop.permute.xlu0 %2321
        %2323 = vrot.lane.b32.xlu0 %v2267, 107
        %v2324 = vpop.permute.xlu0 %2323
        %2325 = vrot.lane.b32.xlu0 %v2268, 107
        %v2326 = vpop.permute.xlu0 %2325
        %2327 = vrot.lane.b32.xlu0 %v2269, 107
        %v2328 = vpop.permute.xlu0 %2327
        %2329 = vrot.lane.b32.xlu0 %v2270, 107
        %v2330 = vpop.permute.xlu0 %2329
        %2331 = vrot.lane.b32.xlu0 %v2271, 107
        %v2332 = vpop.permute.xlu0 %2331
        %2333 = vrot.lane.b32.xlu0 %v2272, 107
        %v2334 = vpop.permute.xlu0 %2333
        %2335 = vrot.lane.b32.xlu0 %v2273, 107
        %v2336 = vpop.permute.xlu0 %2335
        %2337 = vrot.lane.b32.xlu0 %v2274, 107
        %v2338 = vpop.permute.xlu0 %2337
        %2339 = vrot.lane.b32.xlu0 %v2275, 107
        %v2340 = vpop.permute.xlu0 %2339
        %2341 = vrot.lane.b32.xlu0 %v2276, 107
        %v2342 = vpop.permute.xlu0 %2341
        %2343 = vrot.lane.b32.xlu0 %v2277, 107
        %v2344 = vpop.permute.xlu0 %2343
        %2345 = vrot.lane.b32.xlu0 %v2278, 107
        %v2346 = vpop.permute.xlu0 %2345
        %2347 = vrot.lane.b32.xlu0 %v2279, 107
        %v2348 = vpop.permute.xlu0 %2347
        %2349 = vrot.lane.b32.xlu0 %v2280, 107
        %v2350 = vpop.permute.xlu0 %2349
        %2351 = vrot.lane.b32.xlu0 %v2281, 107
        %v2352 = vpop.permute.xlu0 %2351
        %2353 = vrot.lane.b32.xlu0 %v2282, 107
        %v2354 = vpop.permute.xlu0 %2353
        %vm2355 = vcmask 875520
        %v2356 = vsel %vm2355, %v2308, %v2310
        %v2357 = vsel %vm2355, %v2310, %v2312
        %v2358 = vsel %vm2355, %v2314, %v2316
        %v2359 = vsel %vm2355, %v2316, %v2318
        %v2360 = vsel %vm2355, %v2320, %v2322
        %v2361 = vsel %vm2355, %v2322, %v2324
        %v2362 = vsel %vm2355, %v2326, %v2328
        %v2363 = vsel %vm2355, %v2328, %v2330
        %v2364 = vsel %vm2355, %v2332, %v2334
        %v2365 = vsel %vm2355, %v2334, %v2336
        %v2366 = vsel %vm2355, %v2338, %v2340
        %v2367 = vsel %vm2355, %v2340, %v2342
        %v2368 = vsel %vm2355, %v2344, %v2346
        %v2369 = vsel %vm2355, %v2346, %v2348
        %v2370 = vsel %vm2355, %v2350, %v2352
        %v2371 = vsel %vm2355, %v2352, %v2354
        %v2396 = vadd.f32 %v2233, %v2356
        %v2397 = vadd.f32 %v2234, %v2357
        %v2398 = vadd.f32 %v2235, %v2312
        %v2399 = vadd.f32 %v2236, %v2358
        %v2400 = vadd.f32 %v2237, %v2359
        %v2401 = vadd.f32 %v2238, %v2318
        %v2402 = vadd.f32 %v2239, %v2360
        %v2403 = vadd.f32 %v2240, %v2361
        %v2404 = vadd.f32 %v2241, %v2324
        %v2405 = vadd.f32 %v2242, %v2362
        %v2406 = vadd.f32 %v2243, %v2363
        %v2407 = vadd.f32 %v2244, %v2330
        %v2408 = vadd.f32 %v2245, %v2364
        %v2409 = vadd.f32 %v2246, %v2365
        %v2410 = vadd.f32 %v2247, %v2336
        %v2411 = vadd.f32 %v2248, %v2366
        %v2412 = vadd.f32 %v2249, %v2367
        %v2413 = vadd.f32 %v2250, %v2342
        %v2414 = vadd.f32 %v2251, %v2368
        %v2415 = vadd.f32 %v2252, %v2369
        %v2416 = vadd.f32 %v2253, %v2348
        %v2417 = vadd.f32 %v2254, %v2370
        %v2418 = vadd.f32 %v2255, %v2371
        %v2419 = vadd.f32 %v2256, %v2354
        %s2420 = sld [smem:[#allocation5 + $0x7]]
        %v2421 = vstv %s2420
        %v2422 = vmul.f32 %v2421, %v1369
        %v2423 = vmul.f32 %v2421, %v1370
        %v2424 = vmul.f32 %v2421, %v1371
        %v2425 = vmul.f32 %v2421, %v1372
        %v2426 = vmul.f32 %v2421, %v1373
        %v2427 = vmul.f32 %v2421, %v1374
        %v2428 = vmul.f32 %v2421, %v1375
        %v2429 = vmul.f32 %v2421, %v1376
        %v2430 = vmul.f32 %v2421, %v1377
        %v2431 = vmul.f32 %v2421, %v1378
        %v2432 = vmul.f32 %v2421, %v1379
        %v2433 = vmul.f32 %v2421, %v1380
        %v2434 = vmul.f32 %v2421, %v1381
        %v2435 = vmul.f32 %v2421, %v1382
        %v2436 = vmul.f32 %v2421, %v1383
        %v2437 = vmul.f32 %v2421, %v1384
        %v2438 = vmul.f32 %v2421, %v1385
        %v2439 = vmul.f32 %v2421, %v1386
        %v2440 = vmul.f32 %v2421, %v1387
        %v2441 = vmul.f32 %v2421, %v1388
        %v2442 = vmul.f32 %v2421, %v1389
        %v2443 = vmul.f32 %v2421, %v1390
        %v2444 = vmul.f32 %v2421, %v1391
        %v2445 = vmul.f32 %v2421, %v1392
        %2470 = vrot.lane.b32.xlu0 %v2422, 106
        %v2471 = vpop.permute.xlu0 %2470
        %2472 = vrot.lane.b32.xlu0 %v2423, 106
        %v2473 = vpop.permute.xlu0 %2472
        %2474 = vrot.lane.b32.xlu0 %v2424, 106
        %v2475 = vpop.permute.xlu0 %2474
        %2476 = vrot.lane.b32.xlu0 %v2425, 106
        %v2477 = vpop.permute.xlu0 %2476
        %2478 = vrot.lane.b32.xlu0 %v2426, 106
        %v2479 = vpop.permute.xlu0 %2478
        %2480 = vrot.lane.b32.xlu0 %v2427, 106
        %v2481 = vpop.permute.xlu0 %2480
        %2482 = vrot.lane.b32.xlu0 %v2428, 106
        %v2483 = vpop.permute.xlu0 %2482
        %2484 = vrot.lane.b32.xlu0 %v2429, 106
        %v2485 = vpop.permute.xlu0 %2484
        %2486 = vrot.lane.b32.xlu0 %v2430, 106
        %v2487 = vpop.permute.xlu0 %2486
        %2488 = vrot.lane.b32.xlu0 %v2431, 106
        %v2489 = vpop.permute.xlu0 %2488
        %2490 = vrot.lane.b32.xlu0 %v2432, 106
        %v2491 = vpop.permute.xlu0 %2490
        %2492 = vrot.lane.b32.xlu0 %v2433, 106
        %v2493 = vpop.permute.xlu0 %2492
        %2494 = vrot.lane.b32.xlu0 %v2434, 106
        %v2495 = vpop.permute.xlu0 %2494
        %2496 = vrot.lane.b32.xlu0 %v2435, 106
        %v2497 = vpop.permute.xlu0 %2496
        %2498 = vrot.lane.b32.xlu0 %v2436, 106
        %v2499 = vpop.permute.xlu0 %2498
        %2500 = vrot.lane.b32.xlu0 %v2437, 106
        %v2501 = vpop.permute.xlu0 %2500
        %2502 = vrot.lane.b32.xlu0 %v2438, 106
        %v2503 = vpop.permute.xlu0 %2502
        %2504 = vrot.lane.b32.xlu0 %v2439, 106
        %v2505 = vpop.permute.xlu0 %2504
        %2506 = vrot.lane.b32.xlu0 %v2440, 106
        %v2507 = vpop.permute.xlu0 %2506
        %2508 = vrot.lane.b32.xlu0 %v2441, 106
        %v2509 = vpop.permute.xlu0 %2508
        %2510 = vrot.lane.b32.xlu0 %v2442, 106
        %v2511 = vpop.permute.xlu0 %2510
        %2512 = vrot.lane.b32.xlu0 %v2443, 106
        %v2513 = vpop.permute.xlu0 %2512
        %2514 = vrot.lane.b32.xlu0 %v2444, 106
        %v2515 = vpop.permute.xlu0 %2514
        %2516 = vrot.lane.b32.xlu0 %v2445, 106
        %v2517 = vpop.permute.xlu0 %2516
        %vm2518 = vcmask 867328
        %v2519 = vsel %vm2518, %v2471, %v2473
        %v2520 = vsel %vm2518, %v2473, %v2475
        %v2521 = vsel %vm2518, %v2477, %v2479
        %v2522 = vsel %vm2518, %v2479, %v2481
        %v2523 = vsel %vm2518, %v2483, %v2485
        %v2524 = vsel %vm2518, %v2485, %v2487
        %v2525 = vsel %vm2518, %v2489, %v2491
        %v2526 = vsel %vm2518, %v2491, %v2493
        %v2527 = vsel %vm2518, %v2495, %v2497
        %v2528 = vsel %vm2518, %v2497, %v2499
        %v2529 = vsel %vm2518, %v2501, %v2503
        %v2530 = vsel %vm2518, %v2503, %v2505
        %v2531 = vsel %vm2518, %v2507, %v2509
        %v2532 = vsel %vm2518, %v2509, %v2511
        %v2533 = vsel %vm2518, %v2513, %v2515
        %v2534 = vsel %vm2518, %v2515, %v2517
        %v2559 = vadd.f32 %v2396, %v2519
        %v2560 = vadd.f32 %v2397, %v2520
        %v2561 = vadd.f32 %v2398, %v2475
        %v2562 = vadd.f32 %v2399, %v2521
        %v2563 = vadd.f32 %v2400, %v2522
        %v2564 = vadd.f32 %v2401, %v2481
        %v2565 = vadd.f32 %v2402, %v2523
        %v2566 = vadd.f32 %v2403, %v2524
        %v2567 = vadd.f32 %v2404, %v2487
        %v2568 = vadd.f32 %v2405, %v2525
        %v2569 = vadd.f32 %v2406, %v2526
        %v2570 = vadd.f32 %v2407, %v2493
        %v2571 = vadd.f32 %v2408, %v2527
        %v2572 = vadd.f32 %v2409, %v2528
        %v2573 = vadd.f32 %v2410, %v2499
        %v2574 = vadd.f32 %v2411, %v2529
        %v2575 = vadd.f32 %v2412, %v2530
        %v2576 = vadd.f32 %v2413, %v2505
        %v2577 = vadd.f32 %v2414, %v2531
        %v2578 = vadd.f32 %v2415, %v2532
        %v2579 = vadd.f32 %v2416, %v2511
        %v2580 = vadd.f32 %v2417, %v2533
        %v2581 = vadd.f32 %v2418, %v2534
        %v2582 = vadd.f32 %v2419, %v2517
        %s2583 = sld [smem:[#allocation5 + $0x8]]
        %v2584 = vstv %s2583
        %v2585 = vmul.f32 %v2584, %v1369
        %v2586 = vmul.f32 %v2584, %v1370
        %v2587 = vmul.f32 %v2584, %v1371
        %v2588 = vmul.f32 %v2584, %v1372
        %v2589 = vmul.f32 %v2584, %v1373
        %v2590 = vmul.f32 %v2584, %v1374
        %v2591 = vmul.f32 %v2584, %v1375
        %v2592 = vmul.f32 %v2584, %v1376
        %v2593 = vmul.f32 %v2584, %v1377
        %v2594 = vmul.f32 %v2584, %v1378
        %v2595 = vmul.f32 %v2584, %v1379
        %v2596 = vmul.f32 %v2584, %v1380
        %v2597 = vmul.f32 %v2584, %v1381
        %v2598 = vmul.f32 %v2584, %v1382
        %v2599 = vmul.f32 %v2584, %v1383
        %v2600 = vmul.f32 %v2584, %v1384
        %v2601 = vmul.f32 %v2584, %v1385
        %v2602 = vmul.f32 %v2584, %v1386
        %v2603 = vmul.f32 %v2584, %v1387
        %v2604 = vmul.f32 %v2584, %v1388
        %v2605 = vmul.f32 %v2584, %v1389
        %v2606 = vmul.f32 %v2584, %v1390
        %v2607 = vmul.f32 %v2584, %v1391
        %v2608 = vmul.f32 %v2584, %v1392
        %2633 = vrot.lane.b32.xlu0 %v2585, 105
        %v2634 = vpop.permute.xlu0 %2633
        %2635 = vrot.lane.b32.xlu0 %v2586, 105
        %v2636 = vpop.permute.xlu0 %2635
        %2637 = vrot.lane.b32.xlu0 %v2587, 105
        %v2638 = vpop.permute.xlu0 %2637
        %2639 = vrot.lane.b32.xlu0 %v2588, 105
        %v2640 = vpop.permute.xlu0 %2639
        %2641 = vrot.lane.b32.xlu0 %v2589, 105
        %v2642 = vpop.permute.xlu0 %2641
        %2643 = vrot.lane.b32.xlu0 %v2590, 105
        %v2644 = vpop.permute.xlu0 %2643
        %2645 = vrot.lane.b32.xlu0 %v2591, 105
        %v2646 = vpop.permute.xlu0 %2645
        %2647 = vrot.lane.b32.xlu0 %v2592, 105
        %v2648 = vpop.permute.xlu0 %2647
        %2649 = vrot.lane.b32.xlu0 %v2593, 105
        %v2650 = vpop.permute.xlu0 %2649
        %2651 = vrot.lane.b32.xlu0 %v2594, 105
        %v2652 = vpop.permute.xlu0 %2651
        %2653 = vrot.lane.b32.xlu0 %v2595, 105
        %v2654 = vpop.permute.xlu0 %2653
        %2655 = vrot.lane.b32.xlu0 %v2596, 105
        %v2656 = vpop.permute.xlu0 %2655
        %2657 = vrot.lane.b32.xlu0 %v2597, 105
        %v2658 = vpop.permute.xlu0 %2657
        %2659 = vrot.lane.b32.xlu0 %v2598, 105
        %v2660 = vpop.permute.xlu0 %2659
        %2661 = vrot.lane.b32.xlu0 %v2599, 105
        %v2662 = vpop.permute.xlu0 %2661
        %2663 = vrot.lane.b32.xlu0 %v2600, 105
        %v2664 = vpop.permute.xlu0 %2663
        %2665 = vrot.lane.b32.xlu0 %v2601, 105
        %v2666 = vpop.permute.xlu0 %2665
        %2667 = vrot.lane.b32.xlu0 %v2602, 105
        %v2668 = vpop.permute.xlu0 %2667
        %2669 = vrot.lane.b32.xlu0 %v2603, 105
        %v2670 = vpop.permute.xlu0 %2669
        %2671 = vrot.lane.b32.xlu0 %v2604, 105
        %v2672 = vpop.permute.xlu0 %2671
        %2673 = vrot.lane.b32.xlu0 %v2605, 105
        %v2674 = vpop.permute.xlu0 %2673
        %2675 = vrot.lane.b32.xlu0 %v2606, 105
        %v2676 = vpop.permute.xlu0 %2675
        %2677 = vrot.lane.b32.xlu0 %v2607, 105
        %v2678 = vpop.permute.xlu0 %2677
        %2679 = vrot.lane.b32.xlu0 %v2608, 105
        %v2680 = vpop.permute.xlu0 %2679
        %vm2681 = vcmask 859136
        %v2682 = vsel %vm2681, %v2634, %v2636
        %v2683 = vsel %vm2681, %v2636, %v2638
        %v2684 = vsel %vm2681, %v2640, %v2642
        %v2685 = vsel %vm2681, %v2642, %v2644
        %v2686 = vsel %vm2681, %v2646, %v2648
        %v2687 = vsel %vm2681, %v2648, %v2650
        %v2688 = vsel %vm2681, %v2652, %v2654
        %v2689 = vsel %vm2681, %v2654, %v2656
        %v2690 = vsel %vm2681, %v2658, %v2660
        %v2691 = vsel %vm2681, %v2660, %v2662
        %v2692 = vsel %vm2681, %v2664, %v2666
        %v2693 = vsel %vm2681, %v2666, %v2668
        %v2694 = vsel %vm2681, %v2670, %v2672
        %v2695 = vsel %vm2681, %v2672, %v2674
        %v2696 = vsel %vm2681, %v2676, %v2678
        %v2697 = vsel %vm2681, %v2678, %v2680
        %v2722 = vadd.f32 %v2559, %v2682
        %v2723 = vadd.f32 %v2560, %v2683
        %v2724 = vadd.f32 %v2561, %v2638
        %v2725 = vadd.f32 %v2562, %v2684
        %v2726 = vadd.f32 %v2563, %v2685
        %v2727 = vadd.f32 %v2564, %v2644
        %v2728 = vadd.f32 %v2565, %v2686
        %v2729 = vadd.f32 %v2566, %v2687
        %v2730 = vadd.f32 %v2567, %v2650
        %v2731 = vadd.f32 %v2568, %v2688
        %v2732 = vadd.f32 %v2569, %v2689
        %v2733 = vadd.f32 %v2570, %v2656
        %v2734 = vadd.f32 %v2571, %v2690
        %v2735 = vadd.f32 %v2572, %v2691
        %v2736 = vadd.f32 %v2573, %v2662
        %v2737 = vadd.f32 %v2574, %v2692
        %v2738 = vadd.f32 %v2575, %v2693
        %v2739 = vadd.f32 %v2576, %v2668
        %v2740 = vadd.f32 %v2577, %v2694
        %v2741 = vadd.f32 %v2578, %v2695
        %v2742 = vadd.f32 %v2579, %v2674
        %v2743 = vadd.f32 %v2580, %v2696
        %v2744 = vadd.f32 %v2581, %v2697
        %v2745 = vadd.f32 %v2582, %v2680
        %s2746 = sld [smem:[#allocation5 + $0x9]]
        %v2747 = vstv %s2746
        %v2748 = vmul.f32 %v2747, %v1369
        %v2749 = vmul.f32 %v2747, %v1370
        %v2750 = vmul.f32 %v2747, %v1371
        %v2751 = vmul.f32 %v2747, %v1372
        %v2752 = vmul.f32 %v2747, %v1373
        %v2753 = vmul.f32 %v2747, %v1374
        %v2754 = vmul.f32 %v2747, %v1375
        %v2755 = vmul.f32 %v2747, %v1376
        %v2756 = vmul.f32 %v2747, %v1377
        %v2757 = vmul.f32 %v2747, %v1378
        %v2758 = vmul.f32 %v2747, %v1379
        %v2759 = vmul.f32 %v2747, %v1380
        %v2760 = vmul.f32 %v2747, %v1381
        %v2761 = vmul.f32 %v2747, %v1382
        %v2762 = vmul.f32 %v2747, %v1383
        %v2763 = vmul.f32 %v2747, %v1384
        %v2764 = vmul.f32 %v2747, %v1385
        %v2765 = vmul.f32 %v2747, %v1386
        %v2766 = vmul.f32 %v2747, %v1387
        %v2767 = vmul.f32 %v2747, %v1388
        %v2768 = vmul.f32 %v2747, %v1389
        %v2769 = vmul.f32 %v2747, %v1390
        %v2770 = vmul.f32 %v2747, %v1391
        %v2771 = vmul.f32 %v2747, %v1392
        %2796 = vrot.lane.b32.xlu0 %v2748, 104
        %v2797 = vpop.permute.xlu0 %2796
        %2798 = vrot.lane.b32.xlu0 %v2749, 104
        %v2799 = vpop.permute.xlu0 %2798
        %2800 = vrot.lane.b32.xlu0 %v2750, 104
        %v2801 = vpop.permute.xlu0 %2800
        %2802 = vrot.lane.b32.xlu0 %v2751, 104
        %v2803 = vpop.permute.xlu0 %2802
        %2804 = vrot.lane.b32.xlu0 %v2752, 104
        %v2805 = vpop.permute.xlu0 %2804
        %2806 = vrot.lane.b32.xlu0 %v2753, 104
        %v2807 = vpop.permute.xlu0 %2806
        %2808 = vrot.lane.b32.xlu0 %v2754, 104
        %v2809 = vpop.permute.xlu0 %2808
        %2810 = vrot.lane.b32.xlu0 %v2755, 104
        %v2811 = vpop.permute.xlu0 %2810
        %2812 = vrot.lane.b32.xlu0 %v2756, 104
        %v2813 = vpop.permute.xlu0 %2812
        %2814 = vrot.lane.b32.xlu0 %v2757, 104
        %v2815 = vpop.permute.xlu0 %2814
        %2816 = vrot.lane.b32.xlu0 %v2758, 104
        %v2817 = vpop.permute.xlu0 %2816
        %2818 = vrot.lane.b32.xlu0 %v2759, 104
        %v2819 = vpop.permute.xlu0 %2818
        %2820 = vrot.lane.b32.xlu0 %v2760, 104
        %v2821 = vpop.permute.xlu0 %2820
        %2822 = vrot.lane.b32.xlu0 %v2761, 104
        %v2823 = vpop.permute.xlu0 %2822
        %2824 = vrot.lane.b32.xlu0 %v2762, 104
        %v2825 = vpop.permute.xlu0 %2824
        %2826 = vrot.lane.b32.xlu0 %v2763, 104
        %v2827 = vpop.permute.xlu0 %2826
        %2828 = vrot.lane.b32.xlu0 %v2764, 104
        %v2829 = vpop.permute.xlu0 %2828
        %2830 = vrot.lane.b32.xlu0 %v2765, 104
        %v2831 = vpop.permute.xlu0 %2830
        %2832 = vrot.lane.b32.xlu0 %v2766, 104
        %v2833 = vpop.permute.xlu0 %2832
        %2834 = vrot.lane.b32.xlu0 %v2767, 104
        %v2835 = vpop.permute.xlu0 %2834
        %2836 = vrot.lane.b32.xlu0 %v2768, 104
        %v2837 = vpop.permute.xlu0 %2836
        %2838 = vrot.lane.b32.xlu0 %v2769, 104
        %v2839 = vpop.permute.xlu0 %2838
        %2840 = vrot.lane.b32.xlu0 %v2770, 104
        %v2841 = vpop.permute.xlu0 %2840
        %2842 = vrot.lane.b32.xlu0 %v2771, 104
        %v2843 = vpop.permute.xlu0 %2842
        %vm2844 = vcmask 850944
        %v2845 = vsel %vm2844, %v2797, %v2799
        %v2846 = vsel %vm2844, %v2799, %v2801
        %v2847 = vsel %vm2844, %v2803, %v2805
        %v2848 = vsel %vm2844, %v2805, %v2807
        %v2849 = vsel %vm2844, %v2809, %v2811
        %v2850 = vsel %vm2844, %v2811, %v2813
        %v2851 = vsel %vm2844, %v2815, %v2817
        %v2852 = vsel %vm2844, %v2817, %v2819
        %v2853 = vsel %vm2844, %v2821, %v2823
        %v2854 = vsel %vm2844, %v2823, %v2825
        %v2855 = vsel %vm2844, %v2827, %v2829
        %v2856 = vsel %vm2844, %v2829, %v2831
        %v2857 = vsel %vm2844, %v2833, %v2835
        %v2858 = vsel %vm2844, %v2835, %v2837
        %v2859 = vsel %vm2844, %v2839, %v2841
        %v2860 = vsel %vm2844, %v2841, %v2843
        %v2885 = vadd.f32 %v2722, %v2845
        %v2886 = vadd.f32 %v2723, %v2846
        %v2887 = vadd.f32 %v2724, %v2801
        %v2888 = vadd.f32 %v2725, %v2847
        %v2889 = vadd.f32 %v2726, %v2848
        %v2890 = vadd.f32 %v2727, %v2807
        %v2891 = vadd.f32 %v2728, %v2849
        %v2892 = vadd.f32 %v2729, %v2850
        %v2893 = vadd.f32 %v2730, %v2813
        %v2894 = vadd.f32 %v2731, %v2851
        %v2895 = vadd.f32 %v2732, %v2852
        %v2896 = vadd.f32 %v2733, %v2819
        %v2897 = vadd.f32 %v2734, %v2853
        %v2898 = vadd.f32 %v2735, %v2854
        %v2899 = vadd.f32 %v2736, %v2825
        %v2900 = vadd.f32 %v2737, %v2855
        %v2901 = vadd.f32 %v2738, %v2856
        %v2902 = vadd.f32 %v2739, %v2831
        %v2903 = vadd.f32 %v2740, %v2857
        %v2904 = vadd.f32 %v2741, %v2858
        %v2905 = vadd.f32 %v2742, %v2837
        %v2906 = vadd.f32 %v2743, %v2859
        %v2907 = vadd.f32 %v2744, %v2860
        %v2908 = vadd.f32 %v2745, %v2843
        %s2909 = sld [smem:[#allocation5 + $0xa]]
        %v2910 = vstv %s2909
        %v2911 = vmul.f32 %v2910, %v1369
        %v2912 = vmul.f32 %v2910, %v1370
        %v2913 = vmul.f32 %v2910, %v1371
        %v2914 = vmul.f32 %v2910, %v1372
        %v2915 = vmul.f32 %v2910, %v1373
        %v2916 = vmul.f32 %v2910, %v1374
        %v2917 = vmul.f32 %v2910, %v1375
        %v2918 = vmul.f32 %v2910, %v1376
        %v2919 = vmul.f32 %v2910, %v1377
        %v2920 = vmul.f32 %v2910, %v1378
        %v2921 = vmul.f32 %v2910, %v1379
        %v2922 = vmul.f32 %v2910, %v1380
        %v2923 = vmul.f32 %v2910, %v1381
        %v2924 = vmul.f32 %v2910, %v1382
        %v2925 = vmul.f32 %v2910, %v1383
        %v2926 = vmul.f32 %v2910, %v1384
        %v2927 = vmul.f32 %v2910, %v1385
        %v2928 = vmul.f32 %v2910, %v1386
        %v2929 = vmul.f32 %v2910, %v1387
        %v2930 = vmul.f32 %v2910, %v1388
        %v2931 = vmul.f32 %v2910, %v1389
        %v2932 = vmul.f32 %v2910, %v1390
        %v2933 = vmul.f32 %v2910, %v1391
        %v2934 = vmul.f32 %v2910, %v1392
        %2959 = vrot.lane.b32.xlu0 %v2911, 88
        %v2960 = vpop.permute.xlu0 %2959
        %2961 = vrot.lane.b32.xlu0 %v2912, 88
        %v2962 = vpop.permute.xlu0 %2961
        %2963 = vrot.lane.b32.xlu0 %v2913, 88
        %v2964 = vpop.permute.xlu0 %2963
        %2965 = vrot.lane.b32.xlu0 %v2914, 88
        %v2966 = vpop.permute.xlu0 %2965
        %2967 = vrot.lane.b32.xlu0 %v2915, 88
        %v2968 = vpop.permute.xlu0 %2967
        %2969 = vrot.lane.b32.xlu0 %v2916, 88
        %v2970 = vpop.permute.xlu0 %2969
        %2971 = vrot.lane.b32.xlu0 %v2917, 88
        %v2972 = vpop.permute.xlu0 %2971
        %2973 = vrot.lane.b32.xlu0 %v2918, 88
        %v2974 = vpop.permute.xlu0 %2973
        %2975 = vrot.lane.b32.xlu0 %v2919, 88
        %v2976 = vpop.permute.xlu0 %2975
        %2977 = vrot.lane.b32.xlu0 %v2920, 88
        %v2978 = vpop.permute.xlu0 %2977
        %2979 = vrot.lane.b32.xlu0 %v2921, 88
        %v2980 = vpop.permute.xlu0 %2979
        %2981 = vrot.lane.b32.xlu0 %v2922, 88
        %v2982 = vpop.permute.xlu0 %2981
        %2983 = vrot.lane.b32.xlu0 %v2923, 88
        %v2984 = vpop.permute.xlu0 %2983
        %2985 = vrot.lane.b32.xlu0 %v2924, 88
        %v2986 = vpop.permute.xlu0 %2985
        %2987 = vrot.lane.b32.xlu0 %v2925, 88
        %v2988 = vpop.permute.xlu0 %2987
        %2989 = vrot.lane.b32.xlu0 %v2926, 88
        %v2990 = vpop.permute.xlu0 %2989
        %2991 = vrot.lane.b32.xlu0 %v2927, 88
        %v2992 = vpop.permute.xlu0 %2991
        %2993 = vrot.lane.b32.xlu0 %v2928, 88
        %v2994 = vpop.permute.xlu0 %2993
        %2995 = vrot.lane.b32.xlu0 %v2929, 88
        %v2996 = vpop.permute.xlu0 %2995
        %2997 = vrot.lane.b32.xlu0 %v2930, 88
        %v2998 = vpop.permute.xlu0 %2997
        %2999 = vrot.lane.b32.xlu0 %v2931, 88
        %v3000 = vpop.permute.xlu0 %2999
        %3001 = vrot.lane.b32.xlu0 %v2932, 88
        %v3002 = vpop.permute.xlu0 %3001
        %3003 = vrot.lane.b32.xlu0 %v2933, 88
        %v3004 = vpop.permute.xlu0 %3003
        %3005 = vrot.lane.b32.xlu0 %v2934, 88
        %v3006 = vpop.permute.xlu0 %3005
        %vm3007 = vcmask 719872
        %v3008 = vsel %vm3007, %v2960, %v2962
        %v3009 = vsel %vm3007, %v2962, %v2964
        %v3010 = vsel %vm3007, %v2966, %v2968
        %v3011 = vsel %vm3007, %v2968, %v2970
        %v3012 = vsel %vm3007, %v2972, %v2974
        %v3013 = vsel %vm3007, %v2974, %v2976
        %v3014 = vsel %vm3007, %v2978, %v2980
        %v3015 = vsel %vm3007, %v2980, %v2982
        %v3016 = vsel %vm3007, %v2984, %v2986
        %v3017 = vsel %vm3007, %v2986, %v2988
        %v3018 = vsel %vm3007, %v2990, %v2992
        %v3019 = vsel %vm3007, %v2992, %v2994
        %v3020 = vsel %vm3007, %v2996, %v2998
        %v3021 = vsel %vm3007, %v2998, %v3000
        %v3022 = vsel %vm3007, %v3002, %v3004
        %v3023 = vsel %vm3007, %v3004, %v3006
        %v3048 = vadd.f32 %v2885, %v3008
        %v3049 = vadd.f32 %v2886, %v3009
        %v3050 = vadd.f32 %v2887, %v2964
        %v3051 = vadd.f32 %v2888, %v3010
        %v3052 = vadd.f32 %v2889, %v3011
        %v3053 = vadd.f32 %v2890, %v2970
        %v3054 = vadd.f32 %v2891, %v3012
        %v3055 = vadd.f32 %v2892, %v3013
        %v3056 = vadd.f32 %v2893, %v2976
        %v3057 = vadd.f32 %v2894, %v3014
        %v3058 = vadd.f32 %v2895, %v3015
        %v3059 = vadd.f32 %v2896, %v2982
        %v3060 = vadd.f32 %v2897, %v3016
        %v3061 = vadd.f32 %v2898, %v3017
        %v3062 = vadd.f32 %v2899, %v2988
        %v3063 = vadd.f32 %v2900, %v3018
        %v3064 = vadd.f32 %v2901, %v3019
        %v3065 = vadd.f32 %v2902, %v2994
        %v3066 = vadd.f32 %v2903, %v3020
        %v3067 = vadd.f32 %v2904, %v3021
        %v3068 = vadd.f32 %v2905, %v3000
        %v3069 = vadd.f32 %v2906, %v3022
        %v3070 = vadd.f32 %v2907, %v3023
        %v3071 = vadd.f32 %v2908, %v3006
        %s3072 = sld [smem:[#allocation5 + $0xb]]
        %v3073 = vstv %s3072
        %v3074 = vmul.f32 %v3073, %v1369
        %v3075 = vmul.f32 %v3073, %v1370
        %v3076 = vmul.f32 %v3073, %v1371
        %v3077 = vmul.f32 %v3073, %v1372
        %v3078 = vmul.f32 %v3073, %v1373
        %v3079 = vmul.f32 %v3073, %v1374
        %v3080 = vmul.f32 %v3073, %v1375
        %v3081 = vmul.f32 %v3073, %v1376
        %v3082 = vmul.f32 %v3073, %v1377
        %v3083 = vmul.f32 %v3073, %v1378
        %v3084 = vmul.f32 %v3073, %v1379
        %v3085 = vmul.f32 %v3073, %v1380
        %v3086 = vmul.f32 %v3073, %v1381
        %v3087 = vmul.f32 %v3073, %v1382
        %v3088 = vmul.f32 %v3073, %v1383
        %v3089 = vmul.f32 %v3073, %v1384
        %v3090 = vmul.f32 %v3073, %v1385
        %v3091 = vmul.f32 %v3073, %v1386
        %v3092 = vmul.f32 %v3073, %v1387
        %v3093 = vmul.f32 %v3073, %v1388
        %v3094 = vmul.f32 %v3073, %v1389
        %v3095 = vmul.f32 %v3073, %v1390
        %v3096 = vmul.f32 %v3073, %v1391
        %v3097 = vmul.f32 %v3073, %v1392
        %3122 = vrot.lane.b32.xlu0 %v3074, 87
        %v3123 = vpop.permute.xlu0 %3122
        %3124 = vrot.lane.b32.xlu0 %v3075, 87
        %v3125 = vpop.permute.xlu0 %3124
        %3126 = vrot.lane.b32.xlu0 %v3076, 87
        %v3127 = vpop.permute.xlu0 %3126
        %3128 = vrot.lane.b32.xlu0 %v3077, 87
        %v3129 = vpop.permute.xlu0 %3128
        %3130 = vrot.lane.b32.xlu0 %v3078, 87
        %v3131 = vpop.permute.xlu0 %3130
        %3132 = vrot.lane.b32.xlu0 %v3079, 87
        %v3133 = vpop.permute.xlu0 %3132
        %3134 = vrot.lane.b32.xlu0 %v3080, 87
        %v3135 = vpop.permute.xlu0 %3134
        %3136 = vrot.lane.b32.xlu0 %v3081, 87
        %v3137 = vpop.permute.xlu0 %3136
        %3138 = vrot.lane.b32.xlu0 %v3082, 87
        %v3139 = vpop.permute.xlu0 %3138
        %3140 = vrot.lane.b32.xlu0 %v3083, 87
        %v3141 = vpop.permute.xlu0 %3140
        %3142 = vrot.lane.b32.xlu0 %v3084, 87
        %v3143 = vpop.permute.xlu0 %3142
        %3144 = vrot.lane.b32.xlu0 %v3085, 87
        %v3145 = vpop.permute.xlu0 %3144
        %3146 = vrot.lane.b32.xlu0 %v3086, 87
        %v3147 = vpop.permute.xlu0 %3146
        %3148 = vrot.lane.b32.xlu0 %v3087, 87
        %v3149 = vpop.permute.xlu0 %3148
        %3150 = vrot.lane.b32.xlu0 %v3088, 87
        %v3151 = vpop.permute.xlu0 %3150
        %3152 = vrot.lane.b32.xlu0 %v3089, 87
        %v3153 = vpop.permute.xlu0 %3152
        %3154 = vrot.lane.b32.xlu0 %v3090, 87
        %v3155 = vpop.permute.xlu0 %3154
        %3156 = vrot.lane.b32.xlu0 %v3091, 87
        %v3157 = vpop.permute.xlu0 %3156
        %3158 = vrot.lane.b32.xlu0 %v3092, 87
        %v3159 = vpop.permute.xlu0 %3158
        %3160 = vrot.lane.b32.xlu0 %v3093, 87
        %v3161 = vpop.permute.xlu0 %3160
        %3162 = vrot.lane.b32.xlu0 %v3094, 87
        %v3163 = vpop.permute.xlu0 %3162
        %3164 = vrot.lane.b32.xlu0 %v3095, 87
        %v3165 = vpop.permute.xlu0 %3164
        %3166 = vrot.lane.b32.xlu0 %v3096, 87
        %v3167 = vpop.permute.xlu0 %3166
        %3168 = vrot.lane.b32.xlu0 %v3097, 87
        %v3169 = vpop.permute.xlu0 %3168
        %vm3170 = vcmask 711680
        %v3171 = vsel %vm3170, %v3123, %v3125
        %v3172 = vsel %vm3170, %v3125, %v3127
        %v3173 = vsel %vm3170, %v3129, %v3131
        %v3174 = vsel %vm3170, %v3131, %v3133
        %v3175 = vsel %vm3170, %v3135, %v3137
        %v3176 = vsel %vm3170, %v3137, %v3139
        %v3177 = vsel %vm3170, %v3141, %v3143
        %v3178 = vsel %vm3170, %v3143, %v3145
        %v3179 = vsel %vm3170, %v3147, %v3149
        %v3180 = vsel %vm3170, %v3149, %v3151
        %v3181 = vsel %vm3170, %v3153, %v3155
        %v3182 = vsel %vm3170, %v3155, %v3157
        %v3183 = vsel %vm3170, %v3159, %v3161
        %v3184 = vsel %vm3170, %v3161, %v3163
        %v3185 = vsel %vm3170, %v3165, %v3167
        %v3186 = vsel %vm3170, %v3167, %v3169
        %v3211 = vadd.f32 %v3048, %v3171
        %v3212 = vadd.f32 %v3049, %v3172
        %v3213 = vadd.f32 %v3050, %v3127
        %v3214 = vadd.f32 %v3051, %v3173
        %v3215 = vadd.f32 %v3052, %v3174
        %v3216 = vadd.f32 %v3053, %v3133
        %v3217 = vadd.f32 %v3054, %v3175
        %v3218 = vadd.f32 %v3055, %v3176
        %v3219 = vadd.f32 %v3056, %v3139
        %v3220 = vadd.f32 %v3057, %v3177
        %v3221 = vadd.f32 %v3058, %v3178
        %v3222 = vadd.f32 %v3059, %v3145
        %v3223 = vadd.f32 %v3060, %v3179
        %v3224 = vadd.f32 %v3061, %v3180
        %v3225 = vadd.f32 %v3062, %v3151
        %v3226 = vadd.f32 %v3063, %v3181
        %v3227 = vadd.f32 %v3064, %v3182
        %v3228 = vadd.f32 %v3065, %v3157
        %v3229 = vadd.f32 %v3066, %v3183
        %v3230 = vadd.f32 %v3067, %v3184
        %v3231 = vadd.f32 %v3068, %v3163
        %v3232 = vadd.f32 %v3069, %v3185
        %v3233 = vadd.f32 %v3070, %v3186
        %v3234 = vadd.f32 %v3071, %v3169
        %s3235 = sld [smem:[#allocation5 + $0xc]]
        %v3236 = vstv %s3235
        %v3237 = vmul.f32 %v3236, %v1369
        %v3238 = vmul.f32 %v3236, %v1370
        %v3239 = vmul.f32 %v3236, %v1371
        %v3240 = vmul.f32 %v3236, %v1372
        %v3241 = vmul.f32 %v3236, %v1373
        %v3242 = vmul.f32 %v3236, %v1374
        %v3243 = vmul.f32 %v3236, %v1375
        %v3244 = vmul.f32 %v3236, %v1376
        %v3245 = vmul.f32 %v3236, %v1377
        %v3246 = vmul.f32 %v3236, %v1378
        %v3247 = vmul.f32 %v3236, %v1379
        %v3248 = vmul.f32 %v3236, %v1380
        %v3249 = vmul.f32 %v3236, %v1381
        %v3250 = vmul.f32 %v3236, %v1382
        %v3251 = vmul.f32 %v3236, %v1383
        %v3252 = vmul.f32 %v3236, %v1384
        %v3253 = vmul.f32 %v3236, %v1385
        %v3254 = vmul.f32 %v3236, %v1386
        %v3255 = vmul.f32 %v3236, %v1387
        %v3256 = vmul.f32 %v3236, %v1388
        %v3257 = vmul.f32 %v3236, %v1389
        %v3258 = vmul.f32 %v3236, %v1390
        %v3259 = vmul.f32 %v3236, %v1391
        %v3260 = vmul.f32 %v3236, %v1392
        %3285 = vrot.lane.b32.xlu0 %v3237, 86
        %v3286 = vpop.permute.xlu0 %3285
        %3287 = vrot.lane.b32.xlu0 %v3238, 86
        %v3288 = vpop.permute.xlu0 %3287
        %3289 = vrot.lane.b32.xlu0 %v3239, 86
        %v3290 = vpop.permute.xlu0 %3289
        %3291 = vrot.lane.b32.xlu0 %v3240, 86
        %v3292 = vpop.permute.xlu0 %3291
        %3293 = vrot.lane.b32.xlu0 %v3241, 86
        %v3294 = vpop.permute.xlu0 %3293
        %3295 = vrot.lane.b32.xlu0 %v3242, 86
        %v3296 = vpop.permute.xlu0 %3295
        %3297 = vrot.lane.b32.xlu0 %v3243, 86
        %v3298 = vpop.permute.xlu0 %3297
        %3299 = vrot.lane.b32.xlu0 %v3244, 86
        %v3300 = vpop.permute.xlu0 %3299
        %3301 = vrot.lane.b32.xlu0 %v3245, 86
        %v3302 = vpop.permute.xlu0 %3301
        %3303 = vrot.lane.b32.xlu0 %v3246, 86
        %v3304 = vpop.permute.xlu0 %3303
        %3305 = vrot.lane.b32.xlu0 %v3247, 86
        %v3306 = vpop.permute.xlu0 %3305
        %3307 = vrot.lane.b32.xlu0 %v3248, 86
        %v3308 = vpop.permute.xlu0 %3307
        %3309 = vrot.lane.b32.xlu0 %v3249, 86
        %v3310 = vpop.permute.xlu0 %3309
        %3311 = vrot.lane.b32.xlu0 %v3250, 86
        %v3312 = vpop.permute.xlu0 %3311
        %3313 = vrot.lane.b32.xlu0 %v3251, 86
        %v3314 = vpop.permute.xlu0 %3313
        %3315 = vrot.lane.b32.xlu0 %v3252, 86
        %v3316 = vpop.permute.xlu0 %3315
        %3317 = vrot.lane.b32.xlu0 %v3253, 86
        %v3318 = vpop.permute.xlu0 %3317
        %3319 = vrot.lane.b32.xlu0 %v3254, 86
        %v3320 = vpop.permute.xlu0 %3319
        %3321 = vrot.lane.b32.xlu0 %v3255, 86
        %v3322 = vpop.permute.xlu0 %3321
        %3323 = vrot.lane.b32.xlu0 %v3256, 86
        %v3324 = vpop.permute.xlu0 %3323
        %3325 = vrot.lane.b32.xlu0 %v3257, 86
        %v3326 = vpop.permute.xlu0 %3325
        %3327 = vrot.lane.b32.xlu0 %v3258, 86
        %v3328 = vpop.permute.xlu0 %3327
        %3329 = vrot.lane.b32.xlu0 %v3259, 86
        %v3330 = vpop.permute.xlu0 %3329
        %3331 = vrot.lane.b32.xlu0 %v3260, 86
        %v3332 = vpop.permute.xlu0 %3331
        %vm3333 = vcmask 703488
        %v3334 = vsel %vm3333, %v3286, %v3288
        %v3335 = vsel %vm3333, %v3288, %v3290
        %v3336 = vsel %vm3333, %v3292, %v3294
        %v3337 = vsel %vm3333, %v3294, %v3296
        %v3338 = vsel %vm3333, %v3298, %v3300
        %v3339 = vsel %vm3333, %v3300, %v3302
        %v3340 = vsel %vm3333, %v3304, %v3306
        %v3341 = vsel %vm3333, %v3306, %v3308
        %v3342 = vsel %vm3333, %v3310, %v3312
        %v3343 = vsel %vm3333, %v3312, %v3314
        %v3344 = vsel %vm3333, %v3316, %v3318
        %v3345 = vsel %vm3333, %v3318, %v3320
        %v3346 = vsel %vm3333, %v3322, %v3324
        %v3347 = vsel %vm3333, %v3324, %v3326
        %v3348 = vsel %vm3333, %v3328, %v3330
        %v3349 = vsel %vm3333, %v3330, %v3332
        %v3374 = vadd.f32 %v3211, %v3334
        %v3375 = vadd.f32 %v3212, %v3335
        %v3376 = vadd.f32 %v3213, %v3290
        %v3377 = vadd.f32 %v3214, %v3336
        %v3378 = vadd.f32 %v3215, %v3337
        %v3379 = vadd.f32 %v3216, %v3296
        %v3380 = vadd.f32 %v3217, %v3338
        %v3381 = vadd.f32 %v3218, %v3339
        %v3382 = vadd.f32 %v3219, %v3302
        %v3383 = vadd.f32 %v3220, %v3340
        %v3384 = vadd.f32 %v3221, %v3341
        %v3385 = vadd.f32 %v3222, %v3308
        %v3386 = vadd.f32 %v3223, %v3342
        %v3387 = vadd.f32 %v3224, %v3343
        %v3388 = vadd.f32 %v3225, %v3314
        %v3389 = vadd.f32 %v3226, %v3344
        %v3390 = vadd.f32 %v3227, %v3345
        %v3391 = vadd.f32 %v3228, %v3320
        %v3392 = vadd.f32 %v3229, %v3346
        %v3393 = vadd.f32 %v3230, %v3347
        %v3394 = vadd.f32 %v3231, %v3326
        %v3395 = vadd.f32 %v3232, %v3348
        %v3396 = vadd.f32 %v3233, %v3349
        %v3397 = vadd.f32 %v3234, %v3332
        %s3398 = sld [smem:[#allocation5 + $0xd]]
        %v3399 = vstv %s3398
        %v3400 = vmul.f32 %v3399, %v1369
        %v3401 = vmul.f32 %v3399, %v1370
        %v3402 = vmul.f32 %v3399, %v1371
        %v3403 = vmul.f32 %v3399, %v1372
        %v3404 = vmul.f32 %v3399, %v1373
        %v3405 = vmul.f32 %v3399, %v1374
        %v3406 = vmul.f32 %v3399, %v1375
        %v3407 = vmul.f32 %v3399, %v1376
        %v3408 = vmul.f32 %v3399, %v1377
        %v3409 = vmul.f32 %v3399, %v1378
        %v3410 = vmul.f32 %v3399, %v1379
        %v3411 = vmul.f32 %v3399, %v1380
        %v3412 = vmul.f32 %v3399, %v1381
        %v3413 = vmul.f32 %v3399, %v1382
        %v3414 = vmul.f32 %v3399, %v1383
        %v3415 = vmul.f32 %v3399, %v1384
        %v3416 = vmul.f32 %v3399, %v1385
        %v3417 = vmul.f32 %v3399, %v1386
        %v3418 = vmul.f32 %v3399, %v1387
        %v3419 = vmul.f32 %v3399, %v1388
        %v3420 = vmul.f32 %v3399, %v1389
        %v3421 = vmul.f32 %v3399, %v1390
        %v3422 = vmul.f32 %v3399, %v1391
        %v3423 = vmul.f32 %v3399, %v1392
        %3448 = vrot.lane.b32.xlu0 %v3400, 85
        %v3449 = vpop.permute.xlu0 %3448
        %3450 = vrot.lane.b32.xlu0 %v3401, 85
        %v3451 = vpop.permute.xlu0 %3450
        %3452 = vrot.lane.b32.xlu0 %v3402, 85
        %v3453 = vpop.permute.xlu0 %3452
        %3454 = vrot.lane.b32.xlu0 %v3403, 85
        %v3455 = vpop.permute.xlu0 %3454
        %3456 = vrot.lane.b32.xlu0 %v3404, 85
        %v3457 = vpop.permute.xlu0 %3456
        %3458 = vrot.lane.b32.xlu0 %v3405, 85
        %v3459 = vpop.permute.xlu0 %3458
        %3460 = vrot.lane.b32.xlu0 %v3406, 85
        %v3461 = vpop.permute.xlu0 %3460
        %3462 = vrot.lane.b32.xlu0 %v3407, 85
        %v3463 = vpop.permute.xlu0 %3462
        %3464 = vrot.lane.b32.xlu0 %v3408, 85
        %v3465 = vpop.permute.xlu0 %3464
        %3466 = vrot.lane.b32.xlu0 %v3409, 85
        %v3467 = vpop.permute.xlu0 %3466
        %3468 = vrot.lane.b32.xlu0 %v3410, 85
        %v3469 = vpop.permute.xlu0 %3468
        %3470 = vrot.lane.b32.xlu0 %v3411, 85
        %v3471 = vpop.permute.xlu0 %3470
        %3472 = vrot.lane.b32.xlu0 %v3412, 85
        %v3473 = vpop.permute.xlu0 %3472
        %3474 = vrot.lane.b32.xlu0 %v3413, 85
        %v3475 = vpop.permute.xlu0 %3474
        %3476 = vrot.lane.b32.xlu0 %v3414, 85
        %v3477 = vpop.permute.xlu0 %3476
        %3478 = vrot.lane.b32.xlu0 %v3415, 85
        %v3479 = vpop.permute.xlu0 %3478
        %3480 = vrot.lane.b32.xlu0 %v3416, 85
        %v3481 = vpop.permute.xlu0 %3480
        %3482 = vrot.lane.b32.xlu0 %v3417, 85
        %v3483 = vpop.permute.xlu0 %3482
        %3484 = vrot.lane.b32.xlu0 %v3418, 85
        %v3485 = vpop.permute.xlu0 %3484
        %3486 = vrot.lane.b32.xlu0 %v3419, 85
        %v3487 = vpop.permute.xlu0 %3486
        %3488 = vrot.lane.b32.xlu0 %v3420, 85
        %v3489 = vpop.permute.xlu0 %3488
        %3490 = vrot.lane.b32.xlu0 %v3421, 85
        %v3491 = vpop.permute.xlu0 %3490
        %3492 = vrot.lane.b32.xlu0 %v3422, 85
        %v3493 = vpop.permute.xlu0 %3492
        %3494 = vrot.lane.b32.xlu0 %v3423, 85
        %v3495 = vpop.permute.xlu0 %3494
        %vm3496 = vcmask 695296
        %v3497 = vsel %vm3496, %v3449, %v3451
        %v3498 = vsel %vm3496, %v3451, %v3453
        %v3499 = vsel %vm3496, %v3455, %v3457
        %v3500 = vsel %vm3496, %v3457, %v3459
        %v3501 = vsel %vm3496, %v3461, %v3463
        %v3502 = vsel %vm3496, %v3463, %v3465
        %v3503 = vsel %vm3496, %v3467, %v3469
        %v3504 = vsel %vm3496, %v3469, %v3471
        %v3505 = vsel %vm3496, %v3473, %v3475
        %v3506 = vsel %vm3496, %v3475, %v3477
        %v3507 = vsel %vm3496, %v3479, %v3481
        %v3508 = vsel %vm3496, %v3481, %v3483
        %v3509 = vsel %vm3496, %v3485, %v3487
        %v3510 = vsel %vm3496, %v3487, %v3489
        %v3511 = vsel %vm3496, %v3491, %v3493
        %v3512 = vsel %vm3496, %v3493, %v3495
        %v3537 = vadd.f32 %v3374, %v3497
        %v3538 = vadd.f32 %v3375, %v3498
        %v3539 = vadd.f32 %v3376, %v3453
        %v3540 = vadd.f32 %v3377, %v3499
        %v3541 = vadd.f32 %v3378, %v3500
        %v3542 = vadd.f32 %v3379, %v3459
        %v3543 = vadd.f32 %v3380, %v3501
        %v3544 = vadd.f32 %v3381, %v3502
        %v3545 = vadd.f32 %v3382, %v3465
        %v3546 = vadd.f32 %v3383, %v3503
        %v3547 = vadd.f32 %v3384, %v3504
        %v3548 = vadd.f32 %v3385, %v3471
        %v3549 = vadd.f32 %v3386, %v3505
        %v3550 = vadd.f32 %v3387, %v3506
        %v3551 = vadd.f32 %v3388, %v3477
        %v3552 = vadd.f32 %v3389, %v3507
        %v3553 = vadd.f32 %v3390, %v3508
        %v3554 = vadd.f32 %v3391, %v3483
        %v3555 = vadd.f32 %v3392, %v3509
        %v3556 = vadd.f32 %v3393, %v3510
        %v3557 = vadd.f32 %v3394, %v3489
        %v3558 = vadd.f32 %v3395, %v3511
        %v3559 = vadd.f32 %v3396, %v3512
        %v3560 = vadd.f32 %v3397, %v3495
        %s3561 = sld [smem:[#allocation5 + $0xe]]
        %v3562 = vstv %s3561
        %v3563 = vmul.f32 %v3562, %v1369
        %v3564 = vmul.f32 %v3562, %v1370
        %v3565 = vmul.f32 %v3562, %v1371
        %v3566 = vmul.f32 %v3562, %v1372
        %v3567 = vmul.f32 %v3562, %v1373
        %v3568 = vmul.f32 %v3562, %v1374
        %v3569 = vmul.f32 %v3562, %v1375
        %v3570 = vmul.f32 %v3562, %v1376
        %v3571 = vmul.f32 %v3562, %v1377
        %v3572 = vmul.f32 %v3562, %v1378
        %v3573 = vmul.f32 %v3562, %v1379
        %v3574 = vmul.f32 %v3562, %v1380
        %v3575 = vmul.f32 %v3562, %v1381
        %v3576 = vmul.f32 %v3562, %v1382
        %v3577 = vmul.f32 %v3562, %v1383
        %v3578 = vmul.f32 %v3562, %v1384
        %v3579 = vmul.f32 %v3562, %v1385
        %v3580 = vmul.f32 %v3562, %v1386
        %v3581 = vmul.f32 %v3562, %v1387
        %v3582 = vmul.f32 %v3562, %v1388
        %v3583 = vmul.f32 %v3562, %v1389
        %v3584 = vmul.f32 %v3562, %v1390
        %v3585 = vmul.f32 %v3562, %v1391
        %v3586 = vmul.f32 %v3562, %v1392
        %3611 = vrot.lane.b32.xlu0 %v3563, 84
        %v3612 = vpop.permute.xlu0 %3611
        %3613 = vrot.lane.b32.xlu0 %v3564, 84
        %v3614 = vpop.permute.xlu0 %3613
        %3615 = vrot.lane.b32.xlu0 %v3565, 84
        %v3616 = vpop.permute.xlu0 %3615
        %3617 = vrot.lane.b32.xlu0 %v3566, 84
        %v3618 = vpop.permute.xlu0 %3617
        %3619 = vrot.lane.b32.xlu0 %v3567, 84
        %v3620 = vpop.permute.xlu0 %3619
        %3621 = vrot.lane.b32.xlu0 %v3568, 84
        %v3622 = vpop.permute.xlu0 %3621
        %3623 = vrot.lane.b32.xlu0 %v3569, 84
        %v3624 = vpop.permute.xlu0 %3623
        %3625 = vrot.lane.b32.xlu0 %v3570, 84
        %v3626 = vpop.permute.xlu0 %3625
        %3627 = vrot.lane.b32.xlu0 %v3571, 84
        %v3628 = vpop.permute.xlu0 %3627
        %3629 = vrot.lane.b32.xlu0 %v3572, 84
        %v3630 = vpop.permute.xlu0 %3629
        %3631 = vrot.lane.b32.xlu0 %v3573, 84
        %v3632 = vpop.permute.xlu0 %3631
        %3633 = vrot.lane.b32.xlu0 %v3574, 84
        %v3634 = vpop.permute.xlu0 %3633
        %3635 = vrot.lane.b32.xlu0 %v3575, 84
        %v3636 = vpop.permute.xlu0 %3635
        %3637 = vrot.lane.b32.xlu0 %v3576, 84
        %v3638 = vpop.permute.xlu0 %3637
        %3639 = vrot.lane.b32.xlu0 %v3577, 84
        %v3640 = vpop.permute.xlu0 %3639
        %3641 = vrot.lane.b32.xlu0 %v3578, 84
        %v3642 = vpop.permute.xlu0 %3641
        %3643 = vrot.lane.b32.xlu0 %v3579, 84
        %v3644 = vpop.permute.xlu0 %3643
        %3645 = vrot.lane.b32.xlu0 %v3580, 84
        %v3646 = vpop.permute.xlu0 %3645
        %3647 = vrot.lane.b32.xlu0 %v3581, 84
        %v3648 = vpop.permute.xlu0 %3647
        %3649 = vrot.lane.b32.xlu0 %v3582, 84
        %v3650 = vpop.permute.xlu0 %3649
        %3651 = vrot.lane.b32.xlu0 %v3583, 84
        %v3652 = vpop.permute.xlu0 %3651
        %3653 = vrot.lane.b32.xlu0 %v3584, 84
        %v3654 = vpop.permute.xlu0 %3653
        %3655 = vrot.lane.b32.xlu0 %v3585, 84
        %v3656 = vpop.permute.xlu0 %3655
        %3657 = vrot.lane.b32.xlu0 %v3586, 84
        %v3658 = vpop.permute.xlu0 %3657
        %vm3659 = vcmask 687104
        %v3660 = vsel %vm3659, %v3612, %v3614
        %v3661 = vsel %vm3659, %v3614, %v3616
        %v3662 = vsel %vm3659, %v3618, %v3620
        %v3663 = vsel %vm3659, %v3620, %v3622
        %v3664 = vsel %vm3659, %v3624, %v3626
        %v3665 = vsel %vm3659, %v3626, %v3628
        %v3666 = vsel %vm3659, %v3630, %v3632
        %v3667 = vsel %vm3659, %v3632, %v3634
        %v3668 = vsel %vm3659, %v3636, %v3638
        %v3669 = vsel %vm3659, %v3638, %v3640
        %v3670 = vsel %vm3659, %v3642, %v3644
        %v3671 = vsel %vm3659, %v3644, %v3646
        %v3672 = vsel %vm3659, %v3648, %v3650
        %v3673 = vsel %vm3659, %v3650, %v3652
        %v3674 = vsel %vm3659, %v3654, %v3656
        %v3675 = vsel %vm3659, %v3656, %v3658
        %v3700 = vadd.f32 %v3537, %v3660
        %v3701 = vadd.f32 %v3538, %v3661
        %v3702 = vadd.f32 %v3539, %v3616
        %v3703 = vadd.f32 %v3540, %v3662
        %v3704 = vadd.f32 %v3541, %v3663
        %v3705 = vadd.f32 %v3542, %v3622
        %v3706 = vadd.f32 %v3543, %v3664
        %v3707 = vadd.f32 %v3544, %v3665
        %v3708 = vadd.f32 %v3545, %v3628
        %v3709 = vadd.f32 %v3546, %v3666
        %v3710 = vadd.f32 %v3547, %v3667
        %v3711 = vadd.f32 %v3548, %v3634
        %v3712 = vadd.f32 %v3549, %v3668
        %v3713 = vadd.f32 %v3550, %v3669
        %v3714 = vadd.f32 %v3551, %v3640
        %v3715 = vadd.f32 %v3552, %v3670
        %v3716 = vadd.f32 %v3553, %v3671
        %v3717 = vadd.f32 %v3554, %v3646
        %v3718 = vadd.f32 %v3555, %v3672
        %v3719 = vadd.f32 %v3556, %v3673
        %v3720 = vadd.f32 %v3557, %v3652
        %v3721 = vadd.f32 %v3558, %v3674
        %v3722 = vadd.f32 %v3559, %v3675
        %v3723 = vadd.f32 %v3560, %v3658
        %s3724 = sld [smem:[#allocation5 + $0xf]]
        %v3725 = vstv %s3724
        %v3726 = vmul.f32 %v3725, %v1369
        %v3727 = vmul.f32 %v3725, %v1370
        %v3728 = vmul.f32 %v3725, %v1371
        %v3729 = vmul.f32 %v3725, %v1372
        %v3730 = vmul.f32 %v3725, %v1373
        %v3731 = vmul.f32 %v3725, %v1374
        %v3732 = vmul.f32 %v3725, %v1375
        %v3733 = vmul.f32 %v3725, %v1376
        %v3734 = vmul.f32 %v3725, %v1377
        %v3735 = vmul.f32 %v3725, %v1378
        %v3736 = vmul.f32 %v3725, %v1379
        %v3737 = vmul.f32 %v3725, %v1380
        %v3738 = vmul.f32 %v3725, %v1381
        %v3739 = vmul.f32 %v3725, %v1382
        %v3740 = vmul.f32 %v3725, %v1383
        %v3741 = vmul.f32 %v3725, %v1384
        %v3742 = vmul.f32 %v3725, %v1385
        %v3743 = vmul.f32 %v3725, %v1386
        %v3744 = vmul.f32 %v3725, %v1387
        %v3745 = vmul.f32 %v3725, %v1388
        %v3746 = vmul.f32 %v3725, %v1389
        %v3747 = vmul.f32 %v3725, %v1390
        %v3748 = vmul.f32 %v3725, %v1391
        %v3749 = vmul.f32 %v3725, %v1392
        %3774 = vrot.lane.b32.xlu0 %v3726, 68
        %v3775 = vpop.permute.xlu0 %3774
        %3776 = vrot.lane.b32.xlu0 %v3727, 68
        %v3777 = vpop.permute.xlu0 %3776
        %3778 = vrot.lane.b32.xlu0 %v3728, 68
        %v3779 = vpop.permute.xlu0 %3778
        %3780 = vrot.lane.b32.xlu0 %v3729, 68
        %v3781 = vpop.permute.xlu0 %3780
        %3782 = vrot.lane.b32.xlu0 %v3730, 68
        %v3783 = vpop.permute.xlu0 %3782
        %3784 = vrot.lane.b32.xlu0 %v3731, 68
        %v3785 = vpop.permute.xlu0 %3784
        %3786 = vrot.lane.b32.xlu0 %v3732, 68
        %v3787 = vpop.permute.xlu0 %3786
        %3788 = vrot.lane.b32.xlu0 %v3733, 68
        %v3789 = vpop.permute.xlu0 %3788
        %3790 = vrot.lane.b32.xlu0 %v3734, 68
        %v3791 = vpop.permute.xlu0 %3790
        %3792 = vrot.lane.b32.xlu0 %v3735, 68
        %v3793 = vpop.permute.xlu0 %3792
        %3794 = vrot.lane.b32.xlu0 %v3736, 68
        %v3795 = vpop.permute.xlu0 %3794
        %3796 = vrot.lane.b32.xlu0 %v3737, 68
        %v3797 = vpop.permute.xlu0 %3796
        %3798 = vrot.lane.b32.xlu0 %v3738, 68
        %v3799 = vpop.permute.xlu0 %3798
        %3800 = vrot.lane.b32.xlu0 %v3739, 68
        %v3801 = vpop.permute.xlu0 %3800
        %3802 = vrot.lane.b32.xlu0 %v3740, 68
        %v3803 = vpop.permute.xlu0 %3802
        %3804 = vrot.lane.b32.xlu0 %v3741, 68
        %v3805 = vpop.permute.xlu0 %3804
        %3806 = vrot.lane.b32.xlu0 %v3742, 68
        %v3807 = vpop.permute.xlu0 %3806
        %3808 = vrot.lane.b32.xlu0 %v3743, 68
        %v3809 = vpop.permute.xlu0 %3808
        %3810 = vrot.lane.b32.xlu0 %v3744, 68
        %v3811 = vpop.permute.xlu0 %3810
        %3812 = vrot.lane.b32.xlu0 %v3745, 68
        %v3813 = vpop.permute.xlu0 %3812
        %3814 = vrot.lane.b32.xlu0 %v3746, 68
        %v3815 = vpop.permute.xlu0 %3814
        %3816 = vrot.lane.b32.xlu0 %v3747, 68
        %v3817 = vpop.permute.xlu0 %3816
        %3818 = vrot.lane.b32.xlu0 %v3748, 68
        %v3819 = vpop.permute.xlu0 %3818
        %3820 = vrot.lane.b32.xlu0 %v3749, 68
        %v3821 = vpop.permute.xlu0 %3820
        %vm3822 = vcmask 556032
        %v3823 = vsel %vm3822, %v3775, %v3777
        %v3824 = vsel %vm3822, %v3777, %v3779
        %v3825 = vsel %vm3822, %v3781, %v3783
        %v3826 = vsel %vm3822, %v3783, %v3785
        %v3827 = vsel %vm3822, %v3787, %v3789
        %v3828 = vsel %vm3822, %v3789, %v3791
        %v3829 = vsel %vm3822, %v3793, %v3795
        %v3830 = vsel %vm3822, %v3795, %v3797
        %v3831 = vsel %vm3822, %v3799, %v3801
        %v3832 = vsel %vm3822, %v3801, %v3803
        %v3833 = vsel %vm3822, %v3805, %v3807
        %v3834 = vsel %vm3822, %v3807, %v3809
        %v3835 = vsel %vm3822, %v3811, %v3813
        %v3836 = vsel %vm3822, %v3813, %v3815
        %v3837 = vsel %vm3822, %v3817, %v3819
        %v3838 = vsel %vm3822, %v3819, %v3821
        %v3863 = vadd.f32 %v3700, %v3823
        %v3864 = vadd.f32 %v3701, %v3824
        %v3865 = vadd.f32 %v3702, %v3779
        %v3866 = vadd.f32 %v3703, %v3825
        %v3867 = vadd.f32 %v3704, %v3826
        %v3868 = vadd.f32 %v3705, %v3785
        %v3869 = vadd.f32 %v3706, %v3827
        %v3870 = vadd.f32 %v3707, %v3828
        %v3871 = vadd.f32 %v3708, %v3791
        %v3872 = vadd.f32 %v3709, %v3829
        %v3873 = vadd.f32 %v3710, %v3830
        %v3874 = vadd.f32 %v3711, %v3797
        %v3875 = vadd.f32 %v3712, %v3831
        %v3876 = vadd.f32 %v3713, %v3832
        %v3877 = vadd.f32 %v3714, %v3803
        %v3878 = vadd.f32 %v3715, %v3833
        %v3879 = vadd.f32 %v3716, %v3834
        %v3880 = vadd.f32 %v3717, %v3809
        %v3881 = vadd.f32 %v3718, %v3835
        %v3882 = vadd.f32 %v3719, %v3836
        %v3883 = vadd.f32 %v3720, %v3815
        %v3884 = vadd.f32 %v3721, %v3837
        %v3885 = vadd.f32 %v3722, %v3838
        %v3886 = vadd.f32 %v3723, %v3821
        %s3887 = sld [smem:[#allocation5 + $0x10]]
        %v3888 = vstv %s3887
        %v3889 = vmul.f32 %v3888, %v1369
        %v3890 = vmul.f32 %v3888, %v1370
        %v3891 = vmul.f32 %v3888, %v1371
        %v3892 = vmul.f32 %v3888, %v1372
        %v3893 = vmul.f32 %v3888, %v1373
        %v3894 = vmul.f32 %v3888, %v1374
        %v3895 = vmul.f32 %v3888, %v1375
        %v3896 = vmul.f32 %v3888, %v1376
        %v3897 = vmul.f32 %v3888, %v1377
        %v3898 = vmul.f32 %v3888, %v1378
        %v3899 = vmul.f32 %v3888, %v1379
        %v3900 = vmul.f32 %v3888, %v1380
        %v3901 = vmul.f32 %v3888, %v1381
        %v3902 = vmul.f32 %v3888, %v1382
        %v3903 = vmul.f32 %v3888, %v1383
        %v3904 = vmul.f32 %v3888, %v1384
        %v3905 = vmul.f32 %v3888, %v1385
        %v3906 = vmul.f32 %v3888, %v1386
        %v3907 = vmul.f32 %v3888, %v1387
        %v3908 = vmul.f32 %v3888, %v1388
        %v3909 = vmul.f32 %v3888, %v1389
        %v3910 = vmul.f32 %v3888, %v1390
        %v3911 = vmul.f32 %v3888, %v1391
        %v3912 = vmul.f32 %v3888, %v1392
        %3937 = vrot.lane.b32.xlu0 %v3889, 67
        %v3938 = vpop.permute.xlu0 %3937
        %3939 = vrot.lane.b32.xlu0 %v3890, 67
        %v3940 = vpop.permute.xlu0 %3939
        %3941 = vrot.lane.b32.xlu0 %v3891, 67
        %v3942 = vpop.permute.xlu0 %3941
        %3943 = vrot.lane.b32.xlu0 %v3892, 67
        %v3944 = vpop.permute.xlu0 %3943
        %3945 = vrot.lane.b32.xlu0 %v3893, 67
        %v3946 = vpop.permute.xlu0 %3945
        %3947 = vrot.lane.b32.xlu0 %v3894, 67
        %v3948 = vpop.permute.xlu0 %3947
        %3949 = vrot.lane.b32.xlu0 %v3895, 67
        %v3950 = vpop.permute.xlu0 %3949
        %3951 = vrot.lane.b32.xlu0 %v3896, 67
        %v3952 = vpop.permute.xlu0 %3951
        %3953 = vrot.lane.b32.xlu0 %v3897, 67
        %v3954 = vpop.permute.xlu0 %3953
        %3955 = vrot.lane.b32.xlu0 %v3898, 67
        %v3956 = vpop.permute.xlu0 %3955
        %3957 = vrot.lane.b32.xlu0 %v3899, 67
        %v3958 = vpop.permute.xlu0 %3957
        %3959 = vrot.lane.b32.xlu0 %v3900, 67
        %v3960 = vpop.permute.xlu0 %3959
        %3961 = vrot.lane.b32.xlu0 %v3901, 67
        %v3962 = vpop.permute.xlu0 %3961
        %3963 = vrot.lane.b32.xlu0 %v3902, 67
        %v3964 = vpop.permute.xlu0 %3963
        %3965 = vrot.lane.b32.xlu0 %v3903, 67
        %v3966 = vpop.permute.xlu0 %3965
        %3967 = vrot.lane.b32.xlu0 %v3904, 67
        %v3968 = vpop.permute.xlu0 %3967
        %3969 = vrot.lane.b32.xlu0 %v3905, 67
        %v3970 = vpop.permute.xlu0 %3969
        %3971 = vrot.lane.b32.xlu0 %v3906, 67
        %v3972 = vpop.permute.xlu0 %3971
        %3973 = vrot.lane.b32.xlu0 %v3907, 67
        %v3974 = vpop.permute.xlu0 %3973
        %3975 = vrot.lane.b32.xlu0 %v3908, 67
        %v3976 = vpop.permute.xlu0 %3975
        %3977 = vrot.lane.b32.xlu0 %v3909, 67
        %v3978 = vpop.permute.xlu0 %3977
        %3979 = vrot.lane.b32.xlu0 %v3910, 67
        %v3980 = vpop.permute.xlu0 %3979
        %3981 = vrot.lane.b32.xlu0 %v3911, 67
        %v3982 = vpop.permute.xlu0 %3981
        %3983 = vrot.lane.b32.xlu0 %v3912, 67
        %v3984 = vpop.permute.xlu0 %3983
        %vm3985 = vcmask 547840
        %v3986 = vsel %vm3985, %v3938, %v3940
        %v3987 = vsel %vm3985, %v3940, %v3942
        %v3988 = vsel %vm3985, %v3944, %v3946
        %v3989 = vsel %vm3985, %v3946, %v3948
        %v3990 = vsel %vm3985, %v3950, %v3952
        %v3991 = vsel %vm3985, %v3952, %v3954
        %v3992 = vsel %vm3985, %v3956, %v3958
        %v3993 = vsel %vm3985, %v3958, %v3960
        %v3994 = vsel %vm3985, %v3962, %v3964
        %v3995 = vsel %vm3985, %v3964, %v3966
        %v3996 = vsel %vm3985, %v3968, %v3970
        %v3997 = vsel %vm3985, %v3970, %v3972
        %v3998 = vsel %vm3985, %v3974, %v3976
        %v3999 = vsel %vm3985, %v3976, %v3978
        %v4000 = vsel %vm3985, %v3980, %v3982
        %v4001 = vsel %vm3985, %v3982, %v3984
        %v4026 = vadd.f32 %v3863, %v3986
        %v4027 = vadd.f32 %v3864, %v3987
        %v4028 = vadd.f32 %v3865, %v3942
        %v4029 = vadd.f32 %v3866, %v3988
        %v4030 = vadd.f32 %v3867, %v3989
        %v4031 = vadd.f32 %v3868, %v3948
        %v4032 = vadd.f32 %v3869, %v3990
        %v4033 = vadd.f32 %v3870, %v3991
        %v4034 = vadd.f32 %v3871, %v3954
        %v4035 = vadd.f32 %v3872, %v3992
        %v4036 = vadd.f32 %v3873, %v3993
        %v4037 = vadd.f32 %v3874, %v3960
        %v4038 = vadd.f32 %v3875, %v3994
        %v4039 = vadd.f32 %v3876, %v3995
        %v4040 = vadd.f32 %v3877, %v3966
        %v4041 = vadd.f32 %v3878, %v3996
        %v4042 = vadd.f32 %v3879, %v3997
        %v4043 = vadd.f32 %v3880, %v3972
        %v4044 = vadd.f32 %v3881, %v3998
        %v4045 = vadd.f32 %v3882, %v3999
        %v4046 = vadd.f32 %v3883, %v3978
        %v4047 = vadd.f32 %v3884, %v4000
        %v4048 = vadd.f32 %v3885, %v4001
        %v4049 = vadd.f32 %v3886, %v3984
        %s4050 = sld [smem:[#allocation5 + $0x11]]
        %v4051 = vstv %s4050
        %v4052 = vmul.f32 %v4051, %v1369
        %v4053 = vmul.f32 %v4051, %v1370
        %v4054 = vmul.f32 %v4051, %v1371
        %v4055 = vmul.f32 %v4051, %v1372
        %v4056 = vmul.f32 %v4051, %v1373
        %v4057 = vmul.f32 %v4051, %v1374
        %v4058 = vmul.f32 %v4051, %v1375
        %v4059 = vmul.f32 %v4051, %v1376
        %v4060 = vmul.f32 %v4051, %v1377
        %v4061 = vmul.f32 %v4051, %v1378
        %v4062 = vmul.f32 %v4051, %v1379
        %v4063 = vmul.f32 %v4051, %v1380
        %v4064 = vmul.f32 %v4051, %v1381
        %v4065 = vmul.f32 %v4051, %v1382
        %v4066 = vmul.f32 %v4051, %v1383
        %v4067 = vmul.f32 %v4051, %v1384
        %v4068 = vmul.f32 %v4051, %v1385
        %v4069 = vmul.f32 %v4051, %v1386
        %v4070 = vmul.f32 %v4051, %v1387
        %v4071 = vmul.f32 %v4051, %v1388
        %v4072 = vmul.f32 %v4051, %v1389
        %v4073 = vmul.f32 %v4051, %v1390
        %v4074 = vmul.f32 %v4051, %v1391
        %v4075 = vmul.f32 %v4051, %v1392
        %4100 = vrot.lane.b32.xlu0 %v4052, 66
        %v4101 = vpop.permute.xlu0 %4100
        %4102 = vrot.lane.b32.xlu0 %v4053, 66
        %v4103 = vpop.permute.xlu0 %4102
        %4104 = vrot.lane.b32.xlu0 %v4054, 66
        %v4105 = vpop.permute.xlu0 %4104
        %4106 = vrot.lane.b32.xlu0 %v4055, 66
        %v4107 = vpop.permute.xlu0 %4106
        %4108 = vrot.lane.b32.xlu0 %v4056, 66
        %v4109 = vpop.permute.xlu0 %4108
        %4110 = vrot.lane.b32.xlu0 %v4057, 66
        %v4111 = vpop.permute.xlu0 %4110
        %4112 = vrot.lane.b32.xlu0 %v4058, 66
        %v4113 = vpop.permute.xlu0 %4112
        %4114 = vrot.lane.b32.xlu0 %v4059, 66
        %v4115 = vpop.permute.xlu0 %4114
        %4116 = vrot.lane.b32.xlu0 %v4060, 66
        %v4117 = vpop.permute.xlu0 %4116
        %4118 = vrot.lane.b32.xlu0 %v4061, 66
        %v4119 = vpop.permute.xlu0 %4118
        %4120 = vrot.lane.b32.xlu0 %v4062, 66
        %v4121 = vpop.permute.xlu0 %4120
        %4122 = vrot.lane.b32.xlu0 %v4063, 66
        %v4123 = vpop.permute.xlu0 %4122
        %4124 = vrot.lane.b32.xlu0 %v4064, 66
        %v4125 = vpop.permute.xlu0 %4124
        %4126 = vrot.lane.b32.xlu0 %v4065, 66
        %v4127 = vpop.permute.xlu0 %4126
        %4128 = vrot.lane.b32.xlu0 %v4066, 66
        %v4129 = vpop.permute.xlu0 %4128
        %4130 = vrot.lane.b32.xlu0 %v4067, 66
        %v4131 = vpop.permute.xlu0 %4130
        %4132 = vrot.lane.b32.xlu0 %v4068, 66
        %v4133 = vpop.permute.xlu0 %4132
        %4134 = vrot.lane.b32.xlu0 %v4069, 66
        %v4135 = vpop.permute.xlu0 %4134
        %4136 = vrot.lane.b32.xlu0 %v4070, 66
        %v4137 = vpop.permute.xlu0 %4136
        %4138 = vrot.lane.b32.xlu0 %v4071, 66
        %v4139 = vpop.permute.xlu0 %4138
        %4140 = vrot.lane.b32.xlu0 %v4072, 66
        %v4141 = vpop.permute.xlu0 %4140
        %4142 = vrot.lane.b32.xlu0 %v4073, 66
        %v4143 = vpop.permute.xlu0 %4142
        %4144 = vrot.lane.b32.xlu0 %v4074, 66
        %v4145 = vpop.permute.xlu0 %4144
        %4146 = vrot.lane.b32.xlu0 %v4075, 66
        %v4147 = vpop.permute.xlu0 %4146
        %vm4148 = vcmask 539648
        %v4149 = vsel %vm4148, %v4101, %v4103
        %v4150 = vsel %vm4148, %v4103, %v4105
        %v4151 = vsel %vm4148, %v4107, %v4109
        %v4152 = vsel %vm4148, %v4109, %v4111
        %v4153 = vsel %vm4148, %v4113, %v4115
        %v4154 = vsel %vm4148, %v4115, %v4117
        %v4155 = vsel %vm4148, %v4119, %v4121
        %v4156 = vsel %vm4148, %v4121, %v4123
        %v4157 = vsel %vm4148, %v4125, %v4127
        %v4158 = vsel %vm4148, %v4127, %v4129
        %v4159 = vsel %vm4148, %v4131, %v4133
        %v4160 = vsel %vm4148, %v4133, %v4135
        %v4161 = vsel %vm4148, %v4137, %v4139
        %v4162 = vsel %vm4148, %v4139, %v4141
        %v4163 = vsel %vm4148, %v4143, %v4145
        %v4164 = vsel %vm4148, %v4145, %v4147
        %v4189 = vadd.f32 %v4026, %v4149
        %v4190 = vadd.f32 %v4027, %v4150
        %v4191 = vadd.f32 %v4028, %v4105
        %v4192 = vadd.f32 %v4029, %v4151
        %v4193 = vadd.f32 %v4030, %v4152
        %v4194 = vadd.f32 %v4031, %v4111
        %v4195 = vadd.f32 %v4032, %v4153
        %v4196 = vadd.f32 %v4033, %v4154
        %v4197 = vadd.f32 %v4034, %v4117
        %v4198 = vadd.f32 %v4035, %v4155
        %v4199 = vadd.f32 %v4036, %v4156
        %v4200 = vadd.f32 %v4037, %v4123
        %v4201 = vadd.f32 %v4038, %v4157
        %v4202 = vadd.f32 %v4039, %v4158
        %v4203 = vadd.f32 %v4040, %v4129
        %v4204 = vadd.f32 %v4041, %v4159
        %v4205 = vadd.f32 %v4042, %v4160
        %v4206 = vadd.f32 %v4043, %v4135
        %v4207 = vadd.f32 %v4044, %v4161
        %v4208 = vadd.f32 %v4045, %v4162
        %v4209 = vadd.f32 %v4046, %v4141
        %v4210 = vadd.f32 %v4047, %v4163
        %v4211 = vadd.f32 %v4048, %v4164
        %v4212 = vadd.f32 %v4049, %v4147
        %s4213 = sld [smem:[#allocation5 + $0x12]]
        %v4214 = vstv %s4213
        %v4215 = vmul.f32 %v4214, %v1369
        %v4216 = vmul.f32 %v4214, %v1370
        %v4217 = vmul.f32 %v4214, %v1371
        %v4218 = vmul.f32 %v4214, %v1372
        %v4219 = vmul.f32 %v4214, %v1373
        %v4220 = vmul.f32 %v4214, %v1374
        %v4221 = vmul.f32 %v4214, %v1375
        %v4222 = vmul.f32 %v4214, %v1376
        %v4223 = vmul.f32 %v4214, %v1377
        %v4224 = vmul.f32 %v4214, %v1378
        %v4225 = vmul.f32 %v4214, %v1379
        %v4226 = vmul.f32 %v4214, %v1380
        %v4227 = vmul.f32 %v4214, %v1381
        %v4228 = vmul.f32 %v4214, %v1382
        %v4229 = vmul.f32 %v4214, %v1383
        %v4230 = vmul.f32 %v4214, %v1384
        %v4231 = vmul.f32 %v4214, %v1385
        %v4232 = vmul.f32 %v4214, %v1386
        %v4233 = vmul.f32 %v4214, %v1387
        %v4234 = vmul.f32 %v4214, %v1388
        %v4235 = vmul.f32 %v4214, %v1389
        %v4236 = vmul.f32 %v4214, %v1390
        %v4237 = vmul.f32 %v4214, %v1391
        %v4238 = vmul.f32 %v4214, %v1392
        %4263 = vrot.lane.b32.xlu0 %v4215, 65
        %v4264 = vpop.permute.xlu0 %4263
        %4265 = vrot.lane.b32.xlu0 %v4216, 65
        %v4266 = vpop.permute.xlu0 %4265
        %4267 = vrot.lane.b32.xlu0 %v4217, 65
        %v4268 = vpop.permute.xlu0 %4267
        %4269 = vrot.lane.b32.xlu0 %v4218, 65
        %v4270 = vpop.permute.xlu0 %4269
        %4271 = vrot.lane.b32.xlu0 %v4219, 65
        %v4272 = vpop.permute.xlu0 %4271
        %4273 = vrot.lane.b32.xlu0 %v4220, 65
        %v4274 = vpop.permute.xlu0 %4273
        %4275 = vrot.lane.b32.xlu0 %v4221, 65
        %v4276 = vpop.permute.xlu0 %4275
        %4277 = vrot.lane.b32.xlu0 %v4222, 65
        %v4278 = vpop.permute.xlu0 %4277
        %4279 = vrot.lane.b32.xlu0 %v4223, 65
        %v4280 = vpop.permute.xlu0 %4279
        %4281 = vrot.lane.b32.xlu0 %v4224, 65
        %v4282 = vpop.permute.xlu0 %4281
        %4283 = vrot.lane.b32.xlu0 %v4225, 65
        %v4284 = vpop.permute.xlu0 %4283
        %4285 = vrot.lane.b32.xlu0 %v4226, 65
        %v4286 = vpop.permute.xlu0 %4285
        %4287 = vrot.lane.b32.xlu0 %v4227, 65
        %v4288 = vpop.permute.xlu0 %4287
        %4289 = vrot.lane.b32.xlu0 %v4228, 65
        %v4290 = vpop.permute.xlu0 %4289
        %4291 = vrot.lane.b32.xlu0 %v4229, 65
        %v4292 = vpop.permute.xlu0 %4291
        %4293 = vrot.lane.b32.xlu0 %v4230, 65
        %v4294 = vpop.permute.xlu0 %4293
        %4295 = vrot.lane.b32.xlu0 %v4231, 65
        %v4296 = vpop.permute.xlu0 %4295
        %4297 = vrot.lane.b32.xlu0 %v4232, 65
        %v4298 = vpop.permute.xlu0 %4297
        %4299 = vrot.lane.b32.xlu0 %v4233, 65
        %v4300 = vpop.permute.xlu0 %4299
        %4301 = vrot.lane.b32.xlu0 %v4234, 65
        %v4302 = vpop.permute.xlu0 %4301
        %4303 = vrot.lane.b32.xlu0 %v4235, 65
        %v4304 = vpop.permute.xlu0 %4303
        %4305 = vrot.lane.b32.xlu0 %v4236, 65
        %v4306 = vpop.permute.xlu0 %4305
        %4307 = vrot.lane.b32.xlu0 %v4237, 65
        %v4308 = vpop.permute.xlu0 %4307
        %4309 = vrot.lane.b32.xlu0 %v4238, 65
        %v4310 = vpop.permute.xlu0 %4309
        %vm4311 = vcmask 531456
        %v4312 = vsel %vm4311, %v4264, %v4266
        %v4313 = vsel %vm4311, %v4266, %v4268
        %v4314 = vsel %vm4311, %v4270, %v4272
        %v4315 = vsel %vm4311, %v4272, %v4274
        %v4316 = vsel %vm4311, %v4276, %v4278
        %v4317 = vsel %vm4311, %v4278, %v4280
        %v4318 = vsel %vm4311, %v4282, %v4284
        %v4319 = vsel %vm4311, %v4284, %v4286
        %v4320 = vsel %vm4311, %v4288, %v4290
        %v4321 = vsel %vm4311, %v4290, %v4292
        %v4322 = vsel %vm4311, %v4294, %v4296
        %v4323 = vsel %vm4311, %v4296, %v4298
        %v4324 = vsel %vm4311, %v4300, %v4302
        %v4325 = vsel %vm4311, %v4302, %v4304
        %v4326 = vsel %vm4311, %v4306, %v4308
        %v4327 = vsel %vm4311, %v4308, %v4310
        %v4352 = vadd.f32 %v4189, %v4312
        %v4353 = vadd.f32 %v4190, %v4313
        %v4354 = vadd.f32 %v4191, %v4268
        %v4355 = vadd.f32 %v4192, %v4314
        %v4356 = vadd.f32 %v4193, %v4315
        %v4357 = vadd.f32 %v4194, %v4274
        %v4358 = vadd.f32 %v4195, %v4316
        %v4359 = vadd.f32 %v4196, %v4317
        %v4360 = vadd.f32 %v4197, %v4280
        %v4361 = vadd.f32 %v4198, %v4318
        %v4362 = vadd.f32 %v4199, %v4319
        %v4363 = vadd.f32 %v4200, %v4286
        %v4364 = vadd.f32 %v4201, %v4320
        %v4365 = vadd.f32 %v4202, %v4321
        %v4366 = vadd.f32 %v4203, %v4292
        %v4367 = vadd.f32 %v4204, %v4322
        %v4368 = vadd.f32 %v4205, %v4323
        %v4369 = vadd.f32 %v4206, %v4298
        %v4370 = vadd.f32 %v4207, %v4324
        %v4371 = vadd.f32 %v4208, %v4325
        %v4372 = vadd.f32 %v4209, %v4304
        %v4373 = vadd.f32 %v4210, %v4326
        %v4374 = vadd.f32 %v4211, %v4327
        %v4375 = vadd.f32 %v4212, %v4310
        %s4376 = sld [smem:[#allocation5 + $0x13]]
        %v4377 = vstv %s4376
        %v4378 = vmul.f32 %v4377, %v1369
        %v4379 = vmul.f32 %v4377, %v1370
        %v4380 = vmul.f32 %v4377, %v1371
        %v4381 = vmul.f32 %v4377, %v1372
        %v4382 = vmul.f32 %v4377, %v1373
        %v4383 = vmul.f32 %v4377, %v1374
        %v4384 = vmul.f32 %v4377, %v1375
        %v4385 = vmul.f32 %v4377, %v1376
        %v4386 = vmul.f32 %v4377, %v1377
        %v4387 = vmul.f32 %v4377, %v1378
        %v4388 = vmul.f32 %v4377, %v1379
        %v4389 = vmul.f32 %v4377, %v1380
        %v4390 = vmul.f32 %v4377, %v1381
        %v4391 = vmul.f32 %v4377, %v1382
        %v4392 = vmul.f32 %v4377, %v1383
        %v4393 = vmul.f32 %v4377, %v1384
        %v4394 = vmul.f32 %v4377, %v1385
        %v4395 = vmul.f32 %v4377, %v1386
        %v4396 = vmul.f32 %v4377, %v1387
        %v4397 = vmul.f32 %v4377, %v1388
        %v4398 = vmul.f32 %v4377, %v1389
        %v4399 = vmul.f32 %v4377, %v1390
        %v4400 = vmul.f32 %v4377, %v1391
        %v4401 = vmul.f32 %v4377, %v1392
        %4426 = vrot.lane.b32.xlu0 %v4378, 64
        %v4427 = vpop.permute.xlu0 %4426
        %4428 = vrot.lane.b32.xlu0 %v4379, 64
        %v4429 = vpop.permute.xlu0 %4428
        %4430 = vrot.lane.b32.xlu0 %v4380, 64
        %v4431 = vpop.permute.xlu0 %4430
        %4432 = vrot.lane.b32.xlu0 %v4381, 64
        %v4433 = vpop.permute.xlu0 %4432
        %4434 = vrot.lane.b32.xlu0 %v4382, 64
        %v4435 = vpop.permute.xlu0 %4434
        %4436 = vrot.lane.b32.xlu0 %v4383, 64
        %v4437 = vpop.permute.xlu0 %4436
        %4438 = vrot.lane.b32.xlu0 %v4384, 64
        %v4439 = vpop.permute.xlu0 %4438
        %4440 = vrot.lane.b32.xlu0 %v4385, 64
        %v4441 = vpop.permute.xlu0 %4440
        %4442 = vrot.lane.b32.xlu0 %v4386, 64
        %v4443 = vpop.permute.xlu0 %4442
        %4444 = vrot.lane.b32.xlu0 %v4387, 64
        %v4445 = vpop.permute.xlu0 %4444
        %4446 = vrot.lane.b32.xlu0 %v4388, 64
        %v4447 = vpop.permute.xlu0 %4446
        %4448 = vrot.lane.b32.xlu0 %v4389, 64
        %v4449 = vpop.permute.xlu0 %4448
        %4450 = vrot.lane.b32.xlu0 %v4390, 64
        %v4451 = vpop.permute.xlu0 %4450
        %4452 = vrot.lane.b32.xlu0 %v4391, 64
        %v4453 = vpop.permute.xlu0 %4452
        %4454 = vrot.lane.b32.xlu0 %v4392, 64
        %v4455 = vpop.permute.xlu0 %4454
        %4456 = vrot.lane.b32.xlu0 %v4393, 64
        %v4457 = vpop.permute.xlu0 %4456
        %4458 = vrot.lane.b32.xlu0 %v4394, 64
        %v4459 = vpop.permute.xlu0 %4458
        %4460 = vrot.lane.b32.xlu0 %v4395, 64
        %v4461 = vpop.permute.xlu0 %4460
        %4462 = vrot.lane.b32.xlu0 %v4396, 64
        %v4463 = vpop.permute.xlu0 %4462
        %4464 = vrot.lane.b32.xlu0 %v4397, 64
        %v4465 = vpop.permute.xlu0 %4464
        %4466 = vrot.lane.b32.xlu0 %v4398, 64
        %v4467 = vpop.permute.xlu0 %4466
        %4468 = vrot.lane.b32.xlu0 %v4399, 64
        %v4469 = vpop.permute.xlu0 %4468
        %4470 = vrot.lane.b32.xlu0 %v4400, 64
        %v4471 = vpop.permute.xlu0 %4470
        %4472 = vrot.lane.b32.xlu0 %v4401, 64
        %v4473 = vpop.permute.xlu0 %4472
        %vm4474 = vcmask 523264
        %v4475 = vsel %vm4474, %v4427, %v4429
        %v4476 = vsel %vm4474, %v4429, %v4431
        %v4477 = vsel %vm4474, %v4433, %v4435
        %v4478 = vsel %vm4474, %v4435, %v4437
        %v4479 = vsel %vm4474, %v4439, %v4441
        %v4480 = vsel %vm4474, %v4441, %v4443
        %v4481 = vsel %vm4474, %v4445, %v4447
        %v4482 = vsel %vm4474, %v4447, %v4449
        %v4483 = vsel %vm4474, %v4451, %v4453
        %v4484 = vsel %vm4474, %v4453, %v4455
        %v4485 = vsel %vm4474, %v4457, %v4459
        %v4486 = vsel %vm4474, %v4459, %v4461
        %v4487 = vsel %vm4474, %v4463, %v4465
        %v4488 = vsel %vm4474, %v4465, %v4467
        %v4489 = vsel %vm4474, %v4469, %v4471
        %v4490 = vsel %vm4474, %v4471, %v4473
        %v4515 = vadd.f32 %v4352, %v4475
        %v4516 = vadd.f32 %v4353, %v4476
        %v4517 = vadd.f32 %v4354, %v4431
        %v4518 = vadd.f32 %v4355, %v4477
        %v4519 = vadd.f32 %v4356, %v4478
        %v4520 = vadd.f32 %v4357, %v4437
        %v4521 = vadd.f32 %v4358, %v4479
        %v4522 = vadd.f32 %v4359, %v4480
        %v4523 = vadd.f32 %v4360, %v4443
        %v4524 = vadd.f32 %v4361, %v4481
        %v4525 = vadd.f32 %v4362, %v4482
        %v4526 = vadd.f32 %v4363, %v4449
        %v4527 = vadd.f32 %v4364, %v4483
        %v4528 = vadd.f32 %v4365, %v4484
        %v4529 = vadd.f32 %v4366, %v4455
        %v4530 = vadd.f32 %v4367, %v4485
        %v4531 = vadd.f32 %v4368, %v4486
        %v4532 = vadd.f32 %v4369, %v4461
        %v4533 = vadd.f32 %v4370, %v4487
        %v4534 = vadd.f32 %v4371, %v4488
        %v4535 = vadd.f32 %v4372, %v4467
        %v4536 = vadd.f32 %v4373, %v4489
        %v4537 = vadd.f32 %v4374, %v4490
        %v4538 = vadd.f32 %v4375, %v4473
        %s4539 = sld [smem:[#allocation5 + $0x14]]
        %v4540 = vld [vmem:[#allocation2] sm:$0xff]
        %v4541 = vld [vmem:[#allocation2 + $0x8] sm:$0xff]
        %v4542 = vld [vmem:[#allocation2 + $0x10] sm:$0xff]
        %v4543 = vld [vmem:[#allocation2 + $0x18] sm:$0xff]
        %v4544 = vld [vmem:[#allocation2 + $0x20] sm:$0xff]
        %v4545 = vld [vmem:[#allocation2 + $0x28] sm:$0xff]
        %v4546 = vld [vmem:[#allocation2 + $0x30] sm:$0xff]
        %v4547 = vld [vmem:[#allocation2 + $0x38] sm:$0xff]
        %v4548 = vld [vmem:[#allocation2 + $0x40] sm:$0xff]
        %v4549 = vld [vmem:[#allocation2 + $0x48] sm:$0xff]
        %v4550 = vld [vmem:[#allocation2 + $0x50] sm:$0xff]
        %v4551 = vld [vmem:[#allocation2 + $0x58] sm:$0xff]
        %v4552 = vld [vmem:[#allocation2 + $0x60] sm:$0xff]
        %v4553 = vld [vmem:[#allocation2 + $0x68] sm:$0xff]
        %v4554 = vld [vmem:[#allocation2 + $0x70] sm:$0xff]
        %v4555 = vld [vmem:[#allocation2 + $0x78] sm:$0xff]
        %v4556 = vld [vmem:[#allocation2 + $0x80] sm:$0xff]
        %v4557 = vld [vmem:[#allocation2 + $0x88] sm:$0xff]
        %v4558 = vld [vmem:[#allocation2 + $0x90] sm:$0xff]
        %v4559 = vld [vmem:[#allocation2 + $0x98] sm:$0xff]
        %v4560 = vld [vmem:[#allocation2 + $0xa0] sm:$0xff]
        %v4561 = vld [vmem:[#allocation2 + $0xa8] sm:$0xff]
        %v4562 = vld [vmem:[#allocation2 + $0xb0] sm:$0xff]
        %v4563 = vld [vmem:[#allocation2 + $0xb8] sm:$0xff]
        %v4564 = vld [vmem:[#allocation2 + $0xc0] sm:$0xff]
        %v4565 = vld [vmem:[#allocation2 + $0xc8] sm:$0xff]
        %v4566 = vld [vmem:[#allocation2 + $0xd0] sm:$0xff]
        %v4567 = vld [vmem:[#allocation2 + $0xd8] sm:$0xff]
        %v4568 = vld [vmem:[#allocation2 + $0xe0] sm:$0xff]
        %v4569 = vld [vmem:[#allocation2 + $0xe8] sm:$0xff]
        %v4570 = vld [vmem:[#allocation2 + $0xf0] sm:$0xff]
        %v4571 = vld [vmem:[#allocation2 + $0xf8] sm:$0xff]
        %v4572 = vstv %s4539
        %v4573 = vmul.f32 %v4572, %v4540
        %v4574 = vmul.f32 %v4572, %v4541
        %v4575 = vmul.f32 %v4572, %v4542
        %v4576 = vmul.f32 %v4572, %v4543
        %v4577 = vmul.f32 %v4572, %v4544
        %v4578 = vmul.f32 %v4572, %v4545
        %v4579 = vmul.f32 %v4572, %v4546
        %v4580 = vmul.f32 %v4572, %v4547
        %v4581 = vmul.f32 %v4572, %v4548
        %v4582 = vmul.f32 %v4572, %v4549
        %v4583 = vmul.f32 %v4572, %v4550
        %v4584 = vmul.f32 %v4572, %v4551
        %v4585 = vmul.f32 %v4572, %v4552
        %v4586 = vmul.f32 %v4572, %v4553
        %v4587 = vmul.f32 %v4572, %v4554
        %v4588 = vmul.f32 %v4572, %v4555
        %v4589 = vmul.f32 %v4572, %v4556
        %v4590 = vmul.f32 %v4572, %v4557
        %v4591 = vmul.f32 %v4572, %v4558
        %v4592 = vmul.f32 %v4572, %v4559
        %v4593 = vmul.f32 %v4572, %v4560
        %v4594 = vmul.f32 %v4572, %v4561
        %v4595 = vmul.f32 %v4572, %v4562
        %v4596 = vmul.f32 %v4572, %v4563
        %v4597 = vmul.f32 %v4572, %v4564
        %v4598 = vmul.f32 %v4572, %v4565
        %v4599 = vmul.f32 %v4572, %v4566
        %v4600 = vmul.f32 %v4572, %v4567
        %v4601 = vmul.f32 %v4572, %v4568
        %v4602 = vmul.f32 %v4572, %v4569
        %v4603 = vmul.f32 %v4572, %v4570
        %v4604 = vmul.f32 %v4572, %v4571
        %4637 = vrot.lane.b32.xlu0 %v4573, 48
        %v4638 = vpop.permute.xlu0 %4637
        %4639 = vrot.lane.b32.xlu0 %v4574, 48
        %v4640 = vpop.permute.xlu0 %4639
        %4641 = vrot.lane.b32.xlu0 %v4575, 48
        %v4642 = vpop.permute.xlu0 %4641
        %4643 = vrot.lane.b32.xlu0 %v4576, 48
        %v4644 = vpop.permute.xlu0 %4643
        %4645 = vrot.lane.b32.xlu0 %v4577, 48
        %v4646 = vpop.permute.xlu0 %4645
        %4647 = vrot.lane.b32.xlu0 %v4578, 48
        %v4648 = vpop.permute.xlu0 %4647
        %4649 = vrot.lane.b32.xlu0 %v4579, 48
        %v4650 = vpop.permute.xlu0 %4649
        %4651 = vrot.lane.b32.xlu0 %v4580, 48
        %v4652 = vpop.permute.xlu0 %4651
        %4653 = vrot.lane.b32.xlu0 %v4581, 48
        %v4654 = vpop.permute.xlu0 %4653
        %4655 = vrot.lane.b32.xlu0 %v4582, 48
        %v4656 = vpop.permute.xlu0 %4655
        %4657 = vrot.lane.b32.xlu0 %v4583, 48
        %v4658 = vpop.permute.xlu0 %4657
        %4659 = vrot.lane.b32.xlu0 %v4584, 48
        %v4660 = vpop.permute.xlu0 %4659
        %4661 = vrot.lane.b32.xlu0 %v4585, 48
        %v4662 = vpop.permute.xlu0 %4661
        %4663 = vrot.lane.b32.xlu0 %v4586, 48
        %v4664 = vpop.permute.xlu0 %4663
        %4665 = vrot.lane.b32.xlu0 %v4587, 48
        %v4666 = vpop.permute.xlu0 %4665
        %4667 = vrot.lane.b32.xlu0 %v4588, 48
        %v4668 = vpop.permute.xlu0 %4667
        %4669 = vrot.lane.b32.xlu0 %v4589, 48
        %v4670 = vpop.permute.xlu0 %4669
        %4671 = vrot.lane.b32.xlu0 %v4590, 48
        %v4672 = vpop.permute.xlu0 %4671
        %4673 = vrot.lane.b32.xlu0 %v4591, 48
        %v4674 = vpop.permute.xlu0 %4673
        %4675 = vrot.lane.b32.xlu0 %v4592, 48
        %v4676 = vpop.permute.xlu0 %4675
        %4677 = vrot.lane.b32.xlu0 %v4593, 48
        %v4678 = vpop.permute.xlu0 %4677
        %4679 = vrot.lane.b32.xlu0 %v4594, 48
        %v4680 = vpop.permute.xlu0 %4679
        %4681 = vrot.lane.b32.xlu0 %v4595, 48
        %v4682 = vpop.permute.xlu0 %4681
        %4683 = vrot.lane.b32.xlu0 %v4596, 48
        %v4684 = vpop.permute.xlu0 %4683
        %4685 = vrot.lane.b32.xlu0 %v4597, 48
        %v4686 = vpop.permute.xlu0 %4685
        %4687 = vrot.lane.b32.xlu0 %v4598, 48
        %v4688 = vpop.permute.xlu0 %4687
        %4689 = vrot.lane.b32.xlu0 %v4599, 48
        %v4690 = vpop.permute.xlu0 %4689
        %4691 = vrot.lane.b32.xlu0 %v4600, 48
        %v4692 = vpop.permute.xlu0 %4691
        %4693 = vrot.lane.b32.xlu0 %v4601, 48
        %v4694 = vpop.permute.xlu0 %4693
        %4695 = vrot.lane.b32.xlu0 %v4602, 48
        %v4696 = vpop.permute.xlu0 %4695
        %4697 = vrot.lane.b32.xlu0 %v4603, 48
        %v4698 = vpop.permute.xlu0 %4697
        %4699 = vrot.lane.b32.xlu0 %v4604, 48
        %v4700 = vpop.permute.xlu0 %4699
        %vm4701 = vcmask 392192
        %v4702 = vsel %vm4701, %v4638, %v4640
        %v4703 = vsel %vm4701, %v4640, %v4642
        %v4704 = vsel %vm4701, %v4642, %v4644
        %v4705 = vsel %vm4701, %v4646, %v4648
        %v4706 = vsel %vm4701, %v4648, %v4650
        %v4707 = vsel %vm4701, %v4650, %v4652
        %v4708 = vsel %vm4701, %v4654, %v4656
        %v4709 = vsel %vm4701, %v4656, %v4658
        %v4710 = vsel %vm4701, %v4658, %v4660
        %v4711 = vsel %vm4701, %v4662, %v4664
        %v4712 = vsel %vm4701, %v4664, %v4666
        %v4713 = vsel %vm4701, %v4666, %v4668
        %v4714 = vsel %vm4701, %v4670, %v4672
        %v4715 = vsel %vm4701, %v4672, %v4674
        %v4716 = vsel %vm4701, %v4674, %v4676
        %v4717 = vsel %vm4701, %v4678, %v4680
        %v4718 = vsel %vm4701, %v4680, %v4682
        %v4719 = vsel %vm4701, %v4682, %v4684
        %v4720 = vsel %vm4701, %v4686, %v4688
        %v4721 = vsel %vm4701, %v4688, %v4690
        %v4722 = vsel %vm4701, %v4690, %v4692
        %v4723 = vsel %vm4701, %v4694, %v4696
        %v4724 = vsel %vm4701, %v4696, %v4698
        %v4725 = vsel %vm4701, %v4698, %v4700
        %v4750 = vadd.f32 %v4515, %v4702
        %v4751 = vadd.f32 %v4516, %v4703
        %v4752 = vadd.f32 %v4517, %v4704
        %v4753 = vadd.f32 %v4518, %v4705
        %v4754 = vadd.f32 %v4519, %v4706
        %v4755 = vadd.f32 %v4520, %v4707
        %v4756 = vadd.f32 %v4521, %v4708
        %v4757 = vadd.f32 %v4522, %v4709
        %v4758 = vadd.f32 %v4523, %v4710
        %v4759 = vadd.f32 %v4524, %v4711
        %v4760 = vadd.f32 %v4525, %v4712
        %v4761 = vadd.f32 %v4526, %v4713
        %v4762 = vadd.f32 %v4527, %v4714
        %v4763 = vadd.f32 %v4528, %v4715
        %v4764 = vadd.f32 %v4529, %v4716
        %v4765 = vadd.f32 %v4530, %v4717
        %v4766 = vadd.f32 %v4531, %v4718
        %v4767 = vadd.f32 %v4532, %v4719
        %v4768 = vadd.f32 %v4533, %v4720
        %v4769 = vadd.f32 %v4534, %v4721
        %v4770 = vadd.f32 %v4535, %v4722
        %v4771 = vadd.f32 %v4536, %v4723
        %v4772 = vadd.f32 %v4537, %v4724
        %v4773 = vadd.f32 %v4538, %v4725
        %s4774 = sld [smem:[#allocation5 + $0x15]]
        %v4775 = vstv %s4774
        %v4776 = vmul.f32 %v4775, %v4540
        %v4777 = vmul.f32 %v4775, %v4541
        %v4778 = vmul.f32 %v4775, %v4542
        %v4779 = vmul.f32 %v4775, %v4543
        %v4780 = vmul.f32 %v4775, %v4544
        %v4781 = vmul.f32 %v4775, %v4545
        %v4782 = vmul.f32 %v4775, %v4546
        %v4783 = vmul.f32 %v4775, %v4547
        %v4784 = vmul.f32 %v4775, %v4548
        %v4785 = vmul.f32 %v4775, %v4549
        %v4786 = vmul.f32 %v4775, %v4550
        %v4787 = vmul.f32 %v4775, %v4551
        %v4788 = vmul.f32 %v4775, %v4552
        %v4789 = vmul.f32 %v4775, %v4553
        %v4790 = vmul.f32 %v4775, %v4554
        %v4791 = vmul.f32 %v4775, %v4555
        %v4792 = vmul.f32 %v4775, %v4556
        %v4793 = vmul.f32 %v4775, %v4557
        %v4794 = vmul.f32 %v4775, %v4558
        %v4795 = vmul.f32 %v4775, %v4559
        %v4796 = vmul.f32 %v4775, %v4560
        %v4797 = vmul.f32 %v4775, %v4561
        %v4798 = vmul.f32 %v4775, %v4562
        %v4799 = vmul.f32 %v4775, %v4563
        %v4800 = vmul.f32 %v4775, %v4564
        %v4801 = vmul.f32 %v4775, %v4565
        %v4802 = vmul.f32 %v4775, %v4566
        %v4803 = vmul.f32 %v4775, %v4567
        %v4804 = vmul.f32 %v4775, %v4568
        %v4805 = vmul.f32 %v4775, %v4569
        %v4806 = vmul.f32 %v4775, %v4570
        %v4807 = vmul.f32 %v4775, %v4571
        %4840 = vrot.lane.b32.xlu0 %v4776, 47
        %v4841 = vpop.permute.xlu0 %4840
        %4842 = vrot.lane.b32.xlu0 %v4777, 47
        %v4843 = vpop.permute.xlu0 %4842
        %4844 = vrot.lane.b32.xlu0 %v4778, 47
        %v4845 = vpop.permute.xlu0 %4844
        %4846 = vrot.lane.b32.xlu0 %v4779, 47
        %v4847 = vpop.permute.xlu0 %4846
        %4848 = vrot.lane.b32.xlu0 %v4780, 47
        %v4849 = vpop.permute.xlu0 %4848
        %4850 = vrot.lane.b32.xlu0 %v4781, 47
        %v4851 = vpop.permute.xlu0 %4850
        %4852 = vrot.lane.b32.xlu0 %v4782, 47
        %v4853 = vpop.permute.xlu0 %4852
        %4854 = vrot.lane.b32.xlu0 %v4783, 47
        %v4855 = vpop.permute.xlu0 %4854
        %4856 = vrot.lane.b32.xlu0 %v4784, 47
        %v4857 = vpop.permute.xlu0 %4856
        %4858 = vrot.lane.b32.xlu0 %v4785, 47
        %v4859 = vpop.permute.xlu0 %4858
        %4860 = vrot.lane.b32.xlu0 %v4786, 47
        %v4861 = vpop.permute.xlu0 %4860
        %4862 = vrot.lane.b32.xlu0 %v4787, 47
        %v4863 = vpop.permute.xlu0 %4862
        %4864 = vrot.lane.b32.xlu0 %v4788, 47
        %v4865 = vpop.permute.xlu0 %4864
        %4866 = vrot.lane.b32.xlu0 %v4789, 47
        %v4867 = vpop.permute.xlu0 %4866
        %4868 = vrot.lane.b32.xlu0 %v4790, 47
        %v4869 = vpop.permute.xlu0 %4868
        %4870 = vrot.lane.b32.xlu0 %v4791, 47
        %v4871 = vpop.permute.xlu0 %4870
        %4872 = vrot.lane.b32.xlu0 %v4792, 47
        %v4873 = vpop.permute.xlu0 %4872
        %4874 = vrot.lane.b32.xlu0 %v4793, 47
        %v4875 = vpop.permute.xlu0 %4874
        %4876 = vrot.lane.b32.xlu0 %v4794, 47
        %v4877 = vpop.permute.xlu0 %4876
        %4878 = vrot.lane.b32.xlu0 %v4795, 47
        %v4879 = vpop.permute.xlu0 %4878
        %4880 = vrot.lane.b32.xlu0 %v4796, 47
        %v4881 = vpop.permute.xlu0 %4880
        %4882 = vrot.lane.b32.xlu0 %v4797, 47
        %v4883 = vpop.permute.xlu0 %4882
        %4884 = vrot.lane.b32.xlu0 %v4798, 47
        %v4885 = vpop.permute.xlu0 %4884
        %4886 = vrot.lane.b32.xlu0 %v4799, 47
        %v4887 = vpop.permute.xlu0 %4886
        %4888 = vrot.lane.b32.xlu0 %v4800, 47
        %v4889 = vpop.permute.xlu0 %4888
        %4890 = vrot.lane.b32.xlu0 %v4801, 47
        %v4891 = vpop.permute.xlu0 %4890
        %4892 = vrot.lane.b32.xlu0 %v4802, 47
        %v4893 = vpop.permute.xlu0 %4892
        %4894 = vrot.lane.b32.xlu0 %v4803, 47
        %v4895 = vpop.permute.xlu0 %4894
        %4896 = vrot.lane.b32.xlu0 %v4804, 47
        %v4897 = vpop.permute.xlu0 %4896
        %4898 = vrot.lane.b32.xlu0 %v4805, 47
        %v4899 = vpop.permute.xlu0 %4898
        %4900 = vrot.lane.b32.xlu0 %v4806, 47
        %v4901 = vpop.permute.xlu0 %4900
        %4902 = vrot.lane.b32.xlu0 %v4807, 47
        %v4903 = vpop.permute.xlu0 %4902
        %vm4904 = vcmask 384000
        %v4905 = vsel %vm4904, %v4841, %v4843
        %v4906 = vsel %vm4904, %v4843, %v4845
        %v4907 = vsel %vm4904, %v4845, %v4847
        %v4908 = vsel %vm4904, %v4849, %v4851
        %v4909 = vsel %vm4904, %v4851, %v4853
        %v4910 = vsel %vm4904, %v4853, %v4855
        %v4911 = vsel %vm4904, %v4857, %v4859
        %v4912 = vsel %vm4904, %v4859, %v4861
        %v4913 = vsel %vm4904, %v4861, %v4863
        %v4914 = vsel %vm4904, %v4865, %v4867
        %v4915 = vsel %vm4904, %v4867, %v4869
        %v4916 = vsel %vm4904, %v4869, %v4871
        %v4917 = vsel %vm4904, %v4873, %v4875
        %v4918 = vsel %vm4904, %v4875, %v4877
        %v4919 = vsel %vm4904, %v4877, %v4879
        %v4920 = vsel %vm4904, %v4881, %v4883
        %v4921 = vsel %vm4904, %v4883, %v4885
        %v4922 = vsel %vm4904, %v4885, %v4887
        %v4923 = vsel %vm4904, %v4889, %v4891
        %v4924 = vsel %vm4904, %v4891, %v4893
        %v4925 = vsel %vm4904, %v4893, %v4895
        %v4926 = vsel %vm4904, %v4897, %v4899
        %v4927 = vsel %vm4904, %v4899, %v4901
        %v4928 = vsel %vm4904, %v4901, %v4903
        %v4953 = vadd.f32 %v4750, %v4905
        %v4954 = vadd.f32 %v4751, %v4906
        %v4955 = vadd.f32 %v4752, %v4907
        %v4956 = vadd.f32 %v4753, %v4908
        %v4957 = vadd.f32 %v4754, %v4909
        %v4958 = vadd.f32 %v4755, %v4910
        %v4959 = vadd.f32 %v4756, %v4911
        %v4960 = vadd.f32 %v4757, %v4912
        %v4961 = vadd.f32 %v4758, %v4913
        %v4962 = vadd.f32 %v4759, %v4914
        %v4963 = vadd.f32 %v4760, %v4915
        %v4964 = vadd.f32 %v4761, %v4916
        %v4965 = vadd.f32 %v4762, %v4917
        %v4966 = vadd.f32 %v4763, %v4918
        %v4967 = vadd.f32 %v4764, %v4919
        %v4968 = vadd.f32 %v4765, %v4920
        %v4969 = vadd.f32 %v4766, %v4921
        %v4970 = vadd.f32 %v4767, %v4922
        %v4971 = vadd.f32 %v4768, %v4923
        %v4972 = vadd.f32 %v4769, %v4924
        %v4973 = vadd.f32 %v4770, %v4925
        %v4974 = vadd.f32 %v4771, %v4926
        %v4975 = vadd.f32 %v4772, %v4927
        %v4976 = vadd.f32 %v4773, %v4928
        %s4977 = sld [smem:[#allocation5 + $0x16]]
        %v4978 = vstv %s4977
        %v4979 = vmul.f32 %v4978, %v4540
        %v4980 = vmul.f32 %v4978, %v4541
        %v4981 = vmul.f32 %v4978, %v4542
        %v4982 = vmul.f32 %v4978, %v4543
        %v4983 = vmul.f32 %v4978, %v4544
        %v4984 = vmul.f32 %v4978, %v4545
        %v4985 = vmul.f32 %v4978, %v4546
        %v4986 = vmul.f32 %v4978, %v4547
        %v4987 = vmul.f32 %v4978, %v4548
        %v4988 = vmul.f32 %v4978, %v4549
        %v4989 = vmul.f32 %v4978, %v4550
        %v4990 = vmul.f32 %v4978, %v4551
        %v4991 = vmul.f32 %v4978, %v4552
        %v4992 = vmul.f32 %v4978, %v4553
        %v4993 = vmul.f32 %v4978, %v4554
        %v4994 = vmul.f32 %v4978, %v4555
        %v4995 = vmul.f32 %v4978, %v4556
        %v4996 = vmul.f32 %v4978, %v4557
        %v4997 = vmul.f32 %v4978, %v4558
        %v4998 = vmul.f32 %v4978, %v4559
        %v4999 = vmul.f32 %v4978, %v4560
        %v5000 = vmul.f32 %v4978, %v4561
        %v5001 = vmul.f32 %v4978, %v4562
        %v5002 = vmul.f32 %v4978, %v4563
        %v5003 = vmul.f32 %v4978, %v4564
        %v5004 = vmul.f32 %v4978, %v4565
        %v5005 = vmul.f32 %v4978, %v4566
        %v5006 = vmul.f32 %v4978, %v4567
        %v5007 = vmul.f32 %v4978, %v4568
        %v5008 = vmul.f32 %v4978, %v4569
        %v5009 = vmul.f32 %v4978, %v4570
        %v5010 = vmul.f32 %v4978, %v4571
        %5043 = vrot.lane.b32.xlu0 %v4979, 46
        %v5044 = vpop.permute.xlu0 %5043
        %5045 = vrot.lane.b32.xlu0 %v4980, 46
        %v5046 = vpop.permute.xlu0 %5045
        %5047 = vrot.lane.b32.xlu0 %v4981, 46
        %v5048 = vpop.permute.xlu0 %5047
        %5049 = vrot.lane.b32.xlu0 %v4982, 46
        %v5050 = vpop.permute.xlu0 %5049
        %5051 = vrot.lane.b32.xlu0 %v4983, 46
        %v5052 = vpop.permute.xlu0 %5051
        %5053 = vrot.lane.b32.xlu0 %v4984, 46
        %v5054 = vpop.permute.xlu0 %5053
        %5055 = vrot.lane.b32.xlu0 %v4985, 46
        %v5056 = vpop.permute.xlu0 %5055
        %5057 = vrot.lane.b32.xlu0 %v4986, 46
        %v5058 = vpop.permute.xlu0 %5057
        %5059 = vrot.lane.b32.xlu0 %v4987, 46
        %v5060 = vpop.permute.xlu0 %5059
        %5061 = vrot.lane.b32.xlu0 %v4988, 46
        %v5062 = vpop.permute.xlu0 %5061
        %5063 = vrot.lane.b32.xlu0 %v4989, 46
        %v5064 = vpop.permute.xlu0 %5063
        %5065 = vrot.lane.b32.xlu0 %v4990, 46
        %v5066 = vpop.permute.xlu0 %5065
        %5067 = vrot.lane.b32.xlu0 %v4991, 46
        %v5068 = vpop.permute.xlu0 %5067
        %5069 = vrot.lane.b32.xlu0 %v4992, 46
        %v5070 = vpop.permute.xlu0 %5069
        %5071 = vrot.lane.b32.xlu0 %v4993, 46
        %v5072 = vpop.permute.xlu0 %5071
        %5073 = vrot.lane.b32.xlu0 %v4994, 46
        %v5074 = vpop.permute.xlu0 %5073
        %5075 = vrot.lane.b32.xlu0 %v4995, 46
        %v5076 = vpop.permute.xlu0 %5075
        %5077 = vrot.lane.b32.xlu0 %v4996, 46
        %v5078 = vpop.permute.xlu0 %5077
        %5079 = vrot.lane.b32.xlu0 %v4997, 46
        %v5080 = vpop.permute.xlu0 %5079
        %5081 = vrot.lane.b32.xlu0 %v4998, 46
        %v5082 = vpop.permute.xlu0 %5081
        %5083 = vrot.lane.b32.xlu0 %v4999, 46
        %v5084 = vpop.permute.xlu0 %5083
        %5085 = vrot.lane.b32.xlu0 %v5000, 46
        %v5086 = vpop.permute.xlu0 %5085
        %5087 = vrot.lane.b32.xlu0 %v5001, 46
        %v5088 = vpop.permute.xlu0 %5087
        %5089 = vrot.lane.b32.xlu0 %v5002, 46
        %v5090 = vpop.permute.xlu0 %5089
        %5091 = vrot.lane.b32.xlu0 %v5003, 46
        %v5092 = vpop.permute.xlu0 %5091
        %5093 = vrot.lane.b32.xlu0 %v5004, 46
        %v5094 = vpop.permute.xlu0 %5093
        %5095 = vrot.lane.b32.xlu0 %v5005, 46
        %v5096 = vpop.permute.xlu0 %5095
        %5097 = vrot.lane.b32.xlu0 %v5006, 46
        %v5098 = vpop.permute.xlu0 %5097
        %5099 = vrot.lane.b32.xlu0 %v5007, 46
        %v5100 = vpop.permute.xlu0 %5099
        %5101 = vrot.lane.b32.xlu0 %v5008, 46
        %v5102 = vpop.permute.xlu0 %5101
        %5103 = vrot.lane.b32.xlu0 %v5009, 46
        %v5104 = vpop.permute.xlu0 %5103
        %5105 = vrot.lane.b32.xlu0 %v5010, 46
        %v5106 = vpop.permute.xlu0 %5105
        %vm5107 = vcmask 375808
        %v5108 = vsel %vm5107, %v5044, %v5046
        %v5109 = vsel %vm5107, %v5046, %v5048
        %v5110 = vsel %vm5107, %v5048, %v5050
        %v5111 = vsel %vm5107, %v5052, %v5054
        %v5112 = vsel %vm5107, %v5054, %v5056
        %v5113 = vsel %vm5107, %v5056, %v5058
        %v5114 = vsel %vm5107, %v5060, %v5062
        %v5115 = vsel %vm5107, %v5062, %v5064
        %v5116 = vsel %vm5107, %v5064, %v5066
        %v5117 = vsel %vm5107, %v5068, %v5070
        %v5118 = vsel %vm5107, %v5070, %v5072
        %v5119 = vsel %vm5107, %v5072, %v5074
        %v5120 = vsel %vm5107, %v5076, %v5078
        %v5121 = vsel %vm5107, %v5078, %v5080
        %v5122 = vsel %vm5107, %v5080, %v5082
        %v5123 = vsel %vm5107, %v5084, %v5086
        %v5124 = vsel %vm5107, %v5086, %v5088
        %v5125 = vsel %vm5107, %v5088, %v5090
        %v5126 = vsel %vm5107, %v5092, %v5094
        %v5127 = vsel %vm5107, %v5094, %v5096
        %v5128 = vsel %vm5107, %v5096, %v5098
        %v5129 = vsel %vm5107, %v5100, %v5102
        %v5130 = vsel %vm5107, %v5102, %v5104
        %v5131 = vsel %vm5107, %v5104, %v5106
        %v5156 = vadd.f32 %v4953, %v5108
        %v5157 = vadd.f32 %v4954, %v5109
        %v5158 = vadd.f32 %v4955, %v5110
        %v5159 = vadd.f32 %v4956, %v5111
        %v5160 = vadd.f32 %v4957, %v5112
        %v5161 = vadd.f32 %v4958, %v5113
        %v5162 = vadd.f32 %v4959, %v5114
        %v5163 = vadd.f32 %v4960, %v5115
        %v5164 = vadd.f32 %v4961, %v5116
        %v5165 = vadd.f32 %v4962, %v5117
        %v5166 = vadd.f32 %v4963, %v5118
        %v5167 = vadd.f32 %v4964, %v5119
        %v5168 = vadd.f32 %v4965, %v5120
        %v5169 = vadd.f32 %v4966, %v5121
        %v5170 = vadd.f32 %v4967, %v5122
        %v5171 = vadd.f32 %v4968, %v5123
        %v5172 = vadd.f32 %v4969, %v5124
        %v5173 = vadd.f32 %v4970, %v5125
        %v5174 = vadd.f32 %v4971, %v5126
        %v5175 = vadd.f32 %v4972, %v5127
        %v5176 = vadd.f32 %v4973, %v5128
        %v5177 = vadd.f32 %v4974, %v5129
        %v5178 = vadd.f32 %v4975, %v5130
        %v5179 = vadd.f32 %v4976, %v5131
        %s5180 = sld [smem:[#allocation5 + $0x17]]
        %v5181 = vstv %s5180
        %v5182 = vmul.f32 %v5181, %v4540
        %v5183 = vmul.f32 %v5181, %v4541
        %v5184 = vmul.f32 %v5181, %v4542
        %v5185 = vmul.f32 %v5181, %v4543
        %v5186 = vmul.f32 %v5181, %v4544
        %v5187 = vmul.f32 %v5181, %v4545
        %v5188 = vmul.f32 %v5181, %v4546
        %v5189 = vmul.f32 %v5181, %v4547
        %v5190 = vmul.f32 %v5181, %v4548
        %v5191 = vmul.f32 %v5181, %v4549
        %v5192 = vmul.f32 %v5181, %v4550
        %v5193 = vmul.f32 %v5181, %v4551
        %v5194 = vmul.f32 %v5181, %v4552
        %v5195 = vmul.f32 %v5181, %v4553
        %v5196 = vmul.f32 %v5181, %v4554
        %v5197 = vmul.f32 %v5181, %v4555
        %v5198 = vmul.f32 %v5181, %v4556
        %v5199 = vmul.f32 %v5181, %v4557
        %v5200 = vmul.f32 %v5181, %v4558
        %v5201 = vmul.f32 %v5181, %v4559
        %v5202 = vmul.f32 %v5181, %v4560
        %v5203 = vmul.f32 %v5181, %v4561
        %v5204 = vmul.f32 %v5181, %v4562
        %v5205 = vmul.f32 %v5181, %v4563
        %v5206 = vmul.f32 %v5181, %v4564
        %v5207 = vmul.f32 %v5181, %v4565
        %v5208 = vmul.f32 %v5181, %v4566
        %v5209 = vmul.f32 %v5181, %v4567
        %v5210 = vmul.f32 %v5181, %v4568
        %v5211 = vmul.f32 %v5181, %v4569
        %v5212 = vmul.f32 %v5181, %v4570
        %v5213 = vmul.f32 %v5181, %v4571
        %5246 = vrot.lane.b32.xlu0 %v5182, 45
        %v5247 = vpop.permute.xlu0 %5246
        %5248 = vrot.lane.b32.xlu0 %v5183, 45
        %v5249 = vpop.permute.xlu0 %5248
        %5250 = vrot.lane.b32.xlu0 %v5184, 45
        %v5251 = vpop.permute.xlu0 %5250
        %5252 = vrot.lane.b32.xlu0 %v5185, 45
        %v5253 = vpop.permute.xlu0 %5252
        %5254 = vrot.lane.b32.xlu0 %v5186, 45
        %v5255 = vpop.permute.xlu0 %5254
        %5256 = vrot.lane.b32.xlu0 %v5187, 45
        %v5257 = vpop.permute.xlu0 %5256
        %5258 = vrot.lane.b32.xlu0 %v5188, 45
        %v5259 = vpop.permute.xlu0 %5258
        %5260 = vrot.lane.b32.xlu0 %v5189, 45
        %v5261 = vpop.permute.xlu0 %5260
        %5262 = vrot.lane.b32.xlu0 %v5190, 45
        %v5263 = vpop.permute.xlu0 %5262
        %5264 = vrot.lane.b32.xlu0 %v5191, 45
        %v5265 = vpop.permute.xlu0 %5264
        %5266 = vrot.lane.b32.xlu0 %v5192, 45
        %v5267 = vpop.permute.xlu0 %5266
        %5268 = vrot.lane.b32.xlu0 %v5193, 45
        %v5269 = vpop.permute.xlu0 %5268
        %5270 = vrot.lane.b32.xlu0 %v5194, 45
        %v5271 = vpop.permute.xlu0 %5270
        %5272 = vrot.lane.b32.xlu0 %v5195, 45
        %v5273 = vpop.permute.xlu0 %5272
        %5274 = vrot.lane.b32.xlu0 %v5196, 45
        %v5275 = vpop.permute.xlu0 %5274
        %5276 = vrot.lane.b32.xlu0 %v5197, 45
        %v5277 = vpop.permute.xlu0 %5276
        %5278 = vrot.lane.b32.xlu0 %v5198, 45
        %v5279 = vpop.permute.xlu0 %5278
        %5280 = vrot.lane.b32.xlu0 %v5199, 45
        %v5281 = vpop.permute.xlu0 %5280
        %5282 = vrot.lane.b32.xlu0 %v5200, 45
        %v5283 = vpop.permute.xlu0 %5282
        %5284 = vrot.lane.b32.xlu0 %v5201, 45
        %v5285 = vpop.permute.xlu0 %5284
        %5286 = vrot.lane.b32.xlu0 %v5202, 45
        %v5287 = vpop.permute.xlu0 %5286
        %5288 = vrot.lane.b32.xlu0 %v5203, 45
        %v5289 = vpop.permute.xlu0 %5288
        %5290 = vrot.lane.b32.xlu0 %v5204, 45
        %v5291 = vpop.permute.xlu0 %5290
        %5292 = vrot.lane.b32.xlu0 %v5205, 45
        %v5293 = vpop.permute.xlu0 %5292
        %5294 = vrot.lane.b32.xlu0 %v5206, 45
        %v5295 = vpop.permute.xlu0 %5294
        %5296 = vrot.lane.b32.xlu0 %v5207, 45
        %v5297 = vpop.permute.xlu0 %5296
        %5298 = vrot.lane.b32.xlu0 %v5208, 45
        %v5299 = vpop.permute.xlu0 %5298
        %5300 = vrot.lane.b32.xlu0 %v5209, 45
        %v5301 = vpop.permute.xlu0 %5300
        %5302 = vrot.lane.b32.xlu0 %v5210, 45
        %v5303 = vpop.permute.xlu0 %5302
        %5304 = vrot.lane.b32.xlu0 %v5211, 45
        %v5305 = vpop.permute.xlu0 %5304
        %5306 = vrot.lane.b32.xlu0 %v5212, 45
        %v5307 = vpop.permute.xlu0 %5306
        %5308 = vrot.lane.b32.xlu0 %v5213, 45
        %v5309 = vpop.permute.xlu0 %5308
        %vm5310 = vcmask 367616
        %v5311 = vsel %vm5310, %v5247, %v5249
        %v5312 = vsel %vm5310, %v5249, %v5251
        %v5313 = vsel %vm5310, %v5251, %v5253
        %v5314 = vsel %vm5310, %v5255, %v5257
        %v5315 = vsel %vm5310, %v5257, %v5259
        %v5316 = vsel %vm5310, %v5259, %v5261
        %v5317 = vsel %vm5310, %v5263, %v5265
        %v5318 = vsel %vm5310, %v5265, %v5267
        %v5319 = vsel %vm5310, %v5267, %v5269
        %v5320 = vsel %vm5310, %v5271, %v5273
        %v5321 = vsel %vm5310, %v5273, %v5275
        %v5322 = vsel %vm5310, %v5275, %v5277
        %v5323 = vsel %vm5310, %v5279, %v5281
        %v5324 = vsel %vm5310, %v5281, %v5283
        %v5325 = vsel %vm5310, %v5283, %v5285
        %v5326 = vsel %vm5310, %v5287, %v5289
        %v5327 = vsel %vm5310, %v5289, %v5291
        %v5328 = vsel %vm5310, %v5291, %v5293
        %v5329 = vsel %vm5310, %v5295, %v5297
        %v5330 = vsel %vm5310, %v5297, %v5299
        %v5331 = vsel %vm5310, %v5299, %v5301
        %v5332 = vsel %vm5310, %v5303, %v5305
        %v5333 = vsel %vm5310, %v5305, %v5307
        %v5334 = vsel %vm5310, %v5307, %v5309
        %v5359 = vadd.f32 %v5156, %v5311
        %v5360 = vadd.f32 %v5157, %v5312
        %v5361 = vadd.f32 %v5158, %v5313
        %v5362 = vadd.f32 %v5159, %v5314
        %v5363 = vadd.f32 %v5160, %v5315
        %v5364 = vadd.f32 %v5161, %v5316
        %v5365 = vadd.f32 %v5162, %v5317
        %v5366 = vadd.f32 %v5163, %v5318
        %v5367 = vadd.f32 %v5164, %v5319
        %v5368 = vadd.f32 %v5165, %v5320
        %v5369 = vadd.f32 %v5166, %v5321
        %v5370 = vadd.f32 %v5167, %v5322
        %v5371 = vadd.f32 %v5168, %v5323
        %v5372 = vadd.f32 %v5169, %v5324
        %v5373 = vadd.f32 %v5170, %v5325
        %v5374 = vadd.f32 %v5171, %v5326
        %v5375 = vadd.f32 %v5172, %v5327
        %v5376 = vadd.f32 %v5173, %v5328
        %v5377 = vadd.f32 %v5174, %v5329
        %v5378 = vadd.f32 %v5175, %v5330
        %v5379 = vadd.f32 %v5176, %v5331
        %v5380 = vadd.f32 %v5177, %v5332
        %v5381 = vadd.f32 %v5178, %v5333
        %v5382 = vadd.f32 %v5179, %v5334
        %s5383 = sld [smem:[#allocation5 + $0x18]]
        %v5384 = vstv %s5383
        %v5385 = vmul.f32 %v5384, %v4540
        %v5386 = vmul.f32 %v5384, %v4541
        %v5387 = vmul.f32 %v5384, %v4542
        %v5388 = vmul.f32 %v5384, %v4543
        %v5389 = vmul.f32 %v5384, %v4544
        %v5390 = vmul.f32 %v5384, %v4545
        %v5391 = vmul.f32 %v5384, %v4546
        %v5392 = vmul.f32 %v5384, %v4547
        %v5393 = vmul.f32 %v5384, %v4548
        %v5394 = vmul.f32 %v5384, %v4549
        %v5395 = vmul.f32 %v5384, %v4550
        %v5396 = vmul.f32 %v5384, %v4551
        %v5397 = vmul.f32 %v5384, %v4552
        %v5398 = vmul.f32 %v5384, %v4553
        %v5399 = vmul.f32 %v5384, %v4554
        %v5400 = vmul.f32 %v5384, %v4555
        %v5401 = vmul.f32 %v5384, %v4556
        %v5402 = vmul.f32 %v5384, %v4557
        %v5403 = vmul.f32 %v5384, %v4558
        %v5404 = vmul.f32 %v5384, %v4559
        %v5405 = vmul.f32 %v5384, %v4560
        %v5406 = vmul.f32 %v5384, %v4561
        %v5407 = vmul.f32 %v5384, %v4562
        %v5408 = vmul.f32 %v5384, %v4563
        %v5409 = vmul.f32 %v5384, %v4564
        %v5410 = vmul.f32 %v5384, %v4565
        %v5411 = vmul.f32 %v5384, %v4566
        %v5412 = vmul.f32 %v5384, %v4567
        %v5413 = vmul.f32 %v5384, %v4568
        %v5414 = vmul.f32 %v5384, %v4569
        %v5415 = vmul.f32 %v5384, %v4570
        %v5416 = vmul.f32 %v5384, %v4571
        %5449 = vrot.lane.b32.xlu0 %v5385, 44
        %v5450 = vpop.permute.xlu0 %5449
        %5451 = vrot.lane.b32.xlu0 %v5386, 44
        %v5452 = vpop.permute.xlu0 %5451
        %5453 = vrot.lane.b32.xlu0 %v5387, 44
        %v5454 = vpop.permute.xlu0 %5453
        %5455 = vrot.lane.b32.xlu0 %v5388, 44
        %v5456 = vpop.permute.xlu0 %5455
        %5457 = vrot.lane.b32.xlu0 %v5389, 44
        %v5458 = vpop.permute.xlu0 %5457
        %5459 = vrot.lane.b32.xlu0 %v5390, 44
        %v5460 = vpop.permute.xlu0 %5459
        %5461 = vrot.lane.b32.xlu0 %v5391, 44
        %v5462 = vpop.permute.xlu0 %5461
        %5463 = vrot.lane.b32.xlu0 %v5392, 44
        %v5464 = vpop.permute.xlu0 %5463
        %5465 = vrot.lane.b32.xlu0 %v5393, 44
        %v5466 = vpop.permute.xlu0 %5465
        %5467 = vrot.lane.b32.xlu0 %v5394, 44
        %v5468 = vpop.permute.xlu0 %5467
        %5469 = vrot.lane.b32.xlu0 %v5395, 44
        %v5470 = vpop.permute.xlu0 %5469
        %5471 = vrot.lane.b32.xlu0 %v5396, 44
        %v5472 = vpop.permute.xlu0 %5471
        %5473 = vrot.lane.b32.xlu0 %v5397, 44
        %v5474 = vpop.permute.xlu0 %5473
        %5475 = vrot.lane.b32.xlu0 %v5398, 44
        %v5476 = vpop.permute.xlu0 %5475
        %5477 = vrot.lane.b32.xlu0 %v5399, 44
        %v5478 = vpop.permute.xlu0 %5477
        %5479 = vrot.lane.b32.xlu0 %v5400, 44
        %v5480 = vpop.permute.xlu0 %5479
        %5481 = vrot.lane.b32.xlu0 %v5401, 44
        %v5482 = vpop.permute.xlu0 %5481
        %5483 = vrot.lane.b32.xlu0 %v5402, 44
        %v5484 = vpop.permute.xlu0 %5483
        %5485 = vrot.lane.b32.xlu0 %v5403, 44
        %v5486 = vpop.permute.xlu0 %5485
        %5487 = vrot.lane.b32.xlu0 %v5404, 44
        %v5488 = vpop.permute.xlu0 %5487
        %5489 = vrot.lane.b32.xlu0 %v5405, 44
        %v5490 = vpop.permute.xlu0 %5489
        %5491 = vrot.lane.b32.xlu0 %v5406, 44
        %v5492 = vpop.permute.xlu0 %5491
        %5493 = vrot.lane.b32.xlu0 %v5407, 44
        %v5494 = vpop.permute.xlu0 %5493
        %5495 = vrot.lane.b32.xlu0 %v5408, 44
        %v5496 = vpop.permute.xlu0 %5495
        %5497 = vrot.lane.b32.xlu0 %v5409, 44
        %v5498 = vpop.permute.xlu0 %5497
        %5499 = vrot.lane.b32.xlu0 %v5410, 44
        %v5500 = vpop.permute.xlu0 %5499
        %5501 = vrot.lane.b32.xlu0 %v5411, 44
        %v5502 = vpop.permute.xlu0 %5501
        %5503 = vrot.lane.b32.xlu0 %v5412, 44
        %v5504 = vpop.permute.xlu0 %5503
        %5505 = vrot.lane.b32.xlu0 %v5413, 44
        %v5506 = vpop.permute.xlu0 %5505
        %5507 = vrot.lane.b32.xlu0 %v5414, 44
        %v5508 = vpop.permute.xlu0 %5507
        %5509 = vrot.lane.b32.xlu0 %v5415, 44
        %v5510 = vpop.permute.xlu0 %5509
        %5511 = vrot.lane.b32.xlu0 %v5416, 44
        %v5512 = vpop.permute.xlu0 %5511
        %vm5513 = vcmask 359424
        %v5514 = vsel %vm5513, %v5450, %v5452
        %v5515 = vsel %vm5513, %v5452, %v5454
        %v5516 = vsel %vm5513, %v5454, %v5456
        %v5517 = vsel %vm5513, %v5458, %v5460
        %v5518 = vsel %vm5513, %v5460, %v5462
        %v5519 = vsel %vm5513, %v5462, %v5464
        %v5520 = vsel %vm5513, %v5466, %v5468
        %v5521 = vsel %vm5513, %v5468, %v5470
        %v5522 = vsel %vm5513, %v5470, %v5472
        %v5523 = vsel %vm5513, %v5474, %v5476
        %v5524 = vsel %vm5513, %v5476, %v5478
        %v5525 = vsel %vm5513, %v5478, %v5480
        %v5526 = vsel %vm5513, %v5482, %v5484
        %v5527 = vsel %vm5513, %v5484, %v5486
        %v5528 = vsel %vm5513, %v5486, %v5488
        %v5529 = vsel %vm5513, %v5490, %v5492
        %v5530 = vsel %vm5513, %v5492, %v5494
        %v5531 = vsel %vm5513, %v5494, %v5496
        %v5532 = vsel %vm5513, %v5498, %v5500
        %v5533 = vsel %vm5513, %v5500, %v5502
        %v5534 = vsel %vm5513, %v5502, %v5504
        %v5535 = vsel %vm5513, %v5506, %v5508
        %v5536 = vsel %vm5513, %v5508, %v5510
        %v5537 = vsel %vm5513, %v5510, %v5512
        %v5562 = vadd.f32 %v5359, %v5514
        %v5563 = vadd.f32 %v5360, %v5515
        %v5564 = vadd.f32 %v5361, %v5516
        %v5565 = vadd.f32 %v5362, %v5517
        %v5566 = vadd.f32 %v5363, %v5518
        %v5567 = vadd.f32 %v5364, %v5519
        %v5568 = vadd.f32 %v5365, %v5520
        %v5569 = vadd.f32 %v5366, %v5521
        %v5570 = vadd.f32 %v5367, %v5522
        %v5571 = vadd.f32 %v5368, %v5523
        %v5572 = vadd.f32 %v5369, %v5524
        %v5573 = vadd.f32 %v5370, %v5525
        %v5574 = vadd.f32 %v5371, %v5526
        %v5575 = vadd.f32 %v5372, %v5527
        %v5576 = vadd.f32 %v5373, %v5528
        %v5577 = vadd.f32 %v5374, %v5529
        %v5578 = vadd.f32 %v5375, %v5530
        %v5579 = vadd.f32 %v5376, %v5531
        %v5580 = vadd.f32 %v5377, %v5532
        %v5581 = vadd.f32 %v5378, %v5533
        %v5582 = vadd.f32 %v5379, %v5534
        %v5583 = vadd.f32 %v5380, %v5535
        %v5584 = vadd.f32 %v5381, %v5536
        %v5585 = vadd.f32 %v5382, %v5537
        %s5586 = sld [smem:[#allocation5 + $0x19]]
        %v5587 = vstv %s5586
        %v5588 = vadd.f32 %v5562, %v5587
        %v5589 = vadd.f32 %v5563, %v5587
        %v5590 = vadd.f32 %v5564, %v5587
        %v5591 = vadd.f32 %v5565, %v5587
        %v5592 = vadd.f32 %v5566, %v5587
        %v5593 = vadd.f32 %v5567, %v5587
        %v5594 = vadd.f32 %v5568, %v5587
        %v5595 = vadd.f32 %v5569, %v5587
        %v5596 = vadd.f32 %v5570, %v5587
        %v5597 = vadd.f32 %v5571, %v5587
        %v5598 = vadd.f32 %v5572, %v5587
        %v5599 = vadd.f32 %v5573, %v5587
        %v5600 = vadd.f32 %v5574, %v5587
        %v5601 = vadd.f32 %v5575, %v5587
        %v5602 = vadd.f32 %v5576, %v5587
        %v5603 = vadd.f32 %v5577, %v5587
        %v5604 = vadd.f32 %v5578, %v5587
        %v5605 = vadd.f32 %v5579, %v5587
        %v5606 = vadd.f32 %v5580, %v5587
        %v5607 = vadd.f32 %v5581, %v5587
        %v5608 = vadd.f32 %v5582, %v5587
        %v5609 = vadd.f32 %v5583, %v5587
        %v5610 = vadd.f32 %v5584, %v5587
        %v5611 = vadd.f32 %v5585, %v5587
        %v5612 = vmax.f32 %v5588, 0.0
        %v5613 = vmax.f32 %v5589, 0.0
        %v5614 = vmax.f32 %v5590, 0.0
        %v5615 = vmax.f32 %v5591, 0.0
        %v5616 = vmax.f32 %v5592, 0.0
        %v5617 = vmax.f32 %v5593, 0.0
        %v5618 = vmax.f32 %v5594, 0.0
        %v5619 = vmax.f32 %v5595, 0.0
        %v5620 = vmax.f32 %v5596, 0.0
        %v5621 = vmax.f32 %v5597, 0.0
        %v5622 = vmax.f32 %v5598, 0.0
        %v5623 = vmax.f32 %v5599, 0.0
        %v5624 = vmax.f32 %v5600, 0.0
        %v5625 = vmax.f32 %v5601, 0.0
        %v5626 = vmax.f32 %v5602, 0.0
        %v5627 = vmax.f32 %v5603, 0.0
        %v5628 = vmax.f32 %v5604, 0.0
        %v5629 = vmax.f32 %v5605, 0.0
        %v5630 = vmax.f32 %v5606, 0.0
        %v5631 = vmax.f32 %v5607, 0.0
        %v5632 = vmax.f32 %v5608, 0.0
        %v5633 = vmax.f32 %v5609, 0.0
        %v5634 = vmax.f32 %v5610, 0.0
        %v5635 = vmax.f32 %v5611, 0.0
        %5660 = vrot.lane.b32.xlu0 %v5612, 108
        %v5661 = vpop.permute.xlu0 %5660
        %5662 = vrot.lane.b32.xlu0 %v5613, 108
        %v5663 = vpop.permute.xlu0 %5662
        %5664 = vrot.lane.b32.xlu0 %v5614, 108
        %v5665 = vpop.permute.xlu0 %5664
        %5666 = vrot.lane.b32.xlu0 %v5615, 108
        %v5667 = vpop.permute.xlu0 %5666
        %5668 = vrot.lane.b32.xlu0 %v5616, 108
        %v5669 = vpop.permute.xlu0 %5668
        %5670 = vrot.lane.b32.xlu0 %v5617, 108
        %v5671 = vpop.permute.xlu0 %5670
        %5672 = vrot.lane.b32.xlu0 %v5618, 108
        %v5673 = vpop.permute.xlu0 %5672
        %5674 = vrot.lane.b32.xlu0 %v5619, 108
        %v5675 = vpop.permute.xlu0 %5674
        %5676 = vrot.lane.b32.xlu0 %v5620, 108
        %v5677 = vpop.permute.xlu0 %5676
        %5678 = vrot.lane.b32.xlu0 %v5621, 108
        %v5679 = vpop.permute.xlu0 %5678
        %5680 = vrot.lane.b32.xlu0 %v5622, 108
        %v5681 = vpop.permute.xlu0 %5680
        %5682 = vrot.lane.b32.xlu0 %v5623, 108
        %v5683 = vpop.permute.xlu0 %5682
        %5684 = vrot.lane.b32.xlu0 %v5624, 108
        %v5685 = vpop.permute.xlu0 %5684
        %5686 = vrot.lane.b32.xlu0 %v5625, 108
        %v5687 = vpop.permute.xlu0 %5686
        %5688 = vrot.lane.b32.xlu0 %v5626, 108
        %v5689 = vpop.permute.xlu0 %5688
        %5690 = vrot.lane.b32.xlu0 %v5627, 108
        %v5691 = vpop.permute.xlu0 %5690
        %5692 = vrot.lane.b32.xlu0 %v5628, 108
        %v5693 = vpop.permute.xlu0 %5692
        %5694 = vrot.lane.b32.xlu0 %v5629, 108
        %v5695 = vpop.permute.xlu0 %5694
        %5696 = vrot.lane.b32.xlu0 %v5630, 108
        %v5697 = vpop.permute.xlu0 %5696
        %5698 = vrot.lane.b32.xlu0 %v5631, 108
        %v5699 = vpop.permute.xlu0 %5698
        %5700 = vrot.lane.b32.xlu0 %v5632, 108
        %v5701 = vpop.permute.xlu0 %5700
        %5702 = vrot.lane.b32.xlu0 %v5633, 108
        %v5703 = vpop.permute.xlu0 %5702
        %5704 = vrot.lane.b32.xlu0 %v5634, 108
        %v5705 = vpop.permute.xlu0 %5704
        %5706 = vrot.lane.b32.xlu0 %v5635, 108
        %v5707 = vpop.permute.xlu0 %5706
        %v5708 = vsel %vm2192, %v5661, %v5663
        %v5709 = vsel %vm2192, %v5663, %v5665
        %v5710 = vsel %vm2192, %v5667, %v5669
        %v5711 = vsel %vm2192, %v5669, %v5671
        %v5712 = vsel %vm2192, %v5673, %v5675
        %v5713 = vsel %vm2192, %v5675, %v5677
        %v5714 = vsel %vm2192, %v5679, %v5681
        %v5715 = vsel %vm2192, %v5681, %v5683
        %v5716 = vsel %vm2192, %v5685, %v5687
        %v5717 = vsel %vm2192, %v5687, %v5689
        %v5718 = vsel %vm2192, %v5691, %v5693
        %v5719 = vsel %vm2192, %v5693, %v5695
        %v5720 = vsel %vm2192, %v5697, %v5699
        %v5721 = vsel %vm2192, %v5699, %v5701
        %v5722 = vsel %vm2192, %v5703, %v5705
        %v5723 = vsel %vm2192, %v5705, %v5707
        %v5748 = vmax.f32 %v5612, %v5708
        %v5749 = vmax.f32 %v5613, %v5709
        %v5750 = vmax.f32 %v5614, %v5665
        %v5751 = vmax.f32 %v5615, %v5710
        %v5752 = vmax.f32 %v5616, %v5711
        %v5753 = vmax.f32 %v5617, %v5671
        %v5754 = vmax.f32 %v5618, %v5712
        %v5755 = vmax.f32 %v5619, %v5713
        %v5756 = vmax.f32 %v5620, %v5677
        %v5757 = vmax.f32 %v5621, %v5714
        %v5758 = vmax.f32 %v5622, %v5715
        %v5759 = vmax.f32 %v5623, %v5683
        %v5760 = vmax.f32 %v5624, %v5716
        %v5761 = vmax.f32 %v5625, %v5717
        %v5762 = vmax.f32 %v5626, %v5689
        %v5763 = vmax.f32 %v5627, %v5718
        %v5764 = vmax.f32 %v5628, %v5719
        %v5765 = vmax.f32 %v5629, %v5695
        %v5766 = vmax.f32 %v5630, %v5720
        %v5767 = vmax.f32 %v5631, %v5721
        %v5768 = vmax.f32 %v5632, %v5701
        %v5769 = vmax.f32 %v5633, %v5722
        %v5770 = vmax.f32 %v5634, %v5723
        %v5771 = vmax.f32 %v5635, %v5707
        %5796 = vrot.lane.b32.xlu0 %v5748, 127
        %v5797 = vpop.permute.xlu0 %5796
        %5798 = vrot.lane.b32.xlu0 %v5749, 127
        %v5799 = vpop.permute.xlu0 %5798
        %5800 = vrot.lane.b32.xlu0 %v5750, 127
        %v5801 = vpop.permute.xlu0 %5800
        %5802 = vrot.lane.b32.xlu0 %v5751, 127
        %v5803 = vpop.permute.xlu0 %5802
        %5804 = vrot.lane.b32.xlu0 %v5752, 127
        %v5805 = vpop.permute.xlu0 %5804
        %5806 = vrot.lane.b32.xlu0 %v5753, 127
        %v5807 = vpop.permute.xlu0 %5806
        %5808 = vrot.lane.b32.xlu0 %v5754, 127
        %v5809 = vpop.permute.xlu0 %5808
        %5810 = vrot.lane.b32.xlu0 %v5755, 127
        %v5811 = vpop.permute.xlu0 %5810
        %5812 = vrot.lane.b32.xlu0 %v5756, 127
        %v5813 = vpop.permute.xlu0 %5812
        %5814 = vrot.lane.b32.xlu0 %v5757, 127
        %v5815 = vpop.permute.xlu0 %5814
        %5816 = vrot.lane.b32.xlu0 %v5758, 127
        %v5817 = vpop.permute.xlu0 %5816
        %5818 = vrot.lane.b32.xlu0 %v5759, 127
        %v5819 = vpop.permute.xlu0 %5818
        %5820 = vrot.lane.b32.xlu0 %v5760, 127
        %v5821 = vpop.permute.xlu0 %5820
        %5822 = vrot.lane.b32.xlu0 %v5761, 127
        %v5823 = vpop.permute.xlu0 %5822
        %5824 = vrot.lane.b32.xlu0 %v5762, 127
        %v5825 = vpop.permute.xlu0 %5824
        %5826 = vrot.lane.b32.xlu0 %v5763, 127
        %v5827 = vpop.permute.xlu0 %5826
        %5828 = vrot.lane.b32.xlu0 %v5764, 127
        %v5829 = vpop.permute.xlu0 %5828
        %5830 = vrot.lane.b32.xlu0 %v5765, 127
        %v5831 = vpop.permute.xlu0 %5830
        %5832 = vrot.lane.b32.xlu0 %v5766, 127
        %v5833 = vpop.permute.xlu0 %5832
        %5834 = vrot.lane.b32.xlu0 %v5767, 127
        %v5835 = vpop.permute.xlu0 %5834
        %5836 = vrot.lane.b32.xlu0 %v5768, 127
        %v5837 = vpop.permute.xlu0 %5836
        %5838 = vrot.lane.b32.xlu0 %v5769, 127
        %v5839 = vpop.permute.xlu0 %5838
        %5840 = vrot.lane.b32.xlu0 %v5770, 127
        %v5841 = vpop.permute.xlu0 %5840
        %5842 = vrot.lane.b32.xlu0 %v5771, 127
        %v5843 = vpop.permute.xlu0 %5842
        %v5844 = vsel %vm1540, %v5797, %v5799
        %v5845 = vsel %vm1540, %v5799, %v5801
        %v5846 = vsel %vm1540, %v5803, %v5805
        %v5847 = vsel %vm1540, %v5805, %v5807
        %v5848 = vsel %vm1540, %v5809, %v5811
        %v5849 = vsel %vm1540, %v5811, %v5813
        %v5850 = vsel %vm1540, %v5815, %v5817
        %v5851 = vsel %vm1540, %v5817, %v5819
        %v5852 = vsel %vm1540, %v5821, %v5823
        %v5853 = vsel %vm1540, %v5823, %v5825
        %v5854 = vsel %vm1540, %v5827, %v5829
        %v5855 = vsel %vm1540, %v5829, %v5831
        %v5856 = vsel %vm1540, %v5833, %v5835
        %v5857 = vsel %vm1540, %v5835, %v5837
        %v5858 = vsel %vm1540, %v5839, %v5841
        %v5859 = vsel %vm1540, %v5841, %v5843
        %v5884 = vmax.f32 %v5748, %v5844
        %v5885 = vmax.f32 %v5749, %v5845
        %v5886 = vmax.f32 %v5750, %v5801
        %v5887 = vmax.f32 %v5751, %v5846
        %v5888 = vmax.f32 %v5752, %v5847
        %v5889 = vmax.f32 %v5753, %v5807
        %v5890 = vmax.f32 %v5754, %v5848
        %v5891 = vmax.f32 %v5755, %v5849
        %v5892 = vmax.f32 %v5756, %v5813
        %v5893 = vmax.f32 %v5757, %v5850
        %v5894 = vmax.f32 %v5758, %v5851
        %v5895 = vmax.f32 %v5759, %v5819
        %v5896 = vmax.f32 %v5760, %v5852
        %v5897 = vmax.f32 %v5761, %v5853
        %v5898 = vmax.f32 %v5762, %v5825
        %v5899 = vmax.f32 %v5763, %v5854
        %v5900 = vmax.f32 %v5764, %v5855
        %v5901 = vmax.f32 %v5765, %v5831
        %v5902 = vmax.f32 %v5766, %v5856
        %v5903 = vmax.f32 %v5767, %v5857
        %v5904 = vmax.f32 %v5768, %v5837
        %v5905 = vmax.f32 %v5769, %v5858
        %v5906 = vmax.f32 %v5770, %v5859
        %v5907 = vmax.f32 %v5771, %v5843
        %v5908 = vpack.c.bf16 %v5887, %v5884
        %v5909 = vpack.c.bf16 %v5888, %v5885
        %v5910 = vpack.c.bf16 %v5889, %v5886
        %v5911 = vpack.c.bf16 %v5893, %v5890
        %v5912 = vpack.c.bf16 %v5894, %v5891
        %v5913 = vpack.c.bf16 %v5895, %v5892
        %v5914 = vpack.c.bf16 %v5899, %v5896
        %v5915 = vpack.c.bf16 %v5900, %v5897
        %v5916 = vpack.c.bf16 %v5901, %v5898
        %v5917 = vpack.c.bf16 %v5905, %v5902
        %v5918 = vpack.c.bf16 %v5906, %v5903
        %v5919 = vpack.c.bf16 %v5907, %v5904
        %v5920 = vld [vmem:[%s6] sm:$0xff]
        %v5921 = vld [vmem:[%s6 + $0x8] sm:$0xff]
        %v5922 = vld [vmem:[%s6 + $0x10] sm:$0xff]
        %v5923 = vld [vmem:[%s6 + $0x18] sm:$0xff]
        %v5924 = vld [vmem:[%s6 + $0x20] sm:$0xff]
        %v5925 = vld [vmem:[%s6 + $0x28] sm:$0xff]
        %v5926 = vld [vmem:[%s6 + $0x30] sm:$0xff]
        %v5927 = vld [vmem:[%s6 + $0x38] sm:$0xff]
        %v5928 = vld [vmem:[%s6 + $0x40] sm:$0xff]
        %v5929 = vld [vmem:[%s6 + $0x48] sm:$0xff]
        %v5930 = vld [vmem:[%s6 + $0x50] sm:$0xff]
        %v5931 = vld [vmem:[%s6 + $0x58] sm:$0xff]
        %v5932 = vld [vmem:[%s6 + $0x60] sm:$0xff]
        %v5933 = vld [vmem:[%s6 + $0x68] sm:$0xff]
        %v5934 = vld [vmem:[%s6 + $0x70] sm:$0xff]
        %v5935 = vld [vmem:[%s6 + $0x78] sm:$0xff]
        %v5936 = vld [vmem:[%s6 + $0x80] sm:$0xff]
        %v5937 = vld [vmem:[%s6 + $0x88] sm:$0xff]
        %v5938 = vld [vmem:[%s6 + $0x90] sm:$0xff]
        %v5939 = vld [vmem:[%s6 + $0x98] sm:$0xff]
        %v5940 = vld [vmem:[%s6 + $0xa0] sm:$0xff]
        %v5941 = vld [vmem:[%s6 + $0xa8] sm:$0xff]
        %v5942 = vld [vmem:[%s6 + $0xb0] sm:$0xff]
        %v5943 = vld [vmem:[%s6 + $0xb8] sm:$0xff]
        %v5944 = vld [vmem:[%s6 + $0xc0] sm:$0xff]
        %v5945 = vld [vmem:[%s6 + $0xc8] sm:$0xff]
        %v5946 = vld [vmem:[%s6 + $0xd0] sm:$0xff]
        %v5947 = vld [vmem:[%s6 + $0xd8] sm:$0xff]
        %v5948 = vld [vmem:[%s6 + $0xe0] sm:$0xff]
        %v5949 = vld [vmem:[%s6 + $0xe8] sm:$0xff]
        %v5950 = vld [vmem:[%s6 + $0xf0] sm:$0xff]
        %v5951 = vld [vmem:[%s6 + $0xf8] sm:$0xff]
        %v5952 = vld [vmem:[%s6 + $0x100] sm:$0xff]
        %v5953 = vld [vmem:[%s6 + $0x108] sm:$0xff]
        %v5954 = vld [vmem:[%s6 + $0x110] sm:$0xff]
        %v5955 = vld [vmem:[%s6 + $0x118] sm:$0xff]
        %v5956 = vld [vmem:[%s6 + $0x120] sm:$0xff]
        %v5957 = vld [vmem:[%s4 + $0x4] sm:$0x3]
        %v5959 = vlaneseq
        %v5960 = vshrl.u32 %v5959, 7
        %v5961 = vsub.s32 0, %v5960
        %v5962 = vrot.slane %v5957, %v5961
        %v5963 = vlaneseq
        %v5964 = vshrl.u32 %v5963, 7
        %v5965 = vsub.s32 1, %v5964
        %v5966 = vrot.slane %v5957, %v5965
        %v6006 = vunpack.c.l.b16 %v5920
        %v6007 = vunpack.c.h.b16 %v5920
        %v6008 = vunpack.c.l.b16 %v5921
        %v6009 = vunpack.c.h.b16 %v5921
        %v6010 = vunpack.c.l.b16 %v5922
        %v6011 = vunpack.c.h.b16 %v5922
        %v6012 = vunpack.c.l.b16 %v5923
        %v6013 = vunpack.c.h.b16 %v5923
        %v6014 = vunpack.c.l.b16 %v5924
        %v6015 = vunpack.c.h.b16 %v5924
        %v6016 = vunpack.c.l.b16 %v5925
        %v6017 = vunpack.c.h.b16 %v5925
        %v6018 = vunpack.c.l.b16 %v5926
        %v6019 = vunpack.c.h.b16 %v5926
        %v6020 = vunpack.c.l.b16 %v5927
        %v6021 = vunpack.c.h.b16 %v5927
        %v6022 = vunpack.c.l.b16 %v5928
        %v6023 = vunpack.c.h.b16 %v5928
        %v6024 = vunpack.c.l.b16 %v5929
        %v6025 = vunpack.c.h.b16 %v5929
        %v6026 = vunpack.c.l.b16 %v5930
        %v6027 = vunpack.c.h.b16 %v5930
        %v6028 = vunpack.c.l.b16 %v5931
        %v6029 = vunpack.c.h.b16 %v5931
        %v6030 = vunpack.c.l.b16 %v5932
        %v6031 = vunpack.c.h.b16 %v5932
        %v6032 = vunpack.c.l.b16 %v5933
        %v6033 = vunpack.c.h.b16 %v5933
        %v6034 = vunpack.c.l.b16 %v5934
        %v6035 = vunpack.c.h.b16 %v5934
        %v6036 = vunpack.c.l.b16 %v5935
        %v6037 = vunpack.c.h.b16 %v5935
        %v6038 = vunpack.c.l.b16 %v5936
        %v6039 = vunpack.c.h.b16 %v5936
        %v6040 = vunpack.c.l.b16 %v5937
        %v6041 = vunpack.c.h.b16 %v5937
        %v6042 = vunpack.c.l.b16 %v5938
        %v6043 = vunpack.c.h.b16 %v5938
        %v6044 = vunpack.c.l.b16 %v5939
        %v6045 = vunpack.c.h.b16 %v5939
        %v6046 = vunpack.c.l.b16 %v5940
        %v6047 = vunpack.c.h.b16 %v5940
        %v6048 = vunpack.c.l.b16 %v5941
        %v6049 = vunpack.c.h.b16 %v5941
        %v6050 = vunpack.c.l.b16 %v5942
        %v6051 = vunpack.c.h.b16 %v5942
        %v6052 = vunpack.c.l.b16 %v5943
        %v6053 = vunpack.c.h.b16 %v5943
        %v6054 = vunpack.c.l.b16 %v5944
        %v6055 = vunpack.c.h.b16 %v5944
        %v6056 = vunpack.c.l.b16 %v5945
        %v6057 = vunpack.c.h.b16 %v5945
        %v6058 = vunpack.c.l.b16 %v5946
        %v6059 = vunpack.c.h.b16 %v5946
        %v6060 = vunpack.c.l.b16 %v5947
        %v6061 = vunpack.c.h.b16 %v5947
        %v6062 = vunpack.c.l.b16 %v5948
        %v6063 = vunpack.c.h.b16 %v5948
        %v6064 = vunpack.c.l.b16 %v5949
        %v6065 = vunpack.c.h.b16 %v5949
        %v6066 = vunpack.c.l.b16 %v5950
        %v6067 = vunpack.c.h.b16 %v5950
        %v6068 = vunpack.c.l.b16 %v5951
        %v6069 = vunpack.c.h.b16 %v5951
        %v6070 = vunpack.c.l.b16 %v5952
        %v6071 = vunpack.c.h.b16 %v5952
        %v6072 = vunpack.c.l.b16 %v5953
        %v6073 = vunpack.c.h.b16 %v5953
        %v6074 = vunpack.c.l.b16 %v5954
        %v6075 = vunpack.c.h.b16 %v5954
        %v6076 = vunpack.c.l.b16 %v5955
        %v6077 = vunpack.c.h.b16 %v5955
        %v6078 = vunpack.c.l.b16 %v5956
        %v6079 = vunpack.c.h.b16 %v5956
        %v6080 = vpack.c.b16 %v6008, %v6006
        %v6081 = vpack.c.b16 %v6009, %v6007
        %v6082 = vpack.c.b16 %v6012, %v6010
        %v6083 = vpack.c.b16 %v6013, %v6011
        %v6084 = vpack.c.b16 %v6016, %v6014
        %v6085 = vpack.c.b16 %v6017, %v6015
        %v6086 = vpack.c.b16 %v6020, %v6018
        %v6087 = vpack.c.b16 %v6021, %v6019
        %v6088 = vpack.c.b16 %v6024, %v6022
        %v6089 = vpack.c.b16 %v6025, %v6023
        %v6090 = vpack.c.b16 %v6028, %v6026
        %v6091 = vpack.c.b16 %v6029, %v6027
        %v6092 = vpack.c.b16 %v6032, %v6030
        %v6093 = vpack.c.b16 %v6033, %v6031
        %v6094 = vpack.c.b16 %v6036, %v6034
        %v6095 = vpack.c.b16 %v6037, %v6035
        %v6096 = vpack.c.b16 %v6040, %v6038
        %v6097 = vpack.c.b16 %v6041, %v6039
        %v6098 = vpack.c.b16 %v6044, %v6042
        %v6099 = vpack.c.b16 %v6045, %v6043
        %v6100 = vpack.c.b16 %v6048, %v6046
        %v6101 = vpack.c.b16 %v6049, %v6047
        %v6102 = vpack.c.b16 %v6052, %v6050
        %v6103 = vpack.c.b16 %v6053, %v6051
        %v6104 = vpack.c.b16 %v6056, %v6054
        %v6105 = vpack.c.b16 %v6057, %v6055
        %v6106 = vpack.c.b16 %v6060, %v6058
        %v6107 = vpack.c.b16 %v6061, %v6059
        %v6108 = vpack.c.b16 %v6064, %v6062
        %v6109 = vpack.c.b16 %v6065, %v6063
        %v6110 = vpack.c.b16 %v6068, %v6066
        %v6111 = vpack.c.b16 %v6069, %v6067
        %v6112 = vpack.c.b16 %v6072, %v6070
        %v6113 = vpack.c.b16 %v6073, %v6071
        %v6114 = vpack.c.b16 %v6076, %v6074
        %v6115 = vpack.c.b16 %v6077, %v6075
        %v6116 = vpack.c.b16 %v6078, %v6078
        %v6117 = vpack.c.b16 %v6079, %v6079
        %vm6154 = vcmask 318464
        %v6156 = vsel %vm6154, %v5910, 0
        %v6159 = vsel %vm6154, %v5913, 0
        %v6162 = vsel %vm6154, %v5916, 0
        %v6165 = vsel %vm6154, %v5919, 0
        %vm6167 = vcmask 1042432
        %vm6168 = vcmask 1043456
        %v6169 = vsel %vm6167, 4294967295, 65535
        %v6170 = vsel %vm6168, %v6169, 0
        %v6172 = vand.u32 %v6116, %v6170
        %v6175 = vand.u32 %v6117, %v6170
        %6177 = vmatprep.subr.bf16.mxu0 %v6081
        %6178 = vmatpush1.bf16.msra.mxu0 %v6080
        %6179 = vmatprep.subr.bf16.mxu0 %v6083
        %6180 = vmatpush1.bf16.msra.mxu0 %v6082
        %6181 = vmatprep.subr.bf16.mxu0 %v6085
        %6182 = vmatpush1.bf16.msra.mxu0 %v6084
        %6183 = vmatprep.subr.bf16.mxu0 %v6087
        %6184 = vmatpush1.bf16.msra.mxu0 %v6086
        %6185 = vmatprep.subr.bf16.mxu0 %v6089
        %6186 = vmatpush1.bf16.msra.mxu0 %v6088
        %6187 = vmatprep.subr.bf16.mxu0 %v6091
        %6188 = vmatpush1.bf16.msra.mxu0 %v6090
        %6189 = vmatprep.subr.bf16.mxu0 %v6093
        %6190 = vmatpush1.bf16.msra.mxu0 %v6092
        %6191 = vmatprep.subr.bf16.mxu0 %v6095
        %6192 = vmatpush1.bf16.msra.mxu0 %v6094
        %6193 = vmatprep.subr.bf16.mxu0 %v6097
        %6194 = vmatpush1.bf16.msra.mxu0 %v6096
        %6195 = vmatprep.subr.bf16.mxu0 %v6099
        %6196 = vmatpush1.bf16.msra.mxu0 %v6098
        %6197 = vmatprep.subr.bf16.mxu0 %v6101
        %6198 = vmatpush1.bf16.msra.mxu0 %v6100
        %6199 = vmatprep.subr.bf16.mxu0 %v6103
        %6200 = vmatpush1.bf16.msra.mxu0 %v6102
        %6201 = vmatprep.subr.bf16.mxu0 %v6105
        %6202 = vmatpush1.bf16.msra.mxu0 %v6104
        %6203 = vmatprep.subr.bf16.mxu0 %v6107
        %6204 = vmatpush1.bf16.msra.mxu0 %v6106
        %6205 = vmatprep.subr.bf16.mxu0 %v6109
        %6206 = vmatpush1.bf16.msra.mxu0 %v6108
        %6207 = vmatprep.subr.bf16.mxu0 %v6111
        %6208 = vmatpush1.bf16.msra.mxu0 %v6110
        %6209 = vmatprep.mubr.bf16.mxu0 %v5909
        %6210 = vmatmul.mubr.bf16.gmra.mrb[0].mxu0 %v5908
        %v6211 = vpop.f32.mrb[0].mxu0
        %v6212 = vadd.f32 %v5962, %v6211
        %v6213 = vpop.f32.mrb[0].mxu0
        %v6214 = vadd.f32 %v5966, %v6213
        %v6215 = vpop.f32.mrb[0].mxu0
        %v6216 = vadd.f32 %v5962, %v6215
        %v6217 = vpop.f32.mrb[0].mxu0
        %v6218 = vadd.f32 %v5966, %v6217
        %6219 = vmatprep.mubr.bf16.mxu0 %v5912
        %6220 = vmatmul.mubr.bf16.gmra.mrb[0].mxu0 %v5911
        %v6221 = vpop.f32.mrb[0].mxu0
        %v6222 = vadd.f32 %v5962, %v6221
        %v6223 = vpop.f32.mrb[0].mxu0
        %v6224 = vadd.f32 %v5966, %v6223
        %v6225 = vpop.f32.mrb[0].mxu0
        %v6226 = vadd.f32 %v5962, %v6225
        %v6227 = vpop.f32.mrb[0].mxu0
        %v6228 = vadd.f32 %v5966, %v6227
        %6229 = vmatprep.mubr.bf16.mxu0 %v5915
        %6230 = vmatmul.mubr.bf16.gmra.mrb[0].mxu0 %v5914
        %v6231 = vpop.f32.mrb[0].mxu0
        %v6232 = vadd.f32 %v5962, %v6231
        %v6233 = vpop.f32.mrb[0].mxu0
        %v6234 = vadd.f32 %v5966, %v6233
        %v6235 = vpop.f32.mrb[0].mxu0
        %v6236 = vadd.f32 %v5962, %v6235
        %v6237 = vpop.f32.mrb[0].mxu0
        %v6238 = vadd.f32 %v5966, %v6237
        %6239 = vmatprep.mubr.bf16.mxu0 %v5918
        %6240 = vmatmul.mubr.bf16.gmra.mrb[0].mxu0 %v5917
        %v6241 = vpop.f32.mrb[0].mxu0
        %v6242 = vadd.f32 %v5962, %v6241
        %v6243 = vpop.f32.mrb[0].mxu0
        %v6244 = vadd.f32 %v5966, %v6243
        %v6245 = vpop.f32.mrb[0].mxu0
        %v6246 = vadd.f32 %v5962, %v6245
        %v6247 = vpop.f32.mrb[0].mxu0
        %v6248 = vadd.f32 %v5966, %v6247
        %6249 = vdwg.mxu0
        %6250 = vmatprep.subr.bf16.mxu0 %v6113
        %6251 = vmatpush1.bf16.msra.mxu0 %v6112
        %6252 = vmatprep.subr.bf16.mxu0 %v6115
        %6253 = vmatpush1.bf16.msra.mxu0 %v6114
        %6254 = vmatprep.subr.bf16.mxu0 %v6175
        %6255 = vmatpush1.bf16.msra.mxu0 %v6172
        %6256 = vmatprep.subr.bf16.mxu0 0
        %6257 = vmatpush1.bf16.msra.mxu0 0
        %6258 = vmatprep.subr.bf16.mxu0 0
        %6259 = vmatpush1.bf16.msra.mxu0 0
        %6260 = vmatprep.subr.bf16.mxu0 0
        %6261 = vmatpush1.bf16.msra.mxu0 0
        %6262 = vmatprep.subr.bf16.mxu0 0
        %6263 = vmatpush1.bf16.msra.mxu0 0
        %6264 = vmatprep.subr.bf16.mxu0 0
        %6265 = vmatpush1.bf16.msra.mxu0 0
        %6266 = vmatprep.subr.bf16.mxu0 0
        %6267 = vmatpush1.bf16.msra.mxu0 0
        %6268 = vmatprep.subr.bf16.mxu0 0
        %6269 = vmatpush1.bf16.msra.mxu0 0
        %6270 = vmatprep.subr.bf16.mxu0 0
        %6271 = vmatpush1.bf16.msra.mxu0 0
        %6272 = vmatprep.subr.bf16.mxu0 0
        %6273 = vmatpush1.bf16.msra.mxu0 0
        %6274 = vmatprep.subr.bf16.mxu0 0
        %6275 = vmatpush1.bf16.msra.mxu0 0
        %6276 = vmatprep.subr.bf16.mxu0 0
        %6277 = vmatpush1.bf16.msra.mxu0 0
        %6278 = vmatprep.subr.bf16.mxu0 0
        %6279 = vmatpush1.bf16.msra.mxu0 0
        %6280 = vmatprep.subr.bf16.mxu0 0
        %6281 = vmatpush1.bf16.msra.mxu0 0
        %6282 = vmatprep.mubr.bf16.mxu0 0
        %6283 = vmatmul.mubr.bf16.gmra.mrb[0].mxu0 %v6156
        %v6284 = vpop.f32.mrb[0].mxu0
        %v6285 = vadd.f32 %v6212, %v6284
        %v6286 = vpop.f32.mrb[0].mxu0
        %v6287 = vadd.f32 %v6214, %v6286
        %v6288 = vpop.f32.mrb[0].mxu0
        %v6289 = vadd.f32 %v6216, %v6288
        %v6290 = vpop.f32.mrb[0].mxu0
        %v6291 = vadd.f32 %v6218, %v6290
        %6292 = vmatprep.mubr.bf16.mxu0 0
        %6293 = vmatmul.mubr.bf16.gmra.mrb[0].mxu0 %v6159
        %v6294 = vpop.f32.mrb[0].mxu0
        %v6295 = vadd.f32 %v6222, %v6294
        %v6296 = vpop.f32.mrb[0].mxu0
        %v6297 = vadd.f32 %v6224, %v6296
        %v6298 = vpop.f32.mrb[0].mxu0
        %v6299 = vadd.f32 %v6226, %v6298
        %v6300 = vpop.f32.mrb[0].mxu0
        %v6301 = vadd.f32 %v6228, %v6300
        %6302 = vmatprep.mubr.bf16.mxu0 0
        %6303 = vmatmul.mubr.bf16.gmra.mrb[0].mxu0 %v6162
        %v6304 = vpop.f32.mrb[0].mxu0
        %v6305 = vadd.f32 %v6232, %v6304
        %v6306 = vpop.f32.mrb[0].mxu0
        %v6307 = vadd.f32 %v6234, %v6306
        %v6308 = vpop.f32.mrb[0].mxu0
        %v6309 = vadd.f32 %v6236, %v6308
        %v6310 = vpop.f32.mrb[0].mxu0
        %v6311 = vadd.f32 %v6238, %v6310
        %6312 = vmatprep.mubr.bf16.mxu0 0
        %6313 = vmatmul.mubr.bf16.gmra.mrb[0].mxu0 %v6165
        %v6314 = vpop.f32.mrb[0].mxu0
        %v6315 = vadd.f32 %v6242, %v6314
        %v6316 = vpop.f32.mrb[0].mxu0
        %v6317 = vadd.f32 %v6244, %v6316
        %v6318 = vpop.f32.mrb[0].mxu0
        %v6319 = vadd.f32 %v6246, %v6318
        %v6320 = vpop.f32.mrb[0].mxu0
        %v6321 = vadd.f32 %v6248, %v6320
        %6322 = vdwg.mxu0
        %v6323 = vmax.f32 %v6285, 0.0
        %v6324 = vmax.f32 %v6287, 0.0
        %v6325 = vmax.f32 %v6289, 0.0
        %v6326 = vmax.f32 %v6291, 0.0
        %v6327 = vmax.f32 %v6295, 0.0
        %v6328 = vmax.f32 %v6297, 0.0
        %v6329 = vmax.f32 %v6299, 0.0
        %v6330 = vmax.f32 %v6301, 0.0
        %v6331 = vmax.f32 %v6305, 0.0
        %v6332 = vmax.f32 %v6307, 0.0
        %v6333 = vmax.f32 %v6309, 0.0
        %v6334 = vmax.f32 %v6311, 0.0
        %v6335 = vmax.f32 %v6315, 0.0
        %v6336 = vmax.f32 %v6317, 0.0
        %v6337 = vmax.f32 %v6319, 0.0
        %v6338 = vmax.f32 %v6321, 0.0
        %v6339 = vpack.c.bf16 %v6325, %v6323
        %v6340 = vpack.c.bf16 %v6326, %v6324
        %v6341 = vpack.c.bf16 %v6329, %v6327
        %v6342 = vpack.c.bf16 %v6330, %v6328
        %v6343 = vpack.c.bf16 %v6333, %v6331
        %v6344 = vpack.c.bf16 %v6334, %v6332
        %v6345 = vpack.c.bf16 %v6337, %v6335
        %v6346 = vpack.c.bf16 %v6338, %v6336
        %v6347 = vld [vmem:[%s7] sm:$0xf]
        %v6348 = vld [vmem:[%s7 + $0x4] sm:$0xf]
        %v6349 = vld [vmem:[%s7 + $0x8] sm:$0xf]
        %v6350 = vld [vmem:[%s7 + $0xc] sm:$0xf]
        %v6351 = vld [vmem:[%s7 + $0x10] sm:$0xf]
        %v6352 = vld [vmem:[%s7 + $0x14] sm:$0xf]
        %v6353 = vld [vmem:[%s7 + $0x18] sm:$0xf]
        %v6354 = vld [vmem:[%s7 + $0x1c] sm:$0xf]
        %v6355 = vld [vmem:[%s7 + $0x20] sm:$0xf]
        %v6356 = vld [vmem:[%s7 + $0x24] sm:$0xf]
        %v6357 = vld [vmem:[%s7 + $0x28] sm:$0xf]
        %v6358 = vld [vmem:[%s7 + $0x2c] sm:$0xf]
        %v6359 = vld [vmem:[%s7 + $0x30] sm:$0xf]
        %v6360 = vld [vmem:[%s7 + $0x34] sm:$0xf]
        %v6361 = vld [vmem:[%s7 + $0x38] sm:$0xf]
        %v6362 = vld [vmem:[%s7 + $0x3c] sm:$0xf]
        %v6363 = vld [vmem:[%s7 + $0x40] sm:$0xf]
        %v6364 = vld [vmem:[%s7 + $0x44] sm:$0xf]
        %v6365 = vld [vmem:[%s7 + $0x48] sm:$0xf]
        %v6366 = vld [vmem:[%s7 + $0x4c] sm:$0xf]
        %v6367 = vld [vmem:[%s7 + $0x50] sm:$0xf]
        %v6368 = vld [vmem:[%s7 + $0x54] sm:$0xf]
        %v6369 = vld [vmem:[%s7 + $0x58] sm:$0xf]
        %v6370 = vld [vmem:[%s7 + $0x5c] sm:$0xf]
        %v6371 = vld [vmem:[%s7 + $0x60] sm:$0xf]
        %v6372 = vld [vmem:[%s7 + $0x64] sm:$0xf]
        %v6373 = vld [vmem:[%s7 + $0x68] sm:$0xf]
        %v6374 = vld [vmem:[%s7 + $0x6c] sm:$0xf]
        %v6375 = vld [vmem:[%s7 + $0x70] sm:$0xf]
        %v6376 = vld [vmem:[%s7 + $0x74] sm:$0xf]
        %v6377 = vld [vmem:[%s7 + $0x78] sm:$0xf]
        %v6378 = vld [vmem:[%s7 + $0x7c] sm:$0xf]
        %v6379 = vld [vmem:[%s4 + $0x6] sm:$0x1]
        %v6381 = vlaneseq
        %v6382 = vshrl.u32 %v6381, 7
        %v6383 = vsub.s32 0, %v6382
        %v6384 = vrot.slane %v6379, %v6383
        %v6418 = vunpack.c.l.b16 %v6347
        %v6419 = vunpack.c.l.b16 %v6348
        %v6420 = vunpack.c.l.b16 %v6349
        %v6421 = vunpack.c.l.b16 %v6350
        %v6422 = vunpack.c.l.b16 %v6351
        %v6423 = vunpack.c.l.b16 %v6352
        %v6424 = vunpack.c.l.b16 %v6353
        %v6425 = vunpack.c.l.b16 %v6354
        %v6426 = vunpack.c.l.b16 %v6355
        %v6427 = vunpack.c.l.b16 %v6356
        %v6428 = vunpack.c.l.b16 %v6357
        %v6429 = vunpack.c.l.b16 %v6358
        %v6430 = vunpack.c.l.b16 %v6359
        %v6431 = vunpack.c.l.b16 %v6360
        %v6432 = vunpack.c.l.b16 %v6361
        %v6433 = vunpack.c.l.b16 %v6362
        %v6434 = vunpack.c.l.b16 %v6363
        %v6435 = vunpack.c.l.b16 %v6364
        %v6436 = vunpack.c.l.b16 %v6365
        %v6437 = vunpack.c.l.b16 %v6366
        %v6438 = vunpack.c.l.b16 %v6367
        %v6439 = vunpack.c.l.b16 %v6368
        %v6440 = vunpack.c.l.b16 %v6369
        %v6441 = vunpack.c.l.b16 %v6370
        %v6442 = vunpack.c.l.b16 %v6371
        %v6443 = vunpack.c.l.b16 %v6372
        %v6444 = vunpack.c.l.b16 %v6373
        %v6445 = vunpack.c.l.b16 %v6374
        %v6446 = vunpack.c.l.b16 %v6375
        %v6447 = vunpack.c.l.b16 %v6376
        %v6448 = vunpack.c.l.b16 %v6377
        %v6449 = vunpack.c.l.b16 %v6378
        %v6450 = vpack.c.b16 %v6419, %v6418
        %v6451 = vpack.c.b16 %v6421, %v6420
        %v6452 = vpack.c.b16 %v6423, %v6422
        %v6453 = vpack.c.b16 %v6425, %v6424
        %v6454 = vpack.c.b16 %v6427, %v6426
        %v6455 = vpack.c.b16 %v6429, %v6428
        %v6456 = vpack.c.b16 %v6431, %v6430
        %v6457 = vpack.c.b16 %v6433, %v6432
        %v6458 = vpack.c.b16 %v6435, %v6434
        %v6459 = vpack.c.b16 %v6437, %v6436
        %v6460 = vpack.c.b16 %v6439, %v6438
        %v6461 = vpack.c.b16 %v6441, %v6440
        %v6462 = vpack.c.b16 %v6443, %v6442
        %v6463 = vpack.c.b16 %v6445, %v6444
        %v6464 = vpack.c.b16 %v6447, %v6446
        %v6465 = vpack.c.b16 %v6449, %v6448
        %6482 = vmatprep.subr.bf16.mxu0 0
        %6483 = vmatpush1.bf16.msra.mxu0 %v6450
        %6484 = vmatprep.subr.bf16.mxu0 0
        %6485 = vmatpush1.bf16.msra.mxu0 %v6451
        %6486 = vmatprep.subr.bf16.mxu0 0
        %6487 = vmatpush1.bf16.msra.mxu0 %v6452
        %6488 = vmatprep.subr.bf16.mxu0 0
        %6489 = vmatpush1.bf16.msra.mxu0 %v6453
        %6490 = vmatprep.subr.bf16.mxu0 0
        %6491 = vmatpush1.bf16.msra.mxu0 %v6454
        %6492 = vmatprep.subr.bf16.mxu0 0
        %6493 = vmatpush1.bf16.msra.mxu0 %v6455
        %6494 = vmatprep.subr.bf16.mxu0 0
        %6495 = vmatpush1.bf16.msra.mxu0 %v6456
        %6496 = vmatprep.subr.bf16.mxu0 0
        %6497 = vmatpush1.bf16.msra.mxu0 %v6457
        %6498 = vmatprep.subr.bf16.mxu0 0
        %6499 = vmatpush1.bf16.msra.mxu0 %v6458
        %6500 = vmatprep.subr.bf16.mxu0 0
        %6501 = vmatpush1.bf16.msra.mxu0 %v6459
        %6502 = vmatprep.subr.bf16.mxu0 0
        %6503 = vmatpush1.bf16.msra.mxu0 %v6460
        %6504 = vmatprep.subr.bf16.mxu0 0
        %6505 = vmatpush1.bf16.msra.mxu0 %v6461
        %6506 = vmatprep.subr.bf16.mxu0 0
        %6507 = vmatpush1.bf16.msra.mxu0 %v6462
        %6508 = vmatprep.subr.bf16.mxu0 0
        %6509 = vmatpush1.bf16.msra.mxu0 %v6463
        %6510 = vmatprep.subr.bf16.mxu0 0
        %6511 = vmatpush1.bf16.msra.mxu0 %v6464
        %6512 = vmatprep.subr.bf16.mxu0 0
        %6513 = vmatpush1.bf16.msra.mxu0 %v6465
        %6514 = vmatprep.mubr.bf16.mxu0 %v6340
        %6515 = vmatmul.mubr.bf16.gmra.mrb[0].mxu0 %v6339
        %v6516 = vpop.f32.mrb[0].mxu0
        %v6517 = vadd.f32 %v6384, %v6516
        %v6518 = vpop.f32.mrb[0].mxu0
        %v6519 = vpop.f32.mrb[0].mxu0
        %v6520 = vadd.f32 %v6384, %v6519
        %v6521 = vpop.f32.mrb[0].mxu0
        %6522 = vmatprep.mubr.bf16.mxu0 %v6342
        %6523 = vmatmul.mubr.bf16.gmra.mrb[0].mxu0 %v6341
        %v6524 = vpop.f32.mrb[0].mxu0
        %v6525 = vadd.f32 %v6384, %v6524
        %v6526 = vpop.f32.mrb[0].mxu0
        %v6527 = vpop.f32.mrb[0].mxu0
        %v6528 = vadd.f32 %v6384, %v6527
        %v6529 = vpop.f32.mrb[0].mxu0
        %6530 = vmatprep.mubr.bf16.mxu0 %v6344
        %6531 = vmatmul.mubr.bf16.gmra.mrb[0].mxu0 %v6343
        %v6532 = vpop.f32.mrb[0].mxu0
        %v6533 = vadd.f32 %v6384, %v6532
        %v6534 = vpop.f32.mrb[0].mxu0
        %v6535 = vpop.f32.mrb[0].mxu0
        %v6536 = vadd.f32 %v6384, %v6535
        %v6537 = vpop.f32.mrb[0].mxu0
        %6538 = vmatprep.mubr.bf16.mxu0 %v6346
        %6539 = vmatmul.mubr.bf16.gmra.mrb[0].mxu0 %v6345
        %v6540 = vpop.f32.mrb[0].mxu0
        %v6541 = vadd.f32 %v6384, %v6540
        %v6542 = vpop.f32.mrb[0].mxu0
        %v6543 = vpop.f32.mrb[0].mxu0
        %v6544 = vadd.f32 %v6384, %v6543
        %v6545 = vpop.f32.mrb[0].mxu0
        %6546 = vdwg.mxu0
        %v6547 = vmax.f32 %v6517, 0.0
        %v6548 = vmax.f32 %v6520, 0.0
        %v6549 = vmax.f32 %v6525, 0.0
        %v6550 = vmax.f32 %v6528, 0.0
        %v6551 = vmax.f32 %v6533, 0.0
        %v6552 = vmax.f32 %v6536, 0.0
        %v6553 = vmax.f32 %v6541, 0.0
        %v6554 = vmax.f32 %v6544, 0.0
        %v6555 = vpack.c.bf16 %v6548, %v6547
        %v6556 = vpack.c.bf16 %v6550, %v6549
        %v6557 = vpack.c.bf16 %v6552, %v6551
        %v6558 = vpack.c.bf16 %v6554, %v6553
        %v6559 = vld [vmem:[%s8] sm:$0xf]
        %v6560 = vld [vmem:[%s8 + $0x4] sm:$0xf]
        %v6561 = vld [vmem:[%s8 + $0x8] sm:$0xf]
        %v6562 = vld [vmem:[%s8 + $0xc] sm:$0xf]
        %v6563 = vld [vmem:[%s8 + $0x10] sm:$0xf]
        %v6564 = vld [vmem:[%s8 + $0x14] sm:$0xf]
        %v6565 = vld [vmem:[%s8 + $0x18] sm:$0xf]
        %v6566 = vld [vmem:[%s8 + $0x1c] sm:$0xf]
        %v6567 = vld [vmem:[%s8 + $0x20] sm:$0xf]
        %v6568 = vld [vmem:[%s8 + $0x24] sm:$0xf]
        %v6569 = vld [vmem:[%s8 + $0x28] sm:$0xf]
        %v6570 = vld [vmem:[%s8 + $0x2c] sm:$0xf]
        %v6571 = vld [vmem:[%s8 + $0x30] sm:$0xf]
        %v6572 = vld [vmem:[%s8 + $0x34] sm:$0xf]
        %v6573 = vld [vmem:[%s8 + $0x38] sm:$0xf]
        %v6574 = vld [vmem:[%s8 + $0x3c] sm:$0xf]
        %v6575 = vld [vmem:[%s4 + $0x7] sm:$0x1]
        %v6577 = vlaneseq
        %v6578 = vshrl.u32 %v6577, 7
        %v6579 = vsub.s32 0, %v6578
        %v6580 = vrot.slane %v6575, %v6579
        %v6598 = vunpack.c.l.b16 %v6559
        %v6599 = vunpack.c.l.b16 %v6560
        %v6600 = vunpack.c.l.b16 %v6561
        %v6601 = vunpack.c.l.b16 %v6562
        %v6602 = vunpack.c.l.b16 %v6563
        %v6603 = vunpack.c.l.b16 %v6564
        %v6604 = vunpack.c.l.b16 %v6565
        %v6605 = vunpack.c.l.b16 %v6566
        %v6606 = vunpack.c.l.b16 %v6567
        %v6607 = vunpack.c.l.b16 %v6568
        %v6608 = vunpack.c.l.b16 %v6569
        %v6609 = vunpack.c.l.b16 %v6570
        %v6610 = vunpack.c.l.b16 %v6571
        %v6611 = vunpack.c.l.b16 %v6572
        %v6612 = vunpack.c.l.b16 %v6573
        %v6613 = vunpack.c.l.b16 %v6574
        %v6614 = vpack.c.b16 %v6599, %v6598
        %v6615 = vpack.c.b16 %v6601, %v6600
        %v6616 = vpack.c.b16 %v6603, %v6602
        %v6617 = vpack.c.b16 %v6605, %v6604
        %v6618 = vpack.c.b16 %v6607, %v6606
        %v6619 = vpack.c.b16 %v6609, %v6608
        %v6620 = vpack.c.b16 %v6611, %v6610
        %v6621 = vpack.c.b16 %v6613, %v6612
        %6630 = vmatprep.subr.bf16.mxu0 0
        %6631 = vmatpush1.bf16.msra.mxu0 %v6614
        %6632 = vmatprep.subr.bf16.mxu0 0
        %6633 = vmatpush1.bf16.msra.mxu0 %v6615
        %6634 = vmatprep.subr.bf16.mxu0 0
        %6635 = vmatpush1.bf16.msra.mxu0 %v6616
        %6636 = vmatprep.subr.bf16.mxu0 0
        %6637 = vmatpush1.bf16.msra.mxu0 %v6617
        %6638 = vmatprep.subr.bf16.mxu0 0
        %6639 = vmatpush1.bf16.msra.mxu0 %v6618
        %6640 = vmatprep.subr.bf16.mxu0 0
        %6641 = vmatpush1.bf16.msra.mxu0 %v6619
        %6642 = vmatprep.subr.bf16.mxu0 0
        %6643 = vmatpush1.bf16.msra.mxu0 %v6620
        %6644 = vmatprep.subr.bf16.mxu0 0
        %6645 = vmatpush1.bf16.msra.mxu0 %v6621
        %6646 = vmatprep.subr.bf16.mxu0 0
        %6647 = vmatpush1.bf16.msra.mxu0 0
        %6648 = vmatprep.subr.bf16.mxu0 0
        %6649 = vmatpush1.bf16.msra.mxu0 0
        %6650 = vmatprep.subr.bf16.mxu0 0
        %6651 = vmatpush1.bf16.msra.mxu0 0
        %6652 = vmatprep.subr.bf16.mxu0 0
        %6653 = vmatpush1.bf16.msra.mxu0 0
        %6654 = vmatprep.subr.bf16.mxu0 0
        %6655 = vmatpush1.bf16.msra.mxu0 0
        %6656 = vmatprep.subr.bf16.mxu0 0
        %6657 = vmatpush1.bf16.msra.mxu0 0
        %6658 = vmatprep.subr.bf16.mxu0 0
        %6659 = vmatpush1.bf16.msra.mxu0 0
        %6660 = vmatprep.subr.bf16.mxu0 0
        %6661 = vmatpush1.bf16.msra.mxu0 0
        %6662 = vmatprep.mubr.bf16.mxu0 0
        %6663 = vmatmul.mubr.bf16.gmra.mrb[0].mxu0 %v6555
        %v6664 = vpop.f32.mrb[0].mxu0
        %v6665 = vadd.f32 %v6580, %v6664
        %v6666 = vpop.f32.mrb[0].mxu0
        %v6667 = vpop.f32.mrb[0].mxu0
        %v6668 = vadd.f32 %v6580, %v6667
        %v6669 = vpop.f32.mrb[0].mxu0
        %6670 = vmatprep.mubr.bf16.mxu0 0
        %6671 = vmatmul.mubr.bf16.gmra.mrb[0].mxu0 %v6556
        %v6672 = vpop.f32.mrb[0].mxu0
        %v6673 = vadd.f32 %v6580, %v6672
        %v6674 = vpop.f32.mrb[0].mxu0
        %v6675 = vpop.f32.mrb[0].mxu0
        %v6676 = vadd.f32 %v6580, %v6675
        %v6677 = vpop.f32.mrb[0].mxu0
        %6678 = vmatprep.mubr.bf16.mxu0 0
        %6679 = vmatmul.mubr.bf16.gmra.mrb[0].mxu0 %v6557
        %v6680 = vpop.f32.mrb[0].mxu0
        %v6681 = vadd.f32 %v6580, %v6680
        %v6682 = vpop.f32.mrb[0].mxu0
        %v6683 = vpop.f32.mrb[0].mxu0
        %v6684 = vadd.f32 %v6580, %v6683
        %v6685 = vpop.f32.mrb[0].mxu0
        %6686 = vmatprep.mubr.bf16.mxu0 0
        %6687 = vmatmul.mubr.bf16.gmra.mrb[0].mxu0 %v6558
        %v6688 = vpop.f32.mrb[0].mxu0
        %v6689 = vadd.f32 %v6580, %v6688
        %v6690 = vpop.f32.mrb[0].mxu0
        %v6691 = vpop.f32.mrb[0].mxu0
        %v6692 = vadd.f32 %v6580, %v6691
        %v6693 = vpop.f32.mrb[0].mxu0
        %6694 = vdwg.mxu0
        %v6695 = vld [vmem:[%s511] sm:$0xff]
        %v6696 = vld [vmem:[%s511 + $0x8] sm:$0xff]
        %v6697 = vld [vmem:[%s511 + $0x10] sm:$0xff]
        %v6698 = vld [vmem:[%s511 + $0x18] sm:$0xff]
        %v6699 = vld [vmem:[%s511 + $0x20] sm:$0xff]
        %v6700 = vld [vmem:[%s511 + $0x28] sm:$0xff]
        %v6701 = vld [vmem:[%s511 + $0x30] sm:$0xff]
        %v6702 = vld [vmem:[%s511 + $0x38] sm:$0xff]
        %v6703 = vpack.c.bf16 %v6696, %v6695
        %v6704 = vpack.c.bf16 %v6698, %v6697
        %v6705 = vpack.c.bf16 %v6700, %v6699
        %v6706 = vpack.c.bf16 %v6702, %v6701
        %v6707 = vld [vmem:[%s5] sm:$0xff]
        %v6708 = vld [vmem:[%s5 + $0x8] sm:$0xff]
        %v6709 = vld [vmem:[%s5 + $0x10] sm:$0x33]
        %v6710 = vld [vmem:[%s4 + $0x1] sm:$0x3]
        %v6712 = vlaneseq
        %v6713 = vshrl.u32 %v6712, 7
        %v6714 = vsub.s32 0, %v6713
        %v6715 = vrot.slane %v6710, %v6714
        %v6716 = vlaneseq
        %v6717 = vshrl.u32 %v6716, 7
        %v6718 = vsub.s32 1, %v6717
        %v6719 = vrot.slane %v6710, %v6718
        %v6725 = vunpack.c.l.b16 %v6707
        %v6726 = vunpack.c.h.b16 %v6707
        %v6727 = vunpack.c.l.b16 %v6708
        %v6728 = vunpack.c.h.b16 %v6708
        %v6729 = vunpack.c.l.b16 %v6709
        %v6730 = vunpack.c.h.b16 %v6709
        %v6731 = vpack.c.b16 %v6727, %v6725
        %v6732 = vpack.c.b16 %v6728, %v6726
        %v6733 = vpack.c.b16 %v6729, %v6729
        %v6734 = vpack.c.b16 %v6730, %v6730
        %vm6737 = vcmask 162816
        %v6739 = vsel %vm6737, %v6703, 0
        %v6742 = vsel %vm6737, %v6704, 0
        %v6745 = vsel %vm6737, %v6705, 0
        %v6748 = vsel %vm6737, %v6706, 0
        %vm6750 = vcmask 1041408
        %v6752 = vsel %vm6750, %v6733, 0
        %v6755 = vsel %vm6750, %v6734, 0
        %6757 = vmatprep.subr.bf16.mxu0 %v6732
        %6758 = vmatpush1.bf16.msra.mxu0 %v6731
        %6759 = vmatprep.subr.bf16.mxu0 %v6755
        %6760 = vmatpush1.bf16.msra.mxu0 %v6752
        %6761 = vmatprep.subr.bf16.mxu0 0
        %6762 = vmatpush1.bf16.msra.mxu0 0
        %6763 = vmatprep.subr.bf16.mxu0 0
        %6764 = vmatpush1.bf16.msra.mxu0 0
        %6765 = vmatprep.subr.bf16.mxu0 0
        %6766 = vmatpush1.bf16.msra.mxu0 0
        %6767 = vmatprep.subr.bf16.mxu0 0
        %6768 = vmatpush1.bf16.msra.mxu0 0
        %6769 = vmatprep.subr.bf16.mxu0 0
        %6770 = vmatpush1.bf16.msra.mxu0 0
        %6771 = vmatprep.subr.bf16.mxu0 0
        %6772 = vmatpush1.bf16.msra.mxu0 0
        %6773 = vmatprep.subr.bf16.mxu0 0
        %6774 = vmatpush1.bf16.msra.mxu0 0
        %6775 = vmatprep.subr.bf16.mxu0 0
        %6776 = vmatpush1.bf16.msra.mxu0 0
        %6777 = vmatprep.subr.bf16.mxu0 0
        %6778 = vmatpush1.bf16.msra.mxu0 0
        %6779 = vmatprep.subr.bf16.mxu0 0
        %6780 = vmatpush1.bf16.msra.mxu0 0
        %6781 = vmatprep.subr.bf16.mxu0 0
        %6782 = vmatpush1.bf16.msra.mxu0 0
        %6783 = vmatprep.subr.bf16.mxu0 0
        %6784 = vmatpush1.bf16.msra.mxu0 0
        %6785 = vmatprep.subr.bf16.mxu0 0
        %6786 = vmatpush1.bf16.msra.mxu0 0
        %6787 = vmatprep.subr.bf16.mxu0 0
        %6788 = vmatpush1.bf16.msra.mxu0 0
        %6789 = vmatprep.mubr.bf16.mxu0 0
        %6790 = vmatmul.mubr.bf16.gmra.mrb[0].mxu0 %v6739
        %v6791 = vpop.f32.mrb[0].mxu0
        %v6792 = vadd.f32 %v6715, %v6791
        %v6793 = vpop.f32.mrb[0].mxu0
        %v6794 = vadd.f32 %v6719, %v6793
        %v6795 = vpop.f32.mrb[0].mxu0
        %v6796 = vadd.f32 %v6715, %v6795
        %v6797 = vpop.f32.mrb[0].mxu0
        %v6798 = vadd.f32 %v6719, %v6797
        %6799 = vmatprep.mubr.bf16.mxu0 0
        %6800 = vmatmul.mubr.bf16.gmra.mrb[0].mxu0 %v6742
        %v6801 = vpop.f32.mrb[0].mxu0
        %v6802 = vadd.f32 %v6715, %v6801
        %v6803 = vpop.f32.mrb[0].mxu0
        %v6804 = vadd.f32 %v6719, %v6803
        %v6805 = vpop.f32.mrb[0].mxu0
        %v6806 = vadd.f32 %v6715, %v6805
        %v6807 = vpop.f32.mrb[0].mxu0
        %v6808 = vadd.f32 %v6719, %v6807
        %6809 = vmatprep.mubr.bf16.mxu0 0
        %6810 = vmatmul.mubr.bf16.gmra.mrb[0].mxu0 %v6745
        %v6811 = vpop.f32.mrb[0].mxu0
        %v6812 = vadd.f32 %v6715, %v6811
        %v6813 = vpop.f32.mrb[0].mxu0
        %v6814 = vadd.f32 %v6719, %v6813
        %v6815 = vpop.f32.mrb[0].mxu0
        %v6816 = vadd.f32 %v6715, %v6815
        %v6817 = vpop.f32.mrb[0].mxu0
        %v6818 = vadd.f32 %v6719, %v6817
        %6819 = vmatprep.mubr.bf16.mxu0 0
        %6820 = vmatmul.mubr.bf16.gmra.mrb[0].mxu0 %v6748
        %v6821 = vpop.f32.mrb[0].mxu0
        %v6822 = vadd.f32 %v6715, %v6821
        %v6823 = vpop.f32.mrb[0].mxu0
        %v6824 = vadd.f32 %v6719, %v6823
        %v6825 = vpop.f32.mrb[0].mxu0
        %v6826 = vadd.f32 %v6715, %v6825
        %v6827 = vpop.f32.mrb[0].mxu0
        %v6828 = vadd.f32 %v6719, %v6827
        %6829 = vdwg.mxu0
        %v6830 = vmax.f32 %v6792, 0.0
        %v6831 = vmax.f32 %v6794, 0.0
        %v6832 = vmax.f32 %v6796, 0.0
        %v6833 = vmax.f32 %v6798, 0.0
        %v6834 = vmax.f32 %v6802, 0.0
        %v6835 = vmax.f32 %v6804, 0.0
        %v6836 = vmax.f32 %v6806, 0.0
        %v6837 = vmax.f32 %v6808, 0.0
        %v6838 = vmax.f32 %v6812, 0.0
        %v6839 = vmax.f32 %v6814, 0.0
        %v6840 = vmax.f32 %v6816, 0.0
        %v6841 = vmax.f32 %v6818, 0.0
        %v6842 = vmax.f32 %v6822, 0.0
        %v6843 = vmax.f32 %v6824, 0.0
        %v6844 = vmax.f32 %v6826, 0.0
        %v6845 = vmax.f32 %v6828, 0.0
        %v6846 = vld [vmem:[%s4] sm:$0x1]
        %v6847 = vld [vmem:[%s517] sm:$0xff]
        %v6848 = vld [vmem:[%s517 + $0x8] sm:$0xff]
        %v6849 = vld [vmem:[%s517 + $0x10] sm:$0xff]
        %v6850 = vld [vmem:[%s517 + $0x18] sm:$0xff]
        %v6851 = vld [vmem:[%s517 + $0x20] sm:$0xff]
        %v6852 = vld [vmem:[%s517 + $0x28] sm:$0xff]
        %v6853 = vld [vmem:[%s517 + $0x30] sm:$0xff]
        %v6854 = vld [vmem:[%s517 + $0x38] sm:$0xff]
        %6856 = vset.pattern.permute.xlu0 0
        %6857 = vperm.xlu0 %6856, %v6847
        %v6858 = vpop.permute.xlu0 %6857
        %6861 = vset.pattern.permute.xlu0 0
        %6862 = vperm.xlu0 %6861, %v6848
        %v6863 = vpop.permute.xlu0 %6862
        %6866 = vset.pattern.permute.xlu0 0
        %6867 = vperm.xlu0 %6866, %v6849
        %v6868 = vpop.permute.xlu0 %6867
        %6871 = vset.pattern.permute.xlu0 0
        %6872 = vperm.xlu0 %6871, %v6850
        %v6873 = vpop.permute.xlu0 %6872
        %6876 = vset.pattern.permute.xlu0 0
        %6877 = vperm.xlu0 %6876, %v6851
        %v6878 = vpop.permute.xlu0 %6877
        %6881 = vset.pattern.permute.xlu0 0
        %6882 = vperm.xlu0 %6881, %v6852
        %v6883 = vpop.permute.xlu0 %6882
        %6886 = vset.pattern.permute.xlu0 0
        %6887 = vperm.xlu0 %6886, %v6853
        %v6888 = vpop.permute.xlu0 %6887
        %6891 = vset.pattern.permute.xlu0 0
        %6892 = vperm.xlu0 %6891, %v6854
        %v6893 = vpop.permute.xlu0 %6892
        %v6896 = vlaneseq
        %v6897 = vshrl.u32 %v6896, 7
        %v6898 = vsub.s32 0, %v6897
        %v6899 = vrot.slane %v6846, %v6898
        %v6901 = vmul.f32 %v6858, %v6899
        %v6902 = vmul.f32 %v6863, %v6899
        %v6903 = vmul.f32 %v6868, %v6899
        %v6904 = vmul.f32 %v6873, %v6899
        %v6905 = vmul.f32 %v6878, %v6899
        %v6906 = vmul.f32 %v6883, %v6899
        %v6907 = vmul.f32 %v6888, %v6899
        %v6908 = vmul.f32 %v6893, %v6899
        %v6909 = vld [vmem:[%s4 + $0x3] sm:$0x1]
        %v6911 = vlaneseq
        %v6912 = vshrl.u32 %v6911, 7
        %v6913 = vsub.s32 0, %v6912
        %v6914 = vrot.slane %v6909, %v6913
        %v6916 = vadd.f32 %v6901, %v6914
        %v6917 = vadd.f32 %v6902, %v6914
        %v6918 = vadd.f32 %v6903, %v6914
        %v6919 = vadd.f32 %v6904, %v6914
        %v6920 = vadd.f32 %v6905, %v6914
        %v6921 = vadd.f32 %v6906, %v6914
        %v6922 = vadd.f32 %v6907, %v6914
        %v6923 = vadd.f32 %v6908, %v6914
        %v6924 = vmax.f32 %v6916, 0.0
        %v6925 = vmax.f32 %v6917, 0.0
        %v6926 = vmax.f32 %v6918, 0.0
        %v6927 = vmax.f32 %v6919, 0.0
        %v6928 = vmax.f32 %v6920, 0.0
        %v6929 = vmax.f32 %v6921, 0.0
        %v6930 = vmax.f32 %v6922, 0.0
        %v6931 = vmax.f32 %v6923, 0.0
        %6932 = vst [vmem:[#allocation3] sm:$0xff] %v6830
        %6933 = vst [vmem:[#allocation3 + $0x8] sm:$0xff] %v6831
        %6934 = vst [vmem:[#allocation3 + $0x18] sm:$0xff] %v6832
        %6935 = vst [vmem:[#allocation3 + $0x20] sm:$0xff] %v6833
        %6936 = vst [vmem:[#allocation3 + $0x30] sm:$0xff] %v6834
        %6937 = vst [vmem:[#allocation3 + $0x38] sm:$0xff] %v6835
        %6938 = vst [vmem:[#allocation3 + $0x48] sm:$0xff] %v6836
        %6939 = vst [vmem:[#allocation3 + $0x50] sm:$0xff] %v6837
        %6940 = vst [vmem:[#allocation3 + $0x60] sm:$0xff] %v6838
        %6941 = vst [vmem:[#allocation3 + $0x68] sm:$0xff] %v6839
        %6942 = vst [vmem:[#allocation3 + $0x78] sm:$0xff] %v6840
        %6943 = vst [vmem:[#allocation3 + $0x80] sm:$0xff] %v6841
        %6944 = vst [vmem:[#allocation3 + $0x90] sm:$0xff] %v6842
        %6945 = vst [vmem:[#allocation3 + $0x98] sm:$0xff] %v6843
        %6946 = vst [vmem:[#allocation3 + $0xa8] sm:$0xff] %v6844
        %6947 = vst [vmem:[#allocation3 + $0xb0] sm:$0xff] %v6845
        %6948 = vst [vmem:[#allocation3 + $0x10] sm:$0xff] %v6924
        %6949 = vst [vmem:[#allocation3 + $0x28] sm:$0xff] %v6925
        %6950 = vst [vmem:[#allocation3 + $0x40] sm:$0xff] %v6926
        %6951 = vst [vmem:[#allocation3 + $0x58] sm:$0xff] %v6927
        %6952 = vst [vmem:[#allocation3 + $0x70] sm:$0xff] %v6928
        %6953 = vst [vmem:[#allocation3 + $0x88] sm:$0xff] %v6929
        %6954 = vst [vmem:[#allocation3 + $0xa0] sm:$0xff] %v6930
        %6955 = vst [vmem:[#allocation3 + $0xb8] sm:$0xff] %v6931
        %v6956 = vld [vmem:[#allocation3] sm:$0xff]
        %v6957 = vld [vmem:[#allocation3 + $0x8] sm:$0xff]
        %v6958 = vld [vmem:[#allocation3 + $0x10] sm:$0xff]
        %v6959 = vld [vmem:[#allocation3 + $0x18] sm:$0xff]
        %v6960 = vld [vmem:[#allocation3 + $0x20] sm:$0xff]
        %v6961 = vld [vmem:[#allocation3 + $0x28] sm:$0xff]
        %v6962 = vld [vmem:[#allocation3 + $0x30] sm:$0xff]
        %v6963 = vld [vmem:[#allocation3 + $0x38] sm:$0xff]
        %v6964 = vld [vmem:[#allocation3 + $0x40] sm:$0xff]
        %v6965 = vld [vmem:[#allocation3 + $0x48] sm:$0xff]
        %v6966 = vld [vmem:[#allocation3 + $0x50] sm:$0xff]
        %v6967 = vld [vmem:[#allocation3 + $0x58] sm:$0xff]
        %v6968 = vld [vmem:[#allocation3 + $0x60] sm:$0xff]
        %v6969 = vld [vmem:[#allocation3 + $0x68] sm:$0xff]
        %v6970 = vld [vmem:[#allocation3 + $0x70] sm:$0xff]
        %v6971 = vld [vmem:[#allocation3 + $0x78] sm:$0xff]
        %v6972 = vld [vmem:[#allocation3 + $0x80] sm:$0xff]
        %v6973 = vld [vmem:[#allocation3 + $0x88] sm:$0xff]
        %v6974 = vld [vmem:[#allocation3 + $0x90] sm:$0xff]
        %v6975 = vld [vmem:[#allocation3 + $0x98] sm:$0xff]
        %v6976 = vld [vmem:[#allocation3 + $0xa0] sm:$0xff]
        %v6977 = vld [vmem:[#allocation3 + $0xa8] sm:$0xff]
        %v6978 = vld [vmem:[#allocation3 + $0xb0] sm:$0xff]
        %v6979 = vld [vmem:[#allocation3 + $0xb8] sm:$0xff]
        %v6980 = vpack.c.bf16 %v6959, %v6956
        %v6981 = vpack.c.bf16 %v6960, %v6957
        %v6982 = vpack.c.bf16 %v6961, %v6958
        %v6983 = vpack.c.bf16 %v6965, %v6962
        %v6984 = vpack.c.bf16 %v6966, %v6963
        %v6985 = vpack.c.bf16 %v6967, %v6964
        %v6986 = vpack.c.bf16 %v6971, %v6968
        %v6987 = vpack.c.bf16 %v6972, %v6969
        %v6988 = vpack.c.bf16 %v6973, %v6970
        %v6989 = vpack.c.bf16 %v6977, %v6974
        %v6990 = vpack.c.bf16 %v6978, %v6975
        %v6991 = vpack.c.bf16 %v6979, %v6976
        %v6992 = vld [vmem:[%s9] sm:$0xff]
        %v6993 = vld [vmem:[%s9 + $0x8] sm:$0xff]
        %v6994 = vld [vmem:[%s9 + $0x10] sm:$0xff]
        %v6995 = vld [vmem:[%s9 + $0x18] sm:$0xff]
        %v6996 = vld [vmem:[%s9 + $0x20] sm:$0xff]
        %v6997 = vld [vmem:[%s9 + $0x28] sm:$0xff]
        %v6998 = vld [vmem:[%s9 + $0x30] sm:$0xff]
        %v6999 = vld [vmem:[%s9 + $0x38] sm:$0xff]
        %v7000 = vld [vmem:[%s9 + $0x40] sm:$0xff]
        %v7001 = vld [vmem:[%s9 + $0x48] sm:$0xff]
        %v7002 = vld [vmem:[%s9 + $0x50] sm:$0xff]
        %v7003 = vld [vmem:[%s9 + $0x58] sm:$0xff]
        %v7004 = vld [vmem:[%s9 + $0x60] sm:$0xff]
        %v7005 = vld [vmem:[%s9 + $0x68] sm:$0xff]
        %v7006 = vld [vmem:[%s9 + $0x70] sm:$0xff]
        %v7007 = vld [vmem:[%s9 + $0x78] sm:$0xff]
        %v7008 = vld [vmem:[%s9 + $0x80] sm:$0xff]
        %v7009 = vld [vmem:[%s9 + $0x88] sm:$0xff]
        %v7010 = vld [vmem:[%s9 + $0x90] sm:$0xff]
        %v7011 = vld [vmem:[%s9 + $0x98] sm:$0xff]
        %v7012 = vld [vmem:[%s9 + $0xa0] sm:$0xff]
        %v7013 = vld [vmem:[%s9 + $0xa8] sm:$0xff]
        %v7014 = vld [vmem:[%s9 + $0xb0] sm:$0xff]
        %v7015 = vld [vmem:[%s9 + $0xb8] sm:$0xff]
        %v7016 = vld [vmem:[%s9 + $0xc0] sm:$0xff]
        %v7017 = vld [vmem:[%s9 + $0xc8] sm:$0xff]
        %v7018 = vld [vmem:[%s9 + $0xd0] sm:$0xff]
        %v7019 = vld [vmem:[%s9 + $0xd8] sm:$0xff]
        %v7020 = vld [vmem:[%s9 + $0xe0] sm:$0xff]
        %v7021 = vld [vmem:[%s9 + $0xe8] sm:$0xff]
        %v7022 = vld [vmem:[%s9 + $0xf0] sm:$0xff]
        %v7023 = vld [vmem:[%s9 + $0xf8] sm:$0xff]
        %v7024 = vld [vmem:[%s9 + $0x100] sm:$0xff]
        %v7025 = vld [vmem:[%s9 + $0x108] sm:$0xff]
        %v7026 = vld [vmem:[%s9 + $0x110] sm:$0xff]
        %v7027 = vld [vmem:[%s9 + $0x118] sm:$0xff]
        %v7028 = vld [vmem:[%s9 + $0x120] sm:$0xff]
        %v7029 = vld [vmem:[%s9 + $0x128] sm:$0xff]
        %v7030 = vld [vmem:[%s9 + $0x130] sm:$0xff]
        %v7031 = vld [vmem:[%s9 + $0x138] sm:$0xff]
        %v7032 = vld [vmem:[%s9 + $0x140] sm:$0xff]
        %v7033 = vld [vmem:[%s9 + $0x148] sm:$0xff]
        %v7034 = vld [vmem:[%s9 + $0x150] sm:$0xff]
        %v7035 = vld [vmem:[%s9 + $0x158] sm:$0xff]
        %v7036 = vld [vmem:[%s9 + $0x160] sm:$0xff]
        %v7037 = vld [vmem:[%s9 + $0x168] sm:$0xff]
        %v7038 = vld [vmem:[%s9 + $0x170] sm:$0xff]
        %v7039 = vld [vmem:[%s9 + $0x178] sm:$0xff]
        %v7040 = vld [vmem:[%s4 + $0x7] sm:$0x3]
        %v7042 = vlaneseq
        %v7043 = vshrl.u32 %v7042, 7
        %v7044 = vsub.s32 0, %v7043
        %v7045 = vrot.slane %v7040, %v7044
        %v7046 = vlaneseq
        %v7047 = vshrl.u32 %v7046, 7
        %v7048 = vsub.s32 1, %v7047
        %v7049 = vrot.slane %v7040, %v7048
        %v7098 = vunpack.c.l.b16 %v6992
        %v7099 = vunpack.c.h.b16 %v6992
        %v7100 = vunpack.c.l.b16 %v6993
        %v7101 = vunpack.c.h.b16 %v6993
        %v7102 = vunpack.c.l.b16 %v6994
        %v7103 = vunpack.c.h.b16 %v6994
        %v7104 = vunpack.c.l.b16 %v6995
        %v7105 = vunpack.c.h.b16 %v6995
        %v7106 = vunpack.c.l.b16 %v6996
        %v7107 = vunpack.c.h.b16 %v6996
        %v7108 = vunpack.c.l.b16 %v6997
        %v7109 = vunpack.c.h.b16 %v6997
        %v7110 = vunpack.c.l.b16 %v6998
        %v7111 = vunpack.c.h.b16 %v6998
        %v7112 = vunpack.c.l.b16 %v6999
        %v7113 = vunpack.c.h.b16 %v6999
        %v7114 = vunpack.c.l.b16 %v7000
        %v7115 = vunpack.c.h.b16 %v7000
        %v7116 = vunpack.c.l.b16 %v7001
        %v7117 = vunpack.c.h.b16 %v7001
        %v7118 = vunpack.c.l.b16 %v7002
        %v7119 = vunpack.c.h.b16 %v7002
        %v7120 = vunpack.c.l.b16 %v7003
        %v7121 = vunpack.c.h.b16 %v7003
        %v7122 = vunpack.c.l.b16 %v7004
        %v7123 = vunpack.c.h.b16 %v7004
        %v7124 = vunpack.c.l.b16 %v7005
        %v7125 = vunpack.c.h.b16 %v7005
        %v7126 = vunpack.c.l.b16 %v7006
        %v7127 = vunpack.c.h.b16 %v7006
        %v7128 = vunpack.c.l.b16 %v7007
        %v7129 = vunpack.c.h.b16 %v7007
        %v7130 = vunpack.c.l.b16 %v7008
        %v7131 = vunpack.c.h.b16 %v7008
        %v7132 = vunpack.c.l.b16 %v7009
        %v7133 = vunpack.c.h.b16 %v7009
        %v7134 = vunpack.c.l.b16 %v7010
        %v7135 = vunpack.c.h.b16 %v7010
        %v7136 = vunpack.c.l.b16 %v7011
        %v7137 = vunpack.c.h.b16 %v7011
        %v7138 = vunpack.c.l.b16 %v7012
        %v7139 = vunpack.c.h.b16 %v7012
        %v7140 = vunpack.c.l.b16 %v7013
        %v7141 = vunpack.c.h.b16 %v7013
        %v7142 = vunpack.c.l.b16 %v7014
        %v7143 = vunpack.c.h.b16 %v7014
        %v7144 = vunpack.c.l.b16 %v7015
        %v7145 = vunpack.c.h.b16 %v7015
        %v7146 = vunpack.c.l.b16 %v7016
        %v7147 = vunpack.c.h.b16 %v7016
        %v7148 = vunpack.c.l.b16 %v7017
        %v7149 = vunpack.c.h.b16 %v7017
        %v7150 = vunpack.c.l.b16 %v7018
        %v7151 = vunpack.c.h.b16 %v7018
        %v7152 = vunpack.c.l.b16 %v7019
        %v7153 = vunpack.c.h.b16 %v7019
        %v7154 = vunpack.c.l.b16 %v7020
        %v7155 = vunpack.c.h.b16 %v7020
        %v7156 = vunpack.c.l.b16 %v7021
        %v7157 = vunpack.c.h.b16 %v7021
        %v7158 = vunpack.c.l.b16 %v7022
        %v7159 = vunpack.c.h.b16 %v7022
        %v7160 = vunpack.c.l.b16 %v7023
        %v7161 = vunpack.c.h.b16 %v7023
        %v7162 = vunpack.c.l.b16 %v7024
        %v7163 = vunpack.c.h.b16 %v7024
        %v7164 = vunpack.c.l.b16 %v7025
        %v7165 = vunpack.c.h.b16 %v7025
        %v7166 = vunpack.c.l.b16 %v7026
        %v7167 = vunpack.c.h.b16 %v7026
        %v7168 = vunpack.c.l.b16 %v7027
        %v7169 = vunpack.c.h.b16 %v7027
        %v7170 = vunpack.c.l.b16 %v7028
        %v7171 = vunpack.c.h.b16 %v7028
        %v7172 = vunpack.c.l.b16 %v7029
        %v7173 = vunpack.c.h.b16 %v7029
        %v7174 = vunpack.c.l.b16 %v7030
        %v7175 = vunpack.c.h.b16 %v7030
        %v7176 = vunpack.c.l.b16 %v7031
        %v7177 = vunpack.c.h.b16 %v7031
        %v7178 = vunpack.c.l.b16 %v7032
        %v7179 = vunpack.c.h.b16 %v7032
        %v7180 = vunpack.c.l.b16 %v7033
        %v7181 = vunpack.c.h.b16 %v7033
        %v7182 = vunpack.c.l.b16 %v7034
        %v7183 = vunpack.c.h.b16 %v7034
        %v7184 = vunpack.c.l.b16 %v7035
        %v7185 = vunpack.c.h.b16 %v7035
        %v7186 = vunpack.c.l.b16 %v7036
        %v7187 = vunpack.c.h.b16 %v7036
        %v7188 = vunpack.c.l.b16 %v7037
        %v7189 = vunpack.c.h.b16 %v7037
        %v7190 = vunpack.c.l.b16 %v7038
        %v7191 = vunpack.c.h.b16 %v7038
        %v7192 = vunpack.c.l.b16 %v7039
        %v7193 = vunpack.c.h.b16 %v7039
        %v7194 = vpack.c.b16 %v7100, %v7098
        %v7195 = vpack.c.b16 %v7101, %v7099
        %v7196 = vpack.c.b16 %v7104, %v7102
        %v7197 = vpack.c.b16 %v7105, %v7103
        %v7198 = vpack.c.b16 %v7108, %v7106
        %v7199 = vpack.c.b16 %v7109, %v7107
        %v7200 = vpack.c.b16 %v7112, %v7110
        %v7201 = vpack.c.b16 %v7113, %v7111
        %v7202 = vpack.c.b16 %v7116, %v7114
        %v7203 = vpack.c.b16 %v7117, %v7115
        %v7204 = vpack.c.b16 %v7120, %v7118
        %v7205 = vpack.c.b16 %v7121, %v7119
        %v7206 = vpack.c.b16 %v7124, %v7122
        %v7207 = vpack.c.b16 %v7125, %v7123
        %v7208 = vpack.c.b16 %v7128, %v7126
        %v7209 = vpack.c.b16 %v7129, %v7127
        %v7210 = vpack.c.b16 %v7132, %v7130
        %v7211 = vpack.c.b16 %v7133, %v7131
        %v7212 = vpack.c.b16 %v7136, %v7134
        %v7213 = vpack.c.b16 %v7137, %v7135
        %v7214 = vpack.c.b16 %v7140, %v7138
        %v7215 = vpack.c.b16 %v7141, %v7139
        %v7216 = vpack.c.b16 %v7144, %v7142
        %v7217 = vpack.c.b16 %v7145, %v7143
        %v7218 = vpack.c.b16 %v7148, %v7146
        %v7219 = vpack.c.b16 %v7149, %v7147
        %v7220 = vpack.c.b16 %v7152, %v7150
        %v7221 = vpack.c.b16 %v7153, %v7151
        %v7222 = vpack.c.b16 %v7156, %v7154
        %v7223 = vpack.c.b16 %v7157, %v7155
        %v7224 = vpack.c.b16 %v7160, %v7158
        %v7225 = vpack.c.b16 %v7161, %v7159
        %v7226 = vpack.c.b16 %v7164, %v7162
        %v7227 = vpack.c.b16 %v7165, %v7163
        %v7228 = vpack.c.b16 %v7168, %v7166
        %v7229 = vpack.c.b16 %v7169, %v7167
        %v7230 = vpack.c.b16 %v7172, %v7170
        %v7231 = vpack.c.b16 %v7173, %v7171
        %v7232 = vpack.c.b16 %v7176, %v7174
        %v7233 = vpack.c.b16 %v7177, %v7175
        %v7234 = vpack.c.b16 %v7180, %v7178
        %v7235 = vpack.c.b16 %v7181, %v7179
        %v7236 = vpack.c.b16 %v7184, %v7182
        %v7237 = vpack.c.b16 %v7185, %v7183
        %v7238 = vpack.c.b16 %v7188, %v7186
        %v7239 = vpack.c.b16 %v7189, %v7187
        %v7240 = vpack.c.b16 %v7192, %v7190
        %v7241 = vpack.c.b16 %v7193, %v7191
        %7290 = vrot.lane.b32.xlu0 %v7045, 64
        %v7291 = vpop.permute.xlu0 %7290
        %7292 = vrot.lane.b32.xlu0 %v7049, 64
        %v7293 = vpop.permute.xlu0 %7292
        %v7294 = vsel %vm4474, %v7291, %v7293
        %7297 = vmatprep.subr.bf16.mxu0 %v7195
        %7298 = vmatpush1.bf16.msra.mxu0 %v7194
        %7299 = vmatprep.subr.bf16.mxu0 %v7197
        %7300 = vmatpush1.bf16.msra.mxu0 %v7196
        %7301 = vmatprep.subr.bf16.mxu0 %v7199
        %7302 = vmatpush1.bf16.msra.mxu0 %v7198
        %7303 = vmatprep.subr.bf16.mxu0 %v7201
        %7304 = vmatpush1.bf16.msra.mxu0 %v7200
        %7305 = vmatprep.subr.bf16.mxu0 %v7203
        %7306 = vmatpush1.bf16.msra.mxu0 %v7202
        %7307 = vmatprep.subr.bf16.mxu0 %v7205
        %7308 = vmatpush1.bf16.msra.mxu0 %v7204
        %7309 = vmatprep.subr.bf16.mxu0 %v7207
        %7310 = vmatpush1.bf16.msra.mxu0 %v7206
        %7311 = vmatprep.subr.bf16.mxu0 %v7209
        %7312 = vmatpush1.bf16.msra.mxu0 %v7208
        %7313 = vmatprep.subr.bf16.mxu0 %v7211
        %7314 = vmatpush1.bf16.msra.mxu0 %v7210
        %7315 = vmatprep.subr.bf16.mxu0 %v7213
        %7316 = vmatpush1.bf16.msra.mxu0 %v7212
        %7317 = vmatprep.subr.bf16.mxu0 %v7215
        %7318 = vmatpush1.bf16.msra.mxu0 %v7214
        %7319 = vmatprep.subr.bf16.mxu0 %v7217
        %7320 = vmatpush1.bf16.msra.mxu0 %v7216
        %7321 = vmatprep.subr.bf16.mxu0 %v7219
        %7322 = vmatpush1.bf16.msra.mxu0 %v7218
        %7323 = vmatprep.subr.bf16.mxu0 %v7221
        %7324 = vmatpush1.bf16.msra.mxu0 %v7220
        %7325 = vmatprep.subr.bf16.mxu0 %v7223
        %7326 = vmatpush1.bf16.msra.mxu0 %v7222
        %7327 = vmatprep.subr.bf16.mxu0 %v7225
        %7328 = vmatpush1.bf16.msra.mxu0 %v7224
        %7329 = vmatprep.mubr.bf16.mxu0 %v6981
        %7330 = vmatmul.mubr.bf16.gmra.mrb[0].mxu0 %v6980
        %v7331 = vpop.f32.mrb[0].mxu0
        %v7332 = vadd.f32 %v7294, %v7331
        %v7333 = vpop.f32.mrb[0].mxu0
        %v7334 = vadd.f32 %v7293, %v7333
        %v7335 = vpop.f32.mrb[0].mxu0
        %v7336 = vadd.f32 %v7294, %v7335
        %v7337 = vpop.f32.mrb[0].mxu0
        %v7338 = vadd.f32 %v7293, %v7337
        %7339 = vmatprep.mubr.bf16.mxu0 %v6984
        %7340 = vmatmul.mubr.bf16.gmra.mrb[0].mxu0 %v6983
        %v7341 = vpop.f32.mrb[0].mxu0
        %v7342 = vadd.f32 %v7294, %v7341
        %v7343 = vpop.f32.mrb[0].mxu0
        %v7344 = vadd.f32 %v7293, %v7343
        %v7345 = vpop.f32.mrb[0].mxu0
        %v7346 = vadd.f32 %v7294, %v7345
        %v7347 = vpop.f32.mrb[0].mxu0
        %v7348 = vadd.f32 %v7293, %v7347
        %7349 = vmatprep.mubr.bf16.mxu0 %v6987
        %7350 = vmatmul.mubr.bf16.gmra.mrb[0].mxu0 %v6986
        %v7351 = vpop.f32.mrb[0].mxu0
        %v7352 = vadd.f32 %v7294, %v7351
        %v7353 = vpop.f32.mrb[0].mxu0
        %v7354 = vadd.f32 %v7293, %v7353
        %v7355 = vpop.f32.mrb[0].mxu0
        %v7356 = vadd.f32 %v7294, %v7355
        %v7357 = vpop.f32.mrb[0].mxu0
        %v7358 = vadd.f32 %v7293, %v7357
        %7359 = vmatprep.mubr.bf16.mxu0 %v6990
        %7360 = vmatmul.mubr.bf16.gmra.mrb[0].mxu0 %v6989
        %v7361 = vpop.f32.mrb[0].mxu0
        %v7362 = vadd.f32 %v7294, %v7361
        %v7363 = vpop.f32.mrb[0].mxu0
        %v7364 = vadd.f32 %v7293, %v7363
        %v7365 = vpop.f32.mrb[0].mxu0
        %v7366 = vadd.f32 %v7294, %v7365
        %v7367 = vpop.f32.mrb[0].mxu0
        %v7368 = vadd.f32 %v7293, %v7367
        %7369 = vdwg.mxu0
        %7370 = vmatprep.subr.bf16.mxu0 %v7227
        %7371 = vmatpush1.bf16.msra.mxu0 %v7226
        %7372 = vmatprep.subr.bf16.mxu0 %v7229
        %7373 = vmatpush1.bf16.msra.mxu0 %v7228
        %7374 = vmatprep.subr.bf16.mxu0 %v7231
        %7375 = vmatpush1.bf16.msra.mxu0 %v7230
        %7376 = vmatprep.subr.bf16.mxu0 %v7233
        %7377 = vmatpush1.bf16.msra.mxu0 %v7232
        %7378 = vmatprep.subr.bf16.mxu0 %v7235
        %7379 = vmatpush1.bf16.msra.mxu0 %v7234
        %7380 = vmatprep.subr.bf16.mxu0 %v7237
        %7381 = vmatpush1.bf16.msra.mxu0 %v7236
        %7382 = vmatprep.subr.bf16.mxu0 %v7239
        %7383 = vmatpush1.bf16.msra.mxu0 %v7238
        %7384 = vmatprep.subr.bf16.mxu0 %v7241
        %7385 = vmatpush1.bf16.msra.mxu0 %v7240
        %7386 = vmatprep.subr.bf16.mxu0 0
        %7387 = vmatpush1.bf16.msra.mxu0 0
        %7388 = vmatprep.subr.bf16.mxu0 0
        %7389 = vmatpush1.bf16.msra.mxu0 0
        %7390 = vmatprep.subr.bf16.mxu0 0
        %7391 = vmatpush1.bf16.msra.mxu0 0
        %7392 = vmatprep.subr.bf16.mxu0 0
        %7393 = vmatpush1.bf16.msra.mxu0 0
        %7394 = vmatprep.subr.bf16.mxu0 0
        %7395 = vmatpush1.bf16.msra.mxu0 0
        %7396 = vmatprep.subr.bf16.mxu0 0
        %7397 = vmatpush1.bf16.msra.mxu0 0
        %7398 = vmatprep.subr.bf16.mxu0 0
        %7399 = vmatpush1.bf16.msra.mxu0 0
        %7400 = vmatprep.subr.bf16.mxu0 0
        %7401 = vmatpush1.bf16.msra.mxu0 0
        %7402 = vmatprep.mubr.bf16.mxu0 0
        %7403 = vmatmul.mubr.bf16.gmra.mrb[0].mxu0 %v6982
        %v7404 = vpop.f32.mrb[0].mxu0
        %v7405 = vadd.f32 %v7332, %v7404
        %v7406 = vpop.f32.mrb[0].mxu0
        %v7407 = vadd.f32 %v7334, %v7406
        %v7408 = vpop.f32.mrb[0].mxu0
        %v7409 = vadd.f32 %v7336, %v7408
        %v7410 = vpop.f32.mrb[0].mxu0
        %v7411 = vadd.f32 %v7338, %v7410
        %7412 = vmatprep.mubr.bf16.mxu0 0
        %7413 = vmatmul.mubr.bf16.gmra.mrb[0].mxu0 %v6985
        %v7414 = vpop.f32.mrb[0].mxu0
        %v7415 = vadd.f32 %v7342, %v7414
        %v7416 = vpop.f32.mrb[0].mxu0
        %v7417 = vadd.f32 %v7344, %v7416
        %v7418 = vpop.f32.mrb[0].mxu0
        %v7419 = vadd.f32 %v7346, %v7418
        %v7420 = vpop.f32.mrb[0].mxu0
        %v7421 = vadd.f32 %v7348, %v7420
        %7422 = vmatprep.mubr.bf16.mxu0 0
        %7423 = vmatmul.mubr.bf16.gmra.mrb[0].mxu0 %v6988
        %v7424 = vpop.f32.mrb[0].mxu0
        %v7425 = vadd.f32 %v7352, %v7424
        %v7426 = vpop.f32.mrb[0].mxu0
        %v7427 = vadd.f32 %v7354, %v7426
        %v7428 = vpop.f32.mrb[0].mxu0
        %v7429 = vadd.f32 %v7356, %v7428
        %v7430 = vpop.f32.mrb[0].mxu0
        %v7431 = vadd.f32 %v7358, %v7430
        %7432 = vmatprep.mubr.bf16.mxu0 0
        %7433 = vmatmul.mubr.bf16.gmra.mrb[0].mxu0 %v6991
        %v7434 = vpop.f32.mrb[0].mxu0
        %v7435 = vadd.f32 %v7362, %v7434
        %v7436 = vpop.f32.mrb[0].mxu0
        %v7437 = vadd.f32 %v7364, %v7436
        %v7438 = vpop.f32.mrb[0].mxu0
        %v7439 = vadd.f32 %v7366, %v7438
        %v7440 = vpop.f32.mrb[0].mxu0
        %v7441 = vadd.f32 %v7368, %v7440
        %7442 = vdwg.mxu0
        %7443 = vst [vmem:[#allocation4] sm:$0xff] %v7405
        %7444 = vst.msk [vmem:[#allocation4 + $0x8] sm:$0xff] %vm4474, %v7407
        %7445 = vst [vmem:[#allocation4 + $0x10] sm:$0xff] %v7409
        %7446 = vst.msk [vmem:[#allocation4 + $0x18] sm:$0xff] %vm4474, %v7411
        %7447 = vst [vmem:[#allocation4 + $0x20] sm:$0xff] %v7415
        %7448 = vst.msk [vmem:[#allocation4 + $0x28] sm:$0xff] %vm4474, %v7417
        %7449 = vst [vmem:[#allocation4 + $0x30] sm:$0xff] %v7419
        %7450 = vst.msk [vmem:[#allocation4 + $0x38] sm:$0xff] %vm4474, %v7421
        %7451 = vst [vmem:[#allocation4 + $0x40] sm:$0xff] %v7425
        %7452 = vst.msk [vmem:[#allocation4 + $0x48] sm:$0xff] %vm4474, %v7427
        %7453 = vst [vmem:[#allocation4 + $0x50] sm:$0xff] %v7429
        %7454 = vst.msk [vmem:[#allocation4 + $0x58] sm:$0xff] %vm4474, %v7431
        %7455 = vst [vmem:[#allocation4 + $0x60] sm:$0xff] %v7435
        %7456 = vst.msk [vmem:[#allocation4 + $0x68] sm:$0xff] %vm4474, %v7437
        %7457 = vst [vmem:[#allocation4 + $0x70] sm:$0xff] %v7439
        %7458 = vst.msk [vmem:[#allocation4 + $0x78] sm:$0xff] %vm4474, %v7441
        %7467 = vrot.lane.b32.xlu0 %v6665, 64
        %v7468 = vpop.permute.xlu0 %7467
        %7469 = vrot.lane.b32.xlu0 %v6668, 64
        %v7470 = vpop.permute.xlu0 %7469
        %7471 = vrot.lane.b32.xlu0 %v6673, 64
        %v7472 = vpop.permute.xlu0 %7471
        %7473 = vrot.lane.b32.xlu0 %v6676, 64
        %v7474 = vpop.permute.xlu0 %7473
        %7475 = vrot.lane.b32.xlu0 %v6681, 64
        %v7476 = vpop.permute.xlu0 %7475
        %7477 = vrot.lane.b32.xlu0 %v6684, 64
        %v7478 = vpop.permute.xlu0 %7477
        %7479 = vrot.lane.b32.xlu0 %v6689, 64
        %v7480 = vpop.permute.xlu0 %7479
        %7481 = vrot.lane.b32.xlu0 %v6692, 64
        %v7482 = vpop.permute.xlu0 %7481
        %vm7491 = vcmask 1048064
        %7492 = vst.msk [vmem:[#allocation4 + $0x8] sm:$0xff] %vm7491, %v7468
        %7493 = vst.msk [vmem:[#allocation4 + $0x18] sm:$0xff] %vm7491, %v7470
        %7494 = vst.msk [vmem:[#allocation4 + $0x28] sm:$0xff] %vm7491, %v7472
        %7495 = vst.msk [vmem:[#allocation4 + $0x38] sm:$0xff] %vm7491, %v7474
        %7496 = vst.msk [vmem:[#allocation4 + $0x48] sm:$0xff] %vm7491, %v7476
        %7497 = vst.msk [vmem:[#allocation4 + $0x58] sm:$0xff] %vm7491, %v7478
        %7498 = vst.msk [vmem:[#allocation4 + $0x68] sm:$0xff] %vm7491, %v7480
        %7499 = vst.msk [vmem:[#allocation4 + $0x78] sm:$0xff] %vm7491, %v7482
        %v7500 = vld [vmem:[#allocation4] sm:$0xff]
        %v7501 = vld [vmem:[#allocation4 + $0x8] sm:$0xff]
        %v7502 = vld [vmem:[#allocation4 + $0x10] sm:$0xff]
        %v7503 = vld [vmem:[#allocation4 + $0x18] sm:$0xff]
        %v7504 = vld [vmem:[#allocation4 + $0x20] sm:$0xff]
        %v7505 = vld [vmem:[#allocation4 + $0x28] sm:$0xff]
        %v7506 = vld [vmem:[#allocation4 + $0x30] sm:$0xff]
        %v7507 = vld [vmem:[#allocation4 + $0x38] sm:$0xff]
        %v7508 = vld [vmem:[#allocation4 + $0x40] sm:$0xff]
        %v7509 = vld [vmem:[#allocation4 + $0x48] sm:$0xff]
        %v7510 = vld [vmem:[#allocation4 + $0x50] sm:$0xff]
        %v7511 = vld [vmem:[#allocation4 + $0x58] sm:$0xff]
        %v7512 = vld [vmem:[#allocation4 + $0x60] sm:$0xff]
        %v7513 = vld [vmem:[#allocation4 + $0x68] sm:$0xff]
        %v7514 = vld [vmem:[#allocation4 + $0x70] sm:$0xff]
        %v7515 = vld [vmem:[#allocation4 + $0x78] sm:$0xff]
        %v7516 = vpack.c.bf16 %v7502, %v7500
        %v7517 = vpack.c.bf16 %v7503, %v7501
        %v7518 = vpack.c.bf16 %v7506, %v7504
        %v7519 = vpack.c.bf16 %v7507, %v7505
        %v7520 = vpack.c.bf16 %v7510, %v7508
        %v7521 = vpack.c.bf16 %v7511, %v7509
        %v7522 = vpack.c.bf16 %v7514, %v7512
        %v7523 = vpack.c.bf16 %v7515, %v7513
        %v7524 = vld [vmem:[%s10] sm:$0xff]
        %v7525 = vld [vmem:[%s10 + $0x8] sm:$0xff]
        %v7526 = vld [vmem:[%s10 + $0x10] sm:$0xff]
        %v7527 = vld [vmem:[%s10 + $0x18] sm:$0xff]
        %v7528 = vld [vmem:[%s10 + $0x20] sm:$0xff]
        %v7529 = vld [vmem:[%s10 + $0x28] sm:$0xff]
        %v7530 = vld [vmem:[%s10 + $0x30] sm:$0xff]
        %v7531 = vld [vmem:[%s10 + $0x38] sm:$0xff]
        %v7532 = vld [vmem:[%s10 + $0x40] sm:$0xff]
        %v7533 = vld [vmem:[%s10 + $0x48] sm:$0xff]
        %v7534 = vld [vmem:[%s10 + $0x50] sm:$0xff]
        %v7535 = vld [vmem:[%s10 + $0x58] sm:$0xff]
        %v7536 = vld [vmem:[%s10 + $0x60] sm:$0xff]
        %v7537 = vld [vmem:[%s10 + $0x68] sm:$0xff]
        %v7538 = vld [vmem:[%s10 + $0x70] sm:$0xff]
        %v7539 = vld [vmem:[%s10 + $0x78] sm:$0xff]
        %v7540 = vld [vmem:[%s10 + $0x80] sm:$0xff]
        %v7541 = vld [vmem:[%s10 + $0x88] sm:$0xff]
        %v7542 = vld [vmem:[%s10 + $0x90] sm:$0xff]
        %v7543 = vld [vmem:[%s10 + $0x98] sm:$0xff]
        %v7544 = vld [vmem:[%s10 + $0xa0] sm:$0xff]
        %v7545 = vld [vmem:[%s10 + $0xa8] sm:$0xff]
        %v7546 = vld [vmem:[%s10 + $0xb0] sm:$0xff]
        %v7547 = vld [vmem:[%s10 + $0xb8] sm:$0xff]
        %v7548 = vld [vmem:[%s10 + $0xc0] sm:$0xff]
        %v7549 = vld [vmem:[%s10 + $0xc8] sm:$0xff]
        %v7550 = vld [vmem:[%s10 + $0xd0] sm:$0xff]
        %v7551 = vld [vmem:[%s10 + $0xd8] sm:$0xff]
        %v7552 = vld [vmem:[%s10 + $0xe0] sm:$0xff]
        %v7553 = vld [vmem:[%s10 + $0xe8] sm:$0xff]
        %v7554 = vld [vmem:[%s10 + $0xf0] sm:$0xff]
        %v7555 = vld [vmem:[%s10 + $0xf8] sm:$0xff]
        %v7556 = vld [vmem:[%s4 + $0x9] sm:$0x3]
        %v7558 = vlaneseq
        %v7559 = vshrl.u32 %v7558, 7
        %v7560 = vsub.s32 0, %v7559
        %v7561 = vrot.slane %v7556, %v7560
        %v7562 = vlaneseq
        %v7563 = vshrl.u32 %v7562, 7
        %v7564 = vsub.s32 1, %v7563
        %v7565 = vrot.slane %v7556, %v7564
        %v7600 = vunpack.c.l.b16 %v7524
        %v7601 = vunpack.c.h.b16 %v7524
        %v7602 = vunpack.c.l.b16 %v7525
        %v7603 = vunpack.c.h.b16 %v7525
        %v7604 = vunpack.c.l.b16 %v7526
        %v7605 = vunpack.c.h.b16 %v7526
        %v7606 = vunpack.c.l.b16 %v7527
        %v7607 = vunpack.c.h.b16 %v7527
        %v7608 = vunpack.c.l.b16 %v7528
        %v7609 = vunpack.c.h.b16 %v7528
        %v7610 = vunpack.c.l.b16 %v7529
        %v7611 = vunpack.c.h.b16 %v7529
        %v7612 = vunpack.c.l.b16 %v7530
        %v7613 = vunpack.c.h.b16 %v7530
        %v7614 = vunpack.c.l.b16 %v7531
        %v7615 = vunpack.c.h.b16 %v7531
        %v7616 = vunpack.c.l.b16 %v7532
        %v7617 = vunpack.c.h.b16 %v7532
        %v7618 = vunpack.c.l.b16 %v7533
        %v7619 = vunpack.c.h.b16 %v7533
        %v7620 = vunpack.c.l.b16 %v7534
        %v7621 = vunpack.c.h.b16 %v7534
        %v7622 = vunpack.c.l.b16 %v7535
        %v7623 = vunpack.c.h.b16 %v7535
        %v7624 = vunpack.c.l.b16 %v7536
        %v7625 = vunpack.c.h.b16 %v7536
        %v7626 = vunpack.c.l.b16 %v7537
        %v7627 = vunpack.c.h.b16 %v7537
        %v7628 = vunpack.c.l.b16 %v7538
        %v7629 = vunpack.c.h.b16 %v7538
        %v7630 = vunpack.c.l.b16 %v7539
        %v7631 = vunpack.c.h.b16 %v7539
        %v7632 = vunpack.c.l.b16 %v7540
        %v7633 = vunpack.c.h.b16 %v7540
        %v7634 = vunpack.c.l.b16 %v7541
        %v7635 = vunpack.c.h.b16 %v7541
        %v7636 = vunpack.c.l.b16 %v7542
        %v7637 = vunpack.c.h.b16 %v7542
        %v7638 = vunpack.c.l.b16 %v7543
        %v7639 = vunpack.c.h.b16 %v7543
        %v7640 = vunpack.c.l.b16 %v7544
        %v7641 = vunpack.c.h.b16 %v7544
        %v7642 = vunpack.c.l.b16 %v7545
        %v7643 = vunpack.c.h.b16 %v7545
        %v7644 = vunpack.c.l.b16 %v7546
        %v7645 = vunpack.c.h.b16 %v7546
        %v7646 = vunpack.c.l.b16 %v7547
        %v7647 = vunpack.c.h.b16 %v7547
        %v7648 = vunpack.c.l.b16 %v7548
        %v7649 = vunpack.c.h.b16 %v7548
        %v7650 = vunpack.c.l.b16 %v7549
        %v7651 = vunpack.c.h.b16 %v7549
        %v7652 = vunpack.c.l.b16 %v7550
        %v7653 = vunpack.c.h.b16 %v7550
        %v7654 = vunpack.c.l.b16 %v7551
        %v7655 = vunpack.c.h.b16 %v7551
        %v7656 = vunpack.c.l.b16 %v7552
        %v7657 = vunpack.c.h.b16 %v7552
        %v7658 = vunpack.c.l.b16 %v7553
        %v7659 = vunpack.c.h.b16 %v7553
        %v7660 = vunpack.c.l.b16 %v7554
        %v7661 = vunpack.c.h.b16 %v7554
        %v7662 = vunpack.c.l.b16 %v7555
        %v7663 = vunpack.c.h.b16 %v7555
        %v7664 = vpack.c.b16 %v7602, %v7600
        %v7665 = vpack.c.b16 %v7603, %v7601
        %v7666 = vpack.c.b16 %v7606, %v7604
        %v7667 = vpack.c.b16 %v7607, %v7605
        %v7668 = vpack.c.b16 %v7610, %v7608
        %v7669 = vpack.c.b16 %v7611, %v7609
        %v7670 = vpack.c.b16 %v7614, %v7612
        %v7671 = vpack.c.b16 %v7615, %v7613
        %v7672 = vpack.c.b16 %v7618, %v7616
        %v7673 = vpack.c.b16 %v7619, %v7617
        %v7674 = vpack.c.b16 %v7622, %v7620
        %v7675 = vpack.c.b16 %v7623, %v7621
        %v7676 = vpack.c.b16 %v7626, %v7624
        %v7677 = vpack.c.b16 %v7627, %v7625
        %v7678 = vpack.c.b16 %v7630, %v7628
        %v7679 = vpack.c.b16 %v7631, %v7629
        %v7680 = vpack.c.b16 %v7634, %v7632
        %v7681 = vpack.c.b16 %v7635, %v7633
        %v7682 = vpack.c.b16 %v7638, %v7636
        %v7683 = vpack.c.b16 %v7639, %v7637
        %v7684 = vpack.c.b16 %v7642, %v7640
        %v7685 = vpack.c.b16 %v7643, %v7641
        %v7686 = vpack.c.b16 %v7646, %v7644
        %v7687 = vpack.c.b16 %v7647, %v7645
        %v7688 = vpack.c.b16 %v7650, %v7648
        %v7689 = vpack.c.b16 %v7651, %v7649
        %v7690 = vpack.c.b16 %v7654, %v7652
        %v7691 = vpack.c.b16 %v7655, %v7653
        %v7692 = vpack.c.b16 %v7658, %v7656
        %v7693 = vpack.c.b16 %v7659, %v7657
        %v7694 = vpack.c.b16 %v7662, %v7660
        %v7695 = vpack.c.b16 %v7663, %v7661
        %7728 = vmatprep.subr.bf16.mxu0 %v7665
        %7729 = vmatpush1.bf16.msra.mxu0 %v7664
        %7730 = vmatprep.subr.bf16.mxu0 %v7667
        %7731 = vmatpush1.bf16.msra.mxu0 %v7666
        %7732 = vmatprep.subr.bf16.mxu0 %v7669
        %7733 = vmatpush1.bf16.msra.mxu0 %v7668
        %7734 = vmatprep.subr.bf16.mxu0 %v7671
        %7735 = vmatpush1.bf16.msra.mxu0 %v7670
        %7736 = vmatprep.subr.bf16.mxu0 %v7673
        %7737 = vmatpush1.bf16.msra.mxu0 %v7672
        %7738 = vmatprep.subr.bf16.mxu0 %v7675
        %7739 = vmatpush1.bf16.msra.mxu0 %v7674
        %7740 = vmatprep.subr.bf16.mxu0 %v7677
        %7741 = vmatpush1.bf16.msra.mxu0 %v7676
        %7742 = vmatprep.subr.bf16.mxu0 %v7679
        %7743 = vmatpush1.bf16.msra.mxu0 %v7678
        %7744 = vmatprep.subr.bf16.mxu0 %v7681
        %7745 = vmatpush1.bf16.msra.mxu0 %v7680
        %7746 = vmatprep.subr.bf16.mxu0 %v7683
        %7747 = vmatpush1.bf16.msra.mxu0 %v7682
        %7748 = vmatprep.subr.bf16.mxu0 %v7685
        %7749 = vmatpush1.bf16.msra.mxu0 %v7684
        %7750 = vmatprep.subr.bf16.mxu0 %v7687
        %7751 = vmatpush1.bf16.msra.mxu0 %v7686
        %7752 = vmatprep.subr.bf16.mxu0 %v7689
        %7753 = vmatpush1.bf16.msra.mxu0 %v7688
        %7754 = vmatprep.subr.bf16.mxu0 %v7691
        %7755 = vmatpush1.bf16.msra.mxu0 %v7690
        %7756 = vmatprep.subr.bf16.mxu0 %v7693
        %7757 = vmatpush1.bf16.msra.mxu0 %v7692
        %7758 = vmatprep.subr.bf16.mxu0 %v7695
        %7759 = vmatpush1.bf16.msra.mxu0 %v7694
        %7760 = vmatprep.mubr.bf16.mxu0 %v7517
        %7761 = vmatmul.mubr.bf16.gmra.mrb[0].mxu0 %v7516
        %v7762 = vpop.f32.mrb[0].mxu0
        %v7763 = vadd.f32 %v7561, %v7762
        %v7764 = vpop.f32.mrb[0].mxu0
        %v7765 = vadd.f32 %v7565, %v7764
        %v7766 = vpop.f32.mrb[0].mxu0
        %v7767 = vadd.f32 %v7561, %v7766
        %v7768 = vpop.f32.mrb[0].mxu0
        %v7769 = vadd.f32 %v7565, %v7768
        %7770 = vmatprep.mubr.bf16.mxu0 %v7519
        %7771 = vmatmul.mubr.bf16.gmra.mrb[0].mxu0 %v7518
        %v7772 = vpop.f32.mrb[0].mxu0
        %v7773 = vadd.f32 %v7561, %v7772
        %v7774 = vpop.f32.mrb[0].mxu0
        %v7775 = vadd.f32 %v7565, %v7774
        %v7776 = vpop.f32.mrb[0].mxu0
        %v7777 = vadd.f32 %v7561, %v7776
        %v7778 = vpop.f32.mrb[0].mxu0
        %v7779 = vadd.f32 %v7565, %v7778
        %7780 = vmatprep.mubr.bf16.mxu0 %v7521
        %7781 = vmatmul.mubr.bf16.gmra.mrb[0].mxu0 %v7520
        %v7782 = vpop.f32.mrb[0].mxu0
        %v7783 = vadd.f32 %v7561, %v7782
        %v7784 = vpop.f32.mrb[0].mxu0
        %v7785 = vadd.f32 %v7565, %v7784
        %v7786 = vpop.f32.mrb[0].mxu0
        %v7787 = vadd.f32 %v7561, %v7786
        %v7788 = vpop.f32.mrb[0].mxu0
        %v7789 = vadd.f32 %v7565, %v7788
        %7790 = vmatprep.mubr.bf16.mxu0 %v7523
        %7791 = vmatmul.mubr.bf16.gmra.mrb[0].mxu0 %v7522
        %v7792 = vpop.f32.mrb[0].mxu0
        %v7793 = vadd.f32 %v7561, %v7792
        %v7794 = vpop.f32.mrb[0].mxu0
        %v7795 = vadd.f32 %v7565, %v7794
        %v7796 = vpop.f32.mrb[0].mxu0
        %v7797 = vadd.f32 %v7561, %v7796
        %v7798 = vpop.f32.mrb[0].mxu0
        %v7799 = vadd.f32 %v7565, %v7798
        %7800 = vdwg.mxu0
        %v7801 = vmax.f32 %v7763, 0.0
        %v7802 = vmax.f32 %v7765, 0.0
        %v7803 = vmax.f32 %v7767, 0.0
        %v7804 = vmax.f32 %v7769, 0.0
        %v7805 = vmax.f32 %v7773, 0.0
        %v7806 = vmax.f32 %v7775, 0.0
        %v7807 = vmax.f32 %v7777, 0.0
        %v7808 = vmax.f32 %v7779, 0.0
        %v7809 = vmax.f32 %v7783, 0.0
        %v7810 = vmax.f32 %v7785, 0.0
        %v7811 = vmax.f32 %v7787, 0.0
        %v7812 = vmax.f32 %v7789, 0.0
        %v7813 = vmax.f32 %v7793, 0.0
        %v7814 = vmax.f32 %v7795, 0.0
        %v7815 = vmax.f32 %v7797, 0.0
        %v7816 = vmax.f32 %v7799, 0.0
        %v7817 = vpack.c.bf16 %v7803, %v7801
        %v7818 = vpack.c.bf16 %v7804, %v7802
        %v7819 = vpack.c.bf16 %v7807, %v7805
        %v7820 = vpack.c.bf16 %v7808, %v7806
        %v7821 = vpack.c.bf16 %v7811, %v7809
        %v7822 = vpack.c.bf16 %v7812, %v7810
        %v7823 = vpack.c.bf16 %v7815, %v7813
        %v7824 = vpack.c.bf16 %v7816, %v7814
        %v7825 = vld [vmem:[%s11] sm:$0xf]
        %v7826 = vld [vmem:[%s11 + $0x4] sm:$0xf]
        %v7827 = vld [vmem:[%s11 + $0x8] sm:$0xf]
        %v7828 = vld [vmem:[%s11 + $0xc] sm:$0xf]
        %v7829 = vld [vmem:[%s11 + $0x10] sm:$0xf]
        %v7830 = vld [vmem:[%s11 + $0x14] sm:$0xf]
        %v7831 = vld [vmem:[%s11 + $0x18] sm:$0xf]
        %v7832 = vld [vmem:[%s11 + $0x1c] sm:$0xf]
        %v7833 = vld [vmem:[%s11 + $0x20] sm:$0xf]
        %v7834 = vld [vmem:[%s11 + $0x24] sm:$0xf]
        %v7835 = vld [vmem:[%s11 + $0x28] sm:$0xf]
        %v7836 = vld [vmem:[%s11 + $0x2c] sm:$0xf]
        %v7837 = vld [vmem:[%s11 + $0x30] sm:$0xf]
        %v7838 = vld [vmem:[%s11 + $0x34] sm:$0xf]
        %v7839 = vld [vmem:[%s11 + $0x38] sm:$0xf]
        %v7840 = vld [vmem:[%s11 + $0x3c] sm:$0xf]
        %v7841 = vld [vmem:[%s11 + $0x40] sm:$0xf]
        %v7842 = vld [vmem:[%s11 + $0x44] sm:$0xf]
        %v7843 = vld [vmem:[%s11 + $0x48] sm:$0xf]
        %v7844 = vld [vmem:[%s11 + $0x4c] sm:$0xf]
        %v7845 = vld [vmem:[%s11 + $0x50] sm:$0xf]
        %v7846 = vld [vmem:[%s11 + $0x54] sm:$0xf]
        %v7847 = vld [vmem:[%s11 + $0x58] sm:$0xf]
        %v7848 = vld [vmem:[%s11 + $0x5c] sm:$0xf]
        %v7849 = vld [vmem:[%s11 + $0x60] sm:$0xf]
        %v7850 = vld [vmem:[%s11 + $0x64] sm:$0xf]
        %v7851 = vld [vmem:[%s11 + $0x68] sm:$0xf]
        %v7852 = vld [vmem:[%s11 + $0x6c] sm:$0xf]
        %v7853 = vld [vmem:[%s11 + $0x70] sm:$0xf]
        %v7854 = vld [vmem:[%s11 + $0x74] sm:$0xf]
        %v7855 = vld [vmem:[%s11 + $0x78] sm:$0xf]
        %v7856 = vld [vmem:[%s11 + $0x7c] sm:$0xf]
        %v7857 = vld [vmem:[%s4 + $0xb] sm:$0x1]
        %v7859 = vlaneseq
        %v7860 = vshrl.u32 %v7859, 7
        %v7861 = vsub.s32 0, %v7860
        %v7862 = vrot.slane %v7857, %v7861
        %v7896 = vunpack.c.l.b16 %v7825
        %v7897 = vunpack.c.l.b16 %v7826
        %v7898 = vunpack.c.l.b16 %v7827
        %v7899 = vunpack.c.l.b16 %v7828
        %v7900 = vunpack.c.l.b16 %v7829
        %v7901 = vunpack.c.l.b16 %v7830
        %v7902 = vunpack.c.l.b16 %v7831
        %v7903 = vunpack.c.l.b16 %v7832
        %v7904 = vunpack.c.l.b16 %v7833
        %v7905 = vunpack.c.l.b16 %v7834
        %v7906 = vunpack.c.l.b16 %v7835
        %v7907 = vunpack.c.l.b16 %v7836
        %v7908 = vunpack.c.l.b16 %v7837
        %v7909 = vunpack.c.l.b16 %v7838
        %v7910 = vunpack.c.l.b16 %v7839
        %v7911 = vunpack.c.l.b16 %v7840
        %v7912 = vunpack.c.l.b16 %v7841
        %v7913 = vunpack.c.l.b16 %v7842
        %v7914 = vunpack.c.l.b16 %v7843
        %v7915 = vunpack.c.l.b16 %v7844
        %v7916 = vunpack.c.l.b16 %v7845
        %v7917 = vunpack.c.l.b16 %v7846
        %v7918 = vunpack.c.l.b16 %v7847
        %v7919 = vunpack.c.l.b16 %v7848
        %v7920 = vunpack.c.l.b16 %v7849
        %v7921 = vunpack.c.l.b16 %v7850
        %v7922 = vunpack.c.l.b16 %v7851
        %v7923 = vunpack.c.l.b16 %v7852
        %v7924 = vunpack.c.l.b16 %v7853
        %v7925 = vunpack.c.l.b16 %v7854
        %v7926 = vunpack.c.l.b16 %v7855
        %v7927 = vunpack.c.l.b16 %v7856
        %v7928 = vpack.c.b16 %v7897, %v7896
        %v7929 = vpack.c.b16 %v7899, %v7898
        %v7930 = vpack.c.b16 %v7901, %v7900
        %v7931 = vpack.c.b16 %v7903, %v7902
        %v7932 = vpack.c.b16 %v7905, %v7904
        %v7933 = vpack.c.b16 %v7907, %v7906
        %v7934 = vpack.c.b16 %v7909, %v7908
        %v7935 = vpack.c.b16 %v7911, %v7910
        %v7936 = vpack.c.b16 %v7913, %v7912
        %v7937 = vpack.c.b16 %v7915, %v7914
        %v7938 = vpack.c.b16 %v7917, %v7916
        %v7939 = vpack.c.b16 %v7919, %v7918
        %v7940 = vpack.c.b16 %v7921, %v7920
        %v7941 = vpack.c.b16 %v7923, %v7922
        %v7942 = vpack.c.b16 %v7925, %v7924
        %v7943 = vpack.c.b16 %v7927, %v7926
        %7960 = vmatprep.subr.bf16.mxu0 0
        %7961 = vmatpush1.bf16.msra.mxu0 %v7928
        %7962 = vmatprep.subr.bf16.mxu0 0
        %7963 = vmatpush1.bf16.msra.mxu0 %v7929
        %7964 = vmatprep.subr.bf16.mxu0 0
        %7965 = vmatpush1.bf16.msra.mxu0 %v7930
        %7966 = vmatprep.subr.bf16.mxu0 0
        %7967 = vmatpush1.bf16.msra.mxu0 %v7931
        %7968 = vmatprep.subr.bf16.mxu0 0
        %7969 = vmatpush1.bf16.msra.mxu0 %v7932
        %7970 = vmatprep.subr.bf16.mxu0 0
        %7971 = vmatpush1.bf16.msra.mxu0 %v7933
        %7972 = vmatprep.subr.bf16.mxu0 0
        %7973 = vmatpush1.bf16.msra.mxu0 %v7934
        %7974 = vmatprep.subr.bf16.mxu0 0
        %7975 = vmatpush1.bf16.msra.mxu0 %v7935
        %7976 = vmatprep.subr.bf16.mxu0 0
        %7977 = vmatpush1.bf16.msra.mxu0 %v7936
        %7978 = vmatprep.subr.bf16.mxu0 0
        %7979 = vmatpush1.bf16.msra.mxu0 %v7937
        %7980 = vmatprep.subr.bf16.mxu0 0
        %7981 = vmatpush1.bf16.msra.mxu0 %v7938
        %7982 = vmatprep.subr.bf16.mxu0 0
        %7983 = vmatpush1.bf16.msra.mxu0 %v7939
        %7984 = vmatprep.subr.bf16.mxu0 0
        %7985 = vmatpush1.bf16.msra.mxu0 %v7940
        %7986 = vmatprep.subr.bf16.mxu0 0
        %7987 = vmatpush1.bf16.msra.mxu0 %v7941
        %7988 = vmatprep.subr.bf16.mxu0 0
        %7989 = vmatpush1.bf16.msra.mxu0 %v7942
        %7990 = vmatprep.subr.bf16.mxu0 0
        %7991 = vmatpush1.bf16.msra.mxu0 %v7943
        %7992 = vmatprep.mubr.bf16.mxu0 %v7818
        %7993 = vmatmul.mubr.bf16.gmra.mrb[0].mxu0 %v7817
        %v7994 = vpop.f32.mrb[0].mxu0
        %v7995 = vadd.f32 %v7862, %v7994
        %v7996 = vpop.f32.mrb[0].mxu0
        %v7997 = vpop.f32.mrb[0].mxu0
        %v7998 = vadd.f32 %v7862, %v7997
        %v7999 = vpop.f32.mrb[0].mxu0
        %8000 = vmatprep.mubr.bf16.mxu0 %v7820
        %8001 = vmatmul.mubr.bf16.gmra.mrb[0].mxu0 %v7819
        %v8002 = vpop.f32.mrb[0].mxu0
        %v8003 = vadd.f32 %v7862, %v8002
        %v8004 = vpop.f32.mrb[0].mxu0
        %v8005 = vpop.f32.mrb[0].mxu0
        %v8006 = vadd.f32 %v7862, %v8005
        %v8007 = vpop.f32.mrb[0].mxu0
        %8008 = vmatprep.mubr.bf16.mxu0 %v7822
        %8009 = vmatmul.mubr.bf16.gmra.mrb[0].mxu0 %v7821
        %v8010 = vpop.f32.mrb[0].mxu0
        %v8011 = vadd.f32 %v7862, %v8010
        %v8012 = vpop.f32.mrb[0].mxu0
        %v8013 = vpop.f32.mrb[0].mxu0
        %v8014 = vadd.f32 %v7862, %v8013
        %v8015 = vpop.f32.mrb[0].mxu0
        %8016 = vmatprep.mubr.bf16.mxu0 %v7824
        %8017 = vmatmul.mubr.bf16.gmra.mrb[0].mxu0 %v7823
        %v8018 = vpop.f32.mrb[0].mxu0
        %v8019 = vadd.f32 %v7862, %v8018
        %v8020 = vpop.f32.mrb[0].mxu0
        %v8021 = vpop.f32.mrb[0].mxu0
        %v8022 = vadd.f32 %v7862, %v8021
        %v8023 = vpop.f32.mrb[0].mxu0
        %8024 = vdwg.mxu0
        %v8025 = vmax.f32 %v7995, 0.0
        %v8026 = vmax.f32 %v7998, 0.0
        %v8027 = vmax.f32 %v8003, 0.0
        %v8028 = vmax.f32 %v8006, 0.0
        %v8029 = vmax.f32 %v8011, 0.0
        %v8030 = vmax.f32 %v8014, 0.0
        %v8031 = vmax.f32 %v8019, 0.0
        %v8032 = vmax.f32 %v8022, 0.0
        %v8033 = vpack.c.bf16 %v8026, %v8025
        %v8034 = vpack.c.bf16 %v8028, %v8027
        %v8035 = vpack.c.bf16 %v8030, %v8029
        %v8036 = vpack.c.bf16 %v8032, %v8031
        %v8037 = vld [vmem:[%s12] sm:$0xf]
        %v8038 = vld [vmem:[%s12 + $0x4] sm:$0xf]
        %v8039 = vld [vmem:[%s12 + $0x8] sm:$0xf]
        %v8040 = vld [vmem:[%s12 + $0xc] sm:$0xf]
        %v8041 = vld [vmem:[%s12 + $0x10] sm:$0xf]
        %v8042 = vld [vmem:[%s12 + $0x14] sm:$0xf]
        %v8043 = vld [vmem:[%s12 + $0x18] sm:$0xf]
        %v8044 = vld [vmem:[%s12 + $0x1c] sm:$0xf]
        %v8045 = vld [vmem:[%s12 + $0x20] sm:$0xf]
        %v8046 = vld [vmem:[%s12 + $0x24] sm:$0xf]
        %v8047 = vld [vmem:[%s12 + $0x28] sm:$0xf]
        %v8048 = vld [vmem:[%s12 + $0x2c] sm:$0xf]
        %v8049 = vld [vmem:[%s12 + $0x30] sm:$0xf]
        %v8050 = vld [vmem:[%s12 + $0x34] sm:$0xf]
        %v8051 = vld [vmem:[%s12 + $0x38] sm:$0xf]
        %v8052 = vld [vmem:[%s12 + $0x3c] sm:$0xf]
        %v8053 = vld [vmem:[%s4 + $0xc] sm:$0x1]
        %v8055 = vlaneseq
        %v8056 = vshrl.u32 %v8055, 7
        %v8057 = vsub.s32 0, %v8056
        %v8058 = vrot.slane %v8053, %v8057
        %v8076 = vunpack.c.l.b16 %v8037
        %v8077 = vunpack.c.l.b16 %v8038
        %v8078 = vunpack.c.l.b16 %v8039
        %v8079 = vunpack.c.l.b16 %v8040
        %v8080 = vunpack.c.l.b16 %v8041
        %v8081 = vunpack.c.l.b16 %v8042
        %v8082 = vunpack.c.l.b16 %v8043
        %v8083 = vunpack.c.l.b16 %v8044
        %v8084 = vunpack.c.l.b16 %v8045
        %v8085 = vunpack.c.l.b16 %v8046
        %v8086 = vunpack.c.l.b16 %v8047
        %v8087 = vunpack.c.l.b16 %v8048
        %v8088 = vunpack.c.l.b16 %v8049
        %v8089 = vunpack.c.l.b16 %v8050
        %v8090 = vunpack.c.l.b16 %v8051
        %v8091 = vunpack.c.l.b16 %v8052
        %v8092 = vpack.c.b16 %v8077, %v8076
        %v8093 = vpack.c.b16 %v8079, %v8078
        %v8094 = vpack.c.b16 %v8081, %v8080
        %v8095 = vpack.c.b16 %v8083, %v8082
        %v8096 = vpack.c.b16 %v8085, %v8084
        %v8097 = vpack.c.b16 %v8087, %v8086
        %v8098 = vpack.c.b16 %v8089, %v8088
        %v8099 = vpack.c.b16 %v8091, %v8090
        %8108 = vmatprep.subr.bf16.mxu0 0
        %8109 = vmatpush1.bf16.msra.mxu0 %v8092
        %8110 = vmatprep.subr.bf16.mxu0 0
        %8111 = vmatpush1.bf16.msra.mxu0 %v8093
        %8112 = vmatprep.subr.bf16.mxu0 0
        %8113 = vmatpush1.bf16.msra.mxu0 %v8094
        %8114 = vmatprep.subr.bf16.mxu0 0
        %8115 = vmatpush1.bf16.msra.mxu0 %v8095
        %8116 = vmatprep.subr.bf16.mxu0 0
        %8117 = vmatpush1.bf16.msra.mxu0 %v8096
        %8118 = vmatprep.subr.bf16.mxu0 0
        %8119 = vmatpush1.bf16.msra.mxu0 %v8097
        %8120 = vmatprep.subr.bf16.mxu0 0
        %8121 = vmatpush1.bf16.msra.mxu0 %v8098
        %8122 = vmatprep.subr.bf16.mxu0 0
        %8123 = vmatpush1.bf16.msra.mxu0 %v8099
        %8124 = vmatprep.subr.bf16.mxu0 0
        %8125 = vmatpush1.bf16.msra.mxu0 0
        %8126 = vmatprep.subr.bf16.mxu0 0
        %8127 = vmatpush1.bf16.msra.mxu0 0
        %8128 = vmatprep.subr.bf16.mxu0 0
        %8129 = vmatpush1.bf16.msra.mxu0 0
        %8130 = vmatprep.subr.bf16.mxu0 0
        %8131 = vmatpush1.bf16.msra.mxu0 0
        %8132 = vmatprep.subr.bf16.mxu0 0
        %8133 = vmatpush1.bf16.msra.mxu0 0
        %8134 = vmatprep.subr.bf16.mxu0 0
        %8135 = vmatpush1.bf16.msra.mxu0 0
        %8136 = vmatprep.subr.bf16.mxu0 0
        %8137 = vmatpush1.bf16.msra.mxu0 0
        %8138 = vmatprep.subr.bf16.mxu0 0
        %8139 = vmatpush1.bf16.msra.mxu0 0
        %8140 = vmatprep.mubr.bf16.mxu0 0
        %8141 = vmatmul.mubr.bf16.gmra.mrb[0].mxu0 %v8033
        %v8142 = vpop.f32.mrb[0].mxu0
        %v8143 = vadd.f32 %v8058, %v8142
        %v8144 = vpop.f32.mrb[0].mxu0
        %v8145 = vpop.f32.mrb[0].mxu0
        %v8146 = vadd.f32 %v8058, %v8145
        %v8147 = vpop.f32.mrb[0].mxu0
        %8148 = vmatprep.mubr.bf16.mxu0 0
        %8149 = vmatmul.mubr.bf16.gmra.mrb[0].mxu0 %v8034
        %v8150 = vpop.f32.mrb[0].mxu0
        %v8151 = vadd.f32 %v8058, %v8150
        %v8152 = vpop.f32.mrb[0].mxu0
        %v8153 = vpop.f32.mrb[0].mxu0
        %v8154 = vadd.f32 %v8058, %v8153
        %v8155 = vpop.f32.mrb[0].mxu0
        %8156 = vmatprep.mubr.bf16.mxu0 0
        %8157 = vmatmul.mubr.bf16.gmra.mrb[0].mxu0 %v8035
        %v8158 = vpop.f32.mrb[0].mxu0
        %v8159 = vadd.f32 %v8058, %v8158
        %v8160 = vpop.f32.mrb[0].mxu0
        %v8161 = vpop.f32.mrb[0].mxu0
        %v8162 = vadd.f32 %v8058, %v8161
        %v8163 = vpop.f32.mrb[0].mxu0
        %8164 = vmatprep.mubr.bf16.mxu0 0
        %8165 = vmatmul.mubr.bf16.gmra.mrb[0].mxu0 %v8036
        %v8166 = vpop.f32.mrb[0].mxu0
        %v8167 = vadd.f32 %v8058, %v8166
        %v8168 = vpop.f32.mrb[0].mxu0
        %v8169 = vpop.f32.mrb[0].mxu0
        %v8170 = vadd.f32 %v8058, %v8169
        %v8171 = vpop.f32.mrb[0].mxu0
        %8172 = vdwg.mxu0
        %v8173 = vmax.f32 %v8143, 0.0
        %v8174 = vmax.f32 %v8146, 0.0
        %v8175 = vmax.f32 %v8151, 0.0
        %v8176 = vmax.f32 %v8154, 0.0
        %v8177 = vmax.f32 %v8159, 0.0
        %v8178 = vmax.f32 %v8162, 0.0
        %v8179 = vmax.f32 %v8167, 0.0
        %v8180 = vmax.f32 %v8170, 0.0
        %v8181 = vpack.c.bf16 %v8174, %v8173
        %v8182 = vpack.c.bf16 %v8176, %v8175
        %v8183 = vpack.c.bf16 %v8178, %v8177
        %v8184 = vpack.c.bf16 %v8180, %v8179
        %v8185 = vld [vmem:[%s13] sm:$0xf]
        %v8186 = vld [vmem:[%s13 + $0x4] sm:$0xf]
        %v8187 = vld [vmem:[%s13 + $0x8] sm:$0xf]
        %v8188 = vld [vmem:[%s13 + $0xc] sm:$0xf]
        %v8189 = vld [vmem:[%s13 + $0x10] sm:$0xf]
        %v8190 = vld [vmem:[%s13 + $0x14] sm:$0xf]
        %v8191 = vld [vmem:[%s13 + $0x18] sm:$0xf]
        %v8192 = vld [vmem:[%s13 + $0x1c] sm:$0xf]
        %v8201 = vunpack.c.l.b16 %v8185
        %v8202 = vunpack.c.l.b16 %v8186
        %v8203 = vunpack.c.l.b16 %v8187
        %v8204 = vunpack.c.l.b16 %v8188
        %v8205 = vunpack.c.l.b16 %v8189
        %v8206 = vunpack.c.l.b16 %v8190
        %v8207 = vunpack.c.l.b16 %v8191
        %v8208 = vunpack.c.l.b16 %v8192
        %v8209 = vpack.c.b16 %v8202, %v8201
        %v8210 = vpack.c.b16 %v8204, %v8203
        %v8211 = vpack.c.b16 %v8206, %v8205
        %v8212 = vpack.c.b16 %v8208, %v8207
        %8217 = vrot.lane.b32.xlu0 %v8058, 64
        %v8218 = vpop.permute.xlu0 %8217
        %v8221 = vsel %vm4474, %v8181, 0
        %v8224 = vsel %vm4474, %v8182, 0
        %v8227 = vsel %vm4474, %v8183, 0
        %v8230 = vsel %vm4474, %v8184, 0
        %8232 = vmatprep.subr.bf16.mxu0 0
        %8233 = vmatpush1.bf16.msra.mxu0 %v8209
        %8234 = vmatprep.subr.bf16.mxu0 0
        %8235 = vmatpush1.bf16.msra.mxu0 %v8210
        %8236 = vmatprep.subr.bf16.mxu0 0
        %8237 = vmatpush1.bf16.msra.mxu0 %v8211
        %8238 = vmatprep.subr.bf16.mxu0 0
        %8239 = vmatpush1.bf16.msra.mxu0 %v8212
        %8240 = vmatprep.subr.bf16.mxu0 0
        %8241 = vmatpush1.bf16.msra.mxu0 0
        %8242 = vmatprep.subr.bf16.mxu0 0
        %8243 = vmatpush1.bf16.msra.mxu0 0
        %8244 = vmatprep.subr.bf16.mxu0 0
        %8245 = vmatpush1.bf16.msra.mxu0 0
        %8246 = vmatprep.subr.bf16.mxu0 0
        %8247 = vmatpush1.bf16.msra.mxu0 0
        %8248 = vmatprep.subr.bf16.mxu0 0
        %8249 = vmatpush1.bf16.msra.mxu0 0
        %8250 = vmatprep.subr.bf16.mxu0 0
        %8251 = vmatpush1.bf16.msra.mxu0 0
        %8252 = vmatprep.subr.bf16.mxu0 0
        %8253 = vmatpush1.bf16.msra.mxu0 0
        %8254 = vmatprep.subr.bf16.mxu0 0
        %8255 = vmatpush1.bf16.msra.mxu0 0
        %8256 = vmatprep.subr.bf16.mxu0 0
        %8257 = vmatpush1.bf16.msra.mxu0 0
        %8258 = vmatprep.subr.bf16.mxu0 0
        %8259 = vmatpush1.bf16.msra.mxu0 0
        %8260 = vmatprep.subr.bf16.mxu0 0
        %8261 = vmatpush1.bf16.msra.mxu0 0
        %8262 = vmatprep.subr.bf16.mxu0 0
        %8263 = vmatpush1.bf16.msra.mxu0 0
        %8264 = vmatprep.mubr.bf16.mxu0 0
        %8265 = vmatmul.mubr.bf16.gmra.mrb[0].mxu0 %v8221
        %v8266 = vpop.f32.mrb[0].mxu0
        %v8267 = vadd.f32 %v8218, %v8266
        %v8268 = vpop.f32.mrb[0].mxu0
        %v8269 = vpop.f32.mrb[0].mxu0
        %v8270 = vadd.f32 %v8218, %v8269
        %v8271 = vpop.f32.mrb[0].mxu0
        %8272 = vmatprep.mubr.bf16.mxu0 0
        %8273 = vmatmul.mubr.bf16.gmra.mrb[0].mxu0 %v8224
        %v8274 = vpop.f32.mrb[0].mxu0
        %v8275 = vadd.f32 %v8218, %v8274
        %v8276 = vpop.f32.mrb[0].mxu0
        %v8277 = vpop.f32.mrb[0].mxu0
        %v8278 = vadd.f32 %v8218, %v8277
        %v8279 = vpop.f32.mrb[0].mxu0
        %8280 = vmatprep.mubr.bf16.mxu0 0
        %8281 = vmatmul.mubr.bf16.gmra.mrb[0].mxu0 %v8227
        %v8282 = vpop.f32.mrb[0].mxu0
        %v8283 = vadd.f32 %v8218, %v8282
        %v8284 = vpop.f32.mrb[0].mxu0
        %v8285 = vpop.f32.mrb[0].mxu0
        %v8286 = vadd.f32 %v8218, %v8285
        %v8287 = vpop.f32.mrb[0].mxu0
        %8288 = vmatprep.mubr.bf16.mxu0 0
        %8289 = vmatmul.mubr.bf16.gmra.mrb[0].mxu0 %v8230
        %v8290 = vpop.f32.mrb[0].mxu0
        %v8291 = vadd.f32 %v8218, %v8290
        %v8292 = vpop.f32.mrb[0].mxu0
        %v8293 = vpop.f32.mrb[0].mxu0
        %v8294 = vadd.f32 %v8218, %v8293
        %v8295 = vpop.f32.mrb[0].mxu0
        %8296 = vdwg.mxu0
        %v8297 = vxor.u32 %v8267, 2147483648
        %v8298 = vxor.u32 %v8270, 2147483648
        %v8299 = vxor.u32 %v8275, 2147483648
        %v8300 = vxor.u32 %v8278, 2147483648
        %v8301 = vxor.u32 %v8283, 2147483648
        %v8302 = vxor.u32 %v8286, 2147483648
        %v8303 = vxor.u32 %v8291, 2147483648
        %v8304 = vxor.u32 %v8294, 2147483648
        %v8305 = vmul.f32 %v8297, 1.442695
        %v8306 = vpow.pop %v8305
        %v8307 = vmul.f32 %v8298, 1.442695
        %v8308 = vpow.pop %v8307
        %v8309 = vmul.f32 %v8299, 1.442695
        %v8310 = vpow.pop %v8309
        %v8311 = vmul.f32 %v8300, 1.442695
        %v8312 = vpow.pop %v8311
        %v8313 = vmul.f32 %v8301, 1.442695
        %v8314 = vpow.pop %v8313
        %v8315 = vmul.f32 %v8302, 1.442695
        %v8316 = vpow.pop %v8315
        %v8317 = vmul.f32 %v8303, 1.442695
        %v8318 = vpow.pop %v8317
        %v8319 = vmul.f32 %v8304, 1.442695
        %v8320 = vpow.pop %v8319
        %v8321 = vadd.f32 %v8306, 1.0
        %v8322 = vadd.f32 %v8308, 1.0
        %v8323 = vadd.f32 %v8310, 1.0
        %v8324 = vadd.f32 %v8312, 1.0
        %v8325 = vadd.f32 %v8314, 1.0
        %v8326 = vadd.f32 %v8316, 1.0
        %v8327 = vadd.f32 %v8318, 1.0
        %v8328 = vadd.f32 %v8320, 1.0
        %v8329 = vrcp.pop %v8321
        %v8330 = vmul.f32 1.0, %v8329
        %v8331 = vrcp.pop %v8322
        %v8332 = vmul.f32 1.0, %v8331
        %v8333 = vrcp.pop %v8323
        %v8334 = vmul.f32 1.0, %v8333
        %v8335 = vrcp.pop %v8324
        %v8336 = vmul.f32 1.0, %v8335
        %v8337 = vrcp.pop %v8325
        %v8338 = vmul.f32 1.0, %v8337
        %v8339 = vrcp.pop %v8326
        %v8340 = vmul.f32 1.0, %v8339
        %v8341 = vrcp.pop %v8327
        %v8342 = vmul.f32 1.0, %v8341
        %v8343 = vrcp.pop %v8328
        %v8344 = vmul.f32 1.0, %v8343
        %vm8345 = vcmask 7168
        %8346 = vst.msk [vmem:[%s530] sm:$0xff] %vm8345, %v8330
        %8347 = vst.msk [vmem:[%s530 + $0x8] sm:$0xff] %vm8345, %v8332
        %8348 = vst.msk [vmem:[%s530 + $0x10] sm:$0xff] %vm8345, %v8334
        %8349 = vst.msk [vmem:[%s530 + $0x18] sm:$0xff] %vm8345, %v8336
        %8350 = vst.msk [vmem:[%s530 + $0x20] sm:$0xff] %vm8345, %v8338
        %8351 = vst.msk [vmem:[%s530 + $0x28] sm:$0xff] %vm8345, %v8340
        %8352 = vst.msk [vmem:[%s530 + $0x30] sm:$0xff] %vm8345, %v8342
        %8353 = vst.msk [vmem:[%s530 + $0x38] sm:$0xff] %vm8345, %v8344
        %s8354 = smul.u32 8, %s26
        %p8355 = scmp.lt.s32.totalorder %s8354, 15
        %s8356 = scalar_select %p8355, %s8354, 15
        %s8357 = smul.addr %s8356, 8
        %s8358 = scalar_lea.vmem %s14, %s8357
        // Predicated region
        $region81: #{whitebox_attack_forward.1} parent=75 // pred_check
          %p8359 = pneg %p353
        $region82: #{whitebox_attack_forward.1} parent=75 // pred_check_branch
          %8361 = sbr.rel (%p8359) target = $region84
        $region83: #{whitebox_attack_forward.1} parent=75 // pred_region
          %s8362 = smul.u32 8, %s26
        $region84: #{whitebox_attack_forward.1} parent=75 // pred_fallthru
          _
      $region76: #{whitebox_attack_forward.1} parent=5 // pred_fallthru
        _
      %p8363 = scmp.le.s32.totalorder 2, %s21
      // Predicated region
      $region85: #{whitebox_attack_forward.1} parent=5 // pred_check
        %p8364 = pneg %p8363
      $region86: #{whitebox_attack_forward.1} parent=5 // pred_check_branch
        %8366 = sbr.rel (%p8364) target = $region88
      $region87: #{whitebox_attack_forward.1} parent=5 // pred_region
        %s8367 = ssub.s32 %s21, 2
        // Predicated region
        $region89: #{whitebox_attack_forward.1} parent=87 // pred_check
          %p8368 = pneg %p359
        $region90: #{whitebox_attack_forward.1} parent=87 // pred_check_branch
          %8370 = sbr.rel (%p8368) target = $region92
        $region91: #{whitebox_attack_forward.1} parent=87 // pred_region
          %s8371 = smul.u32 8, %s27
          %p8372 = scmp.lt.s32.totalorder %s8371, 15
          %s8373 = scalar_select %p8372, %s8371, 15
          %s8374 = smul.addr %s8373, 8
          %s8375 = scalar_lea.vmem %s14, %s8374
        $region92: #{whitebox_attack_forward.1} parent=87 // pred_fallthru
          _
      $region88: #{whitebox_attack_forward.1} parent=5 // pred_fallthru
        _
    $region6: #{whitebox_attack_forward.1} parent=1 // loop_footer
      %s25 = sadd.s32 1, %s21
    $region7: #{whitebox_attack_forward.1} parent=1 // loop_footer_branch
      %20 = sbr.rel target = $region3
    $region8: #{whitebox_attack_forward.1} parent=1 // loop_exit
      _
    %8376 = vsyncpa [#allocation6], 1
    %s8377 = scalar_lea.sflag [#allocation6], 1
    %8378 = vsyncpa %s8377, 1

</llo_original>
